<compile_context>
chip_gen: v7x
topology: tpu7x:2x2x1
jax: 0.10.0
libtpu: 0.0.40
codegen_flags: <defaults>
</compile_context>

<pallas_src>
import jax
import jax.numpy as jnp
import numpy as np
from jax import lax
from jax.experimental import pallas as pl
from jax.experimental.pallas import tpu as pltpu

_LANE = 128
_SUBLANE = 8


def _round_up(v, m):
    return ((v + m - 1) // m) * m


def resblock_kernel(x_ref, w1_ref, b1_ref, w2_ref, b2_ref, out_ref, pad_ref):
    # x_ref:   (Nb, H, W, Cp)  f32   input block (also the residual)
    # w1_ref:  (9, Cp, Cp)     bf16  conv1 weights, tap-major (dy*3 + dx)
    # b1_ref:  (1, Cp)         f32
    # w2_ref:  (9, Cp, Cp)     bf16
    # b2_ref:  (1, Cp)         f32
    # out_ref: (Nb, H, W, Cp)  f32
    # pad_ref: (H+2, Wrow, Cp) bf16  persistent padded-activation scratch,
    #          Wrow = round_up(W+2, 8)
    Nb, H, W, Cp = x_ref.shape
    Wrow = pad_ref.shape[1]
    HW = H * W
    dt = pad_ref.dtype

    def fill_interior(rows_hwc):
        # One full-width contiguous store: interior + left/right halo columns.
        lpad = jnp.zeros((H, 1, Cp), dt)
        rpad = jnp.zeros((H, Wrow - W - 1, Cp), dt)
        pad_ref[1:H + 1, :, :] = jnp.concatenate(
            [lpad, rows_hwc.astype(dt), rpad], axis=1)

    def conv3x3_relu(w_ref, b_ref):
        # Shift-and-accumulate: 9 MXU matmuls (K = Cp each), f32 accumulation.
        acc = None
        for dy in range(3):
            for dx in range(3):
                win = pad_ref[dy:dy + H, dx:dx + W, :].reshape(HW, Cp)
                part = jnp.dot(win, w_ref[dy * 3 + dx],
                               preferred_element_type=jnp.float32)
                acc = part if acc is None else acc + part
        return jnp.maximum(acc + b_ref[...], 0.0)            # (HW, Cp) f32

    # Top / bottom halo rows: the only scratch rows not fully overwritten
    # below.  Two contiguous full-width stores per grid step (cheap, and safe
    # under v7x per-core scratches -- do NOT gate on program_id == 0).
    zrow = jnp.zeros((1, Wrow, Cp), dt)
    pad_ref[0:1, :, :] = zrow
    pad_ref[H + 1:H + 2, :, :] = zrow

    for n in range(Nb):                                       # static unroll
        # ---- conv1 + ReLU (bf16 cast happens at the pad store) ----
        fill_interior(x_ref[n])
        y1 = conv3x3_relu(w1_ref, b1_ref)
        # ---- conv2 + ReLU (re-stage intermediate in the same scratch) ----
        fill_interior(y1.reshape(H, W, Cp))
        y2 = conv3x3_relu(w2_ref, b2_ref)
        # ---- residual add in f32, input re-read from the ref at use site ----
        out_ref[n] = (y2.reshape(H, W, Cp) + x_ref[n]).astype(out_ref.dtype)


def _images_per_step(N):
    # Batch small images per grid step to amortize per-step overhead while
    # keeping >= 2 grid steps so v7x can shard the batch across its two cores.
    best = 1
    for nb in range(1, min(N, 8) + 1):
        if N % nb == 0 and N // nb >= 2:
            best = nb
    return best


def resblock_pallas(x, w1, b1, w2, b2, *, compute_dtype=jnp.bfloat16,
                    images_per_step=None):
    """x: (N, H, W, C) f32; w*: (3, 3, Cin, Cout) HWIO; b*: (1, Cout) or (Cout,).

    Requires Cin == Cout (residual add), as in the PyTorch forward.
    """
    N, H, W, C = x.shape
    Cp = _round_up(C, _LANE)          # lane-dense channel count
    pad_c = Cp - C
    Wrow = _round_up(W + 2, _SUBLANE)  # sublane-aligned padded width
    Nb = images_per_step or _images_per_step(N)
    assert N % Nb == 0, "images_per_step must divide N"

    # Channel padding only (free when C is already a multiple of 128).
    xp = jnp.pad(x, ((0, 0), (0, 0), (0, 0), (0, pad_c))) if pad_c else x

    def prep_w(w):
        wp = jnp.pad(w, ((0, 0), (0, 0), (0, pad_c), (0, pad_c))) if pad_c else w
        return wp.reshape(9, Cp, Cp).astype(compute_dtype)   # tap-major

    def prep_b(b):
        b = b.reshape(1, C)
        bp = jnp.pad(b, ((0, 0), (0, pad_c))) if pad_c else b
        return bp.astype(jnp.float32)

    w1m, w2m = prep_w(w1), prep_w(w2)
    b1p, b2p = prep_b(b1), prep_b(b2)

    out_p = pl.pallas_call(
        resblock_kernel,
        out_shape=jax.ShapeDtypeStruct((N, H, W, Cp), x.dtype),
        grid=(N // Nb,),
        in_specs=[
            pl.BlockSpec((Nb, H, W, Cp), lambda n: (n, 0, 0, 0)),
            pl.BlockSpec((9, Cp, Cp), lambda n: (0, 0, 0)),
            pl.BlockSpec((1, Cp), lambda n: (0, 0)),
            pl.BlockSpec((9, Cp, Cp), lambda n: (0, 0, 0)),
            pl.BlockSpec((1, Cp), lambda n: (0, 0)),
        ],
        out_specs=pl.BlockSpec((Nb, H, W, Cp), lambda n: (n, 0, 0, 0)),
        scratch_shapes=[
            pltpu.VMEM((H + 2, Wrow, Cp), compute_dtype),   # padded activations
        ],
        compiler_params=pltpu.CompilerParams(
            dimension_semantics=("parallel",)),
    )(xp, w1m, b1p, w2m, b2p)

    return out_p[..., :C] if pad_c else out_p


def resblock_reference(x, w1, b1, w2, b2):
    """Pure-JAX reference (NHWC / HWIO), same semantics as the PyTorch module."""
    dn = ('NHWC', 'HWIO', 'NHWC')
    y = lax.conv_general_dilated(x, w1, window_strides=(1, 1), padding='SAME',
                                 dimension_numbers=dn,
                                 precision=lax.Precision.HIGHEST)
    y = jnp.maximum(y + b1.reshape(1, 1, 1, -1), 0.0)
    y = lax.conv_general_dilated(y, w2, window_strides=(1, 1), padding='SAME',
                                 dimension_numbers=dn,
                                 precision=lax.Precision.HIGHEST)
    y = jnp.maximum(y + b2.reshape(1, 1, 1, -1), 0.0)
    return y + x


if __name__ == "__main__":
    # Residual add requires in_channel == out_channel (as in the PyTorch forward).
    N, H, W, C = 2, 16, 16, 4

    key = jax.random.PRNGKey(0)
    kx, kw1, kb1, kw2, kb2 = jax.random.split(key, 5)

    x = jax.random.normal(kx, (N, H, W, C), jnp.float32)
    fan_in = 3 * 3 * C
    w1 = jax.random.normal(kw1, (3, 3, C, C), jnp.float32) / np.sqrt(fan_in)
    b1 = jax.random.normal(kb1, (1, C), jnp.float32) * 0.01
    w2 = jax.random.normal(kw2, (3, 3, C, C), jnp.float32) / np.sqrt(fan_in)
    b2 = jax.random.normal(kb2, (1, C), jnp.float32) * 0.01

    out = jax.block_until_ready(resblock_pallas(x, w1, b1, w2, b2))
    ref = jax.block_until_ready(resblock_reference(x, w1, b1, w2, b2))

    # Kernel uses bf16 matmul inputs with f32 accumulation -> bf16-level tolerance.
    np.testing.assert_allclose(np.asarray(out), np.asarray(ref),
                               rtol=5e-2, atol=5e-2)

    print("KERNEL_OK")
</pallas_src>

<mosaic_0001>
module attributes {stable_mosaic.version = 11 : i64} {
  func.func @resblock_kernel(%arg0: i32, %arg1: memref<1x16x16x128xf32, #tpu.memory_space<vmem>>, %arg2: memref<9x128x128xbf16, #tpu.memory_space<vmem>>, %arg3: memref<1x128xf32, #tpu.memory_space<vmem>>, %arg4: memref<9x128x128xbf16, #tpu.memory_space<vmem>>, %arg5: memref<1x128xf32, #tpu.memory_space<vmem>>, %arg6: memref<1x16x16x128xf32, #tpu.memory_space<vmem>>, %arg7: memref<18x24x128xbf16, #tpu.memory_space<vmem>>) attributes {dimension_semantics = [#tpu.dimension_semantics<parallel>], iteration_bounds = array<i64: 2>, scalar_prefetch = 0 : i64, scratch_operands = 1 : i64, tpu.core_type = #tpu.core_type<tc>, window_params = [{transform_indices = @transform_0, window_bounds = array<i64: 1, 16, 16, 128>}, {pipeline_mode = #tpu.pipeline_mode<synchronous>, transform_indices = @transform_1, window_bounds = array<i64: 9, 128, 128>}, {pipeline_mode = #tpu.pipeline_mode<synchronous>, transform_indices = @transform_2, window_bounds = array<i64: 1, 128>}, {pipeline_mode = #tpu.pipeline_mode<synchronous>, transform_indices = @transform_3, window_bounds = array<i64: 9, 128, 128>}, {pipeline_mode = #tpu.pipeline_mode<synchronous>, transform_indices = @transform_4, window_bounds = array<i64: 1, 128>}, {transform_indices = @transform_5, window_bounds = array<i64: 1, 16, 16, 128>}]} {
    %cst = arith.constant 0.000000e+00 : bf16
    %0 = vector.broadcast %cst : bf16 to vector<1x24x128xbf16>
    %c0 = arith.constant 0 : index
    %c0_0 = arith.constant 0 : index
    %c0_1 = arith.constant 0 : index
    %1 = vector.load %arg7[%c0, %c0_0, %c0_1] : memref<18x24x128xbf16, #tpu.memory_space<vmem>>, vector<1x24x128xbf16>
    tpu.vector_store %arg7[%c0, %c0_0, %c0_1], %0 {strides = array<i32>} : memref<18x24x128xbf16, #tpu.memory_space<vmem>>, vector<1x24x128xbf16>,
    %c17 = arith.constant 17 : index
    %c0_2 = arith.constant 0 : index
    %c0_3 = arith.constant 0 : index
    %2 = vector.load %arg7[%c17, %c0_2, %c0_3] : memref<18x24x128xbf16, #tpu.memory_space<vmem>>, vector<1x24x128xbf16>
    tpu.vector_store %arg7[%c17, %c0_2, %c0_3], %0 {strides = array<i32>} : memref<18x24x128xbf16, #tpu.memory_space<vmem>>, vector<1x24x128xbf16>,
    %c0_4 = arith.constant 0 : index
    %c0_5 = arith.constant 0 : index
    %c0_6 = arith.constant 0 : index
    %c0_7 = arith.constant 0 : index
    %3 = vector.load %arg1[%c0_4, %c0_5, %c0_6, %c0_7] : memref<1x16x16x128xf32, #tpu.memory_space<vmem>>, vector<1x16x16x128xf32>
    %4 = vector.shape_cast %3 : vector<1x16x16x128xf32> to vector<16x16x128xf32>
    %cst_8 = arith.constant 0.000000e+00 : bf16
    %5 = vector.broadcast %cst_8 : bf16 to vector<16x1x128xbf16>
    %cst_9 = arith.constant 0.000000e+00 : bf16
    %6 = vector.broadcast %cst_9 : bf16 to vector<16x7x128xbf16>
    %7 = arith.truncf %4 : vector<16x16x128xf32> to vector<16x16x128xbf16>
    %8 = tpu.concatenate %5, %7, %6 in 1 : vector<16x1x128xbf16>, vector<16x16x128xbf16>, vector<16x7x128xbf16> -> vector<16x24x128xbf16>
    %c1 = arith.constant 1 : index
    %c0_10 = arith.constant 0 : index
    %c0_11 = arith.constant 0 : index
    %9 = vector.load %arg7[%c1, %c0_10, %c0_11] : memref<18x24x128xbf16, #tpu.memory_space<vmem>>, vector<16x24x128xbf16>
    tpu.vector_store %arg7[%c1, %c0_10, %c0_11], %8 {strides = array<i32>} : memref<18x24x128xbf16, #tpu.memory_space<vmem>>, vector<16x24x128xbf16>,
    %c0_12 = arith.constant 0 : index
    %c0_13 = arith.constant 0 : index
    %c0_14 = arith.constant 0 : index
    %10 = vector.load %arg7[%c0_12, %c0_13, %c0_14] : memref<18x24x128xbf16, #tpu.memory_space<vmem>>, vector<16x16x128xbf16>
    %11 = vector.shape_cast %10 : vector<16x16x128xbf16> to vector<256x128xbf16>
    %c0_15 = arith.constant 0 : index
    %c0_16 = arith.constant 0 : index
    %c0_17 = arith.constant 0 : index
    %12 = vector.load %arg2[%c0_15, %c0_16, %c0_17] : memref<9x128x128xbf16, #tpu.memory_space<vmem>>, vector<1x128x128xbf16>
    %13 = vector.shape_cast %12 : vector<1x128x128xbf16> to vector<128x128xbf16>
    %cst_18 = arith.constant dense<0.000000e+00> : vector<256x128xf32>
    %14 = tpu.matmul %11, %13, %cst_18 {dimension_numbers = #tpu.dot_dimension_numbers<[1], [0], [0], [1], [0, 0, 1, 1], [], []>} : vector<256x128xbf16>, vector<128x128xbf16>, vector<256x128xf32> -> vector<256x128xf32>
    %c0_19 = arith.constant 0 : index
    %c1_20 = arith.constant 1 : index
    %c0_21 = arith.constant 0 : index
    %15 = vector.load %arg7[%c0_19, %c1_20, %c0_21] : memref<18x24x128xbf16, #tpu.memory_space<vmem>>, vector<16x16x128xbf16>
    %16 = vector.shape_cast %15 : vector<16x16x128xbf16> to vector<256x128xbf16>
    %c1_22 = arith.constant 1 : index
    %c0_23 = arith.constant 0 : index
    %c0_24 = arith.constant 0 : index
    %17 = vector.load %arg2[%c1_22, %c0_23, %c0_24] : memref<9x128x128xbf16, #tpu.memory_space<vmem>>, vector<1x128x128xbf16>
    %18 = vector.shape_cast %17 : vector<1x128x128xbf16> to vector<128x128xbf16>
    %cst_25 = arith.constant dense<0.000000e+00> : vector<256x128xf32>
    %19 = tpu.matmul %16, %18, %cst_25 {dimension_numbers = #tpu.dot_dimension_numbers<[1], [0], [0], [1], [0, 0, 1, 1], [], []>} : vector<256x128xbf16>, vector<128x128xbf16>, vector<256x128xf32> -> vector<256x128xf32>
    %20 = arith.addf %14, %19 : vector<256x128xf32>
    %c0_26 = arith.constant 0 : index
    %c2 = arith.constant 2 : index
    %c0_27 = arith.constant 0 : index
    %21 = vector.load %arg7[%c0_26, %c2, %c0_27] : memref<18x24x128xbf16, #tpu.memory_space<vmem>>, vector<16x16x128xbf16>
    %22 = vector.shape_cast %21 : vector<16x16x128xbf16> to vector<256x128xbf16>
    %c2_28 = arith.constant 2 : index
    %c0_29 = arith.constant 0 : index
    %c0_30 = arith.constant 0 : index
    %23 = vector.load %arg2[%c2_28, %c0_29, %c0_30] : memref<9x128x128xbf16, #tpu.memory_space<vmem>>, vector<1x128x128xbf16>
    %24 = vector.shape_cast %23 : vector<1x128x128xbf16> to vector<128x128xbf16>
    %cst_31 = arith.constant dense<0.000000e+00> : vector<256x128xf32>
    %25 = tpu.matmul %22, %24, %cst_31 {dimension_numbers = #tpu.dot_dimension_numbers<[1], [0], [0], [1], [0, 0, 1, 1], [], []>} : vector<256x128xbf16>, vector<128x128xbf16>, vector<256x128xf32> -> vector<256x128xf32>
    %26 = arith.addf %20, %25 : vector<256x128xf32>
    %c1_32 = arith.constant 1 : index
    %c0_33 = arith.constant 0 : index
    %c0_34 = arith.constant 0 : index
    %27 = vector.load %arg7[%c1_32, %c0_33, %c0_34] : memref<18x24x128xbf16, #tpu.memory_space<vmem>>, vector<16x16x128xbf16>
    %28 = vector.shape_cast %27 : vector<16x16x128xbf16> to vector<256x128xbf16>
    %c3 = arith.constant 3 : index
    %c0_35 = arith.constant 0 : index
    %c0_36 = arith.constant 0 : index
    %29 = vector.load %arg2[%c3, %c0_35, %c0_36] : memref<9x128x128xbf16, #tpu.memory_space<vmem>>, vector<1x128x128xbf16>
    %30 = vector.shape_cast %29 : vector<1x128x128xbf16> to vector<128x128xbf16>
    %cst_37 = arith.constant dense<0.000000e+00> : vector<256x128xf32>
    %31 = tpu.matmul %28, %30, %cst_37 {dimension_numbers = #tpu.dot_dimension_numbers<[1], [0], [0], [1], [0, 0, 1, 1], [], []>} : vector<256x128xbf16>, vector<128x128xbf16>, vector<256x128xf32> -> vector<256x128xf32>
    %32 = arith.addf %26, %31 : vector<256x128xf32>
    %c1_38 = arith.constant 1 : index
    %c1_39 = arith.constant 1 : index
    %c0_40 = arith.constant 0 : index
    %33 = vector.load %arg7[%c1_38, %c1_39, %c0_40] : memref<18x24x128xbf16, #tpu.memory_space<vmem>>, vector<16x16x128xbf16>
    %34 = vector.shape_cast %33 : vector<16x16x128xbf16> to vector<256x128xbf16>
    %c4 = arith.constant 4 : index
    %c0_41 = arith.constant 0 : index
    %c0_42 = arith.constant 0 : index
    %35 = vector.load %arg2[%c4, %c0_41, %c0_42] : memref<9x128x128xbf16, #tpu.memory_space<vmem>>, vector<1x128x128xbf16>
    %36 = vector.shape_cast %35 : vector<1x128x128xbf16> to vector<128x128xbf16>
    %cst_43 = arith.constant dense<0.000000e+00> : vector<256x128xf32>
    %37 = tpu.matmul %34, %36, %cst_43 {dimension_numbers = #tpu.dot_dimension_numbers<[1], [0], [0], [1], [0, 0, 1, 1], [], []>} : vector<256x128xbf16>, vector<128x128xbf16>, vector<256x128xf32> -> vector<256x128xf32>
    %38 = arith.addf %32, %37 : vector<256x128xf32>
    %c1_44 = arith.constant 1 : index
    %c2_45 = arith.constant 2 : index
    %c0_46 = arith.constant 0 : index
    %39 = vector.load %arg7[%c1_44, %c2_45, %c0_46] : memref<18x24x128xbf16, #tpu.memory_space<vmem>>, vector<16x16x128xbf16>
    %40 = vector.shape_cast %39 : vector<16x16x128xbf16> to vector<256x128xbf16>
    %c5 = arith.constant 5 : index
    %c0_47 = arith.constant 0 : index
    %c0_48 = arith.constant 0 : index
    %41 = vector.load %arg2[%c5, %c0_47, %c0_48] : memref<9x128x128xbf16, #tpu.memory_space<vmem>>, vector<1x128x128xbf16>
    %42 = vector.shape_cast %41 : vector<1x128x128xbf16> to vector<128x128xbf16>
    %cst_49 = arith.constant dense<0.000000e+00> : vector<256x128xf32>
    %43 = tpu.matmul %40, %42, %cst_49 {dimension_numbers = #tpu.dot_dimension_numbers<[1], [0], [0], [1], [0, 0, 1, 1], [], []>} : vector<256x128xbf16>, vector<128x128xbf16>, vector<256x128xf32> -> vector<256x128xf32>
    %44 = arith.addf %38, %43 : vector<256x128xf32>
    %c2_50 = arith.constant 2 : index
    %c0_51 = arith.constant 0 : index
    %c0_52 = arith.constant 0 : index
    %45 = vector.load %arg7[%c2_50, %c0_51, %c0_52] : memref<18x24x128xbf16, #tpu.memory_space<vmem>>, vector<16x16x128xbf16>
    %46 = vector.shape_cast %45 : vector<16x16x128xbf16> to vector<256x128xbf16>
    %c6 = arith.constant 6 : index
    %c0_53 = arith.constant 0 : index
    %c0_54 = arith.constant 0 : index
    %47 = vector.load %arg2[%c6, %c0_53, %c0_54] : memref<9x128x128xbf16, #tpu.memory_space<vmem>>, vector<1x128x128xbf16>
    %48 = vector.shape_cast %47 : vector<1x128x128xbf16> to vector<128x128xbf16>
    %cst_55 = arith.constant dense<0.000000e+00> : vector<256x128xf32>
    %49 = tpu.matmul %46, %48, %cst_55 {dimension_numbers = #tpu.dot_dimension_numbers<[1], [0], [0], [1], [0, 0, 1, 1], [], []>} : vector<256x128xbf16>, vector<128x128xbf16>, vector<256x128xf32> -> vector<256x128xf32>
    %50 = arith.addf %44, %49 : vector<256x128xf32>
    %c2_56 = arith.constant 2 : index
    %c1_57 = arith.constant 1 : index
    %c0_58 = arith.constant 0 : index
    %51 = vector.load %arg7[%c2_56, %c1_57, %c0_58] : memref<18x24x128xbf16, #tpu.memory_space<vmem>>, vector<16x16x128xbf16>
    %52 = vector.shape_cast %51 : vector<16x16x128xbf16> to vector<256x128xbf16>
    %c7 = arith.constant 7 : index
    %c0_59 = arith.constant 0 : index
    %c0_60 = arith.constant 0 : index
    %53 = vector.load %arg2[%c7, %c0_59, %c0_60] : memref<9x128x128xbf16, #tpu.memory_space<vmem>>, vector<1x128x128xbf16>
    %54 = vector.shape_cast %53 : vector<1x128x128xbf16> to vector<128x128xbf16>
    %cst_61 = arith.constant dense<0.000000e+00> : vector<256x128xf32>
    %55 = tpu.matmul %52, %54, %cst_61 {dimension_numbers = #tpu.dot_dimension_numbers<[1], [0], [0], [1], [0, 0, 1, 1], [], []>} : vector<256x128xbf16>, vector<128x128xbf16>, vector<256x128xf32> -> vector<256x128xf32>
    %56 = arith.addf %50, %55 : vector<256x128xf32>
    %c2_62 = arith.constant 2 : index
    %c2_63 = arith.constant 2 : index
    %c0_64 = arith.constant 0 : index
    %57 = vector.load %arg7[%c2_62, %c2_63, %c0_64] : memref<18x24x128xbf16, #tpu.memory_space<vmem>>, vector<16x16x128xbf16>
    %58 = vector.shape_cast %57 : vector<16x16x128xbf16> to vector<256x128xbf16>
    %c8 = arith.constant 8 : index
    %c0_65 = arith.constant 0 : index
    %c0_66 = arith.constant 0 : index
    %59 = vector.load %arg2[%c8, %c0_65, %c0_66] : memref<9x128x128xbf16, #tpu.memory_space<vmem>>, vector<1x128x128xbf16>
    %60 = vector.shape_cast %59 : vector<1x128x128xbf16> to vector<128x128xbf16>
    %cst_67 = arith.constant dense<0.000000e+00> : vector<256x128xf32>
    %61 = tpu.matmul %58, %60, %cst_67 {dimension_numbers = #tpu.dot_dimension_numbers<[1], [0], [0], [1], [0, 0, 1, 1], [], []>} : vector<256x128xbf16>, vector<128x128xbf16>, vector<256x128xf32> -> vector<256x128xf32>
    %62 = arith.addf %56, %61 : vector<256x128xf32>
    %c0_68 = arith.constant 0 : index
    %c0_69 = arith.constant 0 : index
    %63 = vector.load %arg3[%c0_68, %c0_69] : memref<1x128xf32, #tpu.memory_space<vmem>>, vector<1x128xf32>
    %64 = vector.broadcast %63 : vector<1x128xf32> to vector<256x128xf32>
    %65 = arith.addf %62, %64 : vector<256x128xf32>
    %cst_70 = arith.constant 0.000000e+00 : f32
    %66 = vector.broadcast %cst_70 : f32 to vector<256x128xf32>
    %67 = arith.maximumf %65, %66 : vector<256x128xf32>
    %68 = vector.shape_cast %67 : vector<256x128xf32> to vector<16x16x128xf32>
    %cst_71 = arith.constant 0.000000e+00 : bf16
    %69 = vector.broadcast %cst_71 : bf16 to vector<16x1x128xbf16>
    %cst_72 = arith.constant 0.000000e+00 : bf16
    %70 = vector.broadcast %cst_72 : bf16 to vector<16x7x128xbf16>
    %71 = arith.truncf %68 : vector<16x16x128xf32> to vector<16x16x128xbf16>
    %72 = tpu.concatenate %69, %71, %70 in 1 : vector<16x1x128xbf16>, vector<16x16x128xbf16>, vector<16x7x128xbf16> -> vector<16x24x128xbf16>
    %c1_73 = arith.constant 1 : index
    %c0_74 = arith.constant 0 : index
    %c0_75 = arith.constant 0 : index
    %73 = vector.load %arg7[%c1_73, %c0_74, %c0_75] : memref<18x24x128xbf16, #tpu.memory_space<vmem>>, vector<16x24x128xbf16>
    tpu.vector_store %arg7[%c1_73, %c0_74, %c0_75], %72 {strides = array<i32>} : memref<18x24x128xbf16, #tpu.memory_space<vmem>>, vector<16x24x128xbf16>,
    %c0_76 = arith.constant 0 : index
    %c0_77 = arith.constant 0 : index
    %c0_78 = arith.constant 0 : index
    %74 = vector.load %arg7[%c0_76, %c0_77, %c0_78] : memref<18x24x128xbf16, #tpu.memory_space<vmem>>, vector<16x16x128xbf16>
    %75 = vector.shape_cast %74 : vector<16x16x128xbf16> to vector<256x128xbf16>
    %c0_79 = arith.constant 0 : index
    %c0_80 = arith.constant 0 : index
    %c0_81 = arith.constant 0 : index
    %76 = vector.load %arg4[%c0_79, %c0_80, %c0_81] : memref<9x128x128xbf16, #tpu.memory_space<vmem>>, vector<1x128x128xbf16>
    %77 = vector.shape_cast %76 : vector<1x128x128xbf16> to vector<128x128xbf16>
    %cst_82 = arith.constant dense<0.000000e+00> : vector<256x128xf32>
    %78 = tpu.matmul %75, %77, %cst_82 {dimension_numbers = #tpu.dot_dimension_numbers<[1], [0], [0], [1], [0, 0, 1, 1], [], []>} : vector<256x128xbf16>, vector<128x128xbf16>, vector<256x128xf32> -> vector<256x128xf32>
    %c0_83 = arith.constant 0 : index
    %c1_84 = arith.constant 1 : index
    %c0_85 = arith.constant 0 : index
    %79 = vector.load %arg7[%c0_83, %c1_84, %c0_85] : memref<18x24x128xbf16, #tpu.memory_space<vmem>>, vector<16x16x128xbf16>
    %80 = vector.shape_cast %79 : vector<16x16x128xbf16> to vector<256x128xbf16>
    %c1_86 = arith.constant 1 : index
    %c0_87 = arith.constant 0 : index
    %c0_88 = arith.constant 0 : index
    %81 = vector.load %arg4[%c1_86, %c0_87, %c0_88] : memref<9x128x128xbf16, #tpu.memory_space<vmem>>, vector<1x128x128xbf16>
    %82 = vector.shape_cast %81 : vector<1x128x128xbf16> to vector<128x128xbf16>
    %cst_89 = arith.constant dense<0.000000e+00> : vector<256x128xf32>
    %83 = tpu.matmul %80, %82, %cst_89 {dimension_numbers = #tpu.dot_dimension_numbers<[1], [0], [0], [1], [0, 0, 1, 1], [], []>} : vector<256x128xbf16>, vector<128x128xbf16>, vector<256x128xf32> -> vector<256x128xf32>
    %84 = arith.addf %78, %83 : vector<256x128xf32>
    %c0_90 = arith.constant 0 : index
    %c2_91 = arith.constant 2 : index
    %c0_92 = arith.constant 0 : index
    %85 = vector.load %arg7[%c0_90, %c2_91, %c0_92] : memref<18x24x128xbf16, #tpu.memory_space<vmem>>, vector<16x16x128xbf16>
    %86 = vector.shape_cast %85 : vector<16x16x128xbf16> to vector<256x128xbf16>
    %c2_93 = arith.constant 2 : index
    %c0_94 = arith.constant 0 : index
    %c0_95 = arith.constant 0 : index
    %87 = vector.load %arg4[%c2_93, %c0_94, %c0_95] : memref<9x128x128xbf16, #tpu.memory_space<vmem>>, vector<1x128x128xbf16>
    %88 = vector.shape_cast %87 : vector<1x128x128xbf16> to vector<128x128xbf16>
    %cst_96 = arith.constant dense<0.000000e+00> : vector<256x128xf32>
    %89 = tpu.matmul %86, %88, %cst_96 {dimension_numbers = #tpu.dot_dimension_numbers<[1], [0], [0], [1], [0, 0, 1, 1], [], []>} : vector<256x128xbf16>, vector<128x128xbf16>, vector<256x128xf32> -> vector<256x128xf32>
    %90 = arith.addf %84, %89 : vector<256x128xf32>
    %c1_97 = arith.constant 1 : index
    %c0_98 = arith.constant 0 : index
    %c0_99 = arith.constant 0 : index
    %91 = vector.load %arg7[%c1_97, %c0_98, %c0_99] : memref<18x24x128xbf16, #tpu.memory_space<vmem>>, vector<16x16x128xbf16>
    %92 = vector.shape_cast %91 : vector<16x16x128xbf16> to vector<256x128xbf16>
    %c3_100 = arith.constant 3 : index
    %c0_101 = arith.constant 0 : index
    %c0_102 = arith.constant 0 : index
    %93 = vector.load %arg4[%c3_100, %c0_101, %c0_102] : memref<9x128x128xbf16, #tpu.memory_space<vmem>>, vector<1x128x128xbf16>
    %94 = vector.shape_cast %93 : vector<1x128x128xbf16> to vector<128x128xbf16>
    %cst_103 = arith.constant dense<0.000000e+00> : vector<256x128xf32>
    %95 = tpu.matmul %92, %94, %cst_103 {dimension_numbers = #tpu.dot_dimension_numbers<[1], [0], [0], [1], [0, 0, 1, 1], [], []>} : vector<256x128xbf16>, vector<128x128xbf16>, vector<256x128xf32> -> vector<256x128xf32>
    %96 = arith.addf %90, %95 : vector<256x128xf32>
    %c1_104 = arith.constant 1 : index
    %c1_105 = arith.constant 1 : index
    %c0_106 = arith.constant 0 : index
    %97 = vector.load %arg7[%c1_104, %c1_105, %c0_106] : memref<18x24x128xbf16, #tpu.memory_space<vmem>>, vector<16x16x128xbf16>
    %98 = vector.shape_cast %97 : vector<16x16x128xbf16> to vector<256x128xbf16>
    %c4_107 = arith.constant 4 : index
    %c0_108 = arith.constant 0 : index
    %c0_109 = arith.constant 0 : index
    %99 = vector.load %arg4[%c4_107, %c0_108, %c0_109] : memref<9x128x128xbf16, #tpu.memory_space<vmem>>, vector<1x128x128xbf16>
    %100 = vector.shape_cast %99 : vector<1x128x128xbf16> to vector<128x128xbf16>
    %cst_110 = arith.constant dense<0.000000e+00> : vector<256x128xf32>
    %101 = tpu.matmul %98, %100, %cst_110 {dimension_numbers = #tpu.dot_dimension_numbers<[1], [0], [0], [1], [0, 0, 1, 1], [], []>} : vector<256x128xbf16>, vector<128x128xbf16>, vector<256x128xf32> -> vector<256x128xf32>
    %102 = arith.addf %96, %101 : vector<256x128xf32>
    %c1_111 = arith.constant 1 : index
    %c2_112 = arith.constant 2 : index
    %c0_113 = arith.constant 0 : index
    %103 = vector.load %arg7[%c1_111, %c2_112, %c0_113] : memref<18x24x128xbf16, #tpu.memory_space<vmem>>, vector<16x16x128xbf16>
    %104 = vector.shape_cast %103 : vector<16x16x128xbf16> to vector<256x128xbf16>
    %c5_114 = arith.constant 5 : index
    %c0_115 = arith.constant 0 : index
    %c0_116 = arith.constant 0 : index
    %105 = vector.load %arg4[%c5_114, %c0_115, %c0_116] : memref<9x128x128xbf16, #tpu.memory_space<vmem>>, vector<1x128x128xbf16>
    %106 = vector.shape_cast %105 : vector<1x128x128xbf16> to vector<128x128xbf16>
    %cst_117 = arith.constant dense<0.000000e+00> : vector<256x128xf32>
    %107 = tpu.matmul %104, %106, %cst_117 {dimension_numbers = #tpu.dot_dimension_numbers<[1], [0], [0], [1], [0, 0, 1, 1], [], []>} : vector<256x128xbf16>, vector<128x128xbf16>, vector<256x128xf32> -> vector<256x128xf32>
    %108 = arith.addf %102, %107 : vector<256x128xf32>
    %c2_118 = arith.constant 2 : index
    %c0_119 = arith.constant 0 : index
    %c0_120 = arith.constant 0 : index
    %109 = vector.load %arg7[%c2_118, %c0_119, %c0_120] : memref<18x24x128xbf16, #tpu.memory_space<vmem>>, vector<16x16x128xbf16>
    %110 = vector.shape_cast %109 : vector<16x16x128xbf16> to vector<256x128xbf16>
    %c6_121 = arith.constant 6 : index
    %c0_122 = arith.constant 0 : index
    %c0_123 = arith.constant 0 : index
    %111 = vector.load %arg4[%c6_121, %c0_122, %c0_123] : memref<9x128x128xbf16, #tpu.memory_space<vmem>>, vector<1x128x128xbf16>
    %112 = vector.shape_cast %111 : vector<1x128x128xbf16> to vector<128x128xbf16>
    %cst_124 = arith.constant dense<0.000000e+00> : vector<256x128xf32>
    %113 = tpu.matmul %110, %112, %cst_124 {dimension_numbers = #tpu.dot_dimension_numbers<[1], [0], [0], [1], [0, 0, 1, 1], [], []>} : vector<256x128xbf16>, vector<128x128xbf16>, vector<256x128xf32> -> vector<256x128xf32>
    %114 = arith.addf %108, %113 : vector<256x128xf32>
    %c2_125 = arith.constant 2 : index
    %c1_126 = arith.constant 1 : index
    %c0_127 = arith.constant 0 : index
    %115 = vector.load %arg7[%c2_125, %c1_126, %c0_127] : memref<18x24x128xbf16, #tpu.memory_space<vmem>>, vector<16x16x128xbf16>
    %116 = vector.shape_cast %115 : vector<16x16x128xbf16> to vector<256x128xbf16>
    %c7_128 = arith.constant 7 : index
    %c0_129 = arith.constant 0 : index
    %c0_130 = arith.constant 0 : index
    %117 = vector.load %arg4[%c7_128, %c0_129, %c0_130] : memref<9x128x128xbf16, #tpu.memory_space<vmem>>, vector<1x128x128xbf16>
    %118 = vector.shape_cast %117 : vector<1x128x128xbf16> to vector<128x128xbf16>
    %cst_131 = arith.constant dense<0.000000e+00> : vector<256x128xf32>
    %119 = tpu.matmul %116, %118, %cst_131 {dimension_numbers = #tpu.dot_dimension_numbers<[1], [0], [0], [1], [0, 0, 1, 1], [], []>} : vector<256x128xbf16>, vector<128x128xbf16>, vector<256x128xf32> -> vector<256x128xf32>
    %120 = arith.addf %114, %119 : vector<256x128xf32>
    %c2_132 = arith.constant 2 : index
    %c2_133 = arith.constant 2 : index
    %c0_134 = arith.constant 0 : index
    %121 = vector.load %arg7[%c2_132, %c2_133, %c0_134] : memref<18x24x128xbf16, #tpu.memory_space<vmem>>, vector<16x16x128xbf16>
    %122 = vector.shape_cast %121 : vector<16x16x128xbf16> to vector<256x128xbf16>
    %c8_135 = arith.constant 8 : index
    %c0_136 = arith.constant 0 : index
    %c0_137 = arith.constant 0 : index
    %123 = vector.load %arg4[%c8_135, %c0_136, %c0_137] : memref<9x128x128xbf16, #tpu.memory_space<vmem>>, vector<1x128x128xbf16>
    %124 = vector.shape_cast %123 : vector<1x128x128xbf16> to vector<128x128xbf16>
    %cst_138 = arith.constant dense<0.000000e+00> : vector<256x128xf32>
    %125 = tpu.matmul %122, %124, %cst_138 {dimension_numbers = #tpu.dot_dimension_numbers<[1], [0], [0], [1], [0, 0, 1, 1], [], []>} : vector<256x128xbf16>, vector<128x128xbf16>, vector<256x128xf32> -> vector<256x128xf32>
    %126 = arith.addf %120, %125 : vector<256x128xf32>
    %c0_139 = arith.constant 0 : index
    %c0_140 = arith.constant 0 : index
    %127 = vector.load %arg5[%c0_139, %c0_140] : memref<1x128xf32, #tpu.memory_space<vmem>>, vector<1x128xf32>
    %128 = vector.broadcast %127 : vector<1x128xf32> to vector<256x128xf32>
    %129 = arith.addf %126, %128 : vector<256x128xf32>
    %cst_141 = arith.constant 0.000000e+00 : f32
    %130 = vector.broadcast %cst_141 : f32 to vector<256x128xf32>
    %131 = arith.maximumf %129, %130 : vector<256x128xf32>
    %132 = vector.shape_cast %131 : vector<256x128xf32> to vector<16x16x128xf32>
    %c0_142 = arith.constant 0 : index
    %c0_143 = arith.constant 0 : index
    %c0_144 = arith.constant 0 : index
    %c0_145 = arith.constant 0 : index
    %133 = vector.load %arg1[%c0_142, %c0_143, %c0_144, %c0_145] : memref<1x16x16x128xf32, #tpu.memory_space<vmem>>, vector<1x16x16x128xf32>
    %134 = vector.shape_cast %133 : vector<1x16x16x128xf32> to vector<16x16x128xf32>
    %135 = arith.addf %132, %134 : vector<16x16x128xf32>
    %c0_146 = arith.constant 0 : index
    %c0_147 = arith.constant 0 : index
    %c0_148 = arith.constant 0 : index
    %c0_149 = arith.constant 0 : index
    %136 = vector.load %arg6[%c0_146, %c0_147, %c0_148, %c0_149] : memref<1x16x16x128xf32, #tpu.memory_space<vmem>>, vector<1x16x16x128xf32>
    %137 = vector.shape_cast %136 : vector<1x16x16x128xf32> to vector<16x16x128xf32>
    %138 = vector.shape_cast %135 : vector<16x16x128xf32> to vector<1x16x16x128xf32>
    tpu.vector_store %arg6[%c0_146, %c0_147, %c0_148, %c0_149], %138 {strides = array<i32>} : memref<1x16x16x128xf32, #tpu.memory_space<vmem>>, vector<1x16x16x128xf32>,
    return
  }
  func.func @transform_0(%arg0: i32) -> (i32, i32, i32, i32) {
    %c0_i32 = arith.constant 0 : i32
    %c0_i32_0 = arith.constant 0 : i32
    %c0_i32_1 = arith.constant 0 : i32
    %c0_i32_2 = arith.constant 0 : i32
    return %arg0, %c0_i32, %c0_i32_0, %c0_i32_1 : i32, i32, i32, i32
  }
  func.func @transform_1(%arg0: i32) -> (i32, i32, i32) {
    %c0_i32 = arith.constant 0 : i32
    %c0_i32_0 = arith.constant 0 : i32
    %c0_i32_1 = arith.constant 0 : i32
    %c0_i32_2 = arith.constant 0 : i32
    return %c0_i32, %c0_i32_0, %c0_i32_1 : i32, i32, i32
  }
  func.func @transform_2(%arg0: i32) -> (i32, i32) {
    %c0_i32 = arith.constant 0 : i32
    %c0_i32_0 = arith.constant 0 : i32
    %c0_i32_1 = arith.constant 0 : i32
    return %c0_i32, %c0_i32_0 : i32, i32
  }
  func.func @transform_3(%arg0: i32) -> (i32, i32, i32) {
    %c0_i32 = arith.constant 0 : i32
    %c0_i32_0 = arith.constant 0 : i32
    %c0_i32_1 = arith.constant 0 : i32
    %c0_i32_2 = arith.constant 0 : i32
    return %c0_i32, %c0_i32_0, %c0_i32_1 : i32, i32, i32
  }
  func.func @transform_4(%arg0: i32) -> (i32, i32) {
    %c0_i32 = arith.constant 0 : i32
    %c0_i32_0 = arith.constant 0 : i32
    %c0_i32_1 = arith.constant 0 : i32
    return %c0_i32, %c0_i32_0 : i32, i32
  }
  func.func @transform_5(%arg0: i32) -> (i32, i32, i32, i32) {
    %c0_i32 = arith.constant 0 : i32
    %c0_i32_0 = arith.constant 0 : i32
    %c0_i32_1 = arith.constant 0 : i32
    %c0_i32_2 = arith.constant 0 : i32
    return %arg0, %c0_i32, %c0_i32_0, %c0_i32_1 : i32, i32, i32, i32
  }
}

</mosaic_0001>

<llo_original>
// kernel: tpu_custom_call.1
$region0: #{tpu_custom_call.1}
  #allocation0 [shape = 'u32[]', space=smem, size = 0x4, offset = 0x4, fixed_abs, tag = 'smem constant byte address 0x4 - core index']
  #allocation1 [shape = 'u32[144,128]{1,0:T(1,128)}', space=vmem, size = 0x12000, scoped, tag = 'internal scratch']
  #allocation2 [shape = 'bf16[18,24,128]{2,1,0:T(8,128)(2,1)}', space=vmem, size = 0x1b000, scoped, tag = 'scratch operand']
  %s0 = inlined_call_operand.hbm [shape: f32[2,16,16,128], index: 0, kind: input, shape index: {}]
  %s1 = inlined_call_operand.hbm [shape: bf16[9,128,128], index: 1, kind: input, shape index: {}]
  %s2 = inlined_call_operand.vmem [shape: f32[1,128], index: 2, kind: input, shape index: {}]
  %s3 = inlined_call_operand.hbm [shape: bf16[9,128,128], index: 3, kind: input, shape index: {}]
  %s4 = inlined_call_operand.vmem [shape: f32[1,128], index: 4, kind: input, shape index: {}]
  %s5 = inlined_call_operand.hbm [shape: f32[2,16,16,128], index: 5, kind: output, shape index: {}]
  %s6 = sld [smem:[#allocation0]]
  $region65: #{tpu_custom_call.1} parent=0
    _
  %s8 = ssub.s32 1, %s6
  %s9 = scalar_select 0, %s8, %s6
  $region1: #{tpu_custom_call.1} parent=0
    #allocation3 [shape = 'u8[262144]{0}', space=vmem, size = 0x40000, scoped, tag = 'input window, operand 0']
    #allocation4 [shape = 's32[2]{0}', space=sflag, size = 0x8, scoped, tag = 'scoped memory for tpu_custom_call.1']
    #allocation5 [shape = 's32[2]{0}', space=sflag, size = 0x8, scoped, tag = 'scoped memory for tpu_custom_call.1']
    #allocation6 [shape = 'u8[294912]{0}', space=vmem, size = 0x48000, scoped, tag = 'input window, operand 1, single buffered']
    #allocation7 [shape = 's32[1]{0}', space=sflag, size = 0x4, scoped, tag = 'scoped memory for tpu_custom_call.1']
    #allocation8 [shape = 'u8[294912]{0}', space=vmem, size = 0x48000, scoped, tag = 'input window, operand 3, single buffered']
    #allocation9 [shape = 'u8[262144]{0}', space=vmem, size = 0x40000, scoped, tag = 'output window, operand 0']
    %10 = vsyncpa [#allocation4], 0
    %s11 = scalar_lea.sflag [#allocation4], 1
    %12 = vsyncpa %s11, 0
    %13 = vsyncpa [#allocation7], 0
    %14 = vsyncpa [#allocation5], 0
    %s15 = scalar_lea.sflag [#allocation5], 1
    %16 = vsyncpa %s15, 0
    loop: start=0, step=1, limit=4
    $region2: #{tpu_custom_call.1} parent=1 // loop_pre_header
      _
    $region3: #{tpu_custom_call.1} parent=1 // loop_header
      %s18 = sphi 0, %s22
      %p19 = scmp.ge.s32.totalorder %s18, 4
      %s28 = sphi 0, %s30
      %s31 = sphi 0, %s28
      %s32 = sphi 0, %s31
      %s48 = sphi 0, %s32
      %s52 = sphi 0, %s52
      %s54 = sphi 0, %s52
      %s55 = sphi 0, %s54
      %s69 = sphi 0, %s55
      %s73 = sphi 0, %s73
      %s75 = sphi 0, %s73
      %s76 = sphi 0, %s75
      %s90 = sphi 0, %s76
      %s94 = sphi 0, %s94
      %s96 = sphi 0, %s94
      %s97 = sphi 0, %s96
      %s111 = sphi 0, %s97
      %s115 = sphi 0, %s115
      %s117 = sphi 0, %s115
      %s118 = sphi 0, %s117
      %s132 = sphi 0, %s118
      %s138 = sphi 0, %s140
      %s141 = sphi 0, %s138
      %s142 = sphi 0, %s141
      %s158 = sphi 0, %s142
    $region4: #{tpu_custom_call.1} parent=1 // loop_header_branch
      %21 = sbr.rel (%p19) target = $region8
    $region5: #{tpu_custom_call.1} parent=1 // loop_body
      %s23 = ssub.s32 %s18, 1
      %s24 = ssub.s32 %s18, 2
      %s25 = sadd.s32 %s18, 1
      %s26 = ssub.s32 %s18, %s25
      %p27 = scmp.eq.s32.totalorder %s26, 0
      %s29 = sadd.s32 %s28, 1
      %s30 = scalar_select %p27, %s28, %s29
      %p33 = pneg %p27
      %p34 = scmp.eq.s32.totalorder %s18, 1
      %p35 = por %p33, %p34
      %p36 = scmp.ne.s32.totalorder %s28, %s31
      %p37 = scmp.eq.s32.totalorder %s18, 0
      %p38 = por %p36, %p37
      %p39 = scmp.ne.s32.totalorder %s28, %s31
      %p40 = scmp.eq.s32.totalorder %s23, 1
      %p41 = por %p39, %p40
      %p42 = scmp.ne.s32.totalorder %s31, %s32
      %p43 = scmp.eq.s32.totalorder %s23, 0
      %p44 = por %p42, %p43
      %p45 = scmp.ne.s32.totalorder %s31, %s32
      %p46 = scmp.eq.s32.totalorder %s24, 1
      %p47 = por %p45, %p46
      %p49 = scmp.ne.s32.totalorder %s32, %s48
      %p50 = scmp.eq.s32.totalorder %s24, 0
      %p51 = por %p49, %p50
      %s53 = sadd.s32 %s52, 1
      %p56 = scmp.eq.s32.totalorder %s18, 1
      %p57 = scmp.ne.s32.totalorder %s52, %s54
      %p58 = scmp.eq.s32.totalorder %s18, 0
      %p59 = por %p57, %p58
      %p60 = scmp.ne.s32.totalorder %s52, %s54
      %p61 = scmp.eq.s32.totalorder %s23, 1
      %p62 = por %p60, %p61
      %p63 = scmp.ne.s32.totalorder %s54, %s55
      %p64 = scmp.eq.s32.totalorder %s23, 0
      %p65 = por %p63, %p64
      %p66 = scmp.ne.s32.totalorder %s54, %s55
      %p67 = scmp.eq.s32.totalorder %s24, 1
      %p68 = por %p66, %p67
      %p70 = scmp.ne.s32.totalorder %s55, %s69
      %p71 = scmp.eq.s32.totalorder %s24, 0
      %p72 = por %p70, %p71
      %s74 = sadd.s32 %s73, 1
      %p77 = scmp.eq.s32.totalorder %s18, 1
      %p78 = scmp.ne.s32.totalorder %s73, %s75
      %p79 = scmp.eq.s32.totalorder %s18, 0
      %p80 = por %p78, %p79
      %p81 = scmp.ne.s32.totalorder %s73, %s75
      %p82 = scmp.eq.s32.totalorder %s23, 1
      %p83 = por %p81, %p82
      %p84 = scmp.ne.s32.totalorder %s75, %s76
      %p85 = scmp.eq.s32.totalorder %s23, 0
      %p86 = por %p84, %p85
      %p87 = scmp.ne.s32.totalorder %s75, %s76
      %p88 = scmp.eq.s32.totalorder %s24, 1
      %p89 = por %p87, %p88
      %p91 = scmp.ne.s32.totalorder %s76, %s90
      %p92 = scmp.eq.s32.totalorder %s24, 0
      %p93 = por %p91, %p92
      %s95 = sadd.s32 %s94, 1
      %p98 = scmp.eq.s32.totalorder %s18, 1
      %p99 = scmp.ne.s32.totalorder %s94, %s96
      %p100 = scmp.eq.s32.totalorder %s18, 0
      %p101 = por %p99, %p100
      %p102 = scmp.ne.s32.totalorder %s94, %s96
      %p103 = scmp.eq.s32.totalorder %s23, 1
      %p104 = por %p102, %p103
      %p105 = scmp.ne.s32.totalorder %s96, %s97
      %p106 = scmp.eq.s32.totalorder %s23, 0
      %p107 = por %p105, %p106
      %p108 = scmp.ne.s32.totalorder %s96, %s97
      %p109 = scmp.eq.s32.totalorder %s24, 1
      %p110 = por %p108, %p109
      %p112 = scmp.ne.s32.totalorder %s97, %s111
      %p113 = scmp.eq.s32.totalorder %s24, 0
      %p114 = por %p112, %p113
      %s116 = sadd.s32 %s115, 1
      %p119 = scmp.eq.s32.totalorder %s18, 1
      %p120 = scmp.ne.s32.totalorder %s115, %s117
      %p121 = scmp.eq.s32.totalorder %s18, 0
      %p122 = por %p120, %p121
      %p123 = scmp.ne.s32.totalorder %s115, %s117
      %p124 = scmp.eq.s32.totalorder %s23, 1
      %p125 = por %p123, %p124
      %p126 = scmp.ne.s32.totalorder %s117, %s118
      %p127 = scmp.eq.s32.totalorder %s23, 0
      %p128 = por %p126, %p127
      %p129 = scmp.ne.s32.totalorder %s117, %s118
      %p130 = scmp.eq.s32.totalorder %s24, 1
      %p131 = por %p129, %p130
      %p133 = scmp.ne.s32.totalorder %s118, %s132
      %p134 = scmp.eq.s32.totalorder %s24, 0
      %p135 = por %p133, %p134
      %s136 = ssub.s32 %s18, %s25
      %p137 = scmp.eq.s32.totalorder %s136, 0
      %s139 = sadd.s32 %s138, 1
      %s140 = scalar_select %p137, %s138, %s139
      %p143 = pneg %p137
      %p144 = scmp.eq.s32.totalorder %s18, 1
      %p145 = por %p143, %p144
      %p146 = scmp.ne.s32.totalorder %s138, %s141
      %p147 = scmp.eq.s32.totalorder %s18, 0
      %p148 = por %p146, %p147
      %p149 = scmp.ne.s32.totalorder %s138, %s141
      %p150 = scmp.eq.s32.totalorder %s23, 1
      %p151 = por %p149, %p150
      %p152 = scmp.ne.s32.totalorder %s141, %s142
      %p153 = scmp.eq.s32.totalorder %s23, 0
      %p154 = por %p152, %p153
      %p155 = scmp.ne.s32.totalorder %s141, %s142
      %p156 = scmp.eq.s32.totalorder %s24, 1
      %p157 = por %p155, %p156
      %p159 = scmp.ne.s32.totalorder %s142, %s158
      %p160 = scmp.eq.s32.totalorder %s24, 0
      %p161 = por %p159, %p160
      %p162 = scmp.le.s32.totalorder 1, %s18
      %p163 = scmp.lt.s32.totalorder %s18, 3
      %p164 = pnand %p162, %p163
      %p165 = pneg %p164
      // Predicated region
      $region9: #{tpu_custom_call.1} parent=5 // pred_check
        _
      $region10: #{tpu_custom_call.1} parent=5 // pred_check_branch
        %167 = sbr.rel (%p164) target = $region12
      $region11: #{tpu_custom_call.1} parent=5 // pred_region
        %s168 = ssub.s32 %s18, 1
        // Predicated region
        $region13: #{tpu_custom_call.1} parent=11 // pred_check
          %p169 = pneg %p65
        $region14: #{tpu_custom_call.1} parent=11 // pred_check_branch
          %171 = sbr.rel (%p169) target = $region16
        $region15: #{tpu_custom_call.1} parent=11 // pred_region
          %s173 = ssub.s32 9216, 9216
          %174 = vsyncadd [#allocation7], %s173
          %s175 = sshll.u32 [#allocation6], 4
          %s176 = int_to_ptr.vmem [resolvable:$true] %s175
          %181 = dma.hbm_to_vmem [thread:$0]  %s1, 9216, %s176, [#allocation7], 64, 64, 4
        $region16: #{tpu_custom_call.1} parent=11 // pred_fallthru
          _
        // Predicated region
        $region17: #{tpu_custom_call.1} parent=11 // pred_check
          %p182 = pneg %p86
        $region18: #{tpu_custom_call.1} parent=11 // pred_check_branch
          %184 = sbr.rel (%p182) target = $region20
        $region19: #{tpu_custom_call.1} parent=11 // pred_region
          _
        $region20: #{tpu_custom_call.1} parent=11 // pred_fallthru
          _
        // Predicated region
        $region21: #{tpu_custom_call.1} parent=11 // pred_check
          %p185 = pneg %p107
        $region22: #{tpu_custom_call.1} parent=11 // pred_check_branch
          %187 = sbr.rel (%p185) target = $region24
        $region23: #{tpu_custom_call.1} parent=11 // pred_region
          %s189 = ssub.s32 9216, 9216
          %190 = vsyncadd [#allocation7], %s189
          %s191 = sshll.u32 [#allocation8], 4
          %s192 = int_to_ptr.vmem [resolvable:$true] %s191
          %197 = dma.hbm_to_vmem [thread:$0]  %s3, 9216, %s192, [#allocation7], 64, 64, 4
        $region24: #{tpu_custom_call.1} parent=11 // pred_fallthru
          _
        // Predicated region
        $region25: #{tpu_custom_call.1} parent=11 // pred_check
          %p198 = pneg %p128
        $region26: #{tpu_custom_call.1} parent=11 // pred_check_branch
          %200 = sbr.rel (%p198) target = $region28
        $region27: #{tpu_custom_call.1} parent=11 // pred_region
          _
        $region28: #{tpu_custom_call.1} parent=11 // pred_fallthru
          _
      $region12: #{tpu_custom_call.1} parent=5 // pred_fallthru
        _
      %p201 = scmp.lt.s32.totalorder %s18, 2
      // Predicated region
      $region29: #{tpu_custom_call.1} parent=5 // pred_check
        %p202 = pneg %p201
      $region30: #{tpu_custom_call.1} parent=5 // pred_check_branch
        %204 = sbr.rel (%p202) target = $region32
      $region31: #{tpu_custom_call.1} parent=5 // pred_region
        // Predicated region
        $region33: #{tpu_custom_call.1} parent=31 // pred_check
          %p205 = pneg %p38
        $region34: #{tpu_custom_call.1} parent=31 // pred_check_branch
          %207 = sbr.rel (%p205) target = $region36
        $region35: #{tpu_custom_call.1} parent=31 // pred_region
          %s208 = sand.u32 %s28, 1
          %s209 = scalar_lea.sflag [#allocation4], %s208
          %s210 = sand.u32 %s28, 1
          %s211 = smul.addr %s210, 256
          %s212 = scalar_lea.vmem [#allocation3], %s211
          %s214 = ssub.s32 4096, 4096
          %215 = vsyncadd %s209, %s214
          %s216 = smul.addr %s18, 32
          %s217 = smul.addr %s216, 128
          %s218 = scalar_lea.hbm %s0, %s217
          %s219 = sshll.u32 %s212, 4
          %s220 = int_to_ptr.vmem [resolvable:$true] %s219
          %225 = dma.hbm_to_vmem [thread:$0]  %s218, 4096, %s220, %s209, 128, 128, 8
        $region36: #{tpu_custom_call.1} parent=31 // pred_fallthru
          _
      $region32: #{tpu_custom_call.1} parent=5 // pred_fallthru
        _
      %p226 = scmp.le.s32.totalorder 1, %s18
      %p227 = scmp.lt.s32.totalorder %s18, 3
      %p228 = pnand %p226, %p227
      %p229 = pneg %p228
      // Predicated region
      $region37: #{tpu_custom_call.1} parent=5 // pred_check
        _
      $region38: #{tpu_custom_call.1} parent=5 // pred_check_branch
        %231 = sbr.rel (%p228) target = $region40
      $region39: #{tpu_custom_call.1} parent=5 // pred_region
        %s232 = ssub.s32 %s18, 1
        %s233 = sand.u32 %s31, 1
        %s234 = scalar_lea.sflag [#allocation4], %s233
        %s235 = sand.u32 %s31, 1
        %s236 = smul.addr %s235, 256
        %s237 = scalar_lea.vmem [#allocation3], %s236
        // Predicated region
        $region41: #{tpu_custom_call.1} parent=39 // pred_check
          %p238 = pneg %p44
        $region42: #{tpu_custom_call.1} parent=39 // pred_check_branch
          %240 = sbr.rel (%p238) target = $region44
        $region43: #{tpu_custom_call.1} parent=39 // pred_region
          %241 = dma.done %s234, 4096
        $region44: #{tpu_custom_call.1} parent=39 // pred_fallthru
          _
        // Predicated region
        $region45: #{tpu_custom_call.1} parent=39 // pred_check
          %p242 = pneg %p65
        $region46: #{tpu_custom_call.1} parent=39 // pred_check_branch
          %244 = sbr.rel (%p242) target = $region48
        $region47: #{tpu_custom_call.1} parent=39 // pred_region
          %245 = dma.done [#allocation7], 9216
        $region48: #{tpu_custom_call.1} parent=39 // pred_fallthru
          _
        // Predicated region
        $region49: #{tpu_custom_call.1} parent=39 // pred_check
          %p246 = pneg %p107
        $region50: #{tpu_custom_call.1} parent=39 // pred_check_branch
          %248 = sbr.rel (%p246) target = $region52
        $region51: #{tpu_custom_call.1} parent=39 // pred_region
          %249 = dma.done [#allocation7], 9216
        $region52: #{tpu_custom_call.1} parent=39 // pred_fallthru
          _
        %s250 = sand.u32 %s31, 1
        %s251 = scalar_lea.sflag [#allocation4], %s250
        %s252 = sand.u32 %s31, 1
        %s253 = smul.addr %s252, 256
        %s254 = scalar_lea.vmem [#allocation3], %s253
        %p255 = pneg %p44
        %p256 = pneg %p41
        %p257 = pneg %p65
        %p258 = pneg %p62
        %p259 = pneg %p86
        %p260 = pneg %p83
        %p261 = pneg %p107
        %p262 = pneg %p104
        %p263 = pneg %p128
        %p264 = pneg %p125
        %p265 = pneg %p154
        %p266 = pneg %p151
        %s267 = sand.u32 %s141, 1
        %s268 = scalar_lea.sflag [#allocation5], %s267
        %s269 = sand.u32 %s141, 1
        %s270 = smul.addr %s269, 256
        %s271 = scalar_lea.vmem [#allocation9], %s270
        %273 = vst [vmem:[#allocation2] sm:$0xf] 0
        %274 = vst [vmem:[#allocation2 + $0x4] sm:$0xf] 0
        %275 = vst [vmem:[#allocation2 + $0x8] sm:$0xf] 0
        %s276 = scalar_lea.vmem [#allocation2], 204
        %277 = vst [vmem:[%s276] sm:$0xf] 0
        %278 = vst [vmem:[%s276 + $0x4] sm:$0xf] 0
        %279 = vst [vmem:[%s276 + $0x8] sm:$0xf] 0
        %v280 = vld [vmem:[%s237] sm:$0xff]
        %v281 = vld [vmem:[%s237 + $0x8] sm:$0xff]
        %v282 = vld [vmem:[%s237 + $0x10] sm:$0xff]
        %v283 = vld [vmem:[%s237 + $0x18] sm:$0xff]
        %v284 = vld [vmem:[%s237 + $0x20] sm:$0xff]
        %v285 = vld [vmem:[%s237 + $0x28] sm:$0xff]
        %v286 = vld [vmem:[%s237 + $0x30] sm:$0xff]
        %v287 = vld [vmem:[%s237 + $0x38] sm:$0xff]
        %v288 = vld [vmem:[%s237 + $0x40] sm:$0xff]
        %v289 = vld [vmem:[%s237 + $0x48] sm:$0xff]
        %v290 = vld [vmem:[%s237 + $0x50] sm:$0xff]
        %v291 = vld [vmem:[%s237 + $0x58] sm:$0xff]
        %v292 = vld [vmem:[%s237 + $0x60] sm:$0xff]
        %v293 = vld [vmem:[%s237 + $0x68] sm:$0xff]
        %v294 = vld [vmem:[%s237 + $0x70] sm:$0xff]
        %v295 = vld [vmem:[%s237 + $0x78] sm:$0xff]
        %v296 = vld [vmem:[%s237 + $0x80] sm:$0xff]
        %v297 = vld [vmem:[%s237 + $0x88] sm:$0xff]
        %v298 = vld [vmem:[%s237 + $0x90] sm:$0xff]
        %v299 = vld [vmem:[%s237 + $0x98] sm:$0xff]
        %v300 = vld [vmem:[%s237 + $0xa0] sm:$0xff]
        %v301 = vld [vmem:[%s237 + $0xa8] sm:$0xff]
        %v302 = vld [vmem:[%s237 + $0xb0] sm:$0xff]
        %v303 = vld [vmem:[%s237 + $0xb8] sm:$0xff]
        %v304 = vld [vmem:[%s237 + $0xc0] sm:$0xff]
        %v305 = vld [vmem:[%s237 + $0xc8] sm:$0xff]
        %v306 = vld [vmem:[%s237 + $0xd0] sm:$0xff]
        %v307 = vld [vmem:[%s237 + $0xd8] sm:$0xff]
        %v308 = vld [vmem:[%s237 + $0xe0] sm:$0xff]
        %v309 = vld [vmem:[%s237 + $0xe8] sm:$0xff]
        %v310 = vld [vmem:[%s237 + $0xf0] sm:$0xff]
        %v311 = vld [vmem:[%s237 + $0xf8] sm:$0xff]
        %v312 = vpack.c.bf16 %v281, %v280
        %v313 = vpack.c.bf16 %v283, %v282
        %v314 = vpack.c.bf16 %v285, %v284
        %v315 = vpack.c.bf16 %v287, %v286
        %v316 = vpack.c.bf16 %v289, %v288
        %v317 = vpack.c.bf16 %v291, %v290
        %v318 = vpack.c.bf16 %v293, %v292
        %v319 = vpack.c.bf16 %v295, %v294
        %v320 = vpack.c.bf16 %v297, %v296
        %v321 = vpack.c.bf16 %v299, %v298
        %v322 = vpack.c.bf16 %v301, %v300
        %v323 = vpack.c.bf16 %v303, %v302
        %v324 = vpack.c.bf16 %v305, %v304
        %v325 = vpack.c.bf16 %v307, %v306
        %v326 = vpack.c.bf16 %v309, %v308
        %v327 = vpack.c.bf16 %v311, %v310
        %v329 = vshrl.u32 %v312, 16
        %v331 = vrot.slane %v329, 7
        %v332 = vshll.u32 %v312, 16
        %v334 = vor.u32 %v331, %v332
        %v336 = vshrl.u32 %v313, 16
        %v338 = vrot.slane %v336, 7
        %v339 = vshll.u32 %v313, 16
        %v341 = vor.u32 %v338, %v339
        %v343 = vshrl.u32 %v314, 16
        %v345 = vrot.slane %v343, 7
        %v346 = vshll.u32 %v314, 16
        %v348 = vor.u32 %v345, %v346
        %v350 = vshrl.u32 %v315, 16
        %v352 = vrot.slane %v350, 7
        %v353 = vshll.u32 %v315, 16
        %v355 = vor.u32 %v352, %v353
        %v357 = vshrl.u32 %v316, 16
        %v359 = vrot.slane %v357, 7
        %v360 = vshll.u32 %v316, 16
        %v362 = vor.u32 %v359, %v360
        %v364 = vshrl.u32 %v317, 16
        %v366 = vrot.slane %v364, 7
        %v367 = vshll.u32 %v317, 16
        %v369 = vor.u32 %v366, %v367
        %v371 = vshrl.u32 %v318, 16
        %v373 = vrot.slane %v371, 7
        %v374 = vshll.u32 %v318, 16
        %v376 = vor.u32 %v373, %v374
        %v378 = vshrl.u32 %v319, 16
        %v380 = vrot.slane %v378, 7
        %v381 = vshll.u32 %v319, 16
        %v383 = vor.u32 %v380, %v381
        %v385 = vshrl.u32 %v320, 16
        %v387 = vrot.slane %v385, 7
        %v388 = vshll.u32 %v320, 16
        %v390 = vor.u32 %v387, %v388
        %v392 = vshrl.u32 %v321, 16
        %v394 = vrot.slane %v392, 7
        %v395 = vshll.u32 %v321, 16
        %v397 = vor.u32 %v394, %v395
        %v399 = vshrl.u32 %v322, 16
        %v401 = vrot.slane %v399, 7
        %v402 = vshll.u32 %v322, 16
        %v404 = vor.u32 %v401, %v402
        %v406 = vshrl.u32 %v323, 16
        %v408 = vrot.slane %v406, 7
        %v409 = vshll.u32 %v323, 16
        %v411 = vor.u32 %v408, %v409
        %v413 = vshrl.u32 %v324, 16
        %v415 = vrot.slane %v413, 7
        %v416 = vshll.u32 %v324, 16
        %v418 = vor.u32 %v415, %v416
        %v420 = vshrl.u32 %v325, 16
        %v422 = vrot.slane %v420, 7
        %v423 = vshll.u32 %v325, 16
        %v425 = vor.u32 %v422, %v423
        %v427 = vshrl.u32 %v326, 16
        %v429 = vrot.slane %v427, 7
        %v430 = vshll.u32 %v326, 16
        %v432 = vor.u32 %v429, %v430
        %v434 = vshrl.u32 %v327, 16
        %v436 = vrot.slane %v434, 7
        %v437 = vshll.u32 %v327, 16
        %v439 = vor.u32 %v436, %v437
        %vm472 = vcmask 1040384
        %vm473 = vsmask.f32 256
        %vm474 = vmand %vm472, %vm473
        %v475 = vsel %vm474, 0, %v334
        %v476 = vsel %vm474, 0, %v341
        %v477 = vsel %vm474, 0, %v348
        %v478 = vsel %vm474, 0, %v355
        %v479 = vsel %vm474, 0, %v362
        %v480 = vsel %vm474, 0, %v369
        %v481 = vsel %vm474, 0, %v376
        %v482 = vsel %vm474, 0, %v383
        %v483 = vsel %vm474, 0, %v390
        %v484 = vsel %vm474, 0, %v397
        %v485 = vsel %vm474, 0, %v404
        %v486 = vsel %vm474, 0, %v411
        %v487 = vsel %vm474, 0, %v418
        %v488 = vsel %vm474, 0, %v425
        %v489 = vsel %vm474, 0, %v432
        %v490 = vsel %vm474, 0, %v439
        %v491 = vsel %vm474, %v331, 0
        %v492 = vsel %vm474, %v338, 0
        %v493 = vsel %vm474, %v345, 0
        %v494 = vsel %vm474, %v352, 0
        %v495 = vsel %vm474, %v359, 0
        %v496 = vsel %vm474, %v366, 0
        %v497 = vsel %vm474, %v373, 0
        %v498 = vsel %vm474, %v380, 0
        %v499 = vsel %vm474, %v387, 0
        %v500 = vsel %vm474, %v394, 0
        %v501 = vsel %vm474, %v401, 0
        %v502 = vsel %vm474, %v408, 0
        %v503 = vsel %vm474, %v415, 0
        %v504 = vsel %vm474, %v422, 0
        %v505 = vsel %vm474, %v429, 0
        %v506 = vsel %vm474, %v436, 0
        %v539 = vunpack.c.l.b16 %v475
        %v540 = vunpack.c.h.b16 %v475
        %v541 = vunpack.c.l.b16 %v491
        %v542 = vunpack.c.l.b16 %v476
        %v543 = vunpack.c.h.b16 %v476
        %v544 = vunpack.c.l.b16 %v492
        %v545 = vunpack.c.l.b16 %v477
        %v546 = vunpack.c.h.b16 %v477
        %v547 = vunpack.c.l.b16 %v493
        %v548 = vunpack.c.l.b16 %v478
        %v549 = vunpack.c.h.b16 %v478
        %v550 = vunpack.c.l.b16 %v494
        %v551 = vunpack.c.l.b16 %v479
        %v552 = vunpack.c.h.b16 %v479
        %v553 = vunpack.c.l.b16 %v495
        %v554 = vunpack.c.l.b16 %v480
        %v555 = vunpack.c.h.b16 %v480
        %v556 = vunpack.c.l.b16 %v496
        %v557 = vunpack.c.l.b16 %v481
        %v558 = vunpack.c.h.b16 %v481
        %v559 = vunpack.c.l.b16 %v497
        %v560 = vunpack.c.l.b16 %v482
        %v561 = vunpack.c.h.b16 %v482
        %v562 = vunpack.c.l.b16 %v498
        %v563 = vunpack.c.l.b16 %v483
        %v564 = vunpack.c.h.b16 %v483
        %v565 = vunpack.c.l.b16 %v499
        %v566 = vunpack.c.l.b16 %v484
        %v567 = vunpack.c.h.b16 %v484
        %v568 = vunpack.c.l.b16 %v500
        %v569 = vunpack.c.l.b16 %v485
        %v570 = vunpack.c.h.b16 %v485
        %v571 = vunpack.c.l.b16 %v501
        %v572 = vunpack.c.l.b16 %v486
        %v573 = vunpack.c.h.b16 %v486
        %v574 = vunpack.c.l.b16 %v502
        %v575 = vunpack.c.l.b16 %v487
        %v576 = vunpack.c.h.b16 %v487
        %v577 = vunpack.c.l.b16 %v503
        %v578 = vunpack.c.l.b16 %v488
        %v579 = vunpack.c.h.b16 %v488
        %v580 = vunpack.c.l.b16 %v504
        %v581 = vunpack.c.l.b16 %v489
        %v582 = vunpack.c.h.b16 %v489
        %v583 = vunpack.c.l.b16 %v505
        %v584 = vunpack.c.l.b16 %v490
        %v585 = vunpack.c.h.b16 %v490
        %v586 = vunpack.c.l.b16 %v506
        %v587 = vpack.c.b16 %v539, %v539
        %v588 = vpack.c.b16 %v540, %v540
        %v589 = vpack.c.b16 %v541, %v541
        %v590 = vpack.c.b16 %v542, %v542
        %v591 = vpack.c.b16 %v543, %v543
        %v592 = vpack.c.b16 %v544, %v544
        %v593 = vpack.c.b16 %v545, %v545
        %v594 = vpack.c.b16 %v546, %v546
        %v595 = vpack.c.b16 %v547, %v547
        %v596 = vpack.c.b16 %v548, %v548
        %v597 = vpack.c.b16 %v549, %v549
        %v598 = vpack.c.b16 %v550, %v550
        %v599 = vpack.c.b16 %v551, %v551
        %v600 = vpack.c.b16 %v552, %v552
        %v601 = vpack.c.b16 %v553, %v553
        %v602 = vpack.c.b16 %v554, %v554
        %v603 = vpack.c.b16 %v555, %v555
        %v604 = vpack.c.b16 %v556, %v556
        %v605 = vpack.c.b16 %v557, %v557
        %v606 = vpack.c.b16 %v558, %v558
        %v607 = vpack.c.b16 %v559, %v559
        %v608 = vpack.c.b16 %v560, %v560
        %v609 = vpack.c.b16 %v561, %v561
        %v610 = vpack.c.b16 %v562, %v562
        %v611 = vpack.c.b16 %v563, %v563
        %v612 = vpack.c.b16 %v564, %v564
        %v613 = vpack.c.b16 %v565, %v565
        %v614 = vpack.c.b16 %v566, %v566
        %v615 = vpack.c.b16 %v567, %v567
        %v616 = vpack.c.b16 %v568, %v568
        %v617 = vpack.c.b16 %v569, %v569
        %v618 = vpack.c.b16 %v570, %v570
        %v619 = vpack.c.b16 %v571, %v571
        %v620 = vpack.c.b16 %v572, %v572
        %v621 = vpack.c.b16 %v573, %v573
        %v622 = vpack.c.b16 %v574, %v574
        %v623 = vpack.c.b16 %v575, %v575
        %v624 = vpack.c.b16 %v576, %v576
        %v625 = vpack.c.b16 %v577, %v577
        %v626 = vpack.c.b16 %v578, %v578
        %v627 = vpack.c.b16 %v579, %v579
        %v628 = vpack.c.b16 %v580, %v580
        %v629 = vpack.c.b16 %v581, %v581
        %v630 = vpack.c.b16 %v582, %v582
        %v631 = vpack.c.b16 %v583, %v583
        %v632 = vpack.c.b16 %v584, %v584
        %v633 = vpack.c.b16 %v585, %v585
        %v634 = vpack.c.b16 %v586, %v586
        %s683 = scalar_lea.vmem [#allocation2], 12
        %684 = vst [vmem:[%s683] sm:$0xf] %v587
        %685 = vst [vmem:[%s683 + $0x4] sm:$0xf] %v588
        %686 = vst [vmem:[%s683 + $0x8] sm:$0xf] %v589
        %687 = vst [vmem:[%s683 + $0xc] sm:$0xf] %v590
        %688 = vst [vmem:[%s683 + $0x10] sm:$0xf] %v591
        %689 = vst [vmem:[%s683 + $0x14] sm:$0xf] %v592
        %690 = vst [vmem:[%s683 + $0x18] sm:$0xf] %v593
        %691 = vst [vmem:[%s683 + $0x1c] sm:$0xf] %v594
        %692 = vst [vmem:[%s683 + $0x20] sm:$0xf] %v595
        %693 = vst [vmem:[%s683 + $0x24] sm:$0xf] %v596
        %694 = vst [vmem:[%s683 + $0x28] sm:$0xf] %v597
        %695 = vst [vmem:[%s683 + $0x2c] sm:$0xf] %v598
        %696 = vst [vmem:[%s683 + $0x30] sm:$0xf] %v599
        %697 = vst [vmem:[%s683 + $0x34] sm:$0xf] %v600
        %698 = vst [vmem:[%s683 + $0x38] sm:$0xf] %v601
        %699 = vst [vmem:[%s683 + $0x3c] sm:$0xf] %v602
        %700 = vst [vmem:[%s683 + $0x40] sm:$0xf] %v603
        %701 = vst [vmem:[%s683 + $0x44] sm:$0xf] %v604
        %702 = vst [vmem:[%s683 + $0x48] sm:$0xf] %v605
        %703 = vst [vmem:[%s683 + $0x4c] sm:$0xf] %v606
        %704 = vst [vmem:[%s683 + $0x50] sm:$0xf] %v607
        %705 = vst [vmem:[%s683 + $0x54] sm:$0xf] %v608
        %706 = vst [vmem:[%s683 + $0x58] sm:$0xf] %v609
        %707 = vst [vmem:[%s683 + $0x5c] sm:$0xf] %v610
        %708 = vst [vmem:[%s683 + $0x60] sm:$0xf] %v611
        %709 = vst [vmem:[%s683 + $0x64] sm:$0xf] %v612
        %710 = vst [vmem:[%s683 + $0x68] sm:$0xf] %v613
        %711 = vst [vmem:[%s683 + $0x6c] sm:$0xf] %v614
        %712 = vst [vmem:[%s683 + $0x70] sm:$0xf] %v615
        %713 = vst [vmem:[%s683 + $0x74] sm:$0xf] %v616
        %714 = vst [vmem:[%s683 + $0x78] sm:$0xf] %v617
        %715 = vst [vmem:[%s683 + $0x7c] sm:$0xf] %v618
        %716 = vst [vmem:[%s683 + $0x80] sm:$0xf] %v619
        %717 = vst [vmem:[%s683 + $0x84] sm:$0xf] %v620
        %718 = vst [vmem:[%s683 + $0x88] sm:$0xf] %v621
        %719 = vst [vmem:[%s683 + $0x8c] sm:$0xf] %v622
        %720 = vst [vmem:[%s683 + $0x90] sm:$0xf] %v623
        %721 = vst [vmem:[%s683 + $0x94] sm:$0xf] %v624
        %722 = vst [vmem:[%s683 + $0x98] sm:$0xf] %v625
        %723 = vst [vmem:[%s683 + $0x9c] sm:$0xf] %v626
        %724 = vst [vmem:[%s683 + $0xa0] sm:$0xf] %v627
        %725 = vst [vmem:[%s683 + $0xa4] sm:$0xf] %v628
        %726 = vst [vmem:[%s683 + $0xa8] sm:$0xf] %v629
        %727 = vst [vmem:[%s683 + $0xac] sm:$0xf] %v630
        %728 = vst [vmem:[%s683 + $0xb0] sm:$0xf] %v631
        %729 = vst [vmem:[%s683 + $0xb4] sm:$0xf] %v632
        %730 = vst [vmem:[%s683 + $0xb8] sm:$0xf] %v633
        %731 = vst [vmem:[%s683 + $0xbc] sm:$0xf] %v634
        %v732 = vld [vmem:[#allocation2] sm:$0xf]
        %v733 = vld [vmem:[#allocation2 + $0x4] sm:$0xf]
        %v734 = vld [vmem:[#allocation2 + $0xc] sm:$0xf]
        %v735 = vld [vmem:[#allocation2 + $0x10] sm:$0xf]
        %v736 = vld [vmem:[#allocation2 + $0x18] sm:$0xf]
        %v737 = vld [vmem:[#allocation2 + $0x1c] sm:$0xf]
        %v738 = vld [vmem:[#allocation2 + $0x24] sm:$0xf]
        %v739 = vld [vmem:[#allocation2 + $0x28] sm:$0xf]
        %v740 = vld [vmem:[#allocation2 + $0x30] sm:$0xf]
        %v741 = vld [vmem:[#allocation2 + $0x34] sm:$0xf]
        %v742 = vld [vmem:[#allocation2 + $0x3c] sm:$0xf]
        %v743 = vld [vmem:[#allocation2 + $0x40] sm:$0xf]
        %v744 = vld [vmem:[#allocation2 + $0x48] sm:$0xf]
        %v745 = vld [vmem:[#allocation2 + $0x4c] sm:$0xf]
        %v746 = vld [vmem:[#allocation2 + $0x54] sm:$0xf]
        %v747 = vld [vmem:[#allocation2 + $0x58] sm:$0xf]
        %v748 = vld [vmem:[#allocation2 + $0x60] sm:$0xf]
        %v749 = vld [vmem:[#allocation2 + $0x64] sm:$0xf]
        %v750 = vld [vmem:[#allocation2 + $0x6c] sm:$0xf]
        %v751 = vld [vmem:[#allocation2 + $0x70] sm:$0xf]
        %v752 = vld [vmem:[#allocation2 + $0x78] sm:$0xf]
        %v753 = vld [vmem:[#allocation2 + $0x7c] sm:$0xf]
        %v754 = vld [vmem:[#allocation2 + $0x84] sm:$0xf]
        %v755 = vld [vmem:[#allocation2 + $0x88] sm:$0xf]
        %v756 = vld [vmem:[#allocation2 + $0x90] sm:$0xf]
        %v757 = vld [vmem:[#allocation2 + $0x94] sm:$0xf]
        %v758 = vld [vmem:[#allocation2 + $0x9c] sm:$0xf]
        %v759 = vld [vmem:[#allocation2 + $0xa0] sm:$0xf]
        %v760 = vld [vmem:[#allocation2 + $0xa8] sm:$0xf]
        %v761 = vld [vmem:[#allocation2 + $0xac] sm:$0xf]
        %v762 = vld [vmem:[#allocation2 + $0xb4] sm:$0xf]
        %v763 = vld [vmem:[#allocation2 + $0xb8] sm:$0xf]
        %v764 = vld [vmem:[#allocation6] sm:$0xf]
        %v765 = vld [vmem:[#allocation6 + $0x4] sm:$0xf]
        %v766 = vld [vmem:[#allocation6 + $0x8] sm:$0xf]
        %v767 = vld [vmem:[#allocation6 + $0xc] sm:$0xf]
        %v768 = vld [vmem:[#allocation6 + $0x10] sm:$0xf]
        %v769 = vld [vmem:[#allocation6 + $0x14] sm:$0xf]
        %v770 = vld [vmem:[#allocation6 + $0x18] sm:$0xf]
        %v771 = vld [vmem:[#allocation6 + $0x1c] sm:$0xf]
        %v772 = vld [vmem:[#allocation6 + $0x20] sm:$0xf]
        %v773 = vld [vmem:[#allocation6 + $0x24] sm:$0xf]
        %v774 = vld [vmem:[#allocation6 + $0x28] sm:$0xf]
        %v775 = vld [vmem:[#allocation6 + $0x2c] sm:$0xf]
        %v776 = vld [vmem:[#allocation6 + $0x30] sm:$0xf]
        %v777 = vld [vmem:[#allocation6 + $0x34] sm:$0xf]
        %v778 = vld [vmem:[#allocation6 + $0x38] sm:$0xf]
        %v779 = vld [vmem:[#allocation6 + $0x3c] sm:$0xf]
        %v780 = vld [vmem:[#allocation2 + $0x8] sm:$0x1]
        %v781 = vld [vmem:[#allocation2 + $0x14] sm:$0x1]
        %v782 = vld [vmem:[#allocation2 + $0x20] sm:$0x1]
        %v783 = vld [vmem:[#allocation2 + $0x2c] sm:$0x1]
        %v784 = vld [vmem:[#allocation2 + $0x38] sm:$0x1]
        %v785 = vld [vmem:[#allocation2 + $0x44] sm:$0x1]
        %v786 = vld [vmem:[#allocation2 + $0x50] sm:$0x1]
        %v787 = vld [vmem:[#allocation2 + $0x5c] sm:$0x1]
        %v788 = vld [vmem:[#allocation2 + $0x68] sm:$0x1]
        %v789 = vld [vmem:[#allocation2 + $0x74] sm:$0x1]
        %v790 = vld [vmem:[#allocation2 + $0x80] sm:$0x1]
        %v791 = vld [vmem:[#allocation2 + $0x8c] sm:$0x1]
        %v792 = vld [vmem:[#allocation2 + $0x98] sm:$0x1]
        %v793 = vld [vmem:[#allocation2 + $0xa4] sm:$0x1]
        %v794 = vld [vmem:[#allocation2 + $0xb0] sm:$0x1]
        %v795 = vld [vmem:[#allocation2 + $0xbc] sm:$0x1]
        %vm796 = vsmask.f32 3328
        %vm797 = vsmask.f32 7440
        %vm798 = vmor %vm796, %vm797
        %v800 = vshrl.u32 %v732, 16
        %v802 = vrot.slane %v800, 4
        %v803 = vshll.u32 %v732, 16
        %v805 = vrot.slane %v803, 5
        %v806 = vor.u32 %v802, %v805
        %v807 = vrot.slane %v806, 4
        %v809 = vshll.u32 %v733, 16
        %v811 = vrot.slane %v809, 5
        %v812 = vsel %vm798, %v807, %v811
        %v813 = vshrl.u32 %v733, 16
        %v815 = vrot.slane %v813, 4
        %v816 = vor.u32 %v815, %v811
        %v817 = vrot.slane %v816, 4
        %v819 = vshll.u32 %v780, 16
        %v821 = vrot.slane %v819, 5
        %v822 = vsel %vm798, %v817, %v821
        %v824 = vshrl.u32 %v734, 16
        %v826 = vrot.slane %v824, 4
        %v827 = vshll.u32 %v734, 16
        %v829 = vrot.slane %v827, 5
        %v830 = vor.u32 %v826, %v829
        %v831 = vrot.slane %v830, 4
        %v833 = vshll.u32 %v735, 16
        %v835 = vrot.slane %v833, 5
        %v836 = vsel %vm798, %v831, %v835
        %v837 = vshrl.u32 %v735, 16
        %v839 = vrot.slane %v837, 4
        %v840 = vor.u32 %v839, %v835
        %v841 = vrot.slane %v840, 4
        %v843 = vshll.u32 %v781, 16
        %v845 = vrot.slane %v843, 5
        %v846 = vsel %vm798, %v841, %v845
        %v848 = vshrl.u32 %v736, 16
        %v850 = vrot.slane %v848, 4
        %v851 = vshll.u32 %v736, 16
        %v853 = vrot.slane %v851, 5
        %v854 = vor.u32 %v850, %v853
        %v855 = vrot.slane %v854, 4
        %v857 = vshll.u32 %v737, 16
        %v859 = vrot.slane %v857, 5
        %v860 = vsel %vm798, %v855, %v859
        %v861 = vshrl.u32 %v737, 16
        %v863 = vrot.slane %v861, 4
        %v864 = vor.u32 %v863, %v859
        %v865 = vrot.slane %v864, 4
        %v867 = vshll.u32 %v782, 16
        %v869 = vrot.slane %v867, 5
        %v870 = vsel %vm798, %v865, %v869
        %v872 = vshrl.u32 %v738, 16
        %v874 = vrot.slane %v872, 4
        %v875 = vshll.u32 %v738, 16
        %v877 = vrot.slane %v875, 5
        %v878 = vor.u32 %v874, %v877
        %v879 = vrot.slane %v878, 4
        %v881 = vshll.u32 %v739, 16
        %v883 = vrot.slane %v881, 5
        %v884 = vsel %vm798, %v879, %v883
        %v885 = vshrl.u32 %v739, 16
        %v887 = vrot.slane %v885, 4
        %v888 = vor.u32 %v887, %v883
        %v889 = vrot.slane %v888, 4
        %v891 = vshll.u32 %v783, 16
        %v893 = vrot.slane %v891, 5
        %v894 = vsel %vm798, %v889, %v893
        %v896 = vshrl.u32 %v740, 16
        %v898 = vrot.slane %v896, 4
        %v899 = vshll.u32 %v740, 16
        %v901 = vrot.slane %v899, 5
        %v902 = vor.u32 %v898, %v901
        %v903 = vrot.slane %v902, 4
        %v905 = vshll.u32 %v741, 16
        %v907 = vrot.slane %v905, 5
        %v908 = vsel %vm798, %v903, %v907
        %v909 = vshrl.u32 %v741, 16
        %v911 = vrot.slane %v909, 4
        %v912 = vor.u32 %v911, %v907
        %v913 = vrot.slane %v912, 4
        %v915 = vshll.u32 %v784, 16
        %v917 = vrot.slane %v915, 5
        %v918 = vsel %vm798, %v913, %v917
        %v920 = vshrl.u32 %v742, 16
        %v922 = vrot.slane %v920, 4
        %v923 = vshll.u32 %v742, 16
        %v925 = vrot.slane %v923, 5
        %v926 = vor.u32 %v922, %v925
        %v927 = vrot.slane %v926, 4
        %v929 = vshll.u32 %v743, 16
        %v931 = vrot.slane %v929, 5
        %v932 = vsel %vm798, %v927, %v931
        %v933 = vshrl.u32 %v743, 16
        %v935 = vrot.slane %v933, 4
        %v936 = vor.u32 %v935, %v931
        %v937 = vrot.slane %v936, 4
        %v939 = vshll.u32 %v785, 16
        %v941 = vrot.slane %v939, 5
        %v942 = vsel %vm798, %v937, %v941
        %v944 = vshrl.u32 %v744, 16
        %v946 = vrot.slane %v944, 4
        %v947 = vshll.u32 %v744, 16
        %v949 = vrot.slane %v947, 5
        %v950 = vor.u32 %v946, %v949
        %v951 = vrot.slane %v950, 4
        %v953 = vshll.u32 %v745, 16
        %v955 = vrot.slane %v953, 5
        %v956 = vsel %vm798, %v951, %v955
        %v957 = vshrl.u32 %v745, 16
        %v959 = vrot.slane %v957, 4
        %v960 = vor.u32 %v959, %v955
        %v961 = vrot.slane %v960, 4
        %v963 = vshll.u32 %v786, 16
        %v965 = vrot.slane %v963, 5
        %v966 = vsel %vm798, %v961, %v965
        %v968 = vshrl.u32 %v746, 16
        %v970 = vrot.slane %v968, 4
        %v971 = vshll.u32 %v746, 16
        %v973 = vrot.slane %v971, 5
        %v974 = vor.u32 %v970, %v973
        %v975 = vrot.slane %v974, 4
        %v977 = vshll.u32 %v747, 16
        %v979 = vrot.slane %v977, 5
        %v980 = vsel %vm798, %v975, %v979
        %v981 = vshrl.u32 %v747, 16
        %v983 = vrot.slane %v981, 4
        %v984 = vor.u32 %v983, %v979
        %v985 = vrot.slane %v984, 4
        %v987 = vshll.u32 %v787, 16
        %v989 = vrot.slane %v987, 5
        %v990 = vsel %vm798, %v985, %v989
        %v992 = vshrl.u32 %v748, 16
        %v994 = vrot.slane %v992, 4
        %v995 = vshll.u32 %v748, 16
        %v997 = vrot.slane %v995, 5
        %v998 = vor.u32 %v994, %v997
        %v999 = vrot.slane %v998, 4
        %v1001 = vshll.u32 %v749, 16
        %v1003 = vrot.slane %v1001, 5
        %v1004 = vsel %vm798, %v999, %v1003
        %v1005 = vshrl.u32 %v749, 16
        %v1007 = vrot.slane %v1005, 4
        %v1008 = vor.u32 %v1007, %v1003
        %v1009 = vrot.slane %v1008, 4
        %v1011 = vshll.u32 %v788, 16
        %v1013 = vrot.slane %v1011, 5
        %v1014 = vsel %vm798, %v1009, %v1013
        %v1016 = vshrl.u32 %v750, 16
        %v1018 = vrot.slane %v1016, 4
        %v1019 = vshll.u32 %v750, 16
        %v1021 = vrot.slane %v1019, 5
        %v1022 = vor.u32 %v1018, %v1021
        %v1023 = vrot.slane %v1022, 4
        %v1025 = vshll.u32 %v751, 16
        %v1027 = vrot.slane %v1025, 5
        %v1028 = vsel %vm798, %v1023, %v1027
        %v1029 = vshrl.u32 %v751, 16
        %v1031 = vrot.slane %v1029, 4
        %v1032 = vor.u32 %v1031, %v1027
        %v1033 = vrot.slane %v1032, 4
        %v1035 = vshll.u32 %v789, 16
        %v1037 = vrot.slane %v1035, 5
        %v1038 = vsel %vm798, %v1033, %v1037
        %v1040 = vshrl.u32 %v752, 16
        %v1042 = vrot.slane %v1040, 4
        %v1043 = vshll.u32 %v752, 16
        %v1045 = vrot.slane %v1043, 5
        %v1046 = vor.u32 %v1042, %v1045
        %v1047 = vrot.slane %v1046, 4
        %v1049 = vshll.u32 %v753, 16
        %v1051 = vrot.slane %v1049, 5
        %v1052 = vsel %vm798, %v1047, %v1051
        %v1053 = vshrl.u32 %v753, 16
        %v1055 = vrot.slane %v1053, 4
        %v1056 = vor.u32 %v1055, %v1051
        %v1057 = vrot.slane %v1056, 4
        %v1059 = vshll.u32 %v790, 16
        %v1061 = vrot.slane %v1059, 5
        %v1062 = vsel %vm798, %v1057, %v1061
        %v1064 = vshrl.u32 %v754, 16
        %v1066 = vrot.slane %v1064, 4
        %v1067 = vshll.u32 %v754, 16
        %v1069 = vrot.slane %v1067, 5
        %v1070 = vor.u32 %v1066, %v1069
        %v1071 = vrot.slane %v1070, 4
        %v1073 = vshll.u32 %v755, 16
        %v1075 = vrot.slane %v1073, 5
        %v1076 = vsel %vm798, %v1071, %v1075
        %v1077 = vshrl.u32 %v755, 16
        %v1079 = vrot.slane %v1077, 4
        %v1080 = vor.u32 %v1079, %v1075
        %v1081 = vrot.slane %v1080, 4
        %v1083 = vshll.u32 %v791, 16
        %v1085 = vrot.slane %v1083, 5
        %v1086 = vsel %vm798, %v1081, %v1085
        %v1088 = vshrl.u32 %v756, 16
        %v1090 = vrot.slane %v1088, 4
        %v1091 = vshll.u32 %v756, 16
        %v1093 = vrot.slane %v1091, 5
        %v1094 = vor.u32 %v1090, %v1093
        %v1095 = vrot.slane %v1094, 4
        %v1097 = vshll.u32 %v757, 16
        %v1099 = vrot.slane %v1097, 5
        %v1100 = vsel %vm798, %v1095, %v1099
        %v1101 = vshrl.u32 %v757, 16
        %v1103 = vrot.slane %v1101, 4
        %v1104 = vor.u32 %v1103, %v1099
        %v1105 = vrot.slane %v1104, 4
        %v1107 = vshll.u32 %v792, 16
        %v1109 = vrot.slane %v1107, 5
        %v1110 = vsel %vm798, %v1105, %v1109
        %v1112 = vshrl.u32 %v758, 16
        %v1114 = vrot.slane %v1112, 4
        %v1115 = vshll.u32 %v758, 16
        %v1117 = vrot.slane %v1115, 5
        %v1118 = vor.u32 %v1114, %v1117
        %v1119 = vrot.slane %v1118, 4
        %v1121 = vshll.u32 %v759, 16
        %v1123 = vrot.slane %v1121, 5
        %v1124 = vsel %vm798, %v1119, %v1123
        %v1125 = vshrl.u32 %v759, 16
        %v1127 = vrot.slane %v1125, 4
        %v1128 = vor.u32 %v1127, %v1123
        %v1129 = vrot.slane %v1128, 4
        %v1131 = vshll.u32 %v793, 16
        %v1133 = vrot.slane %v1131, 5
        %v1134 = vsel %vm798, %v1129, %v1133
        %v1136 = vshrl.u32 %v760, 16
        %v1138 = vrot.slane %v1136, 4
        %v1139 = vshll.u32 %v760, 16
        %v1141 = vrot.slane %v1139, 5
        %v1142 = vor.u32 %v1138, %v1141
        %v1143 = vrot.slane %v1142, 4
        %v1145 = vshll.u32 %v761, 16
        %v1147 = vrot.slane %v1145, 5
        %v1148 = vsel %vm798, %v1143, %v1147
        %v1149 = vshrl.u32 %v761, 16
        %v1151 = vrot.slane %v1149, 4
        %v1152 = vor.u32 %v1151, %v1147
        %v1153 = vrot.slane %v1152, 4
        %v1155 = vshll.u32 %v794, 16
        %v1157 = vrot.slane %v1155, 5
        %v1158 = vsel %vm798, %v1153, %v1157
        %v1160 = vshrl.u32 %v762, 16
        %v1162 = vrot.slane %v1160, 4
        %v1163 = vshll.u32 %v762, 16
        %v1165 = vrot.slane %v1163, 5
        %v1166 = vor.u32 %v1162, %v1165
        %v1167 = vrot.slane %v1166, 4
        %v1169 = vshll.u32 %v763, 16
        %v1171 = vrot.slane %v1169, 5
        %v1172 = vsel %vm798, %v1167, %v1171
        %v1173 = vshrl.u32 %v763, 16
        %v1175 = vrot.slane %v1173, 4
        %v1176 = vor.u32 %v1175, %v1171
        %v1177 = vrot.slane %v1176, 4
        %v1179 = vshll.u32 %v795, 16
        %v1181 = vrot.slane %v1179, 5
        %v1182 = vsel %vm798, %v1177, %v1181
        %s1183 = scalar_lea.vmem [#allocation6], 64
        %v1184 = vld [vmem:[%s1183] sm:$0xf]
        %v1185 = vld [vmem:[%s1183 + $0x4] sm:$0xf]
        %v1186 = vld [vmem:[%s1183 + $0x8] sm:$0xf]
        %v1187 = vld [vmem:[%s1183 + $0xc] sm:$0xf]
        %v1188 = vld [vmem:[%s1183 + $0x10] sm:$0xf]
        %v1189 = vld [vmem:[%s1183 + $0x14] sm:$0xf]
        %v1190 = vld [vmem:[%s1183 + $0x18] sm:$0xf]
        %v1191 = vld [vmem:[%s1183 + $0x1c] sm:$0xf]
        %v1192 = vld [vmem:[%s1183 + $0x20] sm:$0xf]
        %v1193 = vld [vmem:[%s1183 + $0x24] sm:$0xf]
        %v1194 = vld [vmem:[%s1183 + $0x28] sm:$0xf]
        %v1195 = vld [vmem:[%s1183 + $0x2c] sm:$0xf]
        %v1196 = vld [vmem:[%s1183 + $0x30] sm:$0xf]
        %v1197 = vld [vmem:[%s1183 + $0x34] sm:$0xf]
        %v1198 = vld [vmem:[%s1183 + $0x38] sm:$0xf]
        %v1199 = vld [vmem:[%s1183 + $0x3c] sm:$0xf]
        %v1200 = vunpack.c.l.b16 %v812
        %v1201 = vunpack.c.l.b16 %v822
        %v1202 = vunpack.c.l.b16 %v836
        %v1203 = vunpack.c.l.b16 %v846
        %v1204 = vunpack.c.l.b16 %v860
        %v1205 = vunpack.c.l.b16 %v870
        %v1206 = vunpack.c.l.b16 %v884
        %v1207 = vunpack.c.l.b16 %v894
        %v1208 = vunpack.c.l.b16 %v908
        %v1209 = vunpack.c.l.b16 %v918
        %v1210 = vunpack.c.l.b16 %v932
        %v1211 = vunpack.c.l.b16 %v942
        %v1212 = vunpack.c.l.b16 %v956
        %v1213 = vunpack.c.l.b16 %v966
        %v1214 = vunpack.c.l.b16 %v980
        %v1215 = vunpack.c.l.b16 %v990
        %v1216 = vunpack.c.l.b16 %v1004
        %v1217 = vunpack.c.l.b16 %v1014
        %v1218 = vunpack.c.l.b16 %v1028
        %v1219 = vunpack.c.l.b16 %v1038
        %v1220 = vunpack.c.l.b16 %v1052
        %v1221 = vunpack.c.l.b16 %v1062
        %v1222 = vunpack.c.l.b16 %v1076
        %v1223 = vunpack.c.l.b16 %v1086
        %v1224 = vunpack.c.l.b16 %v1100
        %v1225 = vunpack.c.l.b16 %v1110
        %v1226 = vunpack.c.l.b16 %v1124
        %v1227 = vunpack.c.l.b16 %v1134
        %v1228 = vunpack.c.l.b16 %v1148
        %v1229 = vunpack.c.l.b16 %v1158
        %v1230 = vunpack.c.l.b16 %v1172
        %v1231 = vunpack.c.l.b16 %v1182
        %v1232 = vpack.c.b16 %v1201, %v1200
        %v1233 = vpack.c.b16 %v1203, %v1202
        %v1234 = vpack.c.b16 %v1205, %v1204
        %v1235 = vpack.c.b16 %v1207, %v1206
        %v1236 = vpack.c.b16 %v1209, %v1208
        %v1237 = vpack.c.b16 %v1211, %v1210
        %v1238 = vpack.c.b16 %v1213, %v1212
        %v1239 = vpack.c.b16 %v1215, %v1214
        %v1240 = vpack.c.b16 %v1217, %v1216
        %v1241 = vpack.c.b16 %v1219, %v1218
        %v1242 = vpack.c.b16 %v1221, %v1220
        %v1243 = vpack.c.b16 %v1223, %v1222
        %v1244 = vpack.c.b16 %v1225, %v1224
        %v1245 = vpack.c.b16 %v1227, %v1226
        %v1246 = vpack.c.b16 %v1229, %v1228
        %v1247 = vpack.c.b16 %v1231, %v1230
        %v1280 = vunpack.c.l.b16 %v1184
        %v1281 = vunpack.c.l.b16 %v1185
        %v1282 = vunpack.c.l.b16 %v1186
        %v1283 = vunpack.c.l.b16 %v1187
        %v1284 = vunpack.c.l.b16 %v1188
        %v1285 = vunpack.c.l.b16 %v1189
        %v1286 = vunpack.c.l.b16 %v1190
        %v1287 = vunpack.c.l.b16 %v1191
        %v1288 = vunpack.c.l.b16 %v1192
        %v1289 = vunpack.c.l.b16 %v1193
        %v1290 = vunpack.c.l.b16 %v1194
        %v1291 = vunpack.c.l.b16 %v1195
        %v1292 = vunpack.c.l.b16 %v1196
        %v1293 = vunpack.c.l.b16 %v1197
        %v1294 = vunpack.c.l.b16 %v1198
        %v1295 = vunpack.c.l.b16 %v1199
        %v1296 = vpack.c.b16 %v1281, %v1280
        %v1297 = vpack.c.b16 %v1283, %v1282
        %v1298 = vpack.c.b16 %v1285, %v1284
        %v1299 = vpack.c.b16 %v1287, %v1286
        %v1300 = vpack.c.b16 %v1289, %v1288
        %v1301 = vpack.c.b16 %v1291, %v1290
        %v1302 = vpack.c.b16 %v1293, %v1292
        %v1303 = vpack.c.b16 %v1295, %v1294
        %1312 = vmatprep.subr.bf16.mxu0 0
        %1313 = vmatpush1.bf16.msra.mxu0 %v1296
        %1314 = vmatprep.subr.bf16.mxu0 0
        %1315 = vmatpush1.bf16.msra.mxu0 %v1297
        %1316 = vmatprep.subr.bf16.mxu0 0
        %1317 = vmatpush1.bf16.msra.mxu0 %v1298
        %1318 = vmatprep.subr.bf16.mxu0 0
        %1319 = vmatpush1.bf16.msra.mxu0 %v1299
        %1320 = vmatprep.subr.bf16.mxu0 0
        %1321 = vmatpush1.bf16.msra.mxu0 %v1300
        %1322 = vmatprep.subr.bf16.mxu0 0
        %1323 = vmatpush1.bf16.msra.mxu0 %v1301
        %1324 = vmatprep.subr.bf16.mxu0 0
        %1325 = vmatpush1.bf16.msra.mxu0 %v1302
        %1326 = vmatprep.subr.bf16.mxu0 0
        %1327 = vmatpush1.bf16.msra.mxu0 %v1303
        %1328 = vmatprep.subr.bf16.mxu0 0
        %1329 = vmatpush1.bf16.msra.mxu0 0
        %1330 = vmatprep.subr.bf16.mxu0 0
        %1331 = vmatpush1.bf16.msra.mxu0 0
        %1332 = vmatprep.subr.bf16.mxu0 0
        %1333 = vmatpush1.bf16.msra.mxu0 0
        %1334 = vmatprep.subr.bf16.mxu0 0
        %1335 = vmatpush1.bf16.msra.mxu0 0
        %1336 = vmatprep.subr.bf16.mxu0 0
        %1337 = vmatpush1.bf16.msra.mxu0 0
        %1338 = vmatprep.subr.bf16.mxu0 0
        %1339 = vmatpush1.bf16.msra.mxu0 0
        %1340 = vmatprep.subr.bf16.mxu0 0
        %1341 = vmatpush1.bf16.msra.mxu0 0
        %1342 = vmatprep.subr.bf16.mxu0 0
        %1343 = vmatpush1.bf16.msra.mxu0 0
        %1344 = vmatprep.mubr.bf16.mxu0 0
        %1345 = vmatmul.mubr.bf16.gmra.mrb[0].mxu0 %v1232
        %v1346 = vpop.f32.mrb[0].mxu0
        %v1347 = vadd.f32 0.0, %v1346
        %v1348 = vpop.f32.mrb[0].mxu0
        %v1349 = vpop.f32.mrb[0].mxu0
        %v1350 = vadd.f32 0.0, %v1349
        %v1351 = vpop.f32.mrb[0].mxu0
        %1352 = vmatprep.mubr.bf16.mxu0 0
        %1353 = vmatmul.mubr.bf16.gmra.mrb[0].mxu0 %v1233
        %v1354 = vpop.f32.mrb[0].mxu0
        %v1355 = vadd.f32 0.0, %v1354
        %v1356 = vpop.f32.mrb[0].mxu0
        %v1357 = vpop.f32.mrb[0].mxu0
        %v1358 = vadd.f32 0.0, %v1357
        %v1359 = vpop.f32.mrb[0].mxu0
        %1360 = vmatprep.mubr.bf16.mxu0 0
        %1361 = vmatmul.mubr.bf16.gmra.mrb[0].mxu0 %v1234
        %v1362 = vpop.f32.mrb[0].mxu0
        %v1363 = vadd.f32 0.0, %v1362
        %v1364 = vpop.f32.mrb[0].mxu0
        %v1365 = vpop.f32.mrb[0].mxu0
        %v1366 = vadd.f32 0.0, %v1365
        %v1367 = vpop.f32.mrb[0].mxu0
        %1368 = vmatprep.mubr.bf16.mxu0 0
        %1369 = vmatmul.mubr.bf16.gmra.mrb[0].mxu0 %v1235
        %v1370 = vpop.f32.mrb[0].mxu0
        %v1371 = vadd.f32 0.0, %v1370
        %v1372 = vpop.f32.mrb[0].mxu0
        %v1373 = vpop.f32.mrb[0].mxu0
        %v1374 = vadd.f32 0.0, %v1373
        %v1375 = vpop.f32.mrb[0].mxu0
        %1376 = vmatprep.mubr.bf16.mxu0 0
        %1377 = vmatmul.mubr.bf16.gmra.mrb[0].mxu0 %v1236
        %v1378 = vpop.f32.mrb[0].mxu0
        %v1379 = vadd.f32 0.0, %v1378
        %v1380 = vpop.f32.mrb[0].mxu0
        %v1381 = vpop.f32.mrb[0].mxu0
        %v1382 = vadd.f32 0.0, %v1381
        %v1383 = vpop.f32.mrb[0].mxu0
        %1384 = vmatprep.mubr.bf16.mxu0 0
        %1385 = vmatmul.mubr.bf16.gmra.mrb[0].mxu0 %v1237
        %v1386 = vpop.f32.mrb[0].mxu0
        %v1387 = vadd.f32 0.0, %v1386
        %v1388 = vpop.f32.mrb[0].mxu0
        %v1389 = vpop.f32.mrb[0].mxu0
        %v1390 = vadd.f32 0.0, %v1389
        %v1391 = vpop.f32.mrb[0].mxu0
        %1392 = vmatprep.mubr.bf16.mxu0 0
        %1393 = vmatmul.mubr.bf16.gmra.mrb[0].mxu0 %v1238
        %v1394 = vpop.f32.mrb[0].mxu0
        %v1395 = vadd.f32 0.0, %v1394
        %v1396 = vpop.f32.mrb[0].mxu0
        %v1397 = vpop.f32.mrb[0].mxu0
        %v1398 = vadd.f32 0.0, %v1397
        %v1399 = vpop.f32.mrb[0].mxu0
        %1400 = vmatprep.mubr.bf16.mxu0 0
        %1401 = vmatmul.mubr.bf16.gmra.mrb[0].mxu0 %v1239
        %v1402 = vpop.f32.mrb[0].mxu0
        %v1403 = vadd.f32 0.0, %v1402
        %v1404 = vpop.f32.mrb[0].mxu0
        %v1405 = vpop.f32.mrb[0].mxu0
        %v1406 = vadd.f32 0.0, %v1405
        %v1407 = vpop.f32.mrb[0].mxu0
        %1408 = vmatprep.mubr.bf16.mxu0 0
        %1409 = vmatmul.mubr.bf16.gmra.mrb[0].mxu0 %v1240
        %v1410 = vpop.f32.mrb[0].mxu0
        %v1411 = vadd.f32 0.0, %v1410
        %v1412 = vpop.f32.mrb[0].mxu0
        %v1413 = vpop.f32.mrb[0].mxu0
        %v1414 = vadd.f32 0.0, %v1413
        %v1415 = vpop.f32.mrb[0].mxu0
        %1416 = vmatprep.mubr.bf16.mxu0 0
        %1417 = vmatmul.mubr.bf16.gmra.mrb[0].mxu0 %v1241
        %v1418 = vpop.f32.mrb[0].mxu0
        %v1419 = vadd.f32 0.0, %v1418
        %v1420 = vpop.f32.mrb[0].mxu0
        %v1421 = vpop.f32.mrb[0].mxu0
        %v1422 = vadd.f32 0.0, %v1421
        %v1423 = vpop.f32.mrb[0].mxu0
        %1424 = vmatprep.mubr.bf16.mxu0 0
        %1425 = vmatmul.mubr.bf16.gmra.mrb[0].mxu0 %v1242
        %v1426 = vpop.f32.mrb[0].mxu0
        %v1427 = vadd.f32 0.0, %v1426
        %v1428 = vpop.f32.mrb[0].mxu0
        %v1429 = vpop.f32.mrb[0].mxu0
        %v1430 = vadd.f32 0.0, %v1429
        %v1431 = vpop.f32.mrb[0].mxu0
        %1432 = vmatprep.mubr.bf16.mxu0 0
        %1433 = vmatmul.mubr.bf16.gmra.mrb[0].mxu0 %v1243
        %v1434 = vpop.f32.mrb[0].mxu0
        %v1435 = vadd.f32 0.0, %v1434
        %v1436 = vpop.f32.mrb[0].mxu0
        %v1437 = vpop.f32.mrb[0].mxu0
        %v1438 = vadd.f32 0.0, %v1437
        %v1439 = vpop.f32.mrb[0].mxu0
        %1440 = vmatprep.mubr.bf16.mxu0 0
        %1441 = vmatmul.mubr.bf16.gmra.mrb[0].mxu0 %v1244
        %v1442 = vpop.f32.mrb[0].mxu0
        %v1443 = vadd.f32 0.0, %v1442
        %v1444 = vpop.f32.mrb[0].mxu0
        %v1445 = vpop.f32.mrb[0].mxu0
        %v1446 = vadd.f32 0.0, %v1445
        %v1447 = vpop.f32.mrb[0].mxu0
        %1448 = vmatprep.mubr.bf16.mxu0 0
        %1449 = vmatmul.mubr.bf16.gmra.mrb[0].mxu0 %v1245
        %v1450 = vpop.f32.mrb[0].mxu0
        %v1451 = vadd.f32 0.0, %v1450
        %v1452 = vpop.f32.mrb[0].mxu0
        %v1453 = vpop.f32.mrb[0].mxu0
        %v1454 = vadd.f32 0.0, %v1453
        %v1455 = vpop.f32.mrb[0].mxu0
        %1456 = vmatprep.mubr.bf16.mxu0 0
        %1457 = vmatmul.mubr.bf16.gmra.mrb[0].mxu0 %v1246
        %v1458 = vpop.f32.mrb[0].mxu0
        %v1459 = vadd.f32 0.0, %v1458
        %v1460 = vpop.f32.mrb[0].mxu0
        %v1461 = vpop.f32.mrb[0].mxu0
        %v1462 = vadd.f32 0.0, %v1461
        %v1463 = vpop.f32.mrb[0].mxu0
        %1464 = vmatprep.mubr.bf16.mxu0 0
        %1465 = vmatmul.mubr.bf16.gmra.mrb[0].mxu0 %v1247
        %v1466 = vpop.f32.mrb[0].mxu0
        %v1467 = vadd.f32 0.0, %v1466
        %v1468 = vpop.f32.mrb[0].mxu0
        %v1469 = vpop.f32.mrb[0].mxu0
        %v1470 = vadd.f32 0.0, %v1469
        %v1471 = vpop.f32.mrb[0].mxu0
        %1472 = vdwg.mxu0
        %v1505 = vunpack.c.l.b16 %v732
        %v1506 = vunpack.c.l.b16 %v733
        %v1507 = vunpack.c.l.b16 %v734
        %v1508 = vunpack.c.l.b16 %v735
        %v1509 = vunpack.c.l.b16 %v736
        %v1510 = vunpack.c.l.b16 %v737
        %v1511 = vunpack.c.l.b16 %v738
        %v1512 = vunpack.c.l.b16 %v739
        %v1513 = vunpack.c.l.b16 %v740
        %v1514 = vunpack.c.l.b16 %v741
        %v1515 = vunpack.c.l.b16 %v742
        %v1516 = vunpack.c.l.b16 %v743
        %v1517 = vunpack.c.l.b16 %v744
        %v1518 = vunpack.c.l.b16 %v745
        %v1519 = vunpack.c.l.b16 %v746
        %v1520 = vunpack.c.l.b16 %v747
        %v1521 = vunpack.c.l.b16 %v748
        %v1522 = vunpack.c.l.b16 %v749
        %v1523 = vunpack.c.l.b16 %v750
        %v1524 = vunpack.c.l.b16 %v751
        %v1525 = vunpack.c.l.b16 %v752
        %v1526 = vunpack.c.l.b16 %v753
        %v1527 = vunpack.c.l.b16 %v754
        %v1528 = vunpack.c.l.b16 %v755
        %v1529 = vunpack.c.l.b16 %v756
        %v1530 = vunpack.c.l.b16 %v757
        %v1531 = vunpack.c.l.b16 %v758
        %v1532 = vunpack.c.l.b16 %v759
        %v1533 = vunpack.c.l.b16 %v760
        %v1534 = vunpack.c.l.b16 %v761
        %v1535 = vunpack.c.l.b16 %v762
        %v1536 = vunpack.c.l.b16 %v763
        %v1537 = vpack.c.b16 %v1506, %v1505
        %v1538 = vpack.c.b16 %v1508, %v1507
        %v1539 = vpack.c.b16 %v1510, %v1509
        %v1540 = vpack.c.b16 %v1512, %v1511
        %v1541 = vpack.c.b16 %v1514, %v1513
        %v1542 = vpack.c.b16 %v1516, %v1515
        %v1543 = vpack.c.b16 %v1518, %v1517
        %v1544 = vpack.c.b16 %v1520, %v1519
        %v1545 = vpack.c.b16 %v1522, %v1521
        %v1546 = vpack.c.b16 %v1524, %v1523
        %v1547 = vpack.c.b16 %v1526, %v1525
        %v1548 = vpack.c.b16 %v1528, %v1527
        %v1549 = vpack.c.b16 %v1530, %v1529
        %v1550 = vpack.c.b16 %v1532, %v1531
        %v1551 = vpack.c.b16 %v1534, %v1533
        %v1552 = vpack.c.b16 %v1536, %v1535
        %v1585 = vunpack.c.l.b16 %v764
        %v1586 = vunpack.c.l.b16 %v765
        %v1587 = vunpack.c.l.b16 %v766
        %v1588 = vunpack.c.l.b16 %v767
        %v1589 = vunpack.c.l.b16 %v768
        %v1590 = vunpack.c.l.b16 %v769
        %v1591 = vunpack.c.l.b16 %v770
        %v1592 = vunpack.c.l.b16 %v771
        %v1593 = vunpack.c.l.b16 %v772
        %v1594 = vunpack.c.l.b16 %v773
        %v1595 = vunpack.c.l.b16 %v774
        %v1596 = vunpack.c.l.b16 %v775
        %v1597 = vunpack.c.l.b16 %v776
        %v1598 = vunpack.c.l.b16 %v777
        %v1599 = vunpack.c.l.b16 %v778
        %v1600 = vunpack.c.l.b16 %v779
        %v1601 = vpack.c.b16 %v1586, %v1585
        %v1602 = vpack.c.b16 %v1588, %v1587
        %v1603 = vpack.c.b16 %v1590, %v1589
        %v1604 = vpack.c.b16 %v1592, %v1591
        %v1605 = vpack.c.b16 %v1594, %v1593
        %v1606 = vpack.c.b16 %v1596, %v1595
        %v1607 = vpack.c.b16 %v1598, %v1597
        %v1608 = vpack.c.b16 %v1600, %v1599
        %1617 = vmatprep.subr.bf16.mxu0 0
        %1618 = vmatpush1.bf16.msra.mxu0 %v1601
        %1619 = vmatprep.subr.bf16.mxu0 0
        %1620 = vmatpush1.bf16.msra.mxu0 %v1602
        %1621 = vmatprep.subr.bf16.mxu0 0
        %1622 = vmatpush1.bf16.msra.mxu0 %v1603
        %1623 = vmatprep.subr.bf16.mxu0 0
        %1624 = vmatpush1.bf16.msra.mxu0 %v1604
        %1625 = vmatprep.subr.bf16.mxu0 0
        %1626 = vmatpush1.bf16.msra.mxu0 %v1605
        %1627 = vmatprep.subr.bf16.mxu0 0
        %1628 = vmatpush1.bf16.msra.mxu0 %v1606
        %1629 = vmatprep.subr.bf16.mxu0 0
        %1630 = vmatpush1.bf16.msra.mxu0 %v1607
        %1631 = vmatprep.subr.bf16.mxu0 0
        %1632 = vmatpush1.bf16.msra.mxu0 %v1608
        %1633 = vmatprep.subr.bf16.mxu0 0
        %1634 = vmatpush1.bf16.msra.mxu0 0
        %1635 = vmatprep.subr.bf16.mxu0 0
        %1636 = vmatpush1.bf16.msra.mxu0 0
        %1637 = vmatprep.subr.bf16.mxu0 0
        %1638 = vmatpush1.bf16.msra.mxu0 0
        %1639 = vmatprep.subr.bf16.mxu0 0
        %1640 = vmatpush1.bf16.msra.mxu0 0
        %1641 = vmatprep.subr.bf16.mxu0 0
        %1642 = vmatpush1.bf16.msra.mxu0 0
        %1643 = vmatprep.subr.bf16.mxu0 0
        %1644 = vmatpush1.bf16.msra.mxu0 0
        %1645 = vmatprep.subr.bf16.mxu0 0
        %1646 = vmatpush1.bf16.msra.mxu0 0
        %1647 = vmatprep.subr.bf16.mxu0 0
        %1648 = vmatpush1.bf16.msra.mxu0 0
        %1649 = vmatprep.mubr.bf16.mxu0 0
        %1650 = vmatmul.mubr.bf16.gmra.mrb[0].mxu0 %v1537
        %v1651 = vpop.f32.mrb[0].mxu0
        %v1652 = vadd.f32 %v1347, %v1651
        %v1653 = vpop.f32.mrb[0].mxu0
        %v1654 = vpop.f32.mrb[0].mxu0
        %v1655 = vadd.f32 %v1350, %v1654
        %v1656 = vpop.f32.mrb[0].mxu0
        %1657 = vmatprep.mubr.bf16.mxu0 0
        %1658 = vmatmul.mubr.bf16.gmra.mrb[0].mxu0 %v1538
        %v1659 = vpop.f32.mrb[0].mxu0
        %v1660 = vadd.f32 %v1355, %v1659
        %v1661 = vpop.f32.mrb[0].mxu0
        %v1662 = vpop.f32.mrb[0].mxu0
        %v1663 = vadd.f32 %v1358, %v1662
        %v1664 = vpop.f32.mrb[0].mxu0
        %1665 = vmatprep.mubr.bf16.mxu0 0
        %1666 = vmatmul.mubr.bf16.gmra.mrb[0].mxu0 %v1539
        %v1667 = vpop.f32.mrb[0].mxu0
        %v1668 = vadd.f32 %v1363, %v1667
        %v1669 = vpop.f32.mrb[0].mxu0
        %v1670 = vpop.f32.mrb[0].mxu0
        %v1671 = vadd.f32 %v1366, %v1670
        %v1672 = vpop.f32.mrb[0].mxu0
        %1673 = vmatprep.mubr.bf16.mxu0 0
        %1674 = vmatmul.mubr.bf16.gmra.mrb[0].mxu0 %v1540
        %v1675 = vpop.f32.mrb[0].mxu0
        %v1676 = vadd.f32 %v1371, %v1675
        %v1677 = vpop.f32.mrb[0].mxu0
        %v1678 = vpop.f32.mrb[0].mxu0
        %v1679 = vadd.f32 %v1374, %v1678
        %v1680 = vpop.f32.mrb[0].mxu0
        %1681 = vmatprep.mubr.bf16.mxu0 0
        %1682 = vmatmul.mubr.bf16.gmra.mrb[0].mxu0 %v1541
        %v1683 = vpop.f32.mrb[0].mxu0
        %v1684 = vadd.f32 %v1379, %v1683
        %v1685 = vpop.f32.mrb[0].mxu0
        %v1686 = vpop.f32.mrb[0].mxu0
        %v1687 = vadd.f32 %v1382, %v1686
        %v1688 = vpop.f32.mrb[0].mxu0
        %1689 = vmatprep.mubr.bf16.mxu0 0
        %1690 = vmatmul.mubr.bf16.gmra.mrb[0].mxu0 %v1542
        %v1691 = vpop.f32.mrb[0].mxu0
        %v1692 = vadd.f32 %v1387, %v1691
        %v1693 = vpop.f32.mrb[0].mxu0
        %v1694 = vpop.f32.mrb[0].mxu0
        %v1695 = vadd.f32 %v1390, %v1694
        %v1696 = vpop.f32.mrb[0].mxu0
        %1697 = vmatprep.mubr.bf16.mxu0 0
        %1698 = vmatmul.mubr.bf16.gmra.mrb[0].mxu0 %v1543
        %v1699 = vpop.f32.mrb[0].mxu0
        %v1700 = vadd.f32 %v1395, %v1699
        %v1701 = vpop.f32.mrb[0].mxu0
        %v1702 = vpop.f32.mrb[0].mxu0
        %v1703 = vadd.f32 %v1398, %v1702
        %v1704 = vpop.f32.mrb[0].mxu0
        %1705 = vmatprep.mubr.bf16.mxu0 0
        %1706 = vmatmul.mubr.bf16.gmra.mrb[0].mxu0 %v1544
        %v1707 = vpop.f32.mrb[0].mxu0
        %v1708 = vadd.f32 %v1403, %v1707
        %v1709 = vpop.f32.mrb[0].mxu0
        %v1710 = vpop.f32.mrb[0].mxu0
        %v1711 = vadd.f32 %v1406, %v1710
        %v1712 = vpop.f32.mrb[0].mxu0
        %1713 = vmatprep.mubr.bf16.mxu0 0
        %1714 = vmatmul.mubr.bf16.gmra.mrb[0].mxu0 %v1545
        %v1715 = vpop.f32.mrb[0].mxu0
        %v1716 = vadd.f32 %v1411, %v1715
        %v1717 = vpop.f32.mrb[0].mxu0
        %v1718 = vpop.f32.mrb[0].mxu0
        %v1719 = vadd.f32 %v1414, %v1718
        %v1720 = vpop.f32.mrb[0].mxu0
        %1721 = vmatprep.mubr.bf16.mxu0 0
        %1722 = vmatmul.mubr.bf16.gmra.mrb[0].mxu0 %v1546
        %v1723 = vpop.f32.mrb[0].mxu0
        %v1724 = vadd.f32 %v1419, %v1723
        %v1725 = vpop.f32.mrb[0].mxu0
        %v1726 = vpop.f32.mrb[0].mxu0
        %v1727 = vadd.f32 %v1422, %v1726
        %v1728 = vpop.f32.mrb[0].mxu0
        %1729 = vmatprep.mubr.bf16.mxu0 0
        %1730 = vmatmul.mubr.bf16.gmra.mrb[0].mxu0 %v1547
        %v1731 = vpop.f32.mrb[0].mxu0
        %v1732 = vadd.f32 %v1427, %v1731
        %v1733 = vpop.f32.mrb[0].mxu0
        %v1734 = vpop.f32.mrb[0].mxu0
        %v1735 = vadd.f32 %v1430, %v1734
        %v1736 = vpop.f32.mrb[0].mxu0
        %1737 = vmatprep.mubr.bf16.mxu0 0
        %1738 = vmatmul.mubr.bf16.gmra.mrb[0].mxu0 %v1548
        %v1739 = vpop.f32.mrb[0].mxu0
        %v1740 = vadd.f32 %v1435, %v1739
        %v1741 = vpop.f32.mrb[0].mxu0
        %v1742 = vpop.f32.mrb[0].mxu0
        %v1743 = vadd.f32 %v1438, %v1742
        %v1744 = vpop.f32.mrb[0].mxu0
        %1745 = vmatprep.mubr.bf16.mxu0 0
        %1746 = vmatmul.mubr.bf16.gmra.mrb[0].mxu0 %v1549
        %v1747 = vpop.f32.mrb[0].mxu0
        %v1748 = vadd.f32 %v1443, %v1747
        %v1749 = vpop.f32.mrb[0].mxu0
        %v1750 = vpop.f32.mrb[0].mxu0
        %v1751 = vadd.f32 %v1446, %v1750
        %v1752 = vpop.f32.mrb[0].mxu0
        %1753 = vmatprep.mubr.bf16.mxu0 0
        %1754 = vmatmul.mubr.bf16.gmra.mrb[0].mxu0 %v1550
        %v1755 = vpop.f32.mrb[0].mxu0
        %v1756 = vadd.f32 %v1451, %v1755
        %v1757 = vpop.f32.mrb[0].mxu0
        %v1758 = vpop.f32.mrb[0].mxu0
        %v1759 = vadd.f32 %v1454, %v1758
        %v1760 = vpop.f32.mrb[0].mxu0
        %1761 = vmatprep.mubr.bf16.mxu0 0
        %1762 = vmatmul.mubr.bf16.gmra.mrb[0].mxu0 %v1551
        %v1763 = vpop.f32.mrb[0].mxu0
        %v1764 = vadd.f32 %v1459, %v1763
        %v1765 = vpop.f32.mrb[0].mxu0
        %v1766 = vpop.f32.mrb[0].mxu0
        %v1767 = vadd.f32 %v1462, %v1766
        %v1768 = vpop.f32.mrb[0].mxu0
        %1769 = vmatprep.mubr.bf16.mxu0 0
        %1770 = vmatmul.mubr.bf16.gmra.mrb[0].mxu0 %v1552
        %v1771 = vpop.f32.mrb[0].mxu0
        %v1772 = vadd.f32 %v1467, %v1771
        %v1773 = vpop.f32.mrb[0].mxu0
        %v1774 = vpop.f32.mrb[0].mxu0
        %v1775 = vadd.f32 %v1470, %v1774
        %v1776 = vpop.f32.mrb[0].mxu0
        %1777 = vdwg.mxu0
        %v1778 = vld [vmem:[#allocation2] sm:$0xe]
        %v1779 = vld [vmem:[#allocation2 + $0xc] sm:$0xe]
        %v1780 = vld [vmem:[#allocation2 + $0x18] sm:$0xe]
        %v1781 = vld [vmem:[#allocation2 + $0x24] sm:$0xe]
        %v1782 = vld [vmem:[#allocation2 + $0x30] sm:$0xe]
        %v1783 = vld [vmem:[#allocation2 + $0x3c] sm:$0xe]
        %v1784 = vld [vmem:[#allocation2 + $0x48] sm:$0xe]
        %v1785 = vld [vmem:[#allocation2 + $0x54] sm:$0xe]
        %v1786 = vld [vmem:[#allocation2 + $0x60] sm:$0xe]
        %v1787 = vld [vmem:[#allocation2 + $0x6c] sm:$0xe]
        %v1788 = vld [vmem:[#allocation2 + $0x78] sm:$0xe]
        %v1789 = vld [vmem:[#allocation2 + $0x84] sm:$0xe]
        %v1790 = vld [vmem:[#allocation2 + $0x90] sm:$0xe]
        %v1791 = vld [vmem:[#allocation2 + $0x9c] sm:$0xe]
        %v1792 = vld [vmem:[#allocation2 + $0xa8] sm:$0xe]
        %v1793 = vld [vmem:[#allocation2 + $0xb4] sm:$0xe]
        %vm1826 = vcmask 1042432
        %vm1827 = vcmask 1046532
        %vm1828 = vmor %vm1826, %vm1827
        %v1829 = vrot.slane %v1778, 5
        %v1830 = vrot.slane %v1829, 4
        %v1831 = vrot.slane %v733, 5
        %v1832 = vsel %vm1828, %v1830, %v1831
        %v1833 = vrot.slane %v1831, 4
        %v1834 = vrot.slane %v780, 5
        %v1835 = vsel %vm1828, %v1833, %v1834
        %v1836 = vrot.slane %v1779, 5
        %v1837 = vrot.slane %v1836, 4
        %v1838 = vrot.slane %v735, 5
        %v1839 = vsel %vm1828, %v1837, %v1838
        %v1840 = vrot.slane %v1838, 4
        %v1841 = vrot.slane %v781, 5
        %v1842 = vsel %vm1828, %v1840, %v1841
        %v1843 = vrot.slane %v1780, 5
        %v1844 = vrot.slane %v1843, 4
        %v1845 = vrot.slane %v737, 5
        %v1846 = vsel %vm1828, %v1844, %v1845
        %v1847 = vrot.slane %v1845, 4
        %v1848 = vrot.slane %v782, 5
        %v1849 = vsel %vm1828, %v1847, %v1848
        %v1850 = vrot.slane %v1781, 5
        %v1851 = vrot.slane %v1850, 4
        %v1852 = vrot.slane %v739, 5
        %v1853 = vsel %vm1828, %v1851, %v1852
        %v1854 = vrot.slane %v1852, 4
        %v1855 = vrot.slane %v783, 5
        %v1856 = vsel %vm1828, %v1854, %v1855
        %v1857 = vrot.slane %v1782, 5
        %v1858 = vrot.slane %v1857, 4
        %v1859 = vrot.slane %v741, 5
        %v1860 = vsel %vm1828, %v1858, %v1859
        %v1861 = vrot.slane %v1859, 4
        %v1862 = vrot.slane %v784, 5
        %v1863 = vsel %vm1828, %v1861, %v1862
        %v1864 = vrot.slane %v1783, 5
        %v1865 = vrot.slane %v1864, 4
        %v1866 = vrot.slane %v743, 5
        %v1867 = vsel %vm1828, %v1865, %v1866
        %v1868 = vrot.slane %v1866, 4
        %v1869 = vrot.slane %v785, 5
        %v1870 = vsel %vm1828, %v1868, %v1869
        %v1871 = vrot.slane %v1784, 5
        %v1872 = vrot.slane %v1871, 4
        %v1873 = vrot.slane %v745, 5
        %v1874 = vsel %vm1828, %v1872, %v1873
        %v1875 = vrot.slane %v1873, 4
        %v1876 = vrot.slane %v786, 5
        %v1877 = vsel %vm1828, %v1875, %v1876
        %v1878 = vrot.slane %v1785, 5
        %v1879 = vrot.slane %v1878, 4
        %v1880 = vrot.slane %v747, 5
        %v1881 = vsel %vm1828, %v1879, %v1880
        %v1882 = vrot.slane %v1880, 4
        %v1883 = vrot.slane %v787, 5
        %v1884 = vsel %vm1828, %v1882, %v1883
        %v1885 = vrot.slane %v1786, 5
        %v1886 = vrot.slane %v1885, 4
        %v1887 = vrot.slane %v749, 5
        %v1888 = vsel %vm1828, %v1886, %v1887
        %v1889 = vrot.slane %v1887, 4
        %v1890 = vrot.slane %v788, 5
        %v1891 = vsel %vm1828, %v1889, %v1890
        %v1892 = vrot.slane %v1787, 5
        %v1893 = vrot.slane %v1892, 4
        %v1894 = vrot.slane %v751, 5
        %v1895 = vsel %vm1828, %v1893, %v1894
        %v1896 = vrot.slane %v1894, 4
        %v1897 = vrot.slane %v789, 5
        %v1898 = vsel %vm1828, %v1896, %v1897
        %v1899 = vrot.slane %v1788, 5
        %v1900 = vrot.slane %v1899, 4
        %v1901 = vrot.slane %v753, 5
        %v1902 = vsel %vm1828, %v1900, %v1901
        %v1903 = vrot.slane %v1901, 4
        %v1904 = vrot.slane %v790, 5
        %v1905 = vsel %vm1828, %v1903, %v1904
        %v1906 = vrot.slane %v1789, 5
        %v1907 = vrot.slane %v1906, 4
        %v1908 = vrot.slane %v755, 5
        %v1909 = vsel %vm1828, %v1907, %v1908
        %v1910 = vrot.slane %v1908, 4
        %v1911 = vrot.slane %v791, 5
        %v1912 = vsel %vm1828, %v1910, %v1911
        %v1913 = vrot.slane %v1790, 5
        %v1914 = vrot.slane %v1913, 4
        %v1915 = vrot.slane %v757, 5
        %v1916 = vsel %vm1828, %v1914, %v1915
        %v1917 = vrot.slane %v1915, 4
        %v1918 = vrot.slane %v792, 5
        %v1919 = vsel %vm1828, %v1917, %v1918
        %v1920 = vrot.slane %v1791, 5
        %v1921 = vrot.slane %v1920, 4
        %v1922 = vrot.slane %v759, 5
        %v1923 = vsel %vm1828, %v1921, %v1922
        %v1924 = vrot.slane %v1922, 4
        %v1925 = vrot.slane %v793, 5
        %v1926 = vsel %vm1828, %v1924, %v1925
        %v1927 = vrot.slane %v1792, 5
        %v1928 = vrot.slane %v1927, 4
        %v1929 = vrot.slane %v761, 5
        %v1930 = vsel %vm1828, %v1928, %v1929
        %v1931 = vrot.slane %v1929, 4
        %v1932 = vrot.slane %v794, 5
        %v1933 = vsel %vm1828, %v1931, %v1932
        %v1934 = vrot.slane %v1793, 5
        %v1935 = vrot.slane %v1934, 4
        %v1936 = vrot.slane %v763, 5
        %v1937 = vsel %vm1828, %v1935, %v1936
        %v1938 = vrot.slane %v1936, 4
        %v1939 = vrot.slane %v795, 5
        %v1940 = vsel %vm1828, %v1938, %v1939
        %s1941 = scalar_lea.vmem [#allocation6], 128
        %v1942 = vld [vmem:[%s1941] sm:$0xf]
        %v1943 = vld [vmem:[%s1941 + $0x4] sm:$0xf]
        %v1944 = vld [vmem:[%s1941 + $0x8] sm:$0xf]
        %v1945 = vld [vmem:[%s1941 + $0xc] sm:$0xf]
        %v1946 = vld [vmem:[%s1941 + $0x10] sm:$0xf]
        %v1947 = vld [vmem:[%s1941 + $0x14] sm:$0xf]
        %v1948 = vld [vmem:[%s1941 + $0x18] sm:$0xf]
        %v1949 = vld [vmem:[%s1941 + $0x1c] sm:$0xf]
        %v1950 = vld [vmem:[%s1941 + $0x20] sm:$0xf]
        %v1951 = vld [vmem:[%s1941 + $0x24] sm:$0xf]
        %v1952 = vld [vmem:[%s1941 + $0x28] sm:$0xf]
        %v1953 = vld [vmem:[%s1941 + $0x2c] sm:$0xf]
        %v1954 = vld [vmem:[%s1941 + $0x30] sm:$0xf]
        %v1955 = vld [vmem:[%s1941 + $0x34] sm:$0xf]
        %v1956 = vld [vmem:[%s1941 + $0x38] sm:$0xf]
        %v1957 = vld [vmem:[%s1941 + $0x3c] sm:$0xf]
        %v1958 = vunpack.c.l.b16 %v1832
        %v1959 = vunpack.c.l.b16 %v1835
        %v1960 = vunpack.c.l.b16 %v1839
        %v1961 = vunpack.c.l.b16 %v1842
        %v1962 = vunpack.c.l.b16 %v1846
        %v1963 = vunpack.c.l.b16 %v1849
        %v1964 = vunpack.c.l.b16 %v1853
        %v1965 = vunpack.c.l.b16 %v1856
        %v1966 = vunpack.c.l.b16 %v1860
        %v1967 = vunpack.c.l.b16 %v1863
        %v1968 = vunpack.c.l.b16 %v1867
        %v1969 = vunpack.c.l.b16 %v1870
        %v1970 = vunpack.c.l.b16 %v1874
        %v1971 = vunpack.c.l.b16 %v1877
        %v1972 = vunpack.c.l.b16 %v1881
        %v1973 = vunpack.c.l.b16 %v1884
        %v1974 = vunpack.c.l.b16 %v1888
        %v1975 = vunpack.c.l.b16 %v1891
        %v1976 = vunpack.c.l.b16 %v1895
        %v1977 = vunpack.c.l.b16 %v1898
        %v1978 = vunpack.c.l.b16 %v1902
        %v1979 = vunpack.c.l.b16 %v1905
        %v1980 = vunpack.c.l.b16 %v1909
        %v1981 = vunpack.c.l.b16 %v1912
        %v1982 = vunpack.c.l.b16 %v1916
        %v1983 = vunpack.c.l.b16 %v1919
        %v1984 = vunpack.c.l.b16 %v1923
        %v1985 = vunpack.c.l.b16 %v1926
        %v1986 = vunpack.c.l.b16 %v1930
        %v1987 = vunpack.c.l.b16 %v1933
        %v1988 = vunpack.c.l.b16 %v1937
        %v1989 = vunpack.c.l.b16 %v1940
        %v1990 = vpack.c.b16 %v1959, %v1958
        %v1991 = vpack.c.b16 %v1961, %v1960
        %v1992 = vpack.c.b16 %v1963, %v1962
        %v1993 = vpack.c.b16 %v1965, %v1964
        %v1994 = vpack.c.b16 %v1967, %v1966
        %v1995 = vpack.c.b16 %v1969, %v1968
        %v1996 = vpack.c.b16 %v1971, %v1970
        %v1997 = vpack.c.b16 %v1973, %v1972
        %v1998 = vpack.c.b16 %v1975, %v1974
        %v1999 = vpack.c.b16 %v1977, %v1976
        %v2000 = vpack.c.b16 %v1979, %v1978
        %v2001 = vpack.c.b16 %v1981, %v1980
        %v2002 = vpack.c.b16 %v1983, %v1982
        %v2003 = vpack.c.b16 %v1985, %v1984
        %v2004 = vpack.c.b16 %v1987, %v1986
        %v2005 = vpack.c.b16 %v1989, %v1988
        %v2038 = vunpack.c.l.b16 %v1942
        %v2039 = vunpack.c.l.b16 %v1943
        %v2040 = vunpack.c.l.b16 %v1944
        %v2041 = vunpack.c.l.b16 %v1945
        %v2042 = vunpack.c.l.b16 %v1946
        %v2043 = vunpack.c.l.b16 %v1947
        %v2044 = vunpack.c.l.b16 %v1948
        %v2045 = vunpack.c.l.b16 %v1949
        %v2046 = vunpack.c.l.b16 %v1950
        %v2047 = vunpack.c.l.b16 %v1951
        %v2048 = vunpack.c.l.b16 %v1952
        %v2049 = vunpack.c.l.b16 %v1953
        %v2050 = vunpack.c.l.b16 %v1954
        %v2051 = vunpack.c.l.b16 %v1955
        %v2052 = vunpack.c.l.b16 %v1956
        %v2053 = vunpack.c.l.b16 %v1957
        %v2054 = vpack.c.b16 %v2039, %v2038
        %v2055 = vpack.c.b16 %v2041, %v2040
        %v2056 = vpack.c.b16 %v2043, %v2042
        %v2057 = vpack.c.b16 %v2045, %v2044
        %v2058 = vpack.c.b16 %v2047, %v2046
        %v2059 = vpack.c.b16 %v2049, %v2048
        %v2060 = vpack.c.b16 %v2051, %v2050
        %v2061 = vpack.c.b16 %v2053, %v2052
        %2070 = vmatprep.subr.bf16.mxu0 0
        %2071 = vmatpush1.bf16.msra.mxu0 %v2054
        %2072 = vmatprep.subr.bf16.mxu0 0
        %2073 = vmatpush1.bf16.msra.mxu0 %v2055
        %2074 = vmatprep.subr.bf16.mxu0 0
        %2075 = vmatpush1.bf16.msra.mxu0 %v2056
        %2076 = vmatprep.subr.bf16.mxu0 0
        %2077 = vmatpush1.bf16.msra.mxu0 %v2057
        %2078 = vmatprep.subr.bf16.mxu0 0
        %2079 = vmatpush1.bf16.msra.mxu0 %v2058
        %2080 = vmatprep.subr.bf16.mxu0 0
        %2081 = vmatpush1.bf16.msra.mxu0 %v2059
        %2082 = vmatprep.subr.bf16.mxu0 0
        %2083 = vmatpush1.bf16.msra.mxu0 %v2060
        %2084 = vmatprep.subr.bf16.mxu0 0
        %2085 = vmatpush1.bf16.msra.mxu0 %v2061
        %2086 = vmatprep.subr.bf16.mxu0 0
        %2087 = vmatpush1.bf16.msra.mxu0 0
        %2088 = vmatprep.subr.bf16.mxu0 0
        %2089 = vmatpush1.bf16.msra.mxu0 0
        %2090 = vmatprep.subr.bf16.mxu0 0
        %2091 = vmatpush1.bf16.msra.mxu0 0
        %2092 = vmatprep.subr.bf16.mxu0 0
        %2093 = vmatpush1.bf16.msra.mxu0 0
        %2094 = vmatprep.subr.bf16.mxu0 0
        %2095 = vmatpush1.bf16.msra.mxu0 0
        %2096 = vmatprep.subr.bf16.mxu0 0
        %2097 = vmatpush1.bf16.msra.mxu0 0
        %2098 = vmatprep.subr.bf16.mxu0 0
        %2099 = vmatpush1.bf16.msra.mxu0 0
        %2100 = vmatprep.subr.bf16.mxu0 0
        %2101 = vmatpush1.bf16.msra.mxu0 0
        %2102 = vmatprep.mubr.bf16.mxu0 0
        %2103 = vmatmul.mubr.bf16.gmra.mrb[0].mxu0 %v1990
        %v2104 = vpop.f32.mrb[0].mxu0
        %v2105 = vadd.f32 0.0, %v2104
        %v2106 = vpop.f32.mrb[0].mxu0
        %v2107 = vpop.f32.mrb[0].mxu0
        %v2108 = vadd.f32 0.0, %v2107
        %v2109 = vpop.f32.mrb[0].mxu0
        %2110 = vmatprep.mubr.bf16.mxu0 0
        %2111 = vmatmul.mubr.bf16.gmra.mrb[0].mxu0 %v1991
        %v2112 = vpop.f32.mrb[0].mxu0
        %v2113 = vadd.f32 0.0, %v2112
        %v2114 = vpop.f32.mrb[0].mxu0
        %v2115 = vpop.f32.mrb[0].mxu0
        %v2116 = vadd.f32 0.0, %v2115
        %v2117 = vpop.f32.mrb[0].mxu0
        %2118 = vmatprep.mubr.bf16.mxu0 0
        %2119 = vmatmul.mubr.bf16.gmra.mrb[0].mxu0 %v1992
        %v2120 = vpop.f32.mrb[0].mxu0
        %v2121 = vadd.f32 0.0, %v2120
        %v2122 = vpop.f32.mrb[0].mxu0
        %v2123 = vpop.f32.mrb[0].mxu0
        %v2124 = vadd.f32 0.0, %v2123
        %v2125 = vpop.f32.mrb[0].mxu0
        %2126 = vmatprep.mubr.bf16.mxu0 0
        %2127 = vmatmul.mubr.bf16.gmra.mrb[0].mxu0 %v1993
        %v2128 = vpop.f32.mrb[0].mxu0
        %v2129 = vadd.f32 0.0, %v2128
        %v2130 = vpop.f32.mrb[0].mxu0
        %v2131 = vpop.f32.mrb[0].mxu0
        %v2132 = vadd.f32 0.0, %v2131
        %v2133 = vpop.f32.mrb[0].mxu0
        %2134 = vmatprep.mubr.bf16.mxu0 0
        %2135 = vmatmul.mubr.bf16.gmra.mrb[0].mxu0 %v1994
        %v2136 = vpop.f32.mrb[0].mxu0
        %v2137 = vadd.f32 0.0, %v2136
        %v2138 = vpop.f32.mrb[0].mxu0
        %v2139 = vpop.f32.mrb[0].mxu0
        %v2140 = vadd.f32 0.0, %v2139
        %v2141 = vpop.f32.mrb[0].mxu0
        %2142 = vmatprep.mubr.bf16.mxu0 0
        %2143 = vmatmul.mubr.bf16.gmra.mrb[0].mxu0 %v1995
        %v2144 = vpop.f32.mrb[0].mxu0
        %v2145 = vadd.f32 0.0, %v2144
        %v2146 = vpop.f32.mrb[0].mxu0
        %v2147 = vpop.f32.mrb[0].mxu0
        %v2148 = vadd.f32 0.0, %v2147
        %v2149 = vpop.f32.mrb[0].mxu0
        %2150 = vmatprep.mubr.bf16.mxu0 0
        %2151 = vmatmul.mubr.bf16.gmra.mrb[0].mxu0 %v1996
        %v2152 = vpop.f32.mrb[0].mxu0
        %v2153 = vadd.f32 0.0, %v2152
        %v2154 = vpop.f32.mrb[0].mxu0
        %v2155 = vpop.f32.mrb[0].mxu0
        %v2156 = vadd.f32 0.0, %v2155
        %v2157 = vpop.f32.mrb[0].mxu0
        %2158 = vmatprep.mubr.bf16.mxu0 0
        %2159 = vmatmul.mubr.bf16.gmra.mrb[0].mxu0 %v1997
        %v2160 = vpop.f32.mrb[0].mxu0
        %v2161 = vadd.f32 0.0, %v2160
        %v2162 = vpop.f32.mrb[0].mxu0
        %v2163 = vpop.f32.mrb[0].mxu0
        %v2164 = vadd.f32 0.0, %v2163
        %v2165 = vpop.f32.mrb[0].mxu0
        %2166 = vmatprep.mubr.bf16.mxu0 0
        %2167 = vmatmul.mubr.bf16.gmra.mrb[0].mxu0 %v1998
        %v2168 = vpop.f32.mrb[0].mxu0
        %v2169 = vadd.f32 0.0, %v2168
        %v2170 = vpop.f32.mrb[0].mxu0
        %v2171 = vpop.f32.mrb[0].mxu0
        %v2172 = vadd.f32 0.0, %v2171
        %v2173 = vpop.f32.mrb[0].mxu0
        %2174 = vmatprep.mubr.bf16.mxu0 0
        %2175 = vmatmul.mubr.bf16.gmra.mrb[0].mxu0 %v1999
        %v2176 = vpop.f32.mrb[0].mxu0
        %v2177 = vadd.f32 0.0, %v2176
        %v2178 = vpop.f32.mrb[0].mxu0
        %v2179 = vpop.f32.mrb[0].mxu0
        %v2180 = vadd.f32 0.0, %v2179
        %v2181 = vpop.f32.mrb[0].mxu0
        %2182 = vmatprep.mubr.bf16.mxu0 0
        %2183 = vmatmul.mubr.bf16.gmra.mrb[0].mxu0 %v2000
        %v2184 = vpop.f32.mrb[0].mxu0
        %v2185 = vadd.f32 0.0, %v2184
        %v2186 = vpop.f32.mrb[0].mxu0
        %v2187 = vpop.f32.mrb[0].mxu0
        %v2188 = vadd.f32 0.0, %v2187
        %v2189 = vpop.f32.mrb[0].mxu0
        %2190 = vmatprep.mubr.bf16.mxu0 0
        %2191 = vmatmul.mubr.bf16.gmra.mrb[0].mxu0 %v2001
        %v2192 = vpop.f32.mrb[0].mxu0
        %v2193 = vadd.f32 0.0, %v2192
        %v2194 = vpop.f32.mrb[0].mxu0
        %v2195 = vpop.f32.mrb[0].mxu0
        %v2196 = vadd.f32 0.0, %v2195
        %v2197 = vpop.f32.mrb[0].mxu0
        %2198 = vmatprep.mubr.bf16.mxu0 0
        %2199 = vmatmul.mubr.bf16.gmra.mrb[0].mxu0 %v2002
        %v2200 = vpop.f32.mrb[0].mxu0
        %v2201 = vadd.f32 0.0, %v2200
        %v2202 = vpop.f32.mrb[0].mxu0
        %v2203 = vpop.f32.mrb[0].mxu0
        %v2204 = vadd.f32 0.0, %v2203
        %v2205 = vpop.f32.mrb[0].mxu0
        %2206 = vmatprep.mubr.bf16.mxu0 0
        %2207 = vmatmul.mubr.bf16.gmra.mrb[0].mxu0 %v2003
        %v2208 = vpop.f32.mrb[0].mxu0
        %v2209 = vadd.f32 0.0, %v2208
        %v2210 = vpop.f32.mrb[0].mxu0
        %v2211 = vpop.f32.mrb[0].mxu0
        %v2212 = vadd.f32 0.0, %v2211
        %v2213 = vpop.f32.mrb[0].mxu0
        %2214 = vmatprep.mubr.bf16.mxu0 0
        %2215 = vmatmul.mubr.bf16.gmra.mrb[0].mxu0 %v2004
        %v2216 = vpop.f32.mrb[0].mxu0
        %v2217 = vadd.f32 0.0, %v2216
        %v2218 = vpop.f32.mrb[0].mxu0
        %v2219 = vpop.f32.mrb[0].mxu0
        %v2220 = vadd.f32 0.0, %v2219
        %v2221 = vpop.f32.mrb[0].mxu0
        %2222 = vmatprep.mubr.bf16.mxu0 0
        %2223 = vmatmul.mubr.bf16.gmra.mrb[0].mxu0 %v2005
        %v2224 = vpop.f32.mrb[0].mxu0
        %v2225 = vadd.f32 0.0, %v2224
        %v2226 = vpop.f32.mrb[0].mxu0
        %v2227 = vpop.f32.mrb[0].mxu0
        %v2228 = vadd.f32 0.0, %v2227
        %v2229 = vpop.f32.mrb[0].mxu0
        %2230 = vdwg.mxu0
        %v2231 = vadd.f32 %v1652, %v2105
        %v2232 = vadd.f32 %v1655, %v2108
        %v2233 = vadd.f32 %v1660, %v2113
        %v2234 = vadd.f32 %v1663, %v2116
        %v2235 = vadd.f32 %v1668, %v2121
        %v2236 = vadd.f32 %v1671, %v2124
        %v2237 = vadd.f32 %v1676, %v2129
        %v2238 = vadd.f32 %v1679, %v2132
        %v2239 = vadd.f32 %v1684, %v2137
        %v2240 = vadd.f32 %v1687, %v2140
        %v2241 = vadd.f32 %v1692, %v2145
        %v2242 = vadd.f32 %v1695, %v2148
        %v2243 = vadd.f32 %v1700, %v2153
        %v2244 = vadd.f32 %v1703, %v2156
        %v2245 = vadd.f32 %v1708, %v2161
        %v2246 = vadd.f32 %v1711, %v2164
        %v2247 = vadd.f32 %v1716, %v2169
        %v2248 = vadd.f32 %v1719, %v2172
        %v2249 = vadd.f32 %v1724, %v2177
        %v2250 = vadd.f32 %v1727, %v2180
        %v2251 = vadd.f32 %v1732, %v2185
        %v2252 = vadd.f32 %v1735, %v2188
        %v2253 = vadd.f32 %v1740, %v2193
        %v2254 = vadd.f32 %v1743, %v2196
        %v2255 = vadd.f32 %v1748, %v2201
        %v2256 = vadd.f32 %v1751, %v2204
        %v2257 = vadd.f32 %v1756, %v2209
        %v2258 = vadd.f32 %v1759, %v2212
        %v2259 = vadd.f32 %v1764, %v2217
        %v2260 = vadd.f32 %v1767, %v2220
        %v2261 = vadd.f32 %v1772, %v2225
        %v2262 = vadd.f32 %v1775, %v2228
        %v2263 = vld [vmem:[%s683] sm:$0xf]
        %v2264 = vld [vmem:[%s683 + $0x4] sm:$0xf]
        %v2265 = vld [vmem:[%s683 + $0xc] sm:$0xf]
        %v2266 = vld [vmem:[%s683 + $0x10] sm:$0xf]
        %v2267 = vld [vmem:[%s683 + $0x18] sm:$0xf]
        %v2268 = vld [vmem:[%s683 + $0x1c] sm:$0xf]
        %v2269 = vld [vmem:[%s683 + $0x24] sm:$0xf]
        %v2270 = vld [vmem:[%s683 + $0x28] sm:$0xf]
        %v2271 = vld [vmem:[%s683 + $0x30] sm:$0xf]
        %v2272 = vld [vmem:[%s683 + $0x34] sm:$0xf]
        %v2273 = vld [vmem:[%s683 + $0x3c] sm:$0xf]
        %v2274 = vld [vmem:[%s683 + $0x40] sm:$0xf]
        %v2275 = vld [vmem:[%s683 + $0x48] sm:$0xf]
        %v2276 = vld [vmem:[%s683 + $0x4c] sm:$0xf]
        %v2277 = vld [vmem:[%s683 + $0x54] sm:$0xf]
        %v2278 = vld [vmem:[%s683 + $0x58] sm:$0xf]
        %v2279 = vld [vmem:[%s683 + $0x60] sm:$0xf]
        %v2280 = vld [vmem:[%s683 + $0x64] sm:$0xf]
        %v2281 = vld [vmem:[%s683 + $0x6c] sm:$0xf]
        %v2282 = vld [vmem:[%s683 + $0x70] sm:$0xf]
        %v2283 = vld [vmem:[%s683 + $0x78] sm:$0xf]
        %v2284 = vld [vmem:[%s683 + $0x7c] sm:$0xf]
        %v2285 = vld [vmem:[%s683 + $0x84] sm:$0xf]
        %v2286 = vld [vmem:[%s683 + $0x88] sm:$0xf]
        %v2287 = vld [vmem:[%s683 + $0x90] sm:$0xf]
        %v2288 = vld [vmem:[%s683 + $0x94] sm:$0xf]
        %v2289 = vld [vmem:[%s683 + $0x9c] sm:$0xf]
        %v2290 = vld [vmem:[%s683 + $0xa0] sm:$0xf]
        %v2291 = vld [vmem:[%s683 + $0xa8] sm:$0xf]
        %v2292 = vld [vmem:[%s683 + $0xac] sm:$0xf]
        %v2293 = vld [vmem:[%s683 + $0xb4] sm:$0xf]
        %v2294 = vld [vmem:[%s683 + $0xb8] sm:$0xf]
        %s2295 = scalar_lea.vmem [#allocation6], 192
        %v2296 = vld [vmem:[%s2295] sm:$0xf]
        %v2297 = vld [vmem:[%s2295 + $0x4] sm:$0xf]
        %v2298 = vld [vmem:[%s2295 + $0x8] sm:$0xf]
        %v2299 = vld [vmem:[%s2295 + $0xc] sm:$0xf]
        %v2300 = vld [vmem:[%s2295 + $0x10] sm:$0xf]
        %v2301 = vld [vmem:[%s2295 + $0x14] sm:$0xf]
        %v2302 = vld [vmem:[%s2295 + $0x18] sm:$0xf]
        %v2303 = vld [vmem:[%s2295 + $0x1c] sm:$0xf]
        %v2304 = vld [vmem:[%s2295 + $0x20] sm:$0xf]
        %v2305 = vld [vmem:[%s2295 + $0x24] sm:$0xf]
        %v2306 = vld [vmem:[%s2295 + $0x28] sm:$0xf]
        %v2307 = vld [vmem:[%s2295 + $0x2c] sm:$0xf]
        %v2308 = vld [vmem:[%s2295 + $0x30] sm:$0xf]
        %v2309 = vld [vmem:[%s2295 + $0x34] sm:$0xf]
        %v2310 = vld [vmem:[%s2295 + $0x38] sm:$0xf]
        %v2311 = vld [vmem:[%s2295 + $0x3c] sm:$0xf]
        %v2344 = vunpack.c.l.b16 %v2263
        %v2345 = vunpack.c.l.b16 %v2264
        %v2346 = vunpack.c.l.b16 %v2265
        %v2347 = vunpack.c.l.b16 %v2266
        %v2348 = vunpack.c.l.b16 %v2267
        %v2349 = vunpack.c.l.b16 %v2268
        %v2350 = vunpack.c.l.b16 %v2269
        %v2351 = vunpack.c.l.b16 %v2270
        %v2352 = vunpack.c.l.b16 %v2271
        %v2353 = vunpack.c.l.b16 %v2272
        %v2354 = vunpack.c.l.b16 %v2273
        %v2355 = vunpack.c.l.b16 %v2274
        %v2356 = vunpack.c.l.b16 %v2275
        %v2357 = vunpack.c.l.b16 %v2276
        %v2358 = vunpack.c.l.b16 %v2277
        %v2359 = vunpack.c.l.b16 %v2278
        %v2360 = vunpack.c.l.b16 %v2279
        %v2361 = vunpack.c.l.b16 %v2280
        %v2362 = vunpack.c.l.b16 %v2281
        %v2363 = vunpack.c.l.b16 %v2282
        %v2364 = vunpack.c.l.b16 %v2283
        %v2365 = vunpack.c.l.b16 %v2284
        %v2366 = vunpack.c.l.b16 %v2285
        %v2367 = vunpack.c.l.b16 %v2286
        %v2368 = vunpack.c.l.b16 %v2287
        %v2369 = vunpack.c.l.b16 %v2288
        %v2370 = vunpack.c.l.b16 %v2289
        %v2371 = vunpack.c.l.b16 %v2290
        %v2372 = vunpack.c.l.b16 %v2291
        %v2373 = vunpack.c.l.b16 %v2292
        %v2374 = vunpack.c.l.b16 %v2293
        %v2375 = vunpack.c.l.b16 %v2294
        %v2376 = vpack.c.b16 %v2345, %v2344
        %v2377 = vpack.c.b16 %v2347, %v2346
        %v2378 = vpack.c.b16 %v2349, %v2348
        %v2379 = vpack.c.b16 %v2351, %v2350
        %v2380 = vpack.c.b16 %v2353, %v2352
        %v2381 = vpack.c.b16 %v2355, %v2354
        %v2382 = vpack.c.b16 %v2357, %v2356
        %v2383 = vpack.c.b16 %v2359, %v2358
        %v2384 = vpack.c.b16 %v2361, %v2360
        %v2385 = vpack.c.b16 %v2363, %v2362
        %v2386 = vpack.c.b16 %v2365, %v2364
        %v2387 = vpack.c.b16 %v2367, %v2366
        %v2388 = vpack.c.b16 %v2369, %v2368
        %v2389 = vpack.c.b16 %v2371, %v2370
        %v2390 = vpack.c.b16 %v2373, %v2372
        %v2391 = vpack.c.b16 %v2375, %v2374
        %v2424 = vunpack.c.l.b16 %v2296
        %v2425 = vunpack.c.l.b16 %v2297
        %v2426 = vunpack.c.l.b16 %v2298
        %v2427 = vunpack.c.l.b16 %v2299
        %v2428 = vunpack.c.l.b16 %v2300
        %v2429 = vunpack.c.l.b16 %v2301
        %v2430 = vunpack.c.l.b16 %v2302
        %v2431 = vunpack.c.l.b16 %v2303
        %v2432 = vunpack.c.l.b16 %v2304
        %v2433 = vunpack.c.l.b16 %v2305
        %v2434 = vunpack.c.l.b16 %v2306
        %v2435 = vunpack.c.l.b16 %v2307
        %v2436 = vunpack.c.l.b16 %v2308
        %v2437 = vunpack.c.l.b16 %v2309
        %v2438 = vunpack.c.l.b16 %v2310
        %v2439 = vunpack.c.l.b16 %v2311
        %v2440 = vpack.c.b16 %v2425, %v2424
        %v2441 = vpack.c.b16 %v2427, %v2426
        %v2442 = vpack.c.b16 %v2429, %v2428
        %v2443 = vpack.c.b16 %v2431, %v2430
        %v2444 = vpack.c.b16 %v2433, %v2432
        %v2445 = vpack.c.b16 %v2435, %v2434
        %v2446 = vpack.c.b16 %v2437, %v2436
        %v2447 = vpack.c.b16 %v2439, %v2438
        %2456 = vmatprep.subr.bf16.mxu0 0
        %2457 = vmatpush1.bf16.msra.mxu0 %v2440
        %2458 = vmatprep.subr.bf16.mxu0 0
        %2459 = vmatpush1.bf16.msra.mxu0 %v2441
        %2460 = vmatprep.subr.bf16.mxu0 0
        %2461 = vmatpush1.bf16.msra.mxu0 %v2442
        %2462 = vmatprep.subr.bf16.mxu0 0
        %2463 = vmatpush1.bf16.msra.mxu0 %v2443
        %2464 = vmatprep.subr.bf16.mxu0 0
        %2465 = vmatpush1.bf16.msra.mxu0 %v2444
        %2466 = vmatprep.subr.bf16.mxu0 0
        %2467 = vmatpush1.bf16.msra.mxu0 %v2445
        %2468 = vmatprep.subr.bf16.mxu0 0
        %2469 = vmatpush1.bf16.msra.mxu0 %v2446
        %2470 = vmatprep.subr.bf16.mxu0 0
        %2471 = vmatpush1.bf16.msra.mxu0 %v2447
        %2472 = vmatprep.subr.bf16.mxu0 0
        %2473 = vmatpush1.bf16.msra.mxu0 0
        %2474 = vmatprep.subr.bf16.mxu0 0
        %2475 = vmatpush1.bf16.msra.mxu0 0
        %2476 = vmatprep.subr.bf16.mxu0 0
        %2477 = vmatpush1.bf16.msra.mxu0 0
        %2478 = vmatprep.subr.bf16.mxu0 0
        %2479 = vmatpush1.bf16.msra.mxu0 0
        %2480 = vmatprep.subr.bf16.mxu0 0
        %2481 = vmatpush1.bf16.msra.mxu0 0
        %2482 = vmatprep.subr.bf16.mxu0 0
        %2483 = vmatpush1.bf16.msra.mxu0 0
        %2484 = vmatprep.subr.bf16.mxu0 0
        %2485 = vmatpush1.bf16.msra.mxu0 0
        %2486 = vmatprep.subr.bf16.mxu0 0
        %2487 = vmatpush1.bf16.msra.mxu0 0
        %2488 = vmatprep.mubr.bf16.mxu0 0
        %2489 = vmatmul.mubr.bf16.gmra.mrb[0].mxu0 %v2376
        %v2490 = vpop.f32.mrb[0].mxu0
        %v2491 = vadd.f32 0.0, %v2490
        %v2492 = vpop.f32.mrb[0].mxu0
        %v2493 = vpop.f32.mrb[0].mxu0
        %v2494 = vadd.f32 0.0, %v2493
        %v2495 = vpop.f32.mrb[0].mxu0
        %2496 = vmatprep.mubr.bf16.mxu0 0
        %2497 = vmatmul.mubr.bf16.gmra.mrb[0].mxu0 %v2377
        %v2498 = vpop.f32.mrb[0].mxu0
        %v2499 = vadd.f32 0.0, %v2498
        %v2500 = vpop.f32.mrb[0].mxu0
        %v2501 = vpop.f32.mrb[0].mxu0
        %v2502 = vadd.f32 0.0, %v2501
        %v2503 = vpop.f32.mrb[0].mxu0
        %2504 = vmatprep.mubr.bf16.mxu0 0
        %2505 = vmatmul.mubr.bf16.gmra.mrb[0].mxu0 %v2378
        %v2506 = vpop.f32.mrb[0].mxu0
        %v2507 = vadd.f32 0.0, %v2506
        %v2508 = vpop.f32.mrb[0].mxu0
        %v2509 = vpop.f32.mrb[0].mxu0
        %v2510 = vadd.f32 0.0, %v2509
        %v2511 = vpop.f32.mrb[0].mxu0
        %2512 = vmatprep.mubr.bf16.mxu0 0
        %2513 = vmatmul.mubr.bf16.gmra.mrb[0].mxu0 %v2379
        %v2514 = vpop.f32.mrb[0].mxu0
        %v2515 = vadd.f32 0.0, %v2514
        %v2516 = vpop.f32.mrb[0].mxu0
        %v2517 = vpop.f32.mrb[0].mxu0
        %v2518 = vadd.f32 0.0, %v2517
        %v2519 = vpop.f32.mrb[0].mxu0
        %2520 = vmatprep.mubr.bf16.mxu0 0
        %2521 = vmatmul.mubr.bf16.gmra.mrb[0].mxu0 %v2380
        %v2522 = vpop.f32.mrb[0].mxu0
        %v2523 = vadd.f32 0.0, %v2522
        %v2524 = vpop.f32.mrb[0].mxu0
        %v2525 = vpop.f32.mrb[0].mxu0
        %v2526 = vadd.f32 0.0, %v2525
        %v2527 = vpop.f32.mrb[0].mxu0
        %2528 = vmatprep.mubr.bf16.mxu0 0
        %2529 = vmatmul.mubr.bf16.gmra.mrb[0].mxu0 %v2381
        %v2530 = vpop.f32.mrb[0].mxu0
        %v2531 = vadd.f32 0.0, %v2530
        %v2532 = vpop.f32.mrb[0].mxu0
        %v2533 = vpop.f32.mrb[0].mxu0
        %v2534 = vadd.f32 0.0, %v2533
        %v2535 = vpop.f32.mrb[0].mxu0
        %2536 = vmatprep.mubr.bf16.mxu0 0
        %2537 = vmatmul.mubr.bf16.gmra.mrb[0].mxu0 %v2382
        %v2538 = vpop.f32.mrb[0].mxu0
        %v2539 = vadd.f32 0.0, %v2538
        %v2540 = vpop.f32.mrb[0].mxu0
        %v2541 = vpop.f32.mrb[0].mxu0
        %v2542 = vadd.f32 0.0, %v2541
        %v2543 = vpop.f32.mrb[0].mxu0
        %2544 = vmatprep.mubr.bf16.mxu0 0
        %2545 = vmatmul.mubr.bf16.gmra.mrb[0].mxu0 %v2383
        %v2546 = vpop.f32.mrb[0].mxu0
        %v2547 = vadd.f32 0.0, %v2546
        %v2548 = vpop.f32.mrb[0].mxu0
        %v2549 = vpop.f32.mrb[0].mxu0
        %v2550 = vadd.f32 0.0, %v2549
        %v2551 = vpop.f32.mrb[0].mxu0
        %2552 = vmatprep.mubr.bf16.mxu0 0
        %2553 = vmatmul.mubr.bf16.gmra.mrb[0].mxu0 %v2384
        %v2554 = vpop.f32.mrb[0].mxu0
        %v2555 = vadd.f32 0.0, %v2554
        %v2556 = vpop.f32.mrb[0].mxu0
        %v2557 = vpop.f32.mrb[0].mxu0
        %v2558 = vadd.f32 0.0, %v2557
        %v2559 = vpop.f32.mrb[0].mxu0
        %2560 = vmatprep.mubr.bf16.mxu0 0
        %2561 = vmatmul.mubr.bf16.gmra.mrb[0].mxu0 %v2385
        %v2562 = vpop.f32.mrb[0].mxu0
        %v2563 = vadd.f32 0.0, %v2562
        %v2564 = vpop.f32.mrb[0].mxu0
        %v2565 = vpop.f32.mrb[0].mxu0
        %v2566 = vadd.f32 0.0, %v2565
        %v2567 = vpop.f32.mrb[0].mxu0
        %2568 = vmatprep.mubr.bf16.mxu0 0
        %2569 = vmatmul.mubr.bf16.gmra.mrb[0].mxu0 %v2386
        %v2570 = vpop.f32.mrb[0].mxu0
        %v2571 = vadd.f32 0.0, %v2570
        %v2572 = vpop.f32.mrb[0].mxu0
        %v2573 = vpop.f32.mrb[0].mxu0
        %v2574 = vadd.f32 0.0, %v2573
        %v2575 = vpop.f32.mrb[0].mxu0
        %2576 = vmatprep.mubr.bf16.mxu0 0
        %2577 = vmatmul.mubr.bf16.gmra.mrb[0].mxu0 %v2387
        %v2578 = vpop.f32.mrb[0].mxu0
        %v2579 = vadd.f32 0.0, %v2578
        %v2580 = vpop.f32.mrb[0].mxu0
        %v2581 = vpop.f32.mrb[0].mxu0
        %v2582 = vadd.f32 0.0, %v2581
        %v2583 = vpop.f32.mrb[0].mxu0
        %2584 = vmatprep.mubr.bf16.mxu0 0
        %2585 = vmatmul.mubr.bf16.gmra.mrb[0].mxu0 %v2388
        %v2586 = vpop.f32.mrb[0].mxu0
        %v2587 = vadd.f32 0.0, %v2586
        %v2588 = vpop.f32.mrb[0].mxu0
        %v2589 = vpop.f32.mrb[0].mxu0
        %v2590 = vadd.f32 0.0, %v2589
        %v2591 = vpop.f32.mrb[0].mxu0
        %2592 = vmatprep.mubr.bf16.mxu0 0
        %2593 = vmatmul.mubr.bf16.gmra.mrb[0].mxu0 %v2389
        %v2594 = vpop.f32.mrb[0].mxu0
        %v2595 = vadd.f32 0.0, %v2594
        %v2596 = vpop.f32.mrb[0].mxu0
        %v2597 = vpop.f32.mrb[0].mxu0
        %v2598 = vadd.f32 0.0, %v2597
        %v2599 = vpop.f32.mrb[0].mxu0
        %2600 = vmatprep.mubr.bf16.mxu0 0
        %2601 = vmatmul.mubr.bf16.gmra.mrb[0].mxu0 %v2390
        %v2602 = vpop.f32.mrb[0].mxu0
        %v2603 = vadd.f32 0.0, %v2602
        %v2604 = vpop.f32.mrb[0].mxu0
        %v2605 = vpop.f32.mrb[0].mxu0
        %v2606 = vadd.f32 0.0, %v2605
        %v2607 = vpop.f32.mrb[0].mxu0
        %2608 = vmatprep.mubr.bf16.mxu0 0
        %2609 = vmatmul.mubr.bf16.gmra.mrb[0].mxu0 %v2391
        %v2610 = vpop.f32.mrb[0].mxu0
        %v2611 = vadd.f32 0.0, %v2610
        %v2612 = vpop.f32.mrb[0].mxu0
        %v2613 = vpop.f32.mrb[0].mxu0
        %v2614 = vadd.f32 0.0, %v2613
        %v2615 = vpop.f32.mrb[0].mxu0
        %2616 = vdwg.mxu0
        %v2617 = vadd.f32 %v2231, %v2491
        %v2618 = vadd.f32 %v2232, %v2494
        %v2619 = vadd.f32 %v2233, %v2499
        %v2620 = vadd.f32 %v2234, %v2502
        %v2621 = vadd.f32 %v2235, %v2507
        %v2622 = vadd.f32 %v2236, %v2510
        %v2623 = vadd.f32 %v2237, %v2515
        %v2624 = vadd.f32 %v2238, %v2518
        %v2625 = vadd.f32 %v2239, %v2523
        %v2626 = vadd.f32 %v2240, %v2526
        %v2627 = vadd.f32 %v2241, %v2531
        %v2628 = vadd.f32 %v2242, %v2534
        %v2629 = vadd.f32 %v2243, %v2539
        %v2630 = vadd.f32 %v2244, %v2542
        %v2631 = vadd.f32 %v2245, %v2547
        %v2632 = vadd.f32 %v2246, %v2550
        %v2633 = vadd.f32 %v2247, %v2555
        %v2634 = vadd.f32 %v2248, %v2558
        %v2635 = vadd.f32 %v2249, %v2563
        %v2636 = vadd.f32 %v2250, %v2566
        %v2637 = vadd.f32 %v2251, %v2571
        %v2638 = vadd.f32 %v2252, %v2574
        %v2639 = vadd.f32 %v2253, %v2579
        %v2640 = vadd.f32 %v2254, %v2582
        %v2641 = vadd.f32 %v2255, %v2587
        %v2642 = vadd.f32 %v2256, %v2590
        %v2643 = vadd.f32 %v2257, %v2595
        %v2644 = vadd.f32 %v2258, %v2598
        %v2645 = vadd.f32 %v2259, %v2603
        %v2646 = vadd.f32 %v2260, %v2606
        %v2647 = vadd.f32 %v2261, %v2611
        %v2648 = vadd.f32 %v2262, %v2614
        %v2649 = vld [vmem:[%s683] sm:$0xf]
        %v2650 = vld [vmem:[%s683 + $0x4] sm:$0xf]
        %v2651 = vld [vmem:[%s683 + $0x8] sm:$0x1]
        %v2652 = vld [vmem:[%s683 + $0xc] sm:$0xf]
        %v2653 = vld [vmem:[%s683 + $0x10] sm:$0xf]
        %v2654 = vld [vmem:[%s683 + $0x14] sm:$0x1]
        %v2655 = vld [vmem:[%s683 + $0x18] sm:$0xf]
        %v2656 = vld [vmem:[%s683 + $0x1c] sm:$0xf]
        %v2657 = vld [vmem:[%s683 + $0x20] sm:$0x1]
        %v2658 = vld [vmem:[%s683 + $0x24] sm:$0xf]
        %v2659 = vld [vmem:[%s683 + $0x28] sm:$0xf]
        %v2660 = vld [vmem:[%s683 + $0x2c] sm:$0x1]
        %v2661 = vld [vmem:[%s683 + $0x30] sm:$0xf]
        %v2662 = vld [vmem:[%s683 + $0x34] sm:$0xf]
        %v2663 = vld [vmem:[%s683 + $0x38] sm:$0x1]
        %v2664 = vld [vmem:[%s683 + $0x3c] sm:$0xf]
        %v2665 = vld [vmem:[%s683 + $0x40] sm:$0xf]
        %v2666 = vld [vmem:[%s683 + $0x44] sm:$0x1]
        %v2667 = vld [vmem:[%s683 + $0x48] sm:$0xf]
        %v2668 = vld [vmem:[%s683 + $0x4c] sm:$0xf]
        %v2669 = vld [vmem:[%s683 + $0x50] sm:$0x1]
        %v2670 = vld [vmem:[%s683 + $0x54] sm:$0xf]
        %v2671 = vld [vmem:[%s683 + $0x58] sm:$0xf]
        %v2672 = vld [vmem:[%s683 + $0x5c] sm:$0x1]
        %v2673 = vld [vmem:[%s683 + $0x60] sm:$0xf]
        %v2674 = vld [vmem:[%s683 + $0x64] sm:$0xf]
        %v2675 = vld [vmem:[%s683 + $0x68] sm:$0x1]
        %v2676 = vld [vmem:[%s683 + $0x6c] sm:$0xf]
        %v2677 = vld [vmem:[%s683 + $0x70] sm:$0xf]
        %v2678 = vld [vmem:[%s683 + $0x74] sm:$0x1]
        %v2679 = vld [vmem:[%s683 + $0x78] sm:$0xf]
        %v2680 = vld [vmem:[%s683 + $0x7c] sm:$0xf]
        %v2681 = vld [vmem:[%s683 + $0x80] sm:$0x1]
        %v2682 = vld [vmem:[%s683 + $0x84] sm:$0xf]
        %v2683 = vld [vmem:[%s683 + $0x88] sm:$0xf]
        %v2684 = vld [vmem:[%s683 + $0x8c] sm:$0x1]
        %v2685 = vld [vmem:[%s683 + $0x90] sm:$0xf]
        %v2686 = vld [vmem:[%s683 + $0x94] sm:$0xf]
        %v2687 = vld [vmem:[%s683 + $0x98] sm:$0x1]
        %v2688 = vld [vmem:[%s683 + $0x9c] sm:$0xf]
        %v2689 = vld [vmem:[%s683 + $0xa0] sm:$0xf]
        %v2690 = vld [vmem:[%s683 + $0xa4] sm:$0x1]
        %v2691 = vld [vmem:[%s683 + $0xa8] sm:$0xf]
        %v2692 = vld [vmem:[%s683 + $0xac] sm:$0xf]
        %v2693 = vld [vmem:[%s683 + $0xb0] sm:$0x1]
        %v2694 = vld [vmem:[%s683 + $0xb4] sm:$0xf]
        %v2695 = vld [vmem:[%s683 + $0xb8] sm:$0xf]
        %v2696 = vld [vmem:[%s683 + $0xbc] sm:$0x1]
        %v2698 = vshrl.u32 %v2649, 16
        %v2700 = vrot.slane %v2698, 4
        %v2701 = vshll.u32 %v2649, 16
        %v2703 = vrot.slane %v2701, 5
        %v2704 = vor.u32 %v2700, %v2703
        %v2705 = vrot.slane %v2704, 4
        %v2707 = vshll.u32 %v2650, 16
        %v2709 = vrot.slane %v2707, 5
        %v2710 = vsel %vm798, %v2705, %v2709
        %v2711 = vshrl.u32 %v2650, 16
        %v2713 = vrot.slane %v2711, 4
        %v2714 = vor.u32 %v2713, %v2709
        %v2715 = vrot.slane %v2714, 4
        %v2717 = vshll.u32 %v2651, 16
        %v2719 = vrot.slane %v2717, 5
        %v2720 = vsel %vm798, %v2715, %v2719
        %v2722 = vshrl.u32 %v2652, 16
        %v2724 = vrot.slane %v2722, 4
        %v2725 = vshll.u32 %v2652, 16
        %v2727 = vrot.slane %v2725, 5
        %v2728 = vor.u32 %v2724, %v2727
        %v2729 = vrot.slane %v2728, 4
        %v2731 = vshll.u32 %v2653, 16
        %v2733 = vrot.slane %v2731, 5
        %v2734 = vsel %vm798, %v2729, %v2733
        %v2735 = vshrl.u32 %v2653, 16
        %v2737 = vrot.slane %v2735, 4
        %v2738 = vor.u32 %v2737, %v2733
        %v2739 = vrot.slane %v2738, 4
        %v2741 = vshll.u32 %v2654, 16
        %v2743 = vrot.slane %v2741, 5
        %v2744 = vsel %vm798, %v2739, %v2743
        %v2746 = vshrl.u32 %v2655, 16
        %v2748 = vrot.slane %v2746, 4
        %v2749 = vshll.u32 %v2655, 16
        %v2751 = vrot.slane %v2749, 5
        %v2752 = vor.u32 %v2748, %v2751
        %v2753 = vrot.slane %v2752, 4
        %v2755 = vshll.u32 %v2656, 16
        %v2757 = vrot.slane %v2755, 5
        %v2758 = vsel %vm798, %v2753, %v2757
        %v2759 = vshrl.u32 %v2656, 16
        %v2761 = vrot.slane %v2759, 4
        %v2762 = vor.u32 %v2761, %v2757
        %v2763 = vrot.slane %v2762, 4
        %v2765 = vshll.u32 %v2657, 16
        %v2767 = vrot.slane %v2765, 5
        %v2768 = vsel %vm798, %v2763, %v2767
        %v2770 = vshrl.u32 %v2658, 16
        %v2772 = vrot.slane %v2770, 4
        %v2773 = vshll.u32 %v2658, 16
        %v2775 = vrot.slane %v2773, 5
        %v2776 = vor.u32 %v2772, %v2775
        %v2777 = vrot.slane %v2776, 4
        %v2779 = vshll.u32 %v2659, 16
        %v2781 = vrot.slane %v2779, 5
        %v2782 = vsel %vm798, %v2777, %v2781
        %v2783 = vshrl.u32 %v2659, 16
        %v2785 = vrot.slane %v2783, 4
        %v2786 = vor.u32 %v2785, %v2781
        %v2787 = vrot.slane %v2786, 4
        %v2789 = vshll.u32 %v2660, 16
        %v2791 = vrot.slane %v2789, 5
        %v2792 = vsel %vm798, %v2787, %v2791
        %v2794 = vshrl.u32 %v2661, 16
        %v2796 = vrot.slane %v2794, 4
        %v2797 = vshll.u32 %v2661, 16
        %v2799 = vrot.slane %v2797, 5
        %v2800 = vor.u32 %v2796, %v2799
        %v2801 = vrot.slane %v2800, 4
        %v2803 = vshll.u32 %v2662, 16
        %v2805 = vrot.slane %v2803, 5
        %v2806 = vsel %vm798, %v2801, %v2805
        %v2807 = vshrl.u32 %v2662, 16
        %v2809 = vrot.slane %v2807, 4
        %v2810 = vor.u32 %v2809, %v2805
        %v2811 = vrot.slane %v2810, 4
        %v2813 = vshll.u32 %v2663, 16
        %v2815 = vrot.slane %v2813, 5
        %v2816 = vsel %vm798, %v2811, %v2815
        %v2818 = vshrl.u32 %v2664, 16
        %v2820 = vrot.slane %v2818, 4
        %v2821 = vshll.u32 %v2664, 16
        %v2823 = vrot.slane %v2821, 5
        %v2824 = vor.u32 %v2820, %v2823
        %v2825 = vrot.slane %v2824, 4
        %v2827 = vshll.u32 %v2665, 16
        %v2829 = vrot.slane %v2827, 5
        %v2830 = vsel %vm798, %v2825, %v2829
        %v2831 = vshrl.u32 %v2665, 16
        %v2833 = vrot.slane %v2831, 4
        %v2834 = vor.u32 %v2833, %v2829
        %v2835 = vrot.slane %v2834, 4
        %v2837 = vshll.u32 %v2666, 16
        %v2839 = vrot.slane %v2837, 5
        %v2840 = vsel %vm798, %v2835, %v2839
        %v2842 = vshrl.u32 %v2667, 16
        %v2844 = vrot.slane %v2842, 4
        %v2845 = vshll.u32 %v2667, 16
        %v2847 = vrot.slane %v2845, 5
        %v2848 = vor.u32 %v2844, %v2847
        %v2849 = vrot.slane %v2848, 4
        %v2851 = vshll.u32 %v2668, 16
        %v2853 = vrot.slane %v2851, 5
        %v2854 = vsel %vm798, %v2849, %v2853
        %v2855 = vshrl.u32 %v2668, 16
        %v2857 = vrot.slane %v2855, 4
        %v2858 = vor.u32 %v2857, %v2853
        %v2859 = vrot.slane %v2858, 4
        %v2861 = vshll.u32 %v2669, 16
        %v2863 = vrot.slane %v2861, 5
        %v2864 = vsel %vm798, %v2859, %v2863
        %v2866 = vshrl.u32 %v2670, 16
        %v2868 = vrot.slane %v2866, 4
        %v2869 = vshll.u32 %v2670, 16
        %v2871 = vrot.slane %v2869, 5
        %v2872 = vor.u32 %v2868, %v2871
        %v2873 = vrot.slane %v2872, 4
        %v2875 = vshll.u32 %v2671, 16
        %v2877 = vrot.slane %v2875, 5
        %v2878 = vsel %vm798, %v2873, %v2877
        %v2879 = vshrl.u32 %v2671, 16
        %v2881 = vrot.slane %v2879, 4
        %v2882 = vor.u32 %v2881, %v2877
        %v2883 = vrot.slane %v2882, 4
        %v2885 = vshll.u32 %v2672, 16
        %v2887 = vrot.slane %v2885, 5
        %v2888 = vsel %vm798, %v2883, %v2887
        %v2890 = vshrl.u32 %v2673, 16
        %v2892 = vrot.slane %v2890, 4
        %v2893 = vshll.u32 %v2673, 16
        %v2895 = vrot.slane %v2893, 5
        %v2896 = vor.u32 %v2892, %v2895
        %v2897 = vrot.slane %v2896, 4
        %v2899 = vshll.u32 %v2674, 16
        %v2901 = vrot.slane %v2899, 5
        %v2902 = vsel %vm798, %v2897, %v2901
        %v2903 = vshrl.u32 %v2674, 16
        %v2905 = vrot.slane %v2903, 4
        %v2906 = vor.u32 %v2905, %v2901
        %v2907 = vrot.slane %v2906, 4
        %v2909 = vshll.u32 %v2675, 16
        %v2911 = vrot.slane %v2909, 5
        %v2912 = vsel %vm798, %v2907, %v2911
        %v2914 = vshrl.u32 %v2676, 16
        %v2916 = vrot.slane %v2914, 4
        %v2917 = vshll.u32 %v2676, 16
        %v2919 = vrot.slane %v2917, 5
        %v2920 = vor.u32 %v2916, %v2919
        %v2921 = vrot.slane %v2920, 4
        %v2923 = vshll.u32 %v2677, 16
        %v2925 = vrot.slane %v2923, 5
        %v2926 = vsel %vm798, %v2921, %v2925
        %v2927 = vshrl.u32 %v2677, 16
        %v2929 = vrot.slane %v2927, 4
        %v2930 = vor.u32 %v2929, %v2925
        %v2931 = vrot.slane %v2930, 4
        %v2933 = vshll.u32 %v2678, 16
        %v2935 = vrot.slane %v2933, 5
        %v2936 = vsel %vm798, %v2931, %v2935
        %v2938 = vshrl.u32 %v2679, 16
        %v2940 = vrot.slane %v2938, 4
        %v2941 = vshll.u32 %v2679, 16
        %v2943 = vrot.slane %v2941, 5
        %v2944 = vor.u32 %v2940, %v2943
        %v2945 = vrot.slane %v2944, 4
        %v2947 = vshll.u32 %v2680, 16
        %v2949 = vrot.slane %v2947, 5
        %v2950 = vsel %vm798, %v2945, %v2949
        %v2951 = vshrl.u32 %v2680, 16
        %v2953 = vrot.slane %v2951, 4
        %v2954 = vor.u32 %v2953, %v2949
        %v2955 = vrot.slane %v2954, 4
        %v2957 = vshll.u32 %v2681, 16
        %v2959 = vrot.slane %v2957, 5
        %v2960 = vsel %vm798, %v2955, %v2959
        %v2962 = vshrl.u32 %v2682, 16
        %v2964 = vrot.slane %v2962, 4
        %v2965 = vshll.u32 %v2682, 16
        %v2967 = vrot.slane %v2965, 5
        %v2968 = vor.u32 %v2964, %v2967
        %v2969 = vrot.slane %v2968, 4
        %v2971 = vshll.u32 %v2683, 16
        %v2973 = vrot.slane %v2971, 5
        %v2974 = vsel %vm798, %v2969, %v2973
        %v2975 = vshrl.u32 %v2683, 16
        %v2977 = vrot.slane %v2975, 4
        %v2978 = vor.u32 %v2977, %v2973
        %v2979 = vrot.slane %v2978, 4
        %v2981 = vshll.u32 %v2684, 16
        %v2983 = vrot.slane %v2981, 5
        %v2984 = vsel %vm798, %v2979, %v2983
        %v2986 = vshrl.u32 %v2685, 16
        %v2988 = vrot.slane %v2986, 4
        %v2989 = vshll.u32 %v2685, 16
        %v2991 = vrot.slane %v2989, 5
        %v2992 = vor.u32 %v2988, %v2991
        %v2993 = vrot.slane %v2992, 4
        %v2995 = vshll.u32 %v2686, 16
        %v2997 = vrot.slane %v2995, 5
        %v2998 = vsel %vm798, %v2993, %v2997
        %v2999 = vshrl.u32 %v2686, 16
        %v3001 = vrot.slane %v2999, 4
        %v3002 = vor.u32 %v3001, %v2997
        %v3003 = vrot.slane %v3002, 4
        %v3005 = vshll.u32 %v2687, 16
        %v3007 = vrot.slane %v3005, 5
        %v3008 = vsel %vm798, %v3003, %v3007
        %v3010 = vshrl.u32 %v2688, 16
        %v3012 = vrot.slane %v3010, 4
        %v3013 = vshll.u32 %v2688, 16
        %v3015 = vrot.slane %v3013, 5
        %v3016 = vor.u32 %v3012, %v3015
        %v3017 = vrot.slane %v3016, 4
        %v3019 = vshll.u32 %v2689, 16
        %v3021 = vrot.slane %v3019, 5
        %v3022 = vsel %vm798, %v3017, %v3021
        %v3023 = vshrl.u32 %v2689, 16
        %v3025 = vrot.slane %v3023, 4
        %v3026 = vor.u32 %v3025, %v3021
        %v3027 = vrot.slane %v3026, 4
        %v3029 = vshll.u32 %v2690, 16
        %v3031 = vrot.slane %v3029, 5
        %v3032 = vsel %vm798, %v3027, %v3031
        %v3034 = vshrl.u32 %v2691, 16
        %v3036 = vrot.slane %v3034, 4
        %v3037 = vshll.u32 %v2691, 16
        %v3039 = vrot.slane %v3037, 5
        %v3040 = vor.u32 %v3036, %v3039
        %v3041 = vrot.slane %v3040, 4
        %v3043 = vshll.u32 %v2692, 16
        %v3045 = vrot.slane %v3043, 5
        %v3046 = vsel %vm798, %v3041, %v3045
        %v3047 = vshrl.u32 %v2692, 16
        %v3049 = vrot.slane %v3047, 4
        %v3050 = vor.u32 %v3049, %v3045
        %v3051 = vrot.slane %v3050, 4
        %v3053 = vshll.u32 %v2693, 16
        %v3055 = vrot.slane %v3053, 5
        %v3056 = vsel %vm798, %v3051, %v3055
        %v3058 = vshrl.u32 %v2694, 16
        %v3060 = vrot.slane %v3058, 4
        %v3061 = vshll.u32 %v2694, 16
        %v3063 = vrot.slane %v3061, 5
        %v3064 = vor.u32 %v3060, %v3063
        %v3065 = vrot.slane %v3064, 4
        %v3067 = vshll.u32 %v2695, 16
        %v3069 = vrot.slane %v3067, 5
        %v3070 = vsel %vm798, %v3065, %v3069
        %v3071 = vshrl.u32 %v2695, 16
        %v3073 = vrot.slane %v3071, 4
        %v3074 = vor.u32 %v3073, %v3069
        %v3075 = vrot.slane %v3074, 4
        %v3077 = vshll.u32 %v2696, 16
        %v3079 = vrot.slane %v3077, 5
        %v3080 = vsel %vm798, %v3075, %v3079
        %s3081 = scalar_lea.vmem [#allocation6], 256
        %v3082 = vld [vmem:[%s3081] sm:$0xf]
        %v3083 = vld [vmem:[%s3081 + $0x4] sm:$0xf]
        %v3084 = vld [vmem:[%s3081 + $0x8] sm:$0xf]
        %v3085 = vld [vmem:[%s3081 + $0xc] sm:$0xf]
        %v3086 = vld [vmem:[%s3081 + $0x10] sm:$0xf]
        %v3087 = vld [vmem:[%s3081 + $0x14] sm:$0xf]
        %v3088 = vld [vmem:[%s3081 + $0x18] sm:$0xf]
        %v3089 = vld [vmem:[%s3081 + $0x1c] sm:$0xf]
        %v3090 = vld [vmem:[%s3081 + $0x20] sm:$0xf]
        %v3091 = vld [vmem:[%s3081 + $0x24] sm:$0xf]
        %v3092 = vld [vmem:[%s3081 + $0x28] sm:$0xf]
        %v3093 = vld [vmem:[%s3081 + $0x2c] sm:$0xf]
        %v3094 = vld [vmem:[%s3081 + $0x30] sm:$0xf]
        %v3095 = vld [vmem:[%s3081 + $0x34] sm:$0xf]
        %v3096 = vld [vmem:[%s3081 + $0x38] sm:$0xf]
        %v3097 = vld [vmem:[%s3081 + $0x3c] sm:$0xf]
        %v3098 = vunpack.c.l.b16 %v2710
        %v3099 = vunpack.c.l.b16 %v2720
        %v3100 = vunpack.c.l.b16 %v2734
        %v3101 = vunpack.c.l.b16 %v2744
        %v3102 = vunpack.c.l.b16 %v2758
        %v3103 = vunpack.c.l.b16 %v2768
        %v3104 = vunpack.c.l.b16 %v2782
        %v3105 = vunpack.c.l.b16 %v2792
        %v3106 = vunpack.c.l.b16 %v2806
        %v3107 = vunpack.c.l.b16 %v2816
        %v3108 = vunpack.c.l.b16 %v2830
        %v3109 = vunpack.c.l.b16 %v2840
        %v3110 = vunpack.c.l.b16 %v2854
        %v3111 = vunpack.c.l.b16 %v2864
        %v3112 = vunpack.c.l.b16 %v2878
        %v3113 = vunpack.c.l.b16 %v2888
        %v3114 = vunpack.c.l.b16 %v2902
        %v3115 = vunpack.c.l.b16 %v2912
        %v3116 = vunpack.c.l.b16 %v2926
        %v3117 = vunpack.c.l.b16 %v2936
        %v3118 = vunpack.c.l.b16 %v2950
        %v3119 = vunpack.c.l.b16 %v2960
        %v3120 = vunpack.c.l.b16 %v2974
        %v3121 = vunpack.c.l.b16 %v2984
        %v3122 = vunpack.c.l.b16 %v2998
        %v3123 = vunpack.c.l.b16 %v3008
        %v3124 = vunpack.c.l.b16 %v3022
        %v3125 = vunpack.c.l.b16 %v3032
        %v3126 = vunpack.c.l.b16 %v3046
        %v3127 = vunpack.c.l.b16 %v3056
        %v3128 = vunpack.c.l.b16 %v3070
        %v3129 = vunpack.c.l.b16 %v3080
        %v3130 = vpack.c.b16 %v3099, %v3098
        %v3131 = vpack.c.b16 %v3101, %v3100
        %v3132 = vpack.c.b16 %v3103, %v3102
        %v3133 = vpack.c.b16 %v3105, %v3104
        %v3134 = vpack.c.b16 %v3107, %v3106
        %v3135 = vpack.c.b16 %v3109, %v3108
        %v3136 = vpack.c.b16 %v3111, %v3110
        %v3137 = vpack.c.b16 %v3113, %v3112
        %v3138 = vpack.c.b16 %v3115, %v3114
        %v3139 = vpack.c.b16 %v3117, %v3116
        %v3140 = vpack.c.b16 %v3119, %v3118
        %v3141 = vpack.c.b16 %v3121, %v3120
        %v3142 = vpack.c.b16 %v3123, %v3122
        %v3143 = vpack.c.b16 %v3125, %v3124
        %v3144 = vpack.c.b16 %v3127, %v3126
        %v3145 = vpack.c.b16 %v3129, %v3128
        %v3178 = vunpack.c.l.b16 %v3082
        %v3179 = vunpack.c.l.b16 %v3083
        %v3180 = vunpack.c.l.b16 %v3084
        %v3181 = vunpack.c.l.b16 %v3085
        %v3182 = vunpack.c.l.b16 %v3086
        %v3183 = vunpack.c.l.b16 %v3087
        %v3184 = vunpack.c.l.b16 %v3088
        %v3185 = vunpack.c.l.b16 %v3089
        %v3186 = vunpack.c.l.b16 %v3090
        %v3187 = vunpack.c.l.b16 %v3091
        %v3188 = vunpack.c.l.b16 %v3092
        %v3189 = vunpack.c.l.b16 %v3093
        %v3190 = vunpack.c.l.b16 %v3094
        %v3191 = vunpack.c.l.b16 %v3095
        %v3192 = vunpack.c.l.b16 %v3096
        %v3193 = vunpack.c.l.b16 %v3097
        %v3194 = vpack.c.b16 %v3179, %v3178
        %v3195 = vpack.c.b16 %v3181, %v3180
        %v3196 = vpack.c.b16 %v3183, %v3182
        %v3197 = vpack.c.b16 %v3185, %v3184
        %v3198 = vpack.c.b16 %v3187, %v3186
        %v3199 = vpack.c.b16 %v3189, %v3188
        %v3200 = vpack.c.b16 %v3191, %v3190
        %v3201 = vpack.c.b16 %v3193, %v3192
        %3210 = vmatprep.subr.bf16.mxu0 0
        %3211 = vmatpush1.bf16.msra.mxu0 %v3194
        %3212 = vmatprep.subr.bf16.mxu0 0
        %3213 = vmatpush1.bf16.msra.mxu0 %v3195
        %3214 = vmatprep.subr.bf16.mxu0 0
        %3215 = vmatpush1.bf16.msra.mxu0 %v3196
        %3216 = vmatprep.subr.bf16.mxu0 0
        %3217 = vmatpush1.bf16.msra.mxu0 %v3197
        %3218 = vmatprep.subr.bf16.mxu0 0
        %3219 = vmatpush1.bf16.msra.mxu0 %v3198
        %3220 = vmatprep.subr.bf16.mxu0 0
        %3221 = vmatpush1.bf16.msra.mxu0 %v3199
        %3222 = vmatprep.subr.bf16.mxu0 0
        %3223 = vmatpush1.bf16.msra.mxu0 %v3200
        %3224 = vmatprep.subr.bf16.mxu0 0
        %3225 = vmatpush1.bf16.msra.mxu0 %v3201
        %3226 = vmatprep.subr.bf16.mxu0 0
        %3227 = vmatpush1.bf16.msra.mxu0 0
        %3228 = vmatprep.subr.bf16.mxu0 0
        %3229 = vmatpush1.bf16.msra.mxu0 0
        %3230 = vmatprep.subr.bf16.mxu0 0
        %3231 = vmatpush1.bf16.msra.mxu0 0
        %3232 = vmatprep.subr.bf16.mxu0 0
        %3233 = vmatpush1.bf16.msra.mxu0 0
        %3234 = vmatprep.subr.bf16.mxu0 0
        %3235 = vmatpush1.bf16.msra.mxu0 0
        %3236 = vmatprep.subr.bf16.mxu0 0
        %3237 = vmatpush1.bf16.msra.mxu0 0
        %3238 = vmatprep.subr.bf16.mxu0 0
        %3239 = vmatpush1.bf16.msra.mxu0 0
        %3240 = vmatprep.subr.bf16.mxu0 0
        %3241 = vmatpush1.bf16.msra.mxu0 0
        %3242 = vmatprep.mubr.bf16.mxu0 0
        %3243 = vmatmul.mubr.bf16.gmra.mrb[0].mxu0 %v3130
        %v3244 = vpop.f32.mrb[0].mxu0
        %v3245 = vadd.f32 0.0, %v3244
        %v3246 = vpop.f32.mrb[0].mxu0
        %v3247 = vpop.f32.mrb[0].mxu0
        %v3248 = vadd.f32 0.0, %v3247
        %v3249 = vpop.f32.mrb[0].mxu0
        %3250 = vmatprep.mubr.bf16.mxu0 0
        %3251 = vmatmul.mubr.bf16.gmra.mrb[0].mxu0 %v3131
        %v3252 = vpop.f32.mrb[0].mxu0
        %v3253 = vadd.f32 0.0, %v3252
        %v3254 = vpop.f32.mrb[0].mxu0
        %v3255 = vpop.f32.mrb[0].mxu0
        %v3256 = vadd.f32 0.0, %v3255
        %v3257 = vpop.f32.mrb[0].mxu0
        %3258 = vmatprep.mubr.bf16.mxu0 0
        %3259 = vmatmul.mubr.bf16.gmra.mrb[0].mxu0 %v3132
        %v3260 = vpop.f32.mrb[0].mxu0
        %v3261 = vadd.f32 0.0, %v3260
        %v3262 = vpop.f32.mrb[0].mxu0
        %v3263 = vpop.f32.mrb[0].mxu0
        %v3264 = vadd.f32 0.0, %v3263
        %v3265 = vpop.f32.mrb[0].mxu0
        %3266 = vmatprep.mubr.bf16.mxu0 0
        %3267 = vmatmul.mubr.bf16.gmra.mrb[0].mxu0 %v3133
        %v3268 = vpop.f32.mrb[0].mxu0
        %v3269 = vadd.f32 0.0, %v3268
        %v3270 = vpop.f32.mrb[0].mxu0
        %v3271 = vpop.f32.mrb[0].mxu0
        %v3272 = vadd.f32 0.0, %v3271
        %v3273 = vpop.f32.mrb[0].mxu0
        %3274 = vmatprep.mubr.bf16.mxu0 0
        %3275 = vmatmul.mubr.bf16.gmra.mrb[0].mxu0 %v3134
        %v3276 = vpop.f32.mrb[0].mxu0
        %v3277 = vadd.f32 0.0, %v3276
        %v3278 = vpop.f32.mrb[0].mxu0
        %v3279 = vpop.f32.mrb[0].mxu0
        %v3280 = vadd.f32 0.0, %v3279
        %v3281 = vpop.f32.mrb[0].mxu0
        %3282 = vmatprep.mubr.bf16.mxu0 0
        %3283 = vmatmul.mubr.bf16.gmra.mrb[0].mxu0 %v3135
        %v3284 = vpop.f32.mrb[0].mxu0
        %v3285 = vadd.f32 0.0, %v3284
        %v3286 = vpop.f32.mrb[0].mxu0
        %v3287 = vpop.f32.mrb[0].mxu0
        %v3288 = vadd.f32 0.0, %v3287
        %v3289 = vpop.f32.mrb[0].mxu0
        %3290 = vmatprep.mubr.bf16.mxu0 0
        %3291 = vmatmul.mubr.bf16.gmra.mrb[0].mxu0 %v3136
        %v3292 = vpop.f32.mrb[0].mxu0
        %v3293 = vadd.f32 0.0, %v3292
        %v3294 = vpop.f32.mrb[0].mxu0
        %v3295 = vpop.f32.mrb[0].mxu0
        %v3296 = vadd.f32 0.0, %v3295
        %v3297 = vpop.f32.mrb[0].mxu0
        %3298 = vmatprep.mubr.bf16.mxu0 0
        %3299 = vmatmul.mubr.bf16.gmra.mrb[0].mxu0 %v3137
        %v3300 = vpop.f32.mrb[0].mxu0
        %v3301 = vadd.f32 0.0, %v3300
        %v3302 = vpop.f32.mrb[0].mxu0
        %v3303 = vpop.f32.mrb[0].mxu0
        %v3304 = vadd.f32 0.0, %v3303
        %v3305 = vpop.f32.mrb[0].mxu0
        %3306 = vmatprep.mubr.bf16.mxu0 0
        %3307 = vmatmul.mubr.bf16.gmra.mrb[0].mxu0 %v3138
        %v3308 = vpop.f32.mrb[0].mxu0
        %v3309 = vadd.f32 0.0, %v3308
        %v3310 = vpop.f32.mrb[0].mxu0
        %v3311 = vpop.f32.mrb[0].mxu0
        %v3312 = vadd.f32 0.0, %v3311
        %v3313 = vpop.f32.mrb[0].mxu0
        %3314 = vmatprep.mubr.bf16.mxu0 0
        %3315 = vmatmul.mubr.bf16.gmra.mrb[0].mxu0 %v3139
        %v3316 = vpop.f32.mrb[0].mxu0
        %v3317 = vadd.f32 0.0, %v3316
        %v3318 = vpop.f32.mrb[0].mxu0
        %v3319 = vpop.f32.mrb[0].mxu0
        %v3320 = vadd.f32 0.0, %v3319
        %v3321 = vpop.f32.mrb[0].mxu0
        %3322 = vmatprep.mubr.bf16.mxu0 0
        %3323 = vmatmul.mubr.bf16.gmra.mrb[0].mxu0 %v3140
        %v3324 = vpop.f32.mrb[0].mxu0
        %v3325 = vadd.f32 0.0, %v3324
        %v3326 = vpop.f32.mrb[0].mxu0
        %v3327 = vpop.f32.mrb[0].mxu0
        %v3328 = vadd.f32 0.0, %v3327
        %v3329 = vpop.f32.mrb[0].mxu0
        %3330 = vmatprep.mubr.bf16.mxu0 0
        %3331 = vmatmul.mubr.bf16.gmra.mrb[0].mxu0 %v3141
        %v3332 = vpop.f32.mrb[0].mxu0
        %v3333 = vadd.f32 0.0, %v3332
        %v3334 = vpop.f32.mrb[0].mxu0
        %v3335 = vpop.f32.mrb[0].mxu0
        %v3336 = vadd.f32 0.0, %v3335
        %v3337 = vpop.f32.mrb[0].mxu0
        %3338 = vmatprep.mubr.bf16.mxu0 0
        %3339 = vmatmul.mubr.bf16.gmra.mrb[0].mxu0 %v3142
        %v3340 = vpop.f32.mrb[0].mxu0
        %v3341 = vadd.f32 0.0, %v3340
        %v3342 = vpop.f32.mrb[0].mxu0
        %v3343 = vpop.f32.mrb[0].mxu0
        %v3344 = vadd.f32 0.0, %v3343
        %v3345 = vpop.f32.mrb[0].mxu0
        %3346 = vmatprep.mubr.bf16.mxu0 0
        %3347 = vmatmul.mubr.bf16.gmra.mrb[0].mxu0 %v3143
        %v3348 = vpop.f32.mrb[0].mxu0
        %v3349 = vadd.f32 0.0, %v3348
        %v3350 = vpop.f32.mrb[0].mxu0
        %v3351 = vpop.f32.mrb[0].mxu0
        %v3352 = vadd.f32 0.0, %v3351
        %v3353 = vpop.f32.mrb[0].mxu0
        %3354 = vmatprep.mubr.bf16.mxu0 0
        %3355 = vmatmul.mubr.bf16.gmra.mrb[0].mxu0 %v3144
        %v3356 = vpop.f32.mrb[0].mxu0
        %v3357 = vadd.f32 0.0, %v3356
        %v3358 = vpop.f32.mrb[0].mxu0
        %v3359 = vpop.f32.mrb[0].mxu0
        %v3360 = vadd.f32 0.0, %v3359
        %v3361 = vpop.f32.mrb[0].mxu0
        %3362 = vmatprep.mubr.bf16.mxu0 0
        %3363 = vmatmul.mubr.bf16.gmra.mrb[0].mxu0 %v3145
        %v3364 = vpop.f32.mrb[0].mxu0
        %v3365 = vadd.f32 0.0, %v3364
        %v3366 = vpop.f32.mrb[0].mxu0
        %v3367 = vpop.f32.mrb[0].mxu0
        %v3368 = vadd.f32 0.0, %v3367
        %v3369 = vpop.f32.mrb[0].mxu0
        %3370 = vdwg.mxu0
        %v3371 = vadd.f32 %v2617, %v3245
        %v3372 = vadd.f32 %v2618, %v3248
        %v3373 = vadd.f32 %v2619, %v3253
        %v3374 = vadd.f32 %v2620, %v3256
        %v3375 = vadd.f32 %v2621, %v3261
        %v3376 = vadd.f32 %v2622, %v3264
        %v3377 = vadd.f32 %v2623, %v3269
        %v3378 = vadd.f32 %v2624, %v3272
        %v3379 = vadd.f32 %v2625, %v3277
        %v3380 = vadd.f32 %v2626, %v3280
        %v3381 = vadd.f32 %v2627, %v3285
        %v3382 = vadd.f32 %v2628, %v3288
        %v3383 = vadd.f32 %v2629, %v3293
        %v3384 = vadd.f32 %v2630, %v3296
        %v3385 = vadd.f32 %v2631, %v3301
        %v3386 = vadd.f32 %v2632, %v3304
        %v3387 = vadd.f32 %v2633, %v3309
        %v3388 = vadd.f32 %v2634, %v3312
        %v3389 = vadd.f32 %v2635, %v3317
        %v3390 = vadd.f32 %v2636, %v3320
        %v3391 = vadd.f32 %v2637, %v3325
        %v3392 = vadd.f32 %v2638, %v3328
        %v3393 = vadd.f32 %v2639, %v3333
        %v3394 = vadd.f32 %v2640, %v3336
        %v3395 = vadd.f32 %v2641, %v3341
        %v3396 = vadd.f32 %v2642, %v3344
        %v3397 = vadd.f32 %v2643, %v3349
        %v3398 = vadd.f32 %v2644, %v3352
        %v3399 = vadd.f32 %v2645, %v3357
        %v3400 = vadd.f32 %v2646, %v3360
        %v3401 = vadd.f32 %v2647, %v3365
        %v3402 = vadd.f32 %v2648, %v3368
        %v3403 = vld [vmem:[%s683] sm:$0xe]
        %v3404 = vld [vmem:[%s683 + $0xc] sm:$0xe]
        %v3405 = vld [vmem:[%s683 + $0x18] sm:$0xe]
        %v3406 = vld [vmem:[%s683 + $0x24] sm:$0xe]
        %v3407 = vld [vmem:[%s683 + $0x30] sm:$0xe]
        %v3408 = vld [vmem:[%s683 + $0x3c] sm:$0xe]
        %v3409 = vld [vmem:[%s683 + $0x48] sm:$0xe]
        %v3410 = vld [vmem:[%s683 + $0x54] sm:$0xe]
        %v3411 = vld [vmem:[%s683 + $0x60] sm:$0xe]
        %v3412 = vld [vmem:[%s683 + $0x6c] sm:$0xe]
        %v3413 = vld [vmem:[%s683 + $0x78] sm:$0xe]
        %v3414 = vld [vmem:[%s683 + $0x84] sm:$0xe]
        %v3415 = vld [vmem:[%s683 + $0x90] sm:$0xe]
        %v3416 = vld [vmem:[%s683 + $0x9c] sm:$0xe]
        %v3417 = vld [vmem:[%s683 + $0xa8] sm:$0xe]
        %v3418 = vld [vmem:[%s683 + $0xb4] sm:$0xe]
        %v3467 = vrot.slane %v3403, 5
        %v3468 = vrot.slane %v3467, 4
        %v3469 = vrot.slane %v2650, 5
        %v3470 = vsel %vm1828, %v3468, %v3469
        %v3471 = vrot.slane %v3469, 4
        %v3472 = vrot.slane %v2651, 5
        %v3473 = vsel %vm1828, %v3471, %v3472
        %v3474 = vrot.slane %v3404, 5
        %v3475 = vrot.slane %v3474, 4
        %v3476 = vrot.slane %v2653, 5
        %v3477 = vsel %vm1828, %v3475, %v3476
        %v3478 = vrot.slane %v3476, 4
        %v3479 = vrot.slane %v2654, 5
        %v3480 = vsel %vm1828, %v3478, %v3479
        %v3481 = vrot.slane %v3405, 5
        %v3482 = vrot.slane %v3481, 4
        %v3483 = vrot.slane %v2656, 5
        %v3484 = vsel %vm1828, %v3482, %v3483
        %v3485 = vrot.slane %v3483, 4
        %v3486 = vrot.slane %v2657, 5
        %v3487 = vsel %vm1828, %v3485, %v3486
        %v3488 = vrot.slane %v3406, 5
        %v3489 = vrot.slane %v3488, 4
        %v3490 = vrot.slane %v2659, 5
        %v3491 = vsel %vm1828, %v3489, %v3490
        %v3492 = vrot.slane %v3490, 4
        %v3493 = vrot.slane %v2660, 5
        %v3494 = vsel %vm1828, %v3492, %v3493
        %v3495 = vrot.slane %v3407, 5
        %v3496 = vrot.slane %v3495, 4
        %v3497 = vrot.slane %v2662, 5
        %v3498 = vsel %vm1828, %v3496, %v3497
        %v3499 = vrot.slane %v3497, 4
        %v3500 = vrot.slane %v2663, 5
        %v3501 = vsel %vm1828, %v3499, %v3500
        %v3502 = vrot.slane %v3408, 5
        %v3503 = vrot.slane %v3502, 4
        %v3504 = vrot.slane %v2665, 5
        %v3505 = vsel %vm1828, %v3503, %v3504
        %v3506 = vrot.slane %v3504, 4
        %v3507 = vrot.slane %v2666, 5
        %v3508 = vsel %vm1828, %v3506, %v3507
        %v3509 = vrot.slane %v3409, 5
        %v3510 = vrot.slane %v3509, 4
        %v3511 = vrot.slane %v2668, 5
        %v3512 = vsel %vm1828, %v3510, %v3511
        %v3513 = vrot.slane %v3511, 4
        %v3514 = vrot.slane %v2669, 5
        %v3515 = vsel %vm1828, %v3513, %v3514
        %v3516 = vrot.slane %v3410, 5
        %v3517 = vrot.slane %v3516, 4
        %v3518 = vrot.slane %v2671, 5
        %v3519 = vsel %vm1828, %v3517, %v3518
        %v3520 = vrot.slane %v3518, 4
        %v3521 = vrot.slane %v2672, 5
        %v3522 = vsel %vm1828, %v3520, %v3521
        %v3523 = vrot.slane %v3411, 5
        %v3524 = vrot.slane %v3523, 4
        %v3525 = vrot.slane %v2674, 5
        %v3526 = vsel %vm1828, %v3524, %v3525
        %v3527 = vrot.slane %v3525, 4
        %v3528 = vrot.slane %v2675, 5
        %v3529 = vsel %vm1828, %v3527, %v3528
        %v3530 = vrot.slane %v3412, 5
        %v3531 = vrot.slane %v3530, 4
        %v3532 = vrot.slane %v2677, 5
        %v3533 = vsel %vm1828, %v3531, %v3532
        %v3534 = vrot.slane %v3532, 4
        %v3535 = vrot.slane %v2678, 5
        %v3536 = vsel %vm1828, %v3534, %v3535
        %v3537 = vrot.slane %v3413, 5
        %v3538 = vrot.slane %v3537, 4
        %v3539 = vrot.slane %v2680, 5
        %v3540 = vsel %vm1828, %v3538, %v3539
        %v3541 = vrot.slane %v3539, 4
        %v3542 = vrot.slane %v2681, 5
        %v3543 = vsel %vm1828, %v3541, %v3542
        %v3544 = vrot.slane %v3414, 5
        %v3545 = vrot.slane %v3544, 4
        %v3546 = vrot.slane %v2683, 5
        %v3547 = vsel %vm1828, %v3545, %v3546
        %v3548 = vrot.slane %v3546, 4
        %v3549 = vrot.slane %v2684, 5
        %v3550 = vsel %vm1828, %v3548, %v3549
        %v3551 = vrot.slane %v3415, 5
        %v3552 = vrot.slane %v3551, 4
        %v3553 = vrot.slane %v2686, 5
        %v3554 = vsel %vm1828, %v3552, %v3553
        %v3555 = vrot.slane %v3553, 4
        %v3556 = vrot.slane %v2687, 5
        %v3557 = vsel %vm1828, %v3555, %v3556
        %v3558 = vrot.slane %v3416, 5
        %v3559 = vrot.slane %v3558, 4
        %v3560 = vrot.slane %v2689, 5
        %v3561 = vsel %vm1828, %v3559, %v3560
        %v3562 = vrot.slane %v3560, 4
        %v3563 = vrot.slane %v2690, 5
        %v3564 = vsel %vm1828, %v3562, %v3563
        %v3565 = vrot.slane %v3417, 5
        %v3566 = vrot.slane %v3565, 4
        %v3567 = vrot.slane %v2692, 5
        %v3568 = vsel %vm1828, %v3566, %v3567
        %v3569 = vrot.slane %v3567, 4
        %v3570 = vrot.slane %v2693, 5
        %v3571 = vsel %vm1828, %v3569, %v3570
        %v3572 = vrot.slane %v3418, 5
        %v3573 = vrot.slane %v3572, 4
        %v3574 = vrot.slane %v2695, 5
        %v3575 = vsel %vm1828, %v3573, %v3574
        %v3576 = vrot.slane %v3574, 4
        %v3577 = vrot.slane %v2696, 5
        %v3578 = vsel %vm1828, %v3576, %v3577
        %s3579 = scalar_lea.vmem [#allocation6], 320
        %v3580 = vld [vmem:[%s3579] sm:$0xf]
        %v3581 = vld [vmem:[%s3579 + $0x4] sm:$0xf]
        %v3582 = vld [vmem:[%s3579 + $0x8] sm:$0xf]
        %v3583 = vld [vmem:[%s3579 + $0xc] sm:$0xf]
        %v3584 = vld [vmem:[%s3579 + $0x10] sm:$0xf]
        %v3585 = vld [vmem:[%s3579 + $0x14] sm:$0xf]
        %v3586 = vld [vmem:[%s3579 + $0x18] sm:$0xf]
        %v3587 = vld [vmem:[%s3579 + $0x1c] sm:$0xf]
        %v3588 = vld [vmem:[%s3579 + $0x20] sm:$0xf]
        %v3589 = vld [vmem:[%s3579 + $0x24] sm:$0xf]
        %v3590 = vld [vmem:[%s3579 + $0x28] sm:$0xf]
        %v3591 = vld [vmem:[%s3579 + $0x2c] sm:$0xf]
        %v3592 = vld [vmem:[%s3579 + $0x30] sm:$0xf]
        %v3593 = vld [vmem:[%s3579 + $0x34] sm:$0xf]
        %v3594 = vld [vmem:[%s3579 + $0x38] sm:$0xf]
        %v3595 = vld [vmem:[%s3579 + $0x3c] sm:$0xf]
        %v3596 = vunpack.c.l.b16 %v3470
        %v3597 = vunpack.c.l.b16 %v3473
        %v3598 = vunpack.c.l.b16 %v3477
        %v3599 = vunpack.c.l.b16 %v3480
        %v3600 = vunpack.c.l.b16 %v3484
        %v3601 = vunpack.c.l.b16 %v3487
        %v3602 = vunpack.c.l.b16 %v3491
        %v3603 = vunpack.c.l.b16 %v3494
        %v3604 = vunpack.c.l.b16 %v3498
        %v3605 = vunpack.c.l.b16 %v3501
        %v3606 = vunpack.c.l.b16 %v3505
        %v3607 = vunpack.c.l.b16 %v3508
        %v3608 = vunpack.c.l.b16 %v3512
        %v3609 = vunpack.c.l.b16 %v3515
        %v3610 = vunpack.c.l.b16 %v3519
        %v3611 = vunpack.c.l.b16 %v3522
        %v3612 = vunpack.c.l.b16 %v3526
        %v3613 = vunpack.c.l.b16 %v3529
        %v3614 = vunpack.c.l.b16 %v3533
        %v3615 = vunpack.c.l.b16 %v3536
        %v3616 = vunpack.c.l.b16 %v3540
        %v3617 = vunpack.c.l.b16 %v3543
        %v3618 = vunpack.c.l.b16 %v3547
        %v3619 = vunpack.c.l.b16 %v3550
        %v3620 = vunpack.c.l.b16 %v3554
        %v3621 = vunpack.c.l.b16 %v3557
        %v3622 = vunpack.c.l.b16 %v3561
        %v3623 = vunpack.c.l.b16 %v3564
        %v3624 = vunpack.c.l.b16 %v3568
        %v3625 = vunpack.c.l.b16 %v3571
        %v3626 = vunpack.c.l.b16 %v3575
        %v3627 = vunpack.c.l.b16 %v3578
        %v3628 = vpack.c.b16 %v3597, %v3596
        %v3629 = vpack.c.b16 %v3599, %v3598
        %v3630 = vpack.c.b16 %v3601, %v3600
        %v3631 = vpack.c.b16 %v3603, %v3602
        %v3632 = vpack.c.b16 %v3605, %v3604
        %v3633 = vpack.c.b16 %v3607, %v3606
        %v3634 = vpack.c.b16 %v3609, %v3608
        %v3635 = vpack.c.b16 %v3611, %v3610
        %v3636 = vpack.c.b16 %v3613, %v3612
        %v3637 = vpack.c.b16 %v3615, %v3614
        %v3638 = vpack.c.b16 %v3617, %v3616
        %v3639 = vpack.c.b16 %v3619, %v3618
        %v3640 = vpack.c.b16 %v3621, %v3620
        %v3641 = vpack.c.b16 %v3623, %v3622
        %v3642 = vpack.c.b16 %v3625, %v3624
        %v3643 = vpack.c.b16 %v3627, %v3626
        %v3676 = vunpack.c.l.b16 %v3580
        %v3677 = vunpack.c.l.b16 %v3581
        %v3678 = vunpack.c.l.b16 %v3582
        %v3679 = vunpack.c.l.b16 %v3583
        %v3680 = vunpack.c.l.b16 %v3584
        %v3681 = vunpack.c.l.b16 %v3585
        %v3682 = vunpack.c.l.b16 %v3586
        %v3683 = vunpack.c.l.b16 %v3587
        %v3684 = vunpack.c.l.b16 %v3588
        %v3685 = vunpack.c.l.b16 %v3589
        %v3686 = vunpack.c.l.b16 %v3590
        %v3687 = vunpack.c.l.b16 %v3591
        %v3688 = vunpack.c.l.b16 %v3592
        %v3689 = vunpack.c.l.b16 %v3593
        %v3690 = vunpack.c.l.b16 %v3594
        %v3691 = vunpack.c.l.b16 %v3595
        %v3692 = vpack.c.b16 %v3677, %v3676
        %v3693 = vpack.c.b16 %v3679, %v3678
        %v3694 = vpack.c.b16 %v3681, %v3680
        %v3695 = vpack.c.b16 %v3683, %v3682
        %v3696 = vpack.c.b16 %v3685, %v3684
        %v3697 = vpack.c.b16 %v3687, %v3686
        %v3698 = vpack.c.b16 %v3689, %v3688
        %v3699 = vpack.c.b16 %v3691, %v3690
        %3708 = vmatprep.subr.bf16.mxu0 0
        %3709 = vmatpush1.bf16.msra.mxu0 %v3692
        %3710 = vmatprep.subr.bf16.mxu0 0
        %3711 = vmatpush1.bf16.msra.mxu0 %v3693
        %3712 = vmatprep.subr.bf16.mxu0 0
        %3713 = vmatpush1.bf16.msra.mxu0 %v3694
        %3714 = vmatprep.subr.bf16.mxu0 0
        %3715 = vmatpush1.bf16.msra.mxu0 %v3695
        %3716 = vmatprep.subr.bf16.mxu0 0
        %3717 = vmatpush1.bf16.msra.mxu0 %v3696
        %3718 = vmatprep.subr.bf16.mxu0 0
        %3719 = vmatpush1.bf16.msra.mxu0 %v3697
        %3720 = vmatprep.subr.bf16.mxu0 0
        %3721 = vmatpush1.bf16.msra.mxu0 %v3698
        %3722 = vmatprep.subr.bf16.mxu0 0
        %3723 = vmatpush1.bf16.msra.mxu0 %v3699
        %3724 = vmatprep.subr.bf16.mxu0 0
        %3725 = vmatpush1.bf16.msra.mxu0 0
        %3726 = vmatprep.subr.bf16.mxu0 0
        %3727 = vmatpush1.bf16.msra.mxu0 0
        %3728 = vmatprep.subr.bf16.mxu0 0
        %3729 = vmatpush1.bf16.msra.mxu0 0
        %3730 = vmatprep.subr.bf16.mxu0 0
        %3731 = vmatpush1.bf16.msra.mxu0 0
        %3732 = vmatprep.subr.bf16.mxu0 0
        %3733 = vmatpush1.bf16.msra.mxu0 0
        %3734 = vmatprep.subr.bf16.mxu0 0
        %3735 = vmatpush1.bf16.msra.mxu0 0
        %3736 = vmatprep.subr.bf16.mxu0 0
        %3737 = vmatpush1.bf16.msra.mxu0 0
        %3738 = vmatprep.subr.bf16.mxu0 0
        %3739 = vmatpush1.bf16.msra.mxu0 0
        %3740 = vmatprep.mubr.bf16.mxu0 0
        %3741 = vmatmul.mubr.bf16.gmra.mrb[0].mxu0 %v3628
        %v3742 = vpop.f32.mrb[0].mxu0
        %v3743 = vadd.f32 0.0, %v3742
        %v3744 = vpop.f32.mrb[0].mxu0
        %v3745 = vpop.f32.mrb[0].mxu0
        %v3746 = vadd.f32 0.0, %v3745
        %v3747 = vpop.f32.mrb[0].mxu0
        %3748 = vmatprep.mubr.bf16.mxu0 0
        %3749 = vmatmul.mubr.bf16.gmra.mrb[0].mxu0 %v3629
        %v3750 = vpop.f32.mrb[0].mxu0
        %v3751 = vadd.f32 0.0, %v3750
        %v3752 = vpop.f32.mrb[0].mxu0
        %v3753 = vpop.f32.mrb[0].mxu0
        %v3754 = vadd.f32 0.0, %v3753
        %v3755 = vpop.f32.mrb[0].mxu0
        %3756 = vmatprep.mubr.bf16.mxu0 0
        %3757 = vmatmul.mubr.bf16.gmra.mrb[0].mxu0 %v3630
        %v3758 = vpop.f32.mrb[0].mxu0
        %v3759 = vadd.f32 0.0, %v3758
        %v3760 = vpop.f32.mrb[0].mxu0
        %v3761 = vpop.f32.mrb[0].mxu0
        %v3762 = vadd.f32 0.0, %v3761
        %v3763 = vpop.f32.mrb[0].mxu0
        %3764 = vmatprep.mubr.bf16.mxu0 0
        %3765 = vmatmul.mubr.bf16.gmra.mrb[0].mxu0 %v3631
        %v3766 = vpop.f32.mrb[0].mxu0
        %v3767 = vadd.f32 0.0, %v3766
        %v3768 = vpop.f32.mrb[0].mxu0
        %v3769 = vpop.f32.mrb[0].mxu0
        %v3770 = vadd.f32 0.0, %v3769
        %v3771 = vpop.f32.mrb[0].mxu0
        %3772 = vmatprep.mubr.bf16.mxu0 0
        %3773 = vmatmul.mubr.bf16.gmra.mrb[0].mxu0 %v3632
        %v3774 = vpop.f32.mrb[0].mxu0
        %v3775 = vadd.f32 0.0, %v3774
        %v3776 = vpop.f32.mrb[0].mxu0
        %v3777 = vpop.f32.mrb[0].mxu0
        %v3778 = vadd.f32 0.0, %v3777
        %v3779 = vpop.f32.mrb[0].mxu0
        %3780 = vmatprep.mubr.bf16.mxu0 0
        %3781 = vmatmul.mubr.bf16.gmra.mrb[0].mxu0 %v3633
        %v3782 = vpop.f32.mrb[0].mxu0
        %v3783 = vadd.f32 0.0, %v3782
        %v3784 = vpop.f32.mrb[0].mxu0
        %v3785 = vpop.f32.mrb[0].mxu0
        %v3786 = vadd.f32 0.0, %v3785
        %v3787 = vpop.f32.mrb[0].mxu0
        %3788 = vmatprep.mubr.bf16.mxu0 0
        %3789 = vmatmul.mubr.bf16.gmra.mrb[0].mxu0 %v3634
        %v3790 = vpop.f32.mrb[0].mxu0
        %v3791 = vadd.f32 0.0, %v3790
        %v3792 = vpop.f32.mrb[0].mxu0
        %v3793 = vpop.f32.mrb[0].mxu0
        %v3794 = vadd.f32 0.0, %v3793
        %v3795 = vpop.f32.mrb[0].mxu0
        %3796 = vmatprep.mubr.bf16.mxu0 0
        %3797 = vmatmul.mubr.bf16.gmra.mrb[0].mxu0 %v3635
        %v3798 = vpop.f32.mrb[0].mxu0
        %v3799 = vadd.f32 0.0, %v3798
        %v3800 = vpop.f32.mrb[0].mxu0
        %v3801 = vpop.f32.mrb[0].mxu0
        %v3802 = vadd.f32 0.0, %v3801
        %v3803 = vpop.f32.mrb[0].mxu0
        %3804 = vmatprep.mubr.bf16.mxu0 0
        %3805 = vmatmul.mubr.bf16.gmra.mrb[0].mxu0 %v3636
        %v3806 = vpop.f32.mrb[0].mxu0
        %v3807 = vadd.f32 0.0, %v3806
        %v3808 = vpop.f32.mrb[0].mxu0
        %v3809 = vpop.f32.mrb[0].mxu0
        %v3810 = vadd.f32 0.0, %v3809
        %v3811 = vpop.f32.mrb[0].mxu0
        %3812 = vmatprep.mubr.bf16.mxu0 0
        %3813 = vmatmul.mubr.bf16.gmra.mrb[0].mxu0 %v3637
        %v3814 = vpop.f32.mrb[0].mxu0
        %v3815 = vadd.f32 0.0, %v3814
        %v3816 = vpop.f32.mrb[0].mxu0
        %v3817 = vpop.f32.mrb[0].mxu0
        %v3818 = vadd.f32 0.0, %v3817
        %v3819 = vpop.f32.mrb[0].mxu0
        %3820 = vmatprep.mubr.bf16.mxu0 0
        %3821 = vmatmul.mubr.bf16.gmra.mrb[0].mxu0 %v3638
        %v3822 = vpop.f32.mrb[0].mxu0
        %v3823 = vadd.f32 0.0, %v3822
        %v3824 = vpop.f32.mrb[0].mxu0
        %v3825 = vpop.f32.mrb[0].mxu0
        %v3826 = vadd.f32 0.0, %v3825
        %v3827 = vpop.f32.mrb[0].mxu0
        %3828 = vmatprep.mubr.bf16.mxu0 0
        %3829 = vmatmul.mubr.bf16.gmra.mrb[0].mxu0 %v3639
        %v3830 = vpop.f32.mrb[0].mxu0
        %v3831 = vadd.f32 0.0, %v3830
        %v3832 = vpop.f32.mrb[0].mxu0
        %v3833 = vpop.f32.mrb[0].mxu0
        %v3834 = vadd.f32 0.0, %v3833
        %v3835 = vpop.f32.mrb[0].mxu0
        %3836 = vmatprep.mubr.bf16.mxu0 0
        %3837 = vmatmul.mubr.bf16.gmra.mrb[0].mxu0 %v3640
        %v3838 = vpop.f32.mrb[0].mxu0
        %v3839 = vadd.f32 0.0, %v3838
        %v3840 = vpop.f32.mrb[0].mxu0
        %v3841 = vpop.f32.mrb[0].mxu0
        %v3842 = vadd.f32 0.0, %v3841
        %v3843 = vpop.f32.mrb[0].mxu0
        %3844 = vmatprep.mubr.bf16.mxu0 0
        %3845 = vmatmul.mubr.bf16.gmra.mrb[0].mxu0 %v3641
        %v3846 = vpop.f32.mrb[0].mxu0
        %v3847 = vadd.f32 0.0, %v3846
        %v3848 = vpop.f32.mrb[0].mxu0
        %v3849 = vpop.f32.mrb[0].mxu0
        %v3850 = vadd.f32 0.0, %v3849
        %v3851 = vpop.f32.mrb[0].mxu0
        %3852 = vmatprep.mubr.bf16.mxu0 0
        %3853 = vmatmul.mubr.bf16.gmra.mrb[0].mxu0 %v3642
        %v3854 = vpop.f32.mrb[0].mxu0
        %v3855 = vadd.f32 0.0, %v3854
        %v3856 = vpop.f32.mrb[0].mxu0
        %v3857 = vpop.f32.mrb[0].mxu0
        %v3858 = vadd.f32 0.0, %v3857
        %v3859 = vpop.f32.mrb[0].mxu0
        %3860 = vmatprep.mubr.bf16.mxu0 0
        %3861 = vmatmul.mubr.bf16.gmra.mrb[0].mxu0 %v3643
        %v3862 = vpop.f32.mrb[0].mxu0
        %v3863 = vadd.f32 0.0, %v3862
        %v3864 = vpop.f32.mrb[0].mxu0
        %v3865 = vpop.f32.mrb[0].mxu0
        %v3866 = vadd.f32 0.0, %v3865
        %v3867 = vpop.f32.mrb[0].mxu0
        %3868 = vdwg.mxu0
        %v3869 = vadd.f32 %v3371, %v3743
        %v3870 = vadd.f32 %v3372, %v3746
        %v3871 = vadd.f32 %v3373, %v3751
        %v3872 = vadd.f32 %v3374, %v3754
        %v3873 = vadd.f32 %v3375, %v3759
        %v3874 = vadd.f32 %v3376, %v3762
        %v3875 = vadd.f32 %v3377, %v3767
        %v3876 = vadd.f32 %v3378, %v3770
        %v3877 = vadd.f32 %v3379, %v3775
        %v3878 = vadd.f32 %v3380, %v3778
        %v3879 = vadd.f32 %v3381, %v3783
        %v3880 = vadd.f32 %v3382, %v3786
        %v3881 = vadd.f32 %v3383, %v3791
        %v3882 = vadd.f32 %v3384, %v3794
        %v3883 = vadd.f32 %v3385, %v3799
        %v3884 = vadd.f32 %v3386, %v3802
        %v3885 = vadd.f32 %v3387, %v3807
        %v3886 = vadd.f32 %v3388, %v3810
        %v3887 = vadd.f32 %v3389, %v3815
        %v3888 = vadd.f32 %v3390, %v3818
        %v3889 = vadd.f32 %v3391, %v3823
        %v3890 = vadd.f32 %v3392, %v3826
        %v3891 = vadd.f32 %v3393, %v3831
        %v3892 = vadd.f32 %v3394, %v3834
        %v3893 = vadd.f32 %v3395, %v3839
        %v3894 = vadd.f32 %v3396, %v3842
        %v3895 = vadd.f32 %v3397, %v3847
        %v3896 = vadd.f32 %v3398, %v3850
        %v3897 = vadd.f32 %v3399, %v3855
        %v3898 = vadd.f32 %v3400, %v3858
        %v3899 = vadd.f32 %v3401, %v3863
        %v3900 = vadd.f32 %v3402, %v3866
        %s3901 = scalar_lea.vmem [#allocation2], 24
        %v3902 = vld [vmem:[%s3901] sm:$0xf]
        %v3903 = vld [vmem:[%s3901 + $0x4] sm:$0xf]
        %v3904 = vld [vmem:[%s3901 + $0xc] sm:$0xf]
        %v3905 = vld [vmem:[%s3901 + $0x10] sm:$0xf]
        %v3906 = vld [vmem:[%s3901 + $0x18] sm:$0xf]
        %v3907 = vld [vmem:[%s3901 + $0x1c] sm:$0xf]
        %v3908 = vld [vmem:[%s3901 + $0x24] sm:$0xf]
        %v3909 = vld [vmem:[%s3901 + $0x28] sm:$0xf]
        %v3910 = vld [vmem:[%s3901 + $0x30] sm:$0xf]
        %v3911 = vld [vmem:[%s3901 + $0x34] sm:$0xf]
        %v3912 = vld [vmem:[%s3901 + $0x3c] sm:$0xf]
        %v3913 = vld [vmem:[%s3901 + $0x40] sm:$0xf]
        %v3914 = vld [vmem:[%s3901 + $0x48] sm:$0xf]
        %v3915 = vld [vmem:[%s3901 + $0x4c] sm:$0xf]
        %v3916 = vld [vmem:[%s3901 + $0x54] sm:$0xf]
        %v3917 = vld [vmem:[%s3901 + $0x58] sm:$0xf]
        %v3918 = vld [vmem:[%s3901 + $0x60] sm:$0xf]
        %v3919 = vld [vmem:[%s3901 + $0x64] sm:$0xf]
        %v3920 = vld [vmem:[%s3901 + $0x6c] sm:$0xf]
        %v3921 = vld [vmem:[%s3901 + $0x70] sm:$0xf]
        %v3922 = vld [vmem:[%s3901 + $0x78] sm:$0xf]
        %v3923 = vld [vmem:[%s3901 + $0x7c] sm:$0xf]
        %v3924 = vld [vmem:[%s3901 + $0x84] sm:$0xf]
        %v3925 = vld [vmem:[%s3901 + $0x88] sm:$0xf]
        %v3926 = vld [vmem:[%s3901 + $0x90] sm:$0xf]
        %v3927 = vld [vmem:[%s3901 + $0x94] sm:$0xf]
        %v3928 = vld [vmem:[%s3901 + $0x9c] sm:$0xf]
        %v3929 = vld [vmem:[%s3901 + $0xa0] sm:$0xf]
        %v3930 = vld [vmem:[%s3901 + $0xa8] sm:$0xf]
        %v3931 = vld [vmem:[%s3901 + $0xac] sm:$0xf]
        %v3932 = vld [vmem:[%s3901 + $0xb4] sm:$0xf]
        %v3933 = vld [vmem:[%s3901 + $0xb8] sm:$0xf]
        %s3934 = scalar_lea.vmem [#allocation6], 384
        %v3935 = vld [vmem:[%s3934] sm:$0xf]
        %v3936 = vld [vmem:[%s3934 + $0x4] sm:$0xf]
        %v3937 = vld [vmem:[%s3934 + $0x8] sm:$0xf]
        %v3938 = vld [vmem:[%s3934 + $0xc] sm:$0xf]
        %v3939 = vld [vmem:[%s3934 + $0x10] sm:$0xf]
        %v3940 = vld [vmem:[%s3934 + $0x14] sm:$0xf]
        %v3941 = vld [vmem:[%s3934 + $0x18] sm:$0xf]
        %v3942 = vld [vmem:[%s3934 + $0x1c] sm:$0xf]
        %v3943 = vld [vmem:[%s3934 + $0x20] sm:$0xf]
        %v3944 = vld [vmem:[%s3934 + $0x24] sm:$0xf]
        %v3945 = vld [vmem:[%s3934 + $0x28] sm:$0xf]
        %v3946 = vld [vmem:[%s3934 + $0x2c] sm:$0xf]
        %v3947 = vld [vmem:[%s3934 + $0x30] sm:$0xf]
        %v3948 = vld [vmem:[%s3934 + $0x34] sm:$0xf]
        %v3949 = vld [vmem:[%s3934 + $0x38] sm:$0xf]
        %v3950 = vld [vmem:[%s3934 + $0x3c] sm:$0xf]
        %v3983 = vunpack.c.l.b16 %v3902
        %v3984 = vunpack.c.l.b16 %v3903
        %v3985 = vunpack.c.l.b16 %v3904
        %v3986 = vunpack.c.l.b16 %v3905
        %v3987 = vunpack.c.l.b16 %v3906
        %v3988 = vunpack.c.l.b16 %v3907
        %v3989 = vunpack.c.l.b16 %v3908
        %v3990 = vunpack.c.l.b16 %v3909
        %v3991 = vunpack.c.l.b16 %v3910
        %v3992 = vunpack.c.l.b16 %v3911
        %v3993 = vunpack.c.l.b16 %v3912
        %v3994 = vunpack.c.l.b16 %v3913
        %v3995 = vunpack.c.l.b16 %v3914
        %v3996 = vunpack.c.l.b16 %v3915
        %v3997 = vunpack.c.l.b16 %v3916
        %v3998 = vunpack.c.l.b16 %v3917
        %v3999 = vunpack.c.l.b16 %v3918
        %v4000 = vunpack.c.l.b16 %v3919
        %v4001 = vunpack.c.l.b16 %v3920
        %v4002 = vunpack.c.l.b16 %v3921
        %v4003 = vunpack.c.l.b16 %v3922
        %v4004 = vunpack.c.l.b16 %v3923
        %v4005 = vunpack.c.l.b16 %v3924
        %v4006 = vunpack.c.l.b16 %v3925
        %v4007 = vunpack.c.l.b16 %v3926
        %v4008 = vunpack.c.l.b16 %v3927
        %v4009 = vunpack.c.l.b16 %v3928
        %v4010 = vunpack.c.l.b16 %v3929
        %v4011 = vunpack.c.l.b16 %v3930
        %v4012 = vunpack.c.l.b16 %v3931
        %v4013 = vunpack.c.l.b16 %v3932
        %v4014 = vunpack.c.l.b16 %v3933
        %v4015 = vpack.c.b16 %v3984, %v3983
        %v4016 = vpack.c.b16 %v3986, %v3985
        %v4017 = vpack.c.b16 %v3988, %v3987
        %v4018 = vpack.c.b16 %v3990, %v3989
        %v4019 = vpack.c.b16 %v3992, %v3991
        %v4020 = vpack.c.b16 %v3994, %v3993
        %v4021 = vpack.c.b16 %v3996, %v3995
        %v4022 = vpack.c.b16 %v3998, %v3997
        %v4023 = vpack.c.b16 %v4000, %v3999
        %v4024 = vpack.c.b16 %v4002, %v4001
        %v4025 = vpack.c.b16 %v4004, %v4003
        %v4026 = vpack.c.b16 %v4006, %v4005
        %v4027 = vpack.c.b16 %v4008, %v4007
        %v4028 = vpack.c.b16 %v4010, %v4009
        %v4029 = vpack.c.b16 %v4012, %v4011
        %v4030 = vpack.c.b16 %v4014, %v4013
        %v4063 = vunpack.c.l.b16 %v3935
        %v4064 = vunpack.c.l.b16 %v3936
        %v4065 = vunpack.c.l.b16 %v3937
        %v4066 = vunpack.c.l.b16 %v3938
        %v4067 = vunpack.c.l.b16 %v3939
        %v4068 = vunpack.c.l.b16 %v3940
        %v4069 = vunpack.c.l.b16 %v3941
        %v4070 = vunpack.c.l.b16 %v3942
        %v4071 = vunpack.c.l.b16 %v3943
        %v4072 = vunpack.c.l.b16 %v3944
        %v4073 = vunpack.c.l.b16 %v3945
        %v4074 = vunpack.c.l.b16 %v3946
        %v4075 = vunpack.c.l.b16 %v3947
        %v4076 = vunpack.c.l.b16 %v3948
        %v4077 = vunpack.c.l.b16 %v3949
        %v4078 = vunpack.c.l.b16 %v3950
        %v4079 = vpack.c.b16 %v4064, %v4063
        %v4080 = vpack.c.b16 %v4066, %v4065
        %v4081 = vpack.c.b16 %v4068, %v4067
        %v4082 = vpack.c.b16 %v4070, %v4069
        %v4083 = vpack.c.b16 %v4072, %v4071
        %v4084 = vpack.c.b16 %v4074, %v4073
        %v4085 = vpack.c.b16 %v4076, %v4075
        %v4086 = vpack.c.b16 %v4078, %v4077
        %4095 = vmatprep.subr.bf16.mxu0 0
        %4096 = vmatpush1.bf16.msra.mxu0 %v4079
        %4097 = vmatprep.subr.bf16.mxu0 0
        %4098 = vmatpush1.bf16.msra.mxu0 %v4080
        %4099 = vmatprep.subr.bf16.mxu0 0
        %4100 = vmatpush1.bf16.msra.mxu0 %v4081
        %4101 = vmatprep.subr.bf16.mxu0 0
        %4102 = vmatpush1.bf16.msra.mxu0 %v4082
        %4103 = vmatprep.subr.bf16.mxu0 0
        %4104 = vmatpush1.bf16.msra.mxu0 %v4083
        %4105 = vmatprep.subr.bf16.mxu0 0
        %4106 = vmatpush1.bf16.msra.mxu0 %v4084
        %4107 = vmatprep.subr.bf16.mxu0 0
        %4108 = vmatpush1.bf16.msra.mxu0 %v4085
        %4109 = vmatprep.subr.bf16.mxu0 0
        %4110 = vmatpush1.bf16.msra.mxu0 %v4086
        %4111 = vmatprep.subr.bf16.mxu0 0
        %4112 = vmatpush1.bf16.msra.mxu0 0
        %4113 = vmatprep.subr.bf16.mxu0 0
        %4114 = vmatpush1.bf16.msra.mxu0 0
        %4115 = vmatprep.subr.bf16.mxu0 0
        %4116 = vmatpush1.bf16.msra.mxu0 0
        %4117 = vmatprep.subr.bf16.mxu0 0
        %4118 = vmatpush1.bf16.msra.mxu0 0
        %4119 = vmatprep.subr.bf16.mxu0 0
        %4120 = vmatpush1.bf16.msra.mxu0 0
        %4121 = vmatprep.subr.bf16.mxu0 0
        %4122 = vmatpush1.bf16.msra.mxu0 0
        %4123 = vmatprep.subr.bf16.mxu0 0
        %4124 = vmatpush1.bf16.msra.mxu0 0
        %4125 = vmatprep.subr.bf16.mxu0 0
        %4126 = vmatpush1.bf16.msra.mxu0 0
        %4127 = vmatprep.mubr.bf16.mxu0 0
        %4128 = vmatmul.mubr.bf16.gmra.mrb[0].mxu0 %v4015
        %v4129 = vpop.f32.mrb[0].mxu0
        %v4130 = vadd.f32 0.0, %v4129
        %v4131 = vpop.f32.mrb[0].mxu0
        %v4132 = vpop.f32.mrb[0].mxu0
        %v4133 = vadd.f32 0.0, %v4132
        %v4134 = vpop.f32.mrb[0].mxu0
        %4135 = vmatprep.mubr.bf16.mxu0 0
        %4136 = vmatmul.mubr.bf16.gmra.mrb[0].mxu0 %v4016
        %v4137 = vpop.f32.mrb[0].mxu0
        %v4138 = vadd.f32 0.0, %v4137
        %v4139 = vpop.f32.mrb[0].mxu0
        %v4140 = vpop.f32.mrb[0].mxu0
        %v4141 = vadd.f32 0.0, %v4140
        %v4142 = vpop.f32.mrb[0].mxu0
        %4143 = vmatprep.mubr.bf16.mxu0 0
        %4144 = vmatmul.mubr.bf16.gmra.mrb[0].mxu0 %v4017
        %v4145 = vpop.f32.mrb[0].mxu0
        %v4146 = vadd.f32 0.0, %v4145
        %v4147 = vpop.f32.mrb[0].mxu0
        %v4148 = vpop.f32.mrb[0].mxu0
        %v4149 = vadd.f32 0.0, %v4148
        %v4150 = vpop.f32.mrb[0].mxu0
        %4151 = vmatprep.mubr.bf16.mxu0 0
        %4152 = vmatmul.mubr.bf16.gmra.mrb[0].mxu0 %v4018
        %v4153 = vpop.f32.mrb[0].mxu0
        %v4154 = vadd.f32 0.0, %v4153
        %v4155 = vpop.f32.mrb[0].mxu0
        %v4156 = vpop.f32.mrb[0].mxu0
        %v4157 = vadd.f32 0.0, %v4156
        %v4158 = vpop.f32.mrb[0].mxu0
        %4159 = vmatprep.mubr.bf16.mxu0 0
        %4160 = vmatmul.mubr.bf16.gmra.mrb[0].mxu0 %v4019
        %v4161 = vpop.f32.mrb[0].mxu0
        %v4162 = vadd.f32 0.0, %v4161
        %v4163 = vpop.f32.mrb[0].mxu0
        %v4164 = vpop.f32.mrb[0].mxu0
        %v4165 = vadd.f32 0.0, %v4164
        %v4166 = vpop.f32.mrb[0].mxu0
        %4167 = vmatprep.mubr.bf16.mxu0 0
        %4168 = vmatmul.mubr.bf16.gmra.mrb[0].mxu0 %v4020
        %v4169 = vpop.f32.mrb[0].mxu0
        %v4170 = vadd.f32 0.0, %v4169
        %v4171 = vpop.f32.mrb[0].mxu0
        %v4172 = vpop.f32.mrb[0].mxu0
        %v4173 = vadd.f32 0.0, %v4172
        %v4174 = vpop.f32.mrb[0].mxu0
        %4175 = vmatprep.mubr.bf16.mxu0 0
        %4176 = vmatmul.mubr.bf16.gmra.mrb[0].mxu0 %v4021
        %v4177 = vpop.f32.mrb[0].mxu0
        %v4178 = vadd.f32 0.0, %v4177
        %v4179 = vpop.f32.mrb[0].mxu0
        %v4180 = vpop.f32.mrb[0].mxu0
        %v4181 = vadd.f32 0.0, %v4180
        %v4182 = vpop.f32.mrb[0].mxu0
        %4183 = vmatprep.mubr.bf16.mxu0 0
        %4184 = vmatmul.mubr.bf16.gmra.mrb[0].mxu0 %v4022
        %v4185 = vpop.f32.mrb[0].mxu0
        %v4186 = vadd.f32 0.0, %v4185
        %v4187 = vpop.f32.mrb[0].mxu0
        %v4188 = vpop.f32.mrb[0].mxu0
        %v4189 = vadd.f32 0.0, %v4188
        %v4190 = vpop.f32.mrb[0].mxu0
        %4191 = vmatprep.mubr.bf16.mxu0 0
        %4192 = vmatmul.mubr.bf16.gmra.mrb[0].mxu0 %v4023
        %v4193 = vpop.f32.mrb[0].mxu0
        %v4194 = vadd.f32 0.0, %v4193
        %v4195 = vpop.f32.mrb[0].mxu0
        %v4196 = vpop.f32.mrb[0].mxu0
        %v4197 = vadd.f32 0.0, %v4196
        %v4198 = vpop.f32.mrb[0].mxu0
        %4199 = vmatprep.mubr.bf16.mxu0 0
        %4200 = vmatmul.mubr.bf16.gmra.mrb[0].mxu0 %v4024
        %v4201 = vpop.f32.mrb[0].mxu0
        %v4202 = vadd.f32 0.0, %v4201
        %v4203 = vpop.f32.mrb[0].mxu0
        %v4204 = vpop.f32.mrb[0].mxu0
        %v4205 = vadd.f32 0.0, %v4204
        %v4206 = vpop.f32.mrb[0].mxu0
        %4207 = vmatprep.mubr.bf16.mxu0 0
        %4208 = vmatmul.mubr.bf16.gmra.mrb[0].mxu0 %v4025
        %v4209 = vpop.f32.mrb[0].mxu0
        %v4210 = vadd.f32 0.0, %v4209
        %v4211 = vpop.f32.mrb[0].mxu0
        %v4212 = vpop.f32.mrb[0].mxu0
        %v4213 = vadd.f32 0.0, %v4212
        %v4214 = vpop.f32.mrb[0].mxu0
        %4215 = vmatprep.mubr.bf16.mxu0 0
        %4216 = vmatmul.mubr.bf16.gmra.mrb[0].mxu0 %v4026
        %v4217 = vpop.f32.mrb[0].mxu0
        %v4218 = vadd.f32 0.0, %v4217
        %v4219 = vpop.f32.mrb[0].mxu0
        %v4220 = vpop.f32.mrb[0].mxu0
        %v4221 = vadd.f32 0.0, %v4220
        %v4222 = vpop.f32.mrb[0].mxu0
        %4223 = vmatprep.mubr.bf16.mxu0 0
        %4224 = vmatmul.mubr.bf16.gmra.mrb[0].mxu0 %v4027
        %v4225 = vpop.f32.mrb[0].mxu0
        %v4226 = vadd.f32 0.0, %v4225
        %v4227 = vpop.f32.mrb[0].mxu0
        %v4228 = vpop.f32.mrb[0].mxu0
        %v4229 = vadd.f32 0.0, %v4228
        %v4230 = vpop.f32.mrb[0].mxu0
        %4231 = vmatprep.mubr.bf16.mxu0 0
        %4232 = vmatmul.mubr.bf16.gmra.mrb[0].mxu0 %v4028
        %v4233 = vpop.f32.mrb[0].mxu0
        %v4234 = vadd.f32 0.0, %v4233
        %v4235 = vpop.f32.mrb[0].mxu0
        %v4236 = vpop.f32.mrb[0].mxu0
        %v4237 = vadd.f32 0.0, %v4236
        %v4238 = vpop.f32.mrb[0].mxu0
        %4239 = vmatprep.mubr.bf16.mxu0 0
        %4240 = vmatmul.mubr.bf16.gmra.mrb[0].mxu0 %v4029
        %v4241 = vpop.f32.mrb[0].mxu0
        %v4242 = vadd.f32 0.0, %v4241
        %v4243 = vpop.f32.mrb[0].mxu0
        %v4244 = vpop.f32.mrb[0].mxu0
        %v4245 = vadd.f32 0.0, %v4244
        %v4246 = vpop.f32.mrb[0].mxu0
        %4247 = vmatprep.mubr.bf16.mxu0 0
        %4248 = vmatmul.mubr.bf16.gmra.mrb[0].mxu0 %v4030
        %v4249 = vpop.f32.mrb[0].mxu0
        %v4250 = vadd.f32 0.0, %v4249
        %v4251 = vpop.f32.mrb[0].mxu0
        %v4252 = vpop.f32.mrb[0].mxu0
        %v4253 = vadd.f32 0.0, %v4252
        %v4254 = vpop.f32.mrb[0].mxu0
        %4255 = vdwg.mxu0
        %v4256 = vadd.f32 %v3869, %v4130
        %v4257 = vadd.f32 %v3870, %v4133
        %v4258 = vadd.f32 %v3871, %v4138
        %v4259 = vadd.f32 %v3872, %v4141
        %v4260 = vadd.f32 %v3873, %v4146
        %v4261 = vadd.f32 %v3874, %v4149
        %v4262 = vadd.f32 %v3875, %v4154
        %v4263 = vadd.f32 %v3876, %v4157
        %v4264 = vadd.f32 %v3877, %v4162
        %v4265 = vadd.f32 %v3878, %v4165
        %v4266 = vadd.f32 %v3879, %v4170
        %v4267 = vadd.f32 %v3880, %v4173
        %v4268 = vadd.f32 %v3881, %v4178
        %v4269 = vadd.f32 %v3882, %v4181
        %v4270 = vadd.f32 %v3883, %v4186
        %v4271 = vadd.f32 %v3884, %v4189
        %v4272 = vadd.f32 %v3885, %v4194
        %v4273 = vadd.f32 %v3886, %v4197
        %v4274 = vadd.f32 %v3887, %v4202
        %v4275 = vadd.f32 %v3888, %v4205
        %v4276 = vadd.f32 %v3889, %v4210
        %v4277 = vadd.f32 %v3890, %v4213
        %v4278 = vadd.f32 %v3891, %v4218
        %v4279 = vadd.f32 %v3892, %v4221
        %v4280 = vadd.f32 %v3893, %v4226
        %v4281 = vadd.f32 %v3894, %v4229
        %v4282 = vadd.f32 %v3895, %v4234
        %v4283 = vadd.f32 %v3896, %v4237
        %v4284 = vadd.f32 %v3897, %v4242
        %v4285 = vadd.f32 %v3898, %v4245
        %v4286 = vadd.f32 %v3899, %v4250
        %v4287 = vadd.f32 %v3900, %v4253
        %v4288 = vld [vmem:[%s3901] sm:$0xf]
        %v4289 = vld [vmem:[%s3901 + $0x4] sm:$0xf]
        %v4290 = vld [vmem:[%s3901 + $0x8] sm:$0x1]
        %v4291 = vld [vmem:[%s3901 + $0xc] sm:$0xf]
        %v4292 = vld [vmem:[%s3901 + $0x10] sm:$0xf]
        %v4293 = vld [vmem:[%s3901 + $0x14] sm:$0x1]
        %v4294 = vld [vmem:[%s3901 + $0x18] sm:$0xf]
        %v4295 = vld [vmem:[%s3901 + $0x1c] sm:$0xf]
        %v4296 = vld [vmem:[%s3901 + $0x20] sm:$0x1]
        %v4297 = vld [vmem:[%s3901 + $0x24] sm:$0xf]
        %v4298 = vld [vmem:[%s3901 + $0x28] sm:$0xf]
        %v4299 = vld [vmem:[%s3901 + $0x2c] sm:$0x1]
        %v4300 = vld [vmem:[%s3901 + $0x30] sm:$0xf]
        %v4301 = vld [vmem:[%s3901 + $0x34] sm:$0xf]
        %v4302 = vld [vmem:[%s3901 + $0x38] sm:$0x1]
        %v4303 = vld [vmem:[%s3901 + $0x3c] sm:$0xf]
        %v4304 = vld [vmem:[%s3901 + $0x40] sm:$0xf]
        %v4305 = vld [vmem:[%s3901 + $0x44] sm:$0x1]
        %v4306 = vld [vmem:[%s3901 + $0x48] sm:$0xf]
        %v4307 = vld [vmem:[%s3901 + $0x4c] sm:$0xf]
        %v4308 = vld [vmem:[%s3901 + $0x50] sm:$0x1]
        %v4309 = vld [vmem:[%s3901 + $0x54] sm:$0xf]
        %v4310 = vld [vmem:[%s3901 + $0x58] sm:$0xf]
        %v4311 = vld [vmem:[%s3901 + $0x5c] sm:$0x1]
        %v4312 = vld [vmem:[%s3901 + $0x60] sm:$0xf]
        %v4313 = vld [vmem:[%s3901 + $0x64] sm:$0xf]
        %v4314 = vld [vmem:[%s3901 + $0x68] sm:$0x1]
        %v4315 = vld [vmem:[%s3901 + $0x6c] sm:$0xf]
        %v4316 = vld [vmem:[%s3901 + $0x70] sm:$0xf]
        %v4317 = vld [vmem:[%s3901 + $0x74] sm:$0x1]
        %v4318 = vld [vmem:[%s3901 + $0x78] sm:$0xf]
        %v4319 = vld [vmem:[%s3901 + $0x7c] sm:$0xf]
        %v4320 = vld [vmem:[%s3901 + $0x80] sm:$0x1]
        %v4321 = vld [vmem:[%s3901 + $0x84] sm:$0xf]
        %v4322 = vld [vmem:[%s3901 + $0x88] sm:$0xf]
        %v4323 = vld [vmem:[%s3901 + $0x8c] sm:$0x1]
        %v4324 = vld [vmem:[%s3901 + $0x90] sm:$0xf]
        %v4325 = vld [vmem:[%s3901 + $0x94] sm:$0xf]
        %v4326 = vld [vmem:[%s3901 + $0x98] sm:$0x1]
        %v4327 = vld [vmem:[%s3901 + $0x9c] sm:$0xf]
        %v4328 = vld [vmem:[%s3901 + $0xa0] sm:$0xf]
        %v4329 = vld [vmem:[%s3901 + $0xa4] sm:$0x1]
        %v4330 = vld [vmem:[%s3901 + $0xa8] sm:$0xf]
        %v4331 = vld [vmem:[%s3901 + $0xac] sm:$0xf]
        %v4332 = vld [vmem:[%s3901 + $0xb0] sm:$0x1]
        %v4333 = vld [vmem:[%s3901 + $0xb4] sm:$0xf]
        %v4334 = vld [vmem:[%s3901 + $0xb8] sm:$0xf]
        %v4335 = vld [vmem:[%s3901 + $0xbc] sm:$0x1]
        %v4337 = vshrl.u32 %v4288, 16
        %v4339 = vrot.slane %v4337, 4
        %v4340 = vshll.u32 %v4288, 16
        %v4342 = vrot.slane %v4340, 5
        %v4343 = vor.u32 %v4339, %v4342
        %v4344 = vrot.slane %v4343, 4
        %v4346 = vshll.u32 %v4289, 16
        %v4348 = vrot.slane %v4346, 5
        %v4349 = vsel %vm798, %v4344, %v4348
        %v4350 = vshrl.u32 %v4289, 16
        %v4352 = vrot.slane %v4350, 4
        %v4353 = vor.u32 %v4352, %v4348
        %v4354 = vrot.slane %v4353, 4
        %v4356 = vshll.u32 %v4290, 16
        %v4358 = vrot.slane %v4356, 5
        %v4359 = vsel %vm798, %v4354, %v4358
        %v4361 = vshrl.u32 %v4291, 16
        %v4363 = vrot.slane %v4361, 4
        %v4364 = vshll.u32 %v4291, 16
        %v4366 = vrot.slane %v4364, 5
        %v4367 = vor.u32 %v4363, %v4366
        %v4368 = vrot.slane %v4367, 4
        %v4370 = vshll.u32 %v4292, 16
        %v4372 = vrot.slane %v4370, 5
        %v4373 = vsel %vm798, %v4368, %v4372
        %v4374 = vshrl.u32 %v4292, 16
        %v4376 = vrot.slane %v4374, 4
        %v4377 = vor.u32 %v4376, %v4372
        %v4378 = vrot.slane %v4377, 4
        %v4380 = vshll.u32 %v4293, 16
        %v4382 = vrot.slane %v4380, 5
        %v4383 = vsel %vm798, %v4378, %v4382
        %v4385 = vshrl.u32 %v4294, 16
        %v4387 = vrot.slane %v4385, 4
        %v4388 = vshll.u32 %v4294, 16
        %v4390 = vrot.slane %v4388, 5
        %v4391 = vor.u32 %v4387, %v4390
        %v4392 = vrot.slane %v4391, 4
        %v4394 = vshll.u32 %v4295, 16
        %v4396 = vrot.slane %v4394, 5
        %v4397 = vsel %vm798, %v4392, %v4396
        %v4398 = vshrl.u32 %v4295, 16
        %v4400 = vrot.slane %v4398, 4
        %v4401 = vor.u32 %v4400, %v4396
        %v4402 = vrot.slane %v4401, 4
        %v4404 = vshll.u32 %v4296, 16
        %v4406 = vrot.slane %v4404, 5
        %v4407 = vsel %vm798, %v4402, %v4406
        %v4409 = vshrl.u32 %v4297, 16
        %v4411 = vrot.slane %v4409, 4
        %v4412 = vshll.u32 %v4297, 16
        %v4414 = vrot.slane %v4412, 5
        %v4415 = vor.u32 %v4411, %v4414
        %v4416 = vrot.slane %v4415, 4
        %v4418 = vshll.u32 %v4298, 16
        %v4420 = vrot.slane %v4418, 5
        %v4421 = vsel %vm798, %v4416, %v4420
        %v4422 = vshrl.u32 %v4298, 16
        %v4424 = vrot.slane %v4422, 4
        %v4425 = vor.u32 %v4424, %v4420
        %v4426 = vrot.slane %v4425, 4
        %v4428 = vshll.u32 %v4299, 16
        %v4430 = vrot.slane %v4428, 5
        %v4431 = vsel %vm798, %v4426, %v4430
        %v4433 = vshrl.u32 %v4300, 16
        %v4435 = vrot.slane %v4433, 4
        %v4436 = vshll.u32 %v4300, 16
        %v4438 = vrot.slane %v4436, 5
        %v4439 = vor.u32 %v4435, %v4438
        %v4440 = vrot.slane %v4439, 4
        %v4442 = vshll.u32 %v4301, 16
        %v4444 = vrot.slane %v4442, 5
        %v4445 = vsel %vm798, %v4440, %v4444
        %v4446 = vshrl.u32 %v4301, 16
        %v4448 = vrot.slane %v4446, 4
        %v4449 = vor.u32 %v4448, %v4444
        %v4450 = vrot.slane %v4449, 4
        %v4452 = vshll.u32 %v4302, 16
        %v4454 = vrot.slane %v4452, 5
        %v4455 = vsel %vm798, %v4450, %v4454
        %v4457 = vshrl.u32 %v4303, 16
        %v4459 = vrot.slane %v4457, 4
        %v4460 = vshll.u32 %v4303, 16
        %v4462 = vrot.slane %v4460, 5
        %v4463 = vor.u32 %v4459, %v4462
        %v4464 = vrot.slane %v4463, 4
        %v4466 = vshll.u32 %v4304, 16
        %v4468 = vrot.slane %v4466, 5
        %v4469 = vsel %vm798, %v4464, %v4468
        %v4470 = vshrl.u32 %v4304, 16
        %v4472 = vrot.slane %v4470, 4
        %v4473 = vor.u32 %v4472, %v4468
        %v4474 = vrot.slane %v4473, 4
        %v4476 = vshll.u32 %v4305, 16
        %v4478 = vrot.slane %v4476, 5
        %v4479 = vsel %vm798, %v4474, %v4478
        %v4481 = vshrl.u32 %v4306, 16
        %v4483 = vrot.slane %v4481, 4
        %v4484 = vshll.u32 %v4306, 16
        %v4486 = vrot.slane %v4484, 5
        %v4487 = vor.u32 %v4483, %v4486
        %v4488 = vrot.slane %v4487, 4
        %v4490 = vshll.u32 %v4307, 16
        %v4492 = vrot.slane %v4490, 5
        %v4493 = vsel %vm798, %v4488, %v4492
        %v4494 = vshrl.u32 %v4307, 16
        %v4496 = vrot.slane %v4494, 4
        %v4497 = vor.u32 %v4496, %v4492
        %v4498 = vrot.slane %v4497, 4
        %v4500 = vshll.u32 %v4308, 16
        %v4502 = vrot.slane %v4500, 5
        %v4503 = vsel %vm798, %v4498, %v4502
        %v4505 = vshrl.u32 %v4309, 16
        %v4507 = vrot.slane %v4505, 4
        %v4508 = vshll.u32 %v4309, 16
        %v4510 = vrot.slane %v4508, 5
        %v4511 = vor.u32 %v4507, %v4510
        %v4512 = vrot.slane %v4511, 4
        %v4514 = vshll.u32 %v4310, 16
        %v4516 = vrot.slane %v4514, 5
        %v4517 = vsel %vm798, %v4512, %v4516
        %v4518 = vshrl.u32 %v4310, 16
        %v4520 = vrot.slane %v4518, 4
        %v4521 = vor.u32 %v4520, %v4516
        %v4522 = vrot.slane %v4521, 4
        %v4524 = vshll.u32 %v4311, 16
        %v4526 = vrot.slane %v4524, 5
        %v4527 = vsel %vm798, %v4522, %v4526
        %v4529 = vshrl.u32 %v4312, 16
        %v4531 = vrot.slane %v4529, 4
        %v4532 = vshll.u32 %v4312, 16
        %v4534 = vrot.slane %v4532, 5
        %v4535 = vor.u32 %v4531, %v4534
        %v4536 = vrot.slane %v4535, 4
        %v4538 = vshll.u32 %v4313, 16
        %v4540 = vrot.slane %v4538, 5
        %v4541 = vsel %vm798, %v4536, %v4540
        %v4542 = vshrl.u32 %v4313, 16
        %v4544 = vrot.slane %v4542, 4
        %v4545 = vor.u32 %v4544, %v4540
        %v4546 = vrot.slane %v4545, 4
        %v4548 = vshll.u32 %v4314, 16
        %v4550 = vrot.slane %v4548, 5
        %v4551 = vsel %vm798, %v4546, %v4550
        %v4553 = vshrl.u32 %v4315, 16
        %v4555 = vrot.slane %v4553, 4
        %v4556 = vshll.u32 %v4315, 16
        %v4558 = vrot.slane %v4556, 5
        %v4559 = vor.u32 %v4555, %v4558
        %v4560 = vrot.slane %v4559, 4
        %v4562 = vshll.u32 %v4316, 16
        %v4564 = vrot.slane %v4562, 5
        %v4565 = vsel %vm798, %v4560, %v4564
        %v4566 = vshrl.u32 %v4316, 16
        %v4568 = vrot.slane %v4566, 4
        %v4569 = vor.u32 %v4568, %v4564
        %v4570 = vrot.slane %v4569, 4
        %v4572 = vshll.u32 %v4317, 16
        %v4574 = vrot.slane %v4572, 5
        %v4575 = vsel %vm798, %v4570, %v4574
        %v4577 = vshrl.u32 %v4318, 16
        %v4579 = vrot.slane %v4577, 4
        %v4580 = vshll.u32 %v4318, 16
        %v4582 = vrot.slane %v4580, 5
        %v4583 = vor.u32 %v4579, %v4582
        %v4584 = vrot.slane %v4583, 4
        %v4586 = vshll.u32 %v4319, 16
        %v4588 = vrot.slane %v4586, 5
        %v4589 = vsel %vm798, %v4584, %v4588
        %v4590 = vshrl.u32 %v4319, 16
        %v4592 = vrot.slane %v4590, 4
        %v4593 = vor.u32 %v4592, %v4588
        %v4594 = vrot.slane %v4593, 4
        %v4596 = vshll.u32 %v4320, 16
        %v4598 = vrot.slane %v4596, 5
        %v4599 = vsel %vm798, %v4594, %v4598
        %v4601 = vshrl.u32 %v4321, 16
        %v4603 = vrot.slane %v4601, 4
        %v4604 = vshll.u32 %v4321, 16
        %v4606 = vrot.slane %v4604, 5
        %v4607 = vor.u32 %v4603, %v4606
        %v4608 = vrot.slane %v4607, 4
        %v4610 = vshll.u32 %v4322, 16
        %v4612 = vrot.slane %v4610, 5
        %v4613 = vsel %vm798, %v4608, %v4612
        %v4614 = vshrl.u32 %v4322, 16
        %v4616 = vrot.slane %v4614, 4
        %v4617 = vor.u32 %v4616, %v4612
        %v4618 = vrot.slane %v4617, 4
        %v4620 = vshll.u32 %v4323, 16
        %v4622 = vrot.slane %v4620, 5
        %v4623 = vsel %vm798, %v4618, %v4622
        %v4625 = vshrl.u32 %v4324, 16
        %v4627 = vrot.slane %v4625, 4
        %v4628 = vshll.u32 %v4324, 16
        %v4630 = vrot.slane %v4628, 5
        %v4631 = vor.u32 %v4627, %v4630
        %v4632 = vrot.slane %v4631, 4
        %v4634 = vshll.u32 %v4325, 16
        %v4636 = vrot.slane %v4634, 5
        %v4637 = vsel %vm798, %v4632, %v4636
        %v4638 = vshrl.u32 %v4325, 16
        %v4640 = vrot.slane %v4638, 4
        %v4641 = vor.u32 %v4640, %v4636
        %v4642 = vrot.slane %v4641, 4
        %v4644 = vshll.u32 %v4326, 16
        %v4646 = vrot.slane %v4644, 5
        %v4647 = vsel %vm798, %v4642, %v4646
        %v4649 = vshrl.u32 %v4327, 16
        %v4651 = vrot.slane %v4649, 4
        %v4652 = vshll.u32 %v4327, 16
        %v4654 = vrot.slane %v4652, 5
        %v4655 = vor.u32 %v4651, %v4654
        %v4656 = vrot.slane %v4655, 4
        %v4658 = vshll.u32 %v4328, 16
        %v4660 = vrot.slane %v4658, 5
        %v4661 = vsel %vm798, %v4656, %v4660
        %v4662 = vshrl.u32 %v4328, 16
        %v4664 = vrot.slane %v4662, 4
        %v4665 = vor.u32 %v4664, %v4660
        %v4666 = vrot.slane %v4665, 4
        %v4668 = vshll.u32 %v4329, 16
        %v4670 = vrot.slane %v4668, 5
        %v4671 = vsel %vm798, %v4666, %v4670
        %v4673 = vshrl.u32 %v4330, 16
        %v4675 = vrot.slane %v4673, 4
        %v4676 = vshll.u32 %v4330, 16
        %v4678 = vrot.slane %v4676, 5
        %v4679 = vor.u32 %v4675, %v4678
        %v4680 = vrot.slane %v4679, 4
        %v4682 = vshll.u32 %v4331, 16
        %v4684 = vrot.slane %v4682, 5
        %v4685 = vsel %vm798, %v4680, %v4684
        %v4686 = vshrl.u32 %v4331, 16
        %v4688 = vrot.slane %v4686, 4
        %v4689 = vor.u32 %v4688, %v4684
        %v4690 = vrot.slane %v4689, 4
        %v4692 = vshll.u32 %v4332, 16
        %v4694 = vrot.slane %v4692, 5
        %v4695 = vsel %vm798, %v4690, %v4694
        %v4697 = vshrl.u32 %v4333, 16
        %v4699 = vrot.slane %v4697, 4
        %v4700 = vshll.u32 %v4333, 16
        %v4702 = vrot.slane %v4700, 5
        %v4703 = vor.u32 %v4699, %v4702
        %v4704 = vrot.slane %v4703, 4
        %v4706 = vshll.u32 %v4334, 16
        %v4708 = vrot.slane %v4706, 5
        %v4709 = vsel %vm798, %v4704, %v4708
        %v4710 = vshrl.u32 %v4334, 16
        %v4712 = vrot.slane %v4710, 4
        %v4713 = vor.u32 %v4712, %v4708
        %v4714 = vrot.slane %v4713, 4
        %v4716 = vshll.u32 %v4335, 16
        %v4718 = vrot.slane %v4716, 5
        %v4719 = vsel %vm798, %v4714, %v4718
        %s4720 = scalar_lea.vmem [#allocation6], 448
        %v4721 = vld [vmem:[%s4720] sm:$0xf]
        %v4722 = vld [vmem:[%s4720 + $0x4] sm:$0xf]
        %v4723 = vld [vmem:[%s4720 + $0x8] sm:$0xf]
        %v4724 = vld [vmem:[%s4720 + $0xc] sm:$0xf]
        %v4725 = vld [vmem:[%s4720 + $0x10] sm:$0xf]
        %v4726 = vld [vmem:[%s4720 + $0x14] sm:$0xf]
        %v4727 = vld [vmem:[%s4720 + $0x18] sm:$0xf]
        %v4728 = vld [vmem:[%s4720 + $0x1c] sm:$0xf]
        %v4729 = vld [vmem:[%s4720 + $0x20] sm:$0xf]
        %v4730 = vld [vmem:[%s4720 + $0x24] sm:$0xf]
        %v4731 = vld [vmem:[%s4720 + $0x28] sm:$0xf]
        %v4732 = vld [vmem:[%s4720 + $0x2c] sm:$0xf]
        %v4733 = vld [vmem:[%s4720 + $0x30] sm:$0xf]
        %v4734 = vld [vmem:[%s4720 + $0x34] sm:$0xf]
        %v4735 = vld [vmem:[%s4720 + $0x38] sm:$0xf]
        %v4736 = vld [vmem:[%s4720 + $0x3c] sm:$0xf]
        %v4737 = vunpack.c.l.b16 %v4349
        %v4738 = vunpack.c.l.b16 %v4359
        %v4739 = vunpack.c.l.b16 %v4373
        %v4740 = vunpack.c.l.b16 %v4383
        %v4741 = vunpack.c.l.b16 %v4397
        %v4742 = vunpack.c.l.b16 %v4407
        %v4743 = vunpack.c.l.b16 %v4421
        %v4744 = vunpack.c.l.b16 %v4431
        %v4745 = vunpack.c.l.b16 %v4445
        %v4746 = vunpack.c.l.b16 %v4455
        %v4747 = vunpack.c.l.b16 %v4469
        %v4748 = vunpack.c.l.b16 %v4479
        %v4749 = vunpack.c.l.b16 %v4493
        %v4750 = vunpack.c.l.b16 %v4503
        %v4751 = vunpack.c.l.b16 %v4517
        %v4752 = vunpack.c.l.b16 %v4527
        %v4753 = vunpack.c.l.b16 %v4541
        %v4754 = vunpack.c.l.b16 %v4551
        %v4755 = vunpack.c.l.b16 %v4565
        %v4756 = vunpack.c.l.b16 %v4575
        %v4757 = vunpack.c.l.b16 %v4589
        %v4758 = vunpack.c.l.b16 %v4599
        %v4759 = vunpack.c.l.b16 %v4613
        %v4760 = vunpack.c.l.b16 %v4623
        %v4761 = vunpack.c.l.b16 %v4637
        %v4762 = vunpack.c.l.b16 %v4647
        %v4763 = vunpack.c.l.b16 %v4661
        %v4764 = vunpack.c.l.b16 %v4671
        %v4765 = vunpack.c.l.b16 %v4685
        %v4766 = vunpack.c.l.b16 %v4695
        %v4767 = vunpack.c.l.b16 %v4709
        %v4768 = vunpack.c.l.b16 %v4719
        %v4769 = vpack.c.b16 %v4738, %v4737
        %v4770 = vpack.c.b16 %v4740, %v4739
        %v4771 = vpack.c.b16 %v4742, %v4741
        %v4772 = vpack.c.b16 %v4744, %v4743
        %v4773 = vpack.c.b16 %v4746, %v4745
        %v4774 = vpack.c.b16 %v4748, %v4747
        %v4775 = vpack.c.b16 %v4750, %v4749
        %v4776 = vpack.c.b16 %v4752, %v4751
        %v4777 = vpack.c.b16 %v4754, %v4753
        %v4778 = vpack.c.b16 %v4756, %v4755
        %v4779 = vpack.c.b16 %v4758, %v4757
        %v4780 = vpack.c.b16 %v4760, %v4759
        %v4781 = vpack.c.b16 %v4762, %v4761
        %v4782 = vpack.c.b16 %v4764, %v4763
        %v4783 = vpack.c.b16 %v4766, %v4765
        %v4784 = vpack.c.b16 %v4768, %v4767
        %v4817 = vunpack.c.l.b16 %v4721
        %v4818 = vunpack.c.l.b16 %v4722
        %v4819 = vunpack.c.l.b16 %v4723
        %v4820 = vunpack.c.l.b16 %v4724
        %v4821 = vunpack.c.l.b16 %v4725
        %v4822 = vunpack.c.l.b16 %v4726
        %v4823 = vunpack.c.l.b16 %v4727
        %v4824 = vunpack.c.l.b16 %v4728
        %v4825 = vunpack.c.l.b16 %v4729
        %v4826 = vunpack.c.l.b16 %v4730
        %v4827 = vunpack.c.l.b16 %v4731
        %v4828 = vunpack.c.l.b16 %v4732
        %v4829 = vunpack.c.l.b16 %v4733
        %v4830 = vunpack.c.l.b16 %v4734
        %v4831 = vunpack.c.l.b16 %v4735
        %v4832 = vunpack.c.l.b16 %v4736
        %v4833 = vpack.c.b16 %v4818, %v4817
        %v4834 = vpack.c.b16 %v4820, %v4819
        %v4835 = vpack.c.b16 %v4822, %v4821
        %v4836 = vpack.c.b16 %v4824, %v4823
        %v4837 = vpack.c.b16 %v4826, %v4825
        %v4838 = vpack.c.b16 %v4828, %v4827
        %v4839 = vpack.c.b16 %v4830, %v4829
        %v4840 = vpack.c.b16 %v4832, %v4831
        %4849 = vmatprep.subr.bf16.mxu0 0
        %4850 = vmatpush1.bf16.msra.mxu0 %v4833
        %4851 = vmatprep.subr.bf16.mxu0 0
        %4852 = vmatpush1.bf16.msra.mxu0 %v4834
        %4853 = vmatprep.subr.bf16.mxu0 0
        %4854 = vmatpush1.bf16.msra.mxu0 %v4835
        %4855 = vmatprep.subr.bf16.mxu0 0
        %4856 = vmatpush1.bf16.msra.mxu0 %v4836
        %4857 = vmatprep.subr.bf16.mxu0 0
        %4858 = vmatpush1.bf16.msra.mxu0 %v4837
        %4859 = vmatprep.subr.bf16.mxu0 0
        %4860 = vmatpush1.bf16.msra.mxu0 %v4838
        %4861 = vmatprep.subr.bf16.mxu0 0
        %4862 = vmatpush1.bf16.msra.mxu0 %v4839
        %4863 = vmatprep.subr.bf16.mxu0 0
        %4864 = vmatpush1.bf16.msra.mxu0 %v4840
        %4865 = vmatprep.subr.bf16.mxu0 0
        %4866 = vmatpush1.bf16.msra.mxu0 0
        %4867 = vmatprep.subr.bf16.mxu0 0
        %4868 = vmatpush1.bf16.msra.mxu0 0
        %4869 = vmatprep.subr.bf16.mxu0 0
        %4870 = vmatpush1.bf16.msra.mxu0 0
        %4871 = vmatprep.subr.bf16.mxu0 0
        %4872 = vmatpush1.bf16.msra.mxu0 0
        %4873 = vmatprep.subr.bf16.mxu0 0
        %4874 = vmatpush1.bf16.msra.mxu0 0
        %4875 = vmatprep.subr.bf16.mxu0 0
        %4876 = vmatpush1.bf16.msra.mxu0 0
        %4877 = vmatprep.subr.bf16.mxu0 0
        %4878 = vmatpush1.bf16.msra.mxu0 0
        %4879 = vmatprep.subr.bf16.mxu0 0
        %4880 = vmatpush1.bf16.msra.mxu0 0
        %4881 = vmatprep.mubr.bf16.mxu0 0
        %4882 = vmatmul.mubr.bf16.gmra.mrb[0].mxu0 %v4769
        %v4883 = vpop.f32.mrb[0].mxu0
        %v4884 = vadd.f32 0.0, %v4883
        %v4885 = vpop.f32.mrb[0].mxu0
        %v4886 = vpop.f32.mrb[0].mxu0
        %v4887 = vadd.f32 0.0, %v4886
        %v4888 = vpop.f32.mrb[0].mxu0
        %4889 = vmatprep.mubr.bf16.mxu0 0
        %4890 = vmatmul.mubr.bf16.gmra.mrb[0].mxu0 %v4770
        %v4891 = vpop.f32.mrb[0].mxu0
        %v4892 = vadd.f32 0.0, %v4891
        %v4893 = vpop.f32.mrb[0].mxu0
        %v4894 = vpop.f32.mrb[0].mxu0
        %v4895 = vadd.f32 0.0, %v4894
        %v4896 = vpop.f32.mrb[0].mxu0
        %4897 = vmatprep.mubr.bf16.mxu0 0
        %4898 = vmatmul.mubr.bf16.gmra.mrb[0].mxu0 %v4771
        %v4899 = vpop.f32.mrb[0].mxu0
        %v4900 = vadd.f32 0.0, %v4899
        %v4901 = vpop.f32.mrb[0].mxu0
        %v4902 = vpop.f32.mrb[0].mxu0
        %v4903 = vadd.f32 0.0, %v4902
        %v4904 = vpop.f32.mrb[0].mxu0
        %4905 = vmatprep.mubr.bf16.mxu0 0
        %4906 = vmatmul.mubr.bf16.gmra.mrb[0].mxu0 %v4772
        %v4907 = vpop.f32.mrb[0].mxu0
        %v4908 = vadd.f32 0.0, %v4907
        %v4909 = vpop.f32.mrb[0].mxu0
        %v4910 = vpop.f32.mrb[0].mxu0
        %v4911 = vadd.f32 0.0, %v4910
        %v4912 = vpop.f32.mrb[0].mxu0
        %4913 = vmatprep.mubr.bf16.mxu0 0
        %4914 = vmatmul.mubr.bf16.gmra.mrb[0].mxu0 %v4773
        %v4915 = vpop.f32.mrb[0].mxu0
        %v4916 = vadd.f32 0.0, %v4915
        %v4917 = vpop.f32.mrb[0].mxu0
        %v4918 = vpop.f32.mrb[0].mxu0
        %v4919 = vadd.f32 0.0, %v4918
        %v4920 = vpop.f32.mrb[0].mxu0
        %4921 = vmatprep.mubr.bf16.mxu0 0
        %4922 = vmatmul.mubr.bf16.gmra.mrb[0].mxu0 %v4774
        %v4923 = vpop.f32.mrb[0].mxu0
        %v4924 = vadd.f32 0.0, %v4923
        %v4925 = vpop.f32.mrb[0].mxu0
        %v4926 = vpop.f32.mrb[0].mxu0
        %v4927 = vadd.f32 0.0, %v4926
        %v4928 = vpop.f32.mrb[0].mxu0
        %4929 = vmatprep.mubr.bf16.mxu0 0
        %4930 = vmatmul.mubr.bf16.gmra.mrb[0].mxu0 %v4775
        %v4931 = vpop.f32.mrb[0].mxu0
        %v4932 = vadd.f32 0.0, %v4931
        %v4933 = vpop.f32.mrb[0].mxu0
        %v4934 = vpop.f32.mrb[0].mxu0
        %v4935 = vadd.f32 0.0, %v4934
        %v4936 = vpop.f32.mrb[0].mxu0
        %4937 = vmatprep.mubr.bf16.mxu0 0
        %4938 = vmatmul.mubr.bf16.gmra.mrb[0].mxu0 %v4776
        %v4939 = vpop.f32.mrb[0].mxu0
        %v4940 = vadd.f32 0.0, %v4939
        %v4941 = vpop.f32.mrb[0].mxu0
        %v4942 = vpop.f32.mrb[0].mxu0
        %v4943 = vadd.f32 0.0, %v4942
        %v4944 = vpop.f32.mrb[0].mxu0
        %4945 = vmatprep.mubr.bf16.mxu0 0
        %4946 = vmatmul.mubr.bf16.gmra.mrb[0].mxu0 %v4777
        %v4947 = vpop.f32.mrb[0].mxu0
        %v4948 = vadd.f32 0.0, %v4947
        %v4949 = vpop.f32.mrb[0].mxu0
        %v4950 = vpop.f32.mrb[0].mxu0
        %v4951 = vadd.f32 0.0, %v4950
        %v4952 = vpop.f32.mrb[0].mxu0
        %4953 = vmatprep.mubr.bf16.mxu0 0
        %4954 = vmatmul.mubr.bf16.gmra.mrb[0].mxu0 %v4778
        %v4955 = vpop.f32.mrb[0].mxu0
        %v4956 = vadd.f32 0.0, %v4955
        %v4957 = vpop.f32.mrb[0].mxu0
        %v4958 = vpop.f32.mrb[0].mxu0
        %v4959 = vadd.f32 0.0, %v4958
        %v4960 = vpop.f32.mrb[0].mxu0
        %4961 = vmatprep.mubr.bf16.mxu0 0
        %4962 = vmatmul.mubr.bf16.gmra.mrb[0].mxu0 %v4779
        %v4963 = vpop.f32.mrb[0].mxu0
        %v4964 = vadd.f32 0.0, %v4963
        %v4965 = vpop.f32.mrb[0].mxu0
        %v4966 = vpop.f32.mrb[0].mxu0
        %v4967 = vadd.f32 0.0, %v4966
        %v4968 = vpop.f32.mrb[0].mxu0
        %4969 = vmatprep.mubr.bf16.mxu0 0
        %4970 = vmatmul.mubr.bf16.gmra.mrb[0].mxu0 %v4780
        %v4971 = vpop.f32.mrb[0].mxu0
        %v4972 = vadd.f32 0.0, %v4971
        %v4973 = vpop.f32.mrb[0].mxu0
        %v4974 = vpop.f32.mrb[0].mxu0
        %v4975 = vadd.f32 0.0, %v4974
        %v4976 = vpop.f32.mrb[0].mxu0
        %4977 = vmatprep.mubr.bf16.mxu0 0
        %4978 = vmatmul.mubr.bf16.gmra.mrb[0].mxu0 %v4781
        %v4979 = vpop.f32.mrb[0].mxu0
        %v4980 = vadd.f32 0.0, %v4979
        %v4981 = vpop.f32.mrb[0].mxu0
        %v4982 = vpop.f32.mrb[0].mxu0
        %v4983 = vadd.f32 0.0, %v4982
        %v4984 = vpop.f32.mrb[0].mxu0
        %4985 = vmatprep.mubr.bf16.mxu0 0
        %4986 = vmatmul.mubr.bf16.gmra.mrb[0].mxu0 %v4782
        %v4987 = vpop.f32.mrb[0].mxu0
        %v4988 = vadd.f32 0.0, %v4987
        %v4989 = vpop.f32.mrb[0].mxu0
        %v4990 = vpop.f32.mrb[0].mxu0
        %v4991 = vadd.f32 0.0, %v4990
        %v4992 = vpop.f32.mrb[0].mxu0
        %4993 = vmatprep.mubr.bf16.mxu0 0
        %4994 = vmatmul.mubr.bf16.gmra.mrb[0].mxu0 %v4783
        %v4995 = vpop.f32.mrb[0].mxu0
        %v4996 = vadd.f32 0.0, %v4995
        %v4997 = vpop.f32.mrb[0].mxu0
        %v4998 = vpop.f32.mrb[0].mxu0
        %v4999 = vadd.f32 0.0, %v4998
        %v5000 = vpop.f32.mrb[0].mxu0
        %5001 = vmatprep.mubr.bf16.mxu0 0
        %5002 = vmatmul.mubr.bf16.gmra.mrb[0].mxu0 %v4784
        %v5003 = vpop.f32.mrb[0].mxu0
        %v5004 = vadd.f32 0.0, %v5003
        %v5005 = vpop.f32.mrb[0].mxu0
        %v5006 = vpop.f32.mrb[0].mxu0
        %v5007 = vadd.f32 0.0, %v5006
        %v5008 = vpop.f32.mrb[0].mxu0
        %5009 = vdwg.mxu0
        %v5010 = vadd.f32 %v4256, %v4884
        %v5011 = vadd.f32 %v4257, %v4887
        %v5012 = vadd.f32 %v4258, %v4892
        %v5013 = vadd.f32 %v4259, %v4895
        %v5014 = vadd.f32 %v4260, %v4900
        %v5015 = vadd.f32 %v4261, %v4903
        %v5016 = vadd.f32 %v4262, %v4908
        %v5017 = vadd.f32 %v4263, %v4911
        %v5018 = vadd.f32 %v4264, %v4916
        %v5019 = vadd.f32 %v4265, %v4919
        %v5020 = vadd.f32 %v4266, %v4924
        %v5021 = vadd.f32 %v4267, %v4927
        %v5022 = vadd.f32 %v4268, %v4932
        %v5023 = vadd.f32 %v4269, %v4935
        %v5024 = vadd.f32 %v4270, %v4940
        %v5025 = vadd.f32 %v4271, %v4943
        %v5026 = vadd.f32 %v4272, %v4948
        %v5027 = vadd.f32 %v4273, %v4951
        %v5028 = vadd.f32 %v4274, %v4956
        %v5029 = vadd.f32 %v4275, %v4959
        %v5030 = vadd.f32 %v4276, %v4964
        %v5031 = vadd.f32 %v4277, %v4967
        %v5032 = vadd.f32 %v4278, %v4972
        %v5033 = vadd.f32 %v4279, %v4975
        %v5034 = vadd.f32 %v4280, %v4980
        %v5035 = vadd.f32 %v4281, %v4983
        %v5036 = vadd.f32 %v4282, %v4988
        %v5037 = vadd.f32 %v4283, %v4991
        %v5038 = vadd.f32 %v4284, %v4996
        %v5039 = vadd.f32 %v4285, %v4999
        %v5040 = vadd.f32 %v4286, %v5004
        %v5041 = vadd.f32 %v4287, %v5007
        %v5042 = vld [vmem:[%s3901] sm:$0xe]
        %v5043 = vld [vmem:[%s3901 + $0xc] sm:$0xe]
        %v5044 = vld [vmem:[%s3901 + $0x18] sm:$0xe]
        %v5045 = vld [vmem:[%s3901 + $0x24] sm:$0xe]
        %v5046 = vld [vmem:[%s3901 + $0x30] sm:$0xe]
        %v5047 = vld [vmem:[%s3901 + $0x3c] sm:$0xe]
        %v5048 = vld [vmem:[%s3901 + $0x48] sm:$0xe]
        %v5049 = vld [vmem:[%s3901 + $0x54] sm:$0xe]
        %v5050 = vld [vmem:[%s3901 + $0x60] sm:$0xe]
        %v5051 = vld [vmem:[%s3901 + $0x6c] sm:$0xe]
        %v5052 = vld [vmem:[%s3901 + $0x78] sm:$0xe]
        %v5053 = vld [vmem:[%s3901 + $0x84] sm:$0xe]
        %v5054 = vld [vmem:[%s3901 + $0x90] sm:$0xe]
        %v5055 = vld [vmem:[%s3901 + $0x9c] sm:$0xe]
        %v5056 = vld [vmem:[%s3901 + $0xa8] sm:$0xe]
        %v5057 = vld [vmem:[%s3901 + $0xb4] sm:$0xe]
        %v5106 = vrot.slane %v5042, 5
        %v5107 = vrot.slane %v5106, 4
        %v5108 = vrot.slane %v4289, 5
        %v5109 = vsel %vm1828, %v5107, %v5108
        %v5110 = vrot.slane %v5108, 4
        %v5111 = vrot.slane %v4290, 5
        %v5112 = vsel %vm1828, %v5110, %v5111
        %v5113 = vrot.slane %v5043, 5
        %v5114 = vrot.slane %v5113, 4
        %v5115 = vrot.slane %v4292, 5
        %v5116 = vsel %vm1828, %v5114, %v5115
        %v5117 = vrot.slane %v5115, 4
        %v5118 = vrot.slane %v4293, 5
        %v5119 = vsel %vm1828, %v5117, %v5118
        %v5120 = vrot.slane %v5044, 5
        %v5121 = vrot.slane %v5120, 4
        %v5122 = vrot.slane %v4295, 5
        %v5123 = vsel %vm1828, %v5121, %v5122
        %v5124 = vrot.slane %v5122, 4
        %v5125 = vrot.slane %v4296, 5
        %v5126 = vsel %vm1828, %v5124, %v5125
        %v5127 = vrot.slane %v5045, 5
        %v5128 = vrot.slane %v5127, 4
        %v5129 = vrot.slane %v4298, 5
        %v5130 = vsel %vm1828, %v5128, %v5129
        %v5131 = vrot.slane %v5129, 4
        %v5132 = vrot.slane %v4299, 5
        %v5133 = vsel %vm1828, %v5131, %v5132
        %v5134 = vrot.slane %v5046, 5
        %v5135 = vrot.slane %v5134, 4
        %v5136 = vrot.slane %v4301, 5
        %v5137 = vsel %vm1828, %v5135, %v5136
        %v5138 = vrot.slane %v5136, 4
        %v5139 = vrot.slane %v4302, 5
        %v5140 = vsel %vm1828, %v5138, %v5139
        %v5141 = vrot.slane %v5047, 5
        %v5142 = vrot.slane %v5141, 4
        %v5143 = vrot.slane %v4304, 5
        %v5144 = vsel %vm1828, %v5142, %v5143
        %v5145 = vrot.slane %v5143, 4
        %v5146 = vrot.slane %v4305, 5
        %v5147 = vsel %vm1828, %v5145, %v5146
        %v5148 = vrot.slane %v5048, 5
        %v5149 = vrot.slane %v5148, 4
        %v5150 = vrot.slane %v4307, 5
        %v5151 = vsel %vm1828, %v5149, %v5150
        %v5152 = vrot.slane %v5150, 4
        %v5153 = vrot.slane %v4308, 5
        %v5154 = vsel %vm1828, %v5152, %v5153
        %v5155 = vrot.slane %v5049, 5
        %v5156 = vrot.slane %v5155, 4
        %v5157 = vrot.slane %v4310, 5
        %v5158 = vsel %vm1828, %v5156, %v5157
        %v5159 = vrot.slane %v5157, 4
        %v5160 = vrot.slane %v4311, 5
        %v5161 = vsel %vm1828, %v5159, %v5160
        %v5162 = vrot.slane %v5050, 5
        %v5163 = vrot.slane %v5162, 4
        %v5164 = vrot.slane %v4313, 5
        %v5165 = vsel %vm1828, %v5163, %v5164
        %v5166 = vrot.slane %v5164, 4
        %v5167 = vrot.slane %v4314, 5
        %v5168 = vsel %vm1828, %v5166, %v5167
        %v5169 = vrot.slane %v5051, 5
        %v5170 = vrot.slane %v5169, 4
        %v5171 = vrot.slane %v4316, 5
        %v5172 = vsel %vm1828, %v5170, %v5171
        %v5173 = vrot.slane %v5171, 4
        %v5174 = vrot.slane %v4317, 5
        %v5175 = vsel %vm1828, %v5173, %v5174
        %v5176 = vrot.slane %v5052, 5
        %v5177 = vrot.slane %v5176, 4
        %v5178 = vrot.slane %v4319, 5
        %v5179 = vsel %vm1828, %v5177, %v5178
        %v5180 = vrot.slane %v5178, 4
        %v5181 = vrot.slane %v4320, 5
        %v5182 = vsel %vm1828, %v5180, %v5181
        %v5183 = vrot.slane %v5053, 5
        %v5184 = vrot.slane %v5183, 4
        %v5185 = vrot.slane %v4322, 5
        %v5186 = vsel %vm1828, %v5184, %v5185
        %v5187 = vrot.slane %v5185, 4
        %v5188 = vrot.slane %v4323, 5
        %v5189 = vsel %vm1828, %v5187, %v5188
        %v5190 = vrot.slane %v5054, 5
        %v5191 = vrot.slane %v5190, 4
        %v5192 = vrot.slane %v4325, 5
        %v5193 = vsel %vm1828, %v5191, %v5192
        %v5194 = vrot.slane %v5192, 4
        %v5195 = vrot.slane %v4326, 5
        %v5196 = vsel %vm1828, %v5194, %v5195
        %v5197 = vrot.slane %v5055, 5
        %v5198 = vrot.slane %v5197, 4
        %v5199 = vrot.slane %v4328, 5
        %v5200 = vsel %vm1828, %v5198, %v5199
        %v5201 = vrot.slane %v5199, 4
        %v5202 = vrot.slane %v4329, 5
        %v5203 = vsel %vm1828, %v5201, %v5202
        %v5204 = vrot.slane %v5056, 5
        %v5205 = vrot.slane %v5204, 4
        %v5206 = vrot.slane %v4331, 5
        %v5207 = vsel %vm1828, %v5205, %v5206
        %v5208 = vrot.slane %v5206, 4
        %v5209 = vrot.slane %v4332, 5
        %v5210 = vsel %vm1828, %v5208, %v5209
        %v5211 = vrot.slane %v5057, 5
        %v5212 = vrot.slane %v5211, 4
        %v5213 = vrot.slane %v4334, 5
        %v5214 = vsel %vm1828, %v5212, %v5213
        %v5215 = vrot.slane %v5213, 4
        %v5216 = vrot.slane %v4335, 5
        %v5217 = vsel %vm1828, %v5215, %v5216
        %s5218 = scalar_lea.vmem [#allocation6], 512
        %v5219 = vld [vmem:[%s5218] sm:$0xf]
        %v5220 = vld [vmem:[%s5218 + $0x4] sm:$0xf]
        %v5221 = vld [vmem:[%s5218 + $0x8] sm:$0xf]
        %v5222 = vld [vmem:[%s5218 + $0xc] sm:$0xf]
        %v5223 = vld [vmem:[%s5218 + $0x10] sm:$0xf]
        %v5224 = vld [vmem:[%s5218 + $0x14] sm:$0xf]
        %v5225 = vld [vmem:[%s5218 + $0x18] sm:$0xf]
        %v5226 = vld [vmem:[%s5218 + $0x1c] sm:$0xf]
        %v5227 = vld [vmem:[%s5218 + $0x20] sm:$0xf]
        %v5228 = vld [vmem:[%s5218 + $0x24] sm:$0xf]
        %v5229 = vld [vmem:[%s5218 + $0x28] sm:$0xf]
        %v5230 = vld [vmem:[%s5218 + $0x2c] sm:$0xf]
        %v5231 = vld [vmem:[%s5218 + $0x30] sm:$0xf]
        %v5232 = vld [vmem:[%s5218 + $0x34] sm:$0xf]
        %v5233 = vld [vmem:[%s5218 + $0x38] sm:$0xf]
        %v5234 = vld [vmem:[%s5218 + $0x3c] sm:$0xf]
        %v5235 = vunpack.c.l.b16 %v5109
        %v5236 = vunpack.c.l.b16 %v5112
        %v5237 = vunpack.c.l.b16 %v5116
        %v5238 = vunpack.c.l.b16 %v5119
        %v5239 = vunpack.c.l.b16 %v5123
        %v5240 = vunpack.c.l.b16 %v5126
        %v5241 = vunpack.c.l.b16 %v5130
        %v5242 = vunpack.c.l.b16 %v5133
        %v5243 = vunpack.c.l.b16 %v5137
        %v5244 = vunpack.c.l.b16 %v5140
        %v5245 = vunpack.c.l.b16 %v5144
        %v5246 = vunpack.c.l.b16 %v5147
        %v5247 = vunpack.c.l.b16 %v5151
        %v5248 = vunpack.c.l.b16 %v5154
        %v5249 = vunpack.c.l.b16 %v5158
        %v5250 = vunpack.c.l.b16 %v5161
        %v5251 = vunpack.c.l.b16 %v5165
        %v5252 = vunpack.c.l.b16 %v5168
        %v5253 = vunpack.c.l.b16 %v5172
        %v5254 = vunpack.c.l.b16 %v5175
        %v5255 = vunpack.c.l.b16 %v5179
        %v5256 = vunpack.c.l.b16 %v5182
        %v5257 = vunpack.c.l.b16 %v5186
        %v5258 = vunpack.c.l.b16 %v5189
        %v5259 = vunpack.c.l.b16 %v5193
        %v5260 = vunpack.c.l.b16 %v5196
        %v5261 = vunpack.c.l.b16 %v5200
        %v5262 = vunpack.c.l.b16 %v5203
        %v5263 = vunpack.c.l.b16 %v5207
        %v5264 = vunpack.c.l.b16 %v5210
        %v5265 = vunpack.c.l.b16 %v5214
        %v5266 = vunpack.c.l.b16 %v5217
        %v5267 = vpack.c.b16 %v5236, %v5235
        %v5268 = vpack.c.b16 %v5238, %v5237
        %v5269 = vpack.c.b16 %v5240, %v5239
        %v5270 = vpack.c.b16 %v5242, %v5241
        %v5271 = vpack.c.b16 %v5244, %v5243
        %v5272 = vpack.c.b16 %v5246, %v5245
        %v5273 = vpack.c.b16 %v5248, %v5247
        %v5274 = vpack.c.b16 %v5250, %v5249
        %v5275 = vpack.c.b16 %v5252, %v5251
        %v5276 = vpack.c.b16 %v5254, %v5253
        %v5277 = vpack.c.b16 %v5256, %v5255
        %v5278 = vpack.c.b16 %v5258, %v5257
        %v5279 = vpack.c.b16 %v5260, %v5259
        %v5280 = vpack.c.b16 %v5262, %v5261
        %v5281 = vpack.c.b16 %v5264, %v5263
        %v5282 = vpack.c.b16 %v5266, %v5265
        %v5315 = vunpack.c.l.b16 %v5219
        %v5316 = vunpack.c.l.b16 %v5220
        %v5317 = vunpack.c.l.b16 %v5221
        %v5318 = vunpack.c.l.b16 %v5222
        %v5319 = vunpack.c.l.b16 %v5223
        %v5320 = vunpack.c.l.b16 %v5224
        %v5321 = vunpack.c.l.b16 %v5225
        %v5322 = vunpack.c.l.b16 %v5226
        %v5323 = vunpack.c.l.b16 %v5227
        %v5324 = vunpack.c.l.b16 %v5228
        %v5325 = vunpack.c.l.b16 %v5229
        %v5326 = vunpack.c.l.b16 %v5230
        %v5327 = vunpack.c.l.b16 %v5231
        %v5328 = vunpack.c.l.b16 %v5232
        %v5329 = vunpack.c.l.b16 %v5233
        %v5330 = vunpack.c.l.b16 %v5234
        %v5331 = vpack.c.b16 %v5316, %v5315
        %v5332 = vpack.c.b16 %v5318, %v5317
        %v5333 = vpack.c.b16 %v5320, %v5319
        %v5334 = vpack.c.b16 %v5322, %v5321
        %v5335 = vpack.c.b16 %v5324, %v5323
        %v5336 = vpack.c.b16 %v5326, %v5325
        %v5337 = vpack.c.b16 %v5328, %v5327
        %v5338 = vpack.c.b16 %v5330, %v5329
        %5347 = vmatprep.subr.bf16.mxu0 0
        %5348 = vmatpush1.bf16.msra.mxu0 %v5331
        %5349 = vmatprep.subr.bf16.mxu0 0
        %5350 = vmatpush1.bf16.msra.mxu0 %v5332
        %5351 = vmatprep.subr.bf16.mxu0 0
        %5352 = vmatpush1.bf16.msra.mxu0 %v5333
        %5353 = vmatprep.subr.bf16.mxu0 0
        %5354 = vmatpush1.bf16.msra.mxu0 %v5334
        %5355 = vmatprep.subr.bf16.mxu0 0
        %5356 = vmatpush1.bf16.msra.mxu0 %v5335
        %5357 = vmatprep.subr.bf16.mxu0 0
        %5358 = vmatpush1.bf16.msra.mxu0 %v5336
        %5359 = vmatprep.subr.bf16.mxu0 0
        %5360 = vmatpush1.bf16.msra.mxu0 %v5337
        %5361 = vmatprep.subr.bf16.mxu0 0
        %5362 = vmatpush1.bf16.msra.mxu0 %v5338
        %5363 = vmatprep.subr.bf16.mxu0 0
        %5364 = vmatpush1.bf16.msra.mxu0 0
        %5365 = vmatprep.subr.bf16.mxu0 0
        %5366 = vmatpush1.bf16.msra.mxu0 0
        %5367 = vmatprep.subr.bf16.mxu0 0
        %5368 = vmatpush1.bf16.msra.mxu0 0
        %5369 = vmatprep.subr.bf16.mxu0 0
        %5370 = vmatpush1.bf16.msra.mxu0 0
        %5371 = vmatprep.subr.bf16.mxu0 0
        %5372 = vmatpush1.bf16.msra.mxu0 0
        %5373 = vmatprep.subr.bf16.mxu0 0
        %5374 = vmatpush1.bf16.msra.mxu0 0
        %5375 = vmatprep.subr.bf16.mxu0 0
        %5376 = vmatpush1.bf16.msra.mxu0 0
        %5377 = vmatprep.subr.bf16.mxu0 0
        %5378 = vmatpush1.bf16.msra.mxu0 0
        %5379 = vmatprep.mubr.bf16.mxu0 0
        %5380 = vmatmul.mubr.bf16.gmra.mrb[0].mxu0 %v5267
        %v5381 = vpop.f32.mrb[0].mxu0
        %v5382 = vadd.f32 0.0, %v5381
        %v5383 = vpop.f32.mrb[0].mxu0
        %v5384 = vpop.f32.mrb[0].mxu0
        %v5385 = vadd.f32 0.0, %v5384
        %v5386 = vpop.f32.mrb[0].mxu0
        %5387 = vmatprep.mubr.bf16.mxu0 0
        %5388 = vmatmul.mubr.bf16.gmra.mrb[0].mxu0 %v5268
        %v5389 = vpop.f32.mrb[0].mxu0
        %v5390 = vadd.f32 0.0, %v5389
        %v5391 = vpop.f32.mrb[0].mxu0
        %v5392 = vpop.f32.mrb[0].mxu0
        %v5393 = vadd.f32 0.0, %v5392
        %v5394 = vpop.f32.mrb[0].mxu0
        %5395 = vmatprep.mubr.bf16.mxu0 0
        %5396 = vmatmul.mubr.bf16.gmra.mrb[0].mxu0 %v5269
        %v5397 = vpop.f32.mrb[0].mxu0
        %v5398 = vadd.f32 0.0, %v5397
        %v5399 = vpop.f32.mrb[0].mxu0
        %v5400 = vpop.f32.mrb[0].mxu0
        %v5401 = vadd.f32 0.0, %v5400
        %v5402 = vpop.f32.mrb[0].mxu0
        %5403 = vmatprep.mubr.bf16.mxu0 0
        %5404 = vmatmul.mubr.bf16.gmra.mrb[0].mxu0 %v5270
        %v5405 = vpop.f32.mrb[0].mxu0
        %v5406 = vadd.f32 0.0, %v5405
        %v5407 = vpop.f32.mrb[0].mxu0
        %v5408 = vpop.f32.mrb[0].mxu0
        %v5409 = vadd.f32 0.0, %v5408
        %v5410 = vpop.f32.mrb[0].mxu0
        %5411 = vmatprep.mubr.bf16.mxu0 0
        %5412 = vmatmul.mubr.bf16.gmra.mrb[0].mxu0 %v5271
        %v5413 = vpop.f32.mrb[0].mxu0
        %v5414 = vadd.f32 0.0, %v5413
        %v5415 = vpop.f32.mrb[0].mxu0
        %v5416 = vpop.f32.mrb[0].mxu0
        %v5417 = vadd.f32 0.0, %v5416
        %v5418 = vpop.f32.mrb[0].mxu0
        %5419 = vmatprep.mubr.bf16.mxu0 0
        %5420 = vmatmul.mubr.bf16.gmra.mrb[0].mxu0 %v5272
        %v5421 = vpop.f32.mrb[0].mxu0
        %v5422 = vadd.f32 0.0, %v5421
        %v5423 = vpop.f32.mrb[0].mxu0
        %v5424 = vpop.f32.mrb[0].mxu0
        %v5425 = vadd.f32 0.0, %v5424
        %v5426 = vpop.f32.mrb[0].mxu0
        %5427 = vmatprep.mubr.bf16.mxu0 0
        %5428 = vmatmul.mubr.bf16.gmra.mrb[0].mxu0 %v5273
        %v5429 = vpop.f32.mrb[0].mxu0
        %v5430 = vadd.f32 0.0, %v5429
        %v5431 = vpop.f32.mrb[0].mxu0
        %v5432 = vpop.f32.mrb[0].mxu0
        %v5433 = vadd.f32 0.0, %v5432
        %v5434 = vpop.f32.mrb[0].mxu0
        %5435 = vmatprep.mubr.bf16.mxu0 0
        %5436 = vmatmul.mubr.bf16.gmra.mrb[0].mxu0 %v5274
        %v5437 = vpop.f32.mrb[0].mxu0
        %v5438 = vadd.f32 0.0, %v5437
        %v5439 = vpop.f32.mrb[0].mxu0
        %v5440 = vpop.f32.mrb[0].mxu0
        %v5441 = vadd.f32 0.0, %v5440
        %v5442 = vpop.f32.mrb[0].mxu0
        %5443 = vmatprep.mubr.bf16.mxu0 0
        %5444 = vmatmul.mubr.bf16.gmra.mrb[0].mxu0 %v5275
        %v5445 = vpop.f32.mrb[0].mxu0
        %v5446 = vadd.f32 0.0, %v5445
        %v5447 = vpop.f32.mrb[0].mxu0
        %v5448 = vpop.f32.mrb[0].mxu0
        %v5449 = vadd.f32 0.0, %v5448
        %v5450 = vpop.f32.mrb[0].mxu0
        %5451 = vmatprep.mubr.bf16.mxu0 0
        %5452 = vmatmul.mubr.bf16.gmra.mrb[0].mxu0 %v5276
        %v5453 = vpop.f32.mrb[0].mxu0
        %v5454 = vadd.f32 0.0, %v5453
        %v5455 = vpop.f32.mrb[0].mxu0
        %v5456 = vpop.f32.mrb[0].mxu0
        %v5457 = vadd.f32 0.0, %v5456
        %v5458 = vpop.f32.mrb[0].mxu0
        %5459 = vmatprep.mubr.bf16.mxu0 0
        %5460 = vmatmul.mubr.bf16.gmra.mrb[0].mxu0 %v5277
        %v5461 = vpop.f32.mrb[0].mxu0
        %v5462 = vadd.f32 0.0, %v5461
        %v5463 = vpop.f32.mrb[0].mxu0
        %v5464 = vpop.f32.mrb[0].mxu0
        %v5465 = vadd.f32 0.0, %v5464
        %v5466 = vpop.f32.mrb[0].mxu0
        %5467 = vmatprep.mubr.bf16.mxu0 0
        %5468 = vmatmul.mubr.bf16.gmra.mrb[0].mxu0 %v5278
        %v5469 = vpop.f32.mrb[0].mxu0
        %v5470 = vadd.f32 0.0, %v5469
        %v5471 = vpop.f32.mrb[0].mxu0
        %v5472 = vpop.f32.mrb[0].mxu0
        %v5473 = vadd.f32 0.0, %v5472
        %v5474 = vpop.f32.mrb[0].mxu0
        %5475 = vmatprep.mubr.bf16.mxu0 0
        %5476 = vmatmul.mubr.bf16.gmra.mrb[0].mxu0 %v5279
        %v5477 = vpop.f32.mrb[0].mxu0
        %v5478 = vadd.f32 0.0, %v5477
        %v5479 = vpop.f32.mrb[0].mxu0
        %v5480 = vpop.f32.mrb[0].mxu0
        %v5481 = vadd.f32 0.0, %v5480
        %v5482 = vpop.f32.mrb[0].mxu0
        %5483 = vmatprep.mubr.bf16.mxu0 0
        %5484 = vmatmul.mubr.bf16.gmra.mrb[0].mxu0 %v5280
        %v5485 = vpop.f32.mrb[0].mxu0
        %v5486 = vadd.f32 0.0, %v5485
        %v5487 = vpop.f32.mrb[0].mxu0
        %v5488 = vpop.f32.mrb[0].mxu0
        %v5489 = vadd.f32 0.0, %v5488
        %v5490 = vpop.f32.mrb[0].mxu0
        %5491 = vmatprep.mubr.bf16.mxu0 0
        %5492 = vmatmul.mubr.bf16.gmra.mrb[0].mxu0 %v5281
        %v5493 = vpop.f32.mrb[0].mxu0
        %v5494 = vadd.f32 0.0, %v5493
        %v5495 = vpop.f32.mrb[0].mxu0
        %v5496 = vpop.f32.mrb[0].mxu0
        %v5497 = vadd.f32 0.0, %v5496
        %v5498 = vpop.f32.mrb[0].mxu0
        %5499 = vmatprep.mubr.bf16.mxu0 0
        %5500 = vmatmul.mubr.bf16.gmra.mrb[0].mxu0 %v5282
        %v5501 = vpop.f32.mrb[0].mxu0
        %v5502 = vadd.f32 0.0, %v5501
        %v5503 = vpop.f32.mrb[0].mxu0
        %v5504 = vpop.f32.mrb[0].mxu0
        %v5505 = vadd.f32 0.0, %v5504
        %v5506 = vpop.f32.mrb[0].mxu0
        %5507 = vdwg.mxu0
        %v5508 = vadd.f32 %v5010, %v5382
        %v5509 = vadd.f32 %v5011, %v5385
        %v5510 = vadd.f32 %v5012, %v5390
        %v5511 = vadd.f32 %v5013, %v5393
        %v5512 = vadd.f32 %v5014, %v5398
        %v5513 = vadd.f32 %v5015, %v5401
        %v5514 = vadd.f32 %v5016, %v5406
        %v5515 = vadd.f32 %v5017, %v5409
        %v5516 = vadd.f32 %v5018, %v5414
        %v5517 = vadd.f32 %v5019, %v5417
        %v5518 = vadd.f32 %v5020, %v5422
        %v5519 = vadd.f32 %v5021, %v5425
        %v5520 = vadd.f32 %v5022, %v5430
        %v5521 = vadd.f32 %v5023, %v5433
        %v5522 = vadd.f32 %v5024, %v5438
        %v5523 = vadd.f32 %v5025, %v5441
        %v5524 = vadd.f32 %v5026, %v5446
        %v5525 = vadd.f32 %v5027, %v5449
        %v5526 = vadd.f32 %v5028, %v5454
        %v5527 = vadd.f32 %v5029, %v5457
        %v5528 = vadd.f32 %v5030, %v5462
        %v5529 = vadd.f32 %v5031, %v5465
        %v5530 = vadd.f32 %v5032, %v5470
        %v5531 = vadd.f32 %v5033, %v5473
        %v5532 = vadd.f32 %v5034, %v5478
        %v5533 = vadd.f32 %v5035, %v5481
        %v5534 = vadd.f32 %v5036, %v5486
        %v5535 = vadd.f32 %v5037, %v5489
        %v5536 = vadd.f32 %v5038, %v5494
        %v5537 = vadd.f32 %v5039, %v5497
        %v5538 = vadd.f32 %v5040, %v5502
        %v5539 = vadd.f32 %v5041, %v5505
        %v5540 = vld [vmem:[%s2] sm:$0x1]
        %v5542 = vlaneseq
        %v5543 = vshrl.u32 %v5542, 7
        %v5544 = vsub.s32 0, %v5543
        %v5545 = vrot.slane %v5540, %v5544
        %v5547 = vadd.f32 %v5508, %v5545
        %v5548 = vadd.f32 %v5509, %v5545
        %v5549 = vadd.f32 %v5510, %v5545
        %v5550 = vadd.f32 %v5511, %v5545
        %v5551 = vadd.f32 %v5512, %v5545
        %v5552 = vadd.f32 %v5513, %v5545
        %v5553 = vadd.f32 %v5514, %v5545
        %v5554 = vadd.f32 %v5515, %v5545
        %v5555 = vadd.f32 %v5516, %v5545
        %v5556 = vadd.f32 %v5517, %v5545
        %v5557 = vadd.f32 %v5518, %v5545
        %v5558 = vadd.f32 %v5519, %v5545
        %v5559 = vadd.f32 %v5520, %v5545
        %v5560 = vadd.f32 %v5521, %v5545
        %v5561 = vadd.f32 %v5522, %v5545
        %v5562 = vadd.f32 %v5523, %v5545
        %v5563 = vadd.f32 %v5524, %v5545
        %v5564 = vadd.f32 %v5525, %v5545
        %v5565 = vadd.f32 %v5526, %v5545
        %v5566 = vadd.f32 %v5527, %v5545
        %v5567 = vadd.f32 %v5528, %v5545
        %v5568 = vadd.f32 %v5529, %v5545
        %v5569 = vadd.f32 %v5530, %v5545
        %v5570 = vadd.f32 %v5531, %v5545
        %v5571 = vadd.f32 %v5532, %v5545
        %v5572 = vadd.f32 %v5533, %v5545
        %v5573 = vadd.f32 %v5534, %v5545
        %v5574 = vadd.f32 %v5535, %v5545
        %v5575 = vadd.f32 %v5536, %v5545
        %v5576 = vadd.f32 %v5537, %v5545
        %v5577 = vadd.f32 %v5538, %v5545
        %v5578 = vadd.f32 %v5539, %v5545
        %v5579 = vmax.f32 %v5547, 0.0
        %v5580 = vmax.f32 %v5548, 0.0
        %v5581 = vmax.f32 %v5549, 0.0
        %v5582 = vmax.f32 %v5550, 0.0
        %v5583 = vmax.f32 %v5551, 0.0
        %v5584 = vmax.f32 %v5552, 0.0
        %v5585 = vmax.f32 %v5553, 0.0
        %v5586 = vmax.f32 %v5554, 0.0
        %v5587 = vmax.f32 %v5555, 0.0
        %v5588 = vmax.f32 %v5556, 0.0
        %v5589 = vmax.f32 %v5557, 0.0
        %v5590 = vmax.f32 %v5558, 0.0
        %v5591 = vmax.f32 %v5559, 0.0
        %v5592 = vmax.f32 %v5560, 0.0
        %v5593 = vmax.f32 %v5561, 0.0
        %v5594 = vmax.f32 %v5562, 0.0
        %v5595 = vmax.f32 %v5563, 0.0
        %v5596 = vmax.f32 %v5564, 0.0
        %v5597 = vmax.f32 %v5565, 0.0
        %v5598 = vmax.f32 %v5566, 0.0
        %v5599 = vmax.f32 %v5567, 0.0
        %v5600 = vmax.f32 %v5568, 0.0
        %v5601 = vmax.f32 %v5569, 0.0
        %v5602 = vmax.f32 %v5570, 0.0
        %v5603 = vmax.f32 %v5571, 0.0
        %v5604 = vmax.f32 %v5572, 0.0
        %v5605 = vmax.f32 %v5573, 0.0
        %v5606 = vmax.f32 %v5574, 0.0
        %v5607 = vmax.f32 %v5575, 0.0
        %v5608 = vmax.f32 %v5576, 0.0
        %v5609 = vmax.f32 %v5577, 0.0
        %v5610 = vmax.f32 %v5578, 0.0
        %v5611 = vpack.c.bf16 %v5580, %v5579
        %v5612 = vpack.c.bf16 %v5582, %v5581
        %v5613 = vpack.c.bf16 %v5584, %v5583
        %v5614 = vpack.c.bf16 %v5586, %v5585
        %v5615 = vpack.c.bf16 %v5588, %v5587
        %v5616 = vpack.c.bf16 %v5590, %v5589
        %v5617 = vpack.c.bf16 %v5592, %v5591
        %v5618 = vpack.c.bf16 %v5594, %v5593
        %v5619 = vpack.c.bf16 %v5596, %v5595
        %v5620 = vpack.c.bf16 %v5598, %v5597
        %v5621 = vpack.c.bf16 %v5600, %v5599
        %v5622 = vpack.c.bf16 %v5602, %v5601
        %v5623 = vpack.c.bf16 %v5604, %v5603
        %v5624 = vpack.c.bf16 %v5606, %v5605
        %v5625 = vpack.c.bf16 %v5608, %v5607
        %v5626 = vpack.c.bf16 %v5610, %v5609
        %v5628 = vshrl.u32 %v5611, 16
        %v5630 = vrot.slane %v5628, 7
        %v5631 = vshll.u32 %v5611, 16
        %v5633 = vor.u32 %v5630, %v5631
        %v5635 = vshrl.u32 %v5612, 16
        %v5637 = vrot.slane %v5635, 7
        %v5638 = vshll.u32 %v5612, 16
        %v5640 = vor.u32 %v5637, %v5638
        %v5642 = vshrl.u32 %v5613, 16
        %v5644 = vrot.slane %v5642, 7
        %v5645 = vshll.u32 %v5613, 16
        %v5647 = vor.u32 %v5644, %v5645
        %v5649 = vshrl.u32 %v5614, 16
        %v5651 = vrot.slane %v5649, 7
        %v5652 = vshll.u32 %v5614, 16
        %v5654 = vor.u32 %v5651, %v5652
        %v5656 = vshrl.u32 %v5615, 16
        %v5658 = vrot.slane %v5656, 7
        %v5659 = vshll.u32 %v5615, 16
        %v5661 = vor.u32 %v5658, %v5659
        %v5663 = vshrl.u32 %v5616, 16
        %v5665 = vrot.slane %v5663, 7
        %v5666 = vshll.u32 %v5616, 16
        %v5668 = vor.u32 %v5665, %v5666
        %v5670 = vshrl.u32 %v5617, 16
        %v5672 = vrot.slane %v5670, 7
        %v5673 = vshll.u32 %v5617, 16
        %v5675 = vor.u32 %v5672, %v5673
        %v5677 = vshrl.u32 %v5618, 16
        %v5679 = vrot.slane %v5677, 7
        %v5680 = vshll.u32 %v5618, 16
        %v5682 = vor.u32 %v5679, %v5680
        %v5684 = vshrl.u32 %v5619, 16
        %v5686 = vrot.slane %v5684, 7
        %v5687 = vshll.u32 %v5619, 16
        %v5689 = vor.u32 %v5686, %v5687
        %v5691 = vshrl.u32 %v5620, 16
        %v5693 = vrot.slane %v5691, 7
        %v5694 = vshll.u32 %v5620, 16
        %v5696 = vor.u32 %v5693, %v5694
        %v5698 = vshrl.u32 %v5621, 16
        %v5700 = vrot.slane %v5698, 7
        %v5701 = vshll.u32 %v5621, 16
        %v5703 = vor.u32 %v5700, %v5701
        %v5705 = vshrl.u32 %v5622, 16
        %v5707 = vrot.slane %v5705, 7
        %v5708 = vshll.u32 %v5622, 16
        %v5710 = vor.u32 %v5707, %v5708
        %v5712 = vshrl.u32 %v5623, 16
        %v5714 = vrot.slane %v5712, 7
        %v5715 = vshll.u32 %v5623, 16
        %v5717 = vor.u32 %v5714, %v5715
        %v5719 = vshrl.u32 %v5624, 16
        %v5721 = vrot.slane %v5719, 7
        %v5722 = vshll.u32 %v5624, 16
        %v5724 = vor.u32 %v5721, %v5722
        %v5726 = vshrl.u32 %v5625, 16
        %v5728 = vrot.slane %v5726, 7
        %v5729 = vshll.u32 %v5625, 16
        %v5731 = vor.u32 %v5728, %v5729
        %v5733 = vshrl.u32 %v5626, 16
        %v5735 = vrot.slane %v5733, 7
        %v5736 = vshll.u32 %v5626, 16
        %v5738 = vor.u32 %v5735, %v5736
        %v5771 = vsel %vm474, 0, %v5633
        %v5772 = vsel %vm474, 0, %v5640
        %v5773 = vsel %vm474, 0, %v5647
        %v5774 = vsel %vm474, 0, %v5654
        %v5775 = vsel %vm474, 0, %v5661
        %v5776 = vsel %vm474, 0, %v5668
        %v5777 = vsel %vm474, 0, %v5675
        %v5778 = vsel %vm474, 0, %v5682
        %v5779 = vsel %vm474, 0, %v5689
        %v5780 = vsel %vm474, 0, %v5696
        %v5781 = vsel %vm474, 0, %v5703
        %v5782 = vsel %vm474, 0, %v5710
        %v5783 = vsel %vm474, 0, %v5717
        %v5784 = vsel %vm474, 0, %v5724
        %v5785 = vsel %vm474, 0, %v5731
        %v5786 = vsel %vm474, 0, %v5738
        %v5787 = vsel %vm474, %v5630, 0
        %v5788 = vsel %vm474, %v5637, 0
        %v5789 = vsel %vm474, %v5644, 0
        %v5790 = vsel %vm474, %v5651, 0
        %v5791 = vsel %vm474, %v5658, 0
        %v5792 = vsel %vm474, %v5665, 0
        %v5793 = vsel %vm474, %v5672, 0
        %v5794 = vsel %vm474, %v5679, 0
        %v5795 = vsel %vm474, %v5686, 0
        %v5796 = vsel %vm474, %v5693, 0
        %v5797 = vsel %vm474, %v5700, 0
        %v5798 = vsel %vm474, %v5707, 0
        %v5799 = vsel %vm474, %v5714, 0
        %v5800 = vsel %vm474, %v5721, 0
        %v5801 = vsel %vm474, %v5728, 0
        %v5802 = vsel %vm474, %v5735, 0
        %v5835 = vunpack.c.l.b16 %v5771
        %v5836 = vunpack.c.h.b16 %v5771
        %v5837 = vunpack.c.l.b16 %v5787
        %v5838 = vunpack.c.l.b16 %v5772
        %v5839 = vunpack.c.h.b16 %v5772
        %v5840 = vunpack.c.l.b16 %v5788
        %v5841 = vunpack.c.l.b16 %v5773
        %v5842 = vunpack.c.h.b16 %v5773
        %v5843 = vunpack.c.l.b16 %v5789
        %v5844 = vunpack.c.l.b16 %v5774
        %v5845 = vunpack.c.h.b16 %v5774
        %v5846 = vunpack.c.l.b16 %v5790
        %v5847 = vunpack.c.l.b16 %v5775
        %v5848 = vunpack.c.h.b16 %v5775
        %v5849 = vunpack.c.l.b16 %v5791
        %v5850 = vunpack.c.l.b16 %v5776
        %v5851 = vunpack.c.h.b16 %v5776
        %v5852 = vunpack.c.l.b16 %v5792
        %v5853 = vunpack.c.l.b16 %v5777
        %v5854 = vunpack.c.h.b16 %v5777
        %v5855 = vunpack.c.l.b16 %v5793
        %v5856 = vunpack.c.l.b16 %v5778
        %v5857 = vunpack.c.h.b16 %v5778
        %v5858 = vunpack.c.l.b16 %v5794
        %v5859 = vunpack.c.l.b16 %v5779
        %v5860 = vunpack.c.h.b16 %v5779
        %v5861 = vunpack.c.l.b16 %v5795
        %v5862 = vunpack.c.l.b16 %v5780
        %v5863 = vunpack.c.h.b16 %v5780
        %v5864 = vunpack.c.l.b16 %v5796
        %v5865 = vunpack.c.l.b16 %v5781
        %v5866 = vunpack.c.h.b16 %v5781
        %v5867 = vunpack.c.l.b16 %v5797
        %v5868 = vunpack.c.l.b16 %v5782
        %v5869 = vunpack.c.h.b16 %v5782
        %v5870 = vunpack.c.l.b16 %v5798
        %v5871 = vunpack.c.l.b16 %v5783
        %v5872 = vunpack.c.h.b16 %v5783
        %v5873 = vunpack.c.l.b16 %v5799
        %v5874 = vunpack.c.l.b16 %v5784
        %v5875 = vunpack.c.h.b16 %v5784
        %v5876 = vunpack.c.l.b16 %v5800
        %v5877 = vunpack.c.l.b16 %v5785
        %v5878 = vunpack.c.h.b16 %v5785
        %v5879 = vunpack.c.l.b16 %v5801
        %v5880 = vunpack.c.l.b16 %v5786
        %v5881 = vunpack.c.h.b16 %v5786
        %v5882 = vunpack.c.l.b16 %v5802
        %v5883 = vpack.c.b16 %v5835, %v5835
        %v5884 = vpack.c.b16 %v5836, %v5836
        %v5885 = vpack.c.b16 %v5837, %v5837
        %v5886 = vpack.c.b16 %v5838, %v5838
        %v5887 = vpack.c.b16 %v5839, %v5839
        %v5888 = vpack.c.b16 %v5840, %v5840
        %v5889 = vpack.c.b16 %v5841, %v5841
        %v5890 = vpack.c.b16 %v5842, %v5842
        %v5891 = vpack.c.b16 %v5843, %v5843
        %v5892 = vpack.c.b16 %v5844, %v5844
        %v5893 = vpack.c.b16 %v5845, %v5845
        %v5894 = vpack.c.b16 %v5846, %v5846
        %v5895 = vpack.c.b16 %v5847, %v5847
        %v5896 = vpack.c.b16 %v5848, %v5848
        %v5897 = vpack.c.b16 %v5849, %v5849
        %v5898 = vpack.c.b16 %v5850, %v5850
        %v5899 = vpack.c.b16 %v5851, %v5851
        %v5900 = vpack.c.b16 %v5852, %v5852
        %v5901 = vpack.c.b16 %v5853, %v5853
        %v5902 = vpack.c.b16 %v5854, %v5854
        %v5903 = vpack.c.b16 %v5855, %v5855
        %v5904 = vpack.c.b16 %v5856, %v5856
        %v5905 = vpack.c.b16 %v5857, %v5857
        %v5906 = vpack.c.b16 %v5858, %v5858
        %v5907 = vpack.c.b16 %v5859, %v5859
        %v5908 = vpack.c.b16 %v5860, %v5860
        %v5909 = vpack.c.b16 %v5861, %v5861
        %v5910 = vpack.c.b16 %v5862, %v5862
        %v5911 = vpack.c.b16 %v5863, %v5863
        %v5912 = vpack.c.b16 %v5864, %v5864
        %v5913 = vpack.c.b16 %v5865, %v5865
        %v5914 = vpack.c.b16 %v5866, %v5866
        %v5915 = vpack.c.b16 %v5867, %v5867
        %v5916 = vpack.c.b16 %v5868, %v5868
        %v5917 = vpack.c.b16 %v5869, %v5869
        %v5918 = vpack.c.b16 %v5870, %v5870
        %v5919 = vpack.c.b16 %v5871, %v5871
        %v5920 = vpack.c.b16 %v5872, %v5872
        %v5921 = vpack.c.b16 %v5873, %v5873
        %v5922 = vpack.c.b16 %v5874, %v5874
        %v5923 = vpack.c.b16 %v5875, %v5875
        %v5924 = vpack.c.b16 %v5876, %v5876
        %v5925 = vpack.c.b16 %v5877, %v5877
        %v5926 = vpack.c.b16 %v5878, %v5878
        %v5927 = vpack.c.b16 %v5879, %v5879
        %v5928 = vpack.c.b16 %v5880, %v5880
        %v5929 = vpack.c.b16 %v5881, %v5881
        %v5930 = vpack.c.b16 %v5882, %v5882
        %5979 = vst [vmem:[%s683] sm:$0xf] %v5883
        %5980 = vst [vmem:[%s683 + $0x4] sm:$0xf] %v5884
        %5981 = vst [vmem:[%s683 + $0x8] sm:$0xf] %v5885
        %5982 = vst [vmem:[%s683 + $0xc] sm:$0xf] %v5886
        %5983 = vst [vmem:[%s683 + $0x10] sm:$0xf] %v5887
        %5984 = vst [vmem:[%s683 + $0x14] sm:$0xf] %v5888
        %5985 = vst [vmem:[%s683 + $0x18] sm:$0xf] %v5889
        %5986 = vst [vmem:[%s683 + $0x1c] sm:$0xf] %v5890
        %5987 = vst [vmem:[%s683 + $0x20] sm:$0xf] %v5891
        %5988 = vst [vmem:[%s683 + $0x24] sm:$0xf] %v5892
        %5989 = vst [vmem:[%s683 + $0x28] sm:$0xf] %v5893
        %5990 = vst [vmem:[%s683 + $0x2c] sm:$0xf] %v5894
        %5991 = vst [vmem:[%s683 + $0x30] sm:$0xf] %v5895
        %5992 = vst [vmem:[%s683 + $0x34] sm:$0xf] %v5896
        %5993 = vst [vmem:[%s683 + $0x38] sm:$0xf] %v5897
        %5994 = vst [vmem:[%s683 + $0x3c] sm:$0xf] %v5898
        %5995 = vst [vmem:[%s683 + $0x40] sm:$0xf] %v5899
        %5996 = vst [vmem:[%s683 + $0x44] sm:$0xf] %v5900
        %5997 = vst [vmem:[%s683 + $0x48] sm:$0xf] %v5901
        %5998 = vst [vmem:[%s683 + $0x4c] sm:$0xf] %v5902
        %5999 = vst [vmem:[%s683 + $0x50] sm:$0xf] %v5903
        %6000 = vst [vmem:[%s683 + $0x54] sm:$0xf] %v5904
        %6001 = vst [vmem:[%s683 + $0x58] sm:$0xf] %v5905
        %6002 = vst [vmem:[%s683 + $0x5c] sm:$0xf] %v5906
        %6003 = vst [vmem:[%s683 + $0x60] sm:$0xf] %v5907
        %6004 = vst [vmem:[%s683 + $0x64] sm:$0xf] %v5908
        %6005 = vst [vmem:[%s683 + $0x68] sm:$0xf] %v5909
        %6006 = vst [vmem:[%s683 + $0x6c] sm:$0xf] %v5910
        %6007 = vst [vmem:[%s683 + $0x70] sm:$0xf] %v5911
        %6008 = vst [vmem:[%s683 + $0x74] sm:$0xf] %v5912
        %6009 = vst [vmem:[%s683 + $0x78] sm:$0xf] %v5913
        %6010 = vst [vmem:[%s683 + $0x7c] sm:$0xf] %v5914
        %6011 = vst [vmem:[%s683 + $0x80] sm:$0xf] %v5915
        %6012 = vst [vmem:[%s683 + $0x84] sm:$0xf] %v5916
        %6013 = vst [vmem:[%s683 + $0x88] sm:$0xf] %v5917
        %6014 = vst [vmem:[%s683 + $0x8c] sm:$0xf] %v5918
        %6015 = vst [vmem:[%s683 + $0x90] sm:$0xf] %v5919
        %6016 = vst [vmem:[%s683 + $0x94] sm:$0xf] %v5920
        %6017 = vst [vmem:[%s683 + $0x98] sm:$0xf] %v5921
        %6018 = vst [vmem:[%s683 + $0x9c] sm:$0xf] %v5922
        %6019 = vst [vmem:[%s683 + $0xa0] sm:$0xf] %v5923
        %6020 = vst [vmem:[%s683 + $0xa4] sm:$0xf] %v5924
        %6021 = vst [vmem:[%s683 + $0xa8] sm:$0xf] %v5925
        %6022 = vst [vmem:[%s683 + $0xac] sm:$0xf] %v5926
        %6023 = vst [vmem:[%s683 + $0xb0] sm:$0xf] %v5927
        %6024 = vst [vmem:[%s683 + $0xb4] sm:$0xf] %v5928
        %6025 = vst [vmem:[%s683 + $0xb8] sm:$0xf] %v5929
        %6026 = vst [vmem:[%s683 + $0xbc] sm:$0xf] %v5930
        %v6027 = vld [vmem:[#allocation2] sm:$0xf]
        %v6028 = vld [vmem:[#allocation2 + $0x4] sm:$0xf]
        %v6029 = vld [vmem:[#allocation2 + $0xc] sm:$0xf]
        %v6030 = vld [vmem:[#allocation2 + $0x10] sm:$0xf]
        %v6031 = vld [vmem:[#allocation2 + $0x18] sm:$0xf]
        %v6032 = vld [vmem:[#allocation2 + $0x1c] sm:$0xf]
        %v6033 = vld [vmem:[#allocation2 + $0x24] sm:$0xf]
        %v6034 = vld [vmem:[#allocation2 + $0x28] sm:$0xf]
        %v6035 = vld [vmem:[#allocation2 + $0x30] sm:$0xf]
        %v6036 = vld [vmem:[#allocation2 + $0x34] sm:$0xf]
        %v6037 = vld [vmem:[#allocation2 + $0x3c] sm:$0xf]
        %v6038 = vld [vmem:[#allocation2 + $0x40] sm:$0xf]
        %v6039 = vld [vmem:[#allocation2 + $0x48] sm:$0xf]
        %v6040 = vld [vmem:[#allocation2 + $0x4c] sm:$0xf]
        %v6041 = vld [vmem:[#allocation2 + $0x54] sm:$0xf]
        %v6042 = vld [vmem:[#allocation2 + $0x58] sm:$0xf]
        %v6043 = vld [vmem:[#allocation2 + $0x60] sm:$0xf]
        %v6044 = vld [vmem:[#allocation2 + $0x64] sm:$0xf]
        %v6045 = vld [vmem:[#allocation2 + $0x6c] sm:$0xf]
        %v6046 = vld [vmem:[#allocation2 + $0x70] sm:$0xf]
        %v6047 = vld [vmem:[#allocation2 + $0x78] sm:$0xf]
        %v6048 = vld [vmem:[#allocation2 + $0x7c] sm:$0xf]
        %v6049 = vld [vmem:[#allocation2 + $0x84] sm:$0xf]
        %v6050 = vld [vmem:[#allocation2 + $0x88] sm:$0xf]
        %v6051 = vld [vmem:[#allocation2 + $0x90] sm:$0xf]
        %v6052 = vld [vmem:[#allocation2 + $0x94] sm:$0xf]
        %v6053 = vld [vmem:[#allocation2 + $0x9c] sm:$0xf]
        %v6054 = vld [vmem:[#allocation2 + $0xa0] sm:$0xf]
        %v6055 = vld [vmem:[#allocation2 + $0xa8] sm:$0xf]
        %v6056 = vld [vmem:[#allocation2 + $0xac] sm:$0xf]
        %v6057 = vld [vmem:[#allocation2 + $0xb4] sm:$0xf]
        %v6058 = vld [vmem:[#allocation2 + $0xb8] sm:$0xf]
        %v6059 = vld [vmem:[#allocation8] sm:$0xf]
        %v6060 = vld [vmem:[#allocation8 + $0x4] sm:$0xf]
        %v6061 = vld [vmem:[#allocation8 + $0x8] sm:$0xf]
        %v6062 = vld [vmem:[#allocation8 + $0xc] sm:$0xf]
        %v6063 = vld [vmem:[#allocation8 + $0x10] sm:$0xf]
        %v6064 = vld [vmem:[#allocation8 + $0x14] sm:$0xf]
        %v6065 = vld [vmem:[#allocation8 + $0x18] sm:$0xf]
        %v6066 = vld [vmem:[#allocation8 + $0x1c] sm:$0xf]
        %v6067 = vld [vmem:[#allocation8 + $0x20] sm:$0xf]
        %v6068 = vld [vmem:[#allocation8 + $0x24] sm:$0xf]
        %v6069 = vld [vmem:[#allocation8 + $0x28] sm:$0xf]
        %v6070 = vld [vmem:[#allocation8 + $0x2c] sm:$0xf]
        %v6071 = vld [vmem:[#allocation8 + $0x30] sm:$0xf]
        %v6072 = vld [vmem:[#allocation8 + $0x34] sm:$0xf]
        %v6073 = vld [vmem:[#allocation8 + $0x38] sm:$0xf]
        %v6074 = vld [vmem:[#allocation8 + $0x3c] sm:$0xf]
        %v6075 = vld [vmem:[#allocation2 + $0x8] sm:$0x1]
        %v6076 = vld [vmem:[#allocation2 + $0x14] sm:$0x1]
        %v6077 = vld [vmem:[#allocation2 + $0x20] sm:$0x1]
        %v6078 = vld [vmem:[#allocation2 + $0x2c] sm:$0x1]
        %v6079 = vld [vmem:[#allocation2 + $0x38] sm:$0x1]
        %v6080 = vld [vmem:[#allocation2 + $0x44] sm:$0x1]
        %v6081 = vld [vmem:[#allocation2 + $0x50] sm:$0x1]
        %v6082 = vld [vmem:[#allocation2 + $0x5c] sm:$0x1]
        %v6083 = vld [vmem:[#allocation2 + $0x68] sm:$0x1]
        %v6084 = vld [vmem:[#allocation2 + $0x74] sm:$0x1]
        %v6085 = vld [vmem:[#allocation2 + $0x80] sm:$0x1]
        %v6086 = vld [vmem:[#allocation2 + $0x8c] sm:$0x1]
        %v6087 = vld [vmem:[#allocation2 + $0x98] sm:$0x1]
        %v6088 = vld [vmem:[#allocation2 + $0xa4] sm:$0x1]
        %v6089 = vld [vmem:[#allocation2 + $0xb0] sm:$0x1]
        %v6090 = vld [vmem:[#allocation2 + $0xbc] sm:$0x1]
        %v6092 = vshrl.u32 %v6027, 16
        %v6094 = vrot.slane %v6092, 4
        %v6095 = vshll.u32 %v6027, 16
        %v6097 = vrot.slane %v6095, 5
        %v6098 = vor.u32 %v6094, %v6097
        %v6099 = vrot.slane %v6098, 4
        %v6101 = vshll.u32 %v6028, 16
        %v6103 = vrot.slane %v6101, 5
        %v6104 = vsel %vm798, %v6099, %v6103
        %v6105 = vshrl.u32 %v6028, 16
        %v6107 = vrot.slane %v6105, 4
        %v6108 = vor.u32 %v6107, %v6103
        %v6109 = vrot.slane %v6108, 4
        %v6111 = vshll.u32 %v6075, 16
        %v6113 = vrot.slane %v6111, 5
        %v6114 = vsel %vm798, %v6109, %v6113
        %v6116 = vshrl.u32 %v6029, 16
        %v6118 = vrot.slane %v6116, 4
        %v6119 = vshll.u32 %v6029, 16
        %v6121 = vrot.slane %v6119, 5
        %v6122 = vor.u32 %v6118, %v6121
        %v6123 = vrot.slane %v6122, 4
        %v6125 = vshll.u32 %v6030, 16
        %v6127 = vrot.slane %v6125, 5
        %v6128 = vsel %vm798, %v6123, %v6127
        %v6129 = vshrl.u32 %v6030, 16
        %v6131 = vrot.slane %v6129, 4
        %v6132 = vor.u32 %v6131, %v6127
        %v6133 = vrot.slane %v6132, 4
        %v6135 = vshll.u32 %v6076, 16
        %v6137 = vrot.slane %v6135, 5
        %v6138 = vsel %vm798, %v6133, %v6137
        %v6140 = vshrl.u32 %v6031, 16
        %v6142 = vrot.slane %v6140, 4
        %v6143 = vshll.u32 %v6031, 16
        %v6145 = vrot.slane %v6143, 5
        %v6146 = vor.u32 %v6142, %v6145
        %v6147 = vrot.slane %v6146, 4
        %v6149 = vshll.u32 %v6032, 16
        %v6151 = vrot.slane %v6149, 5
        %v6152 = vsel %vm798, %v6147, %v6151
        %v6153 = vshrl.u32 %v6032, 16
        %v6155 = vrot.slane %v6153, 4
        %v6156 = vor.u32 %v6155, %v6151
        %v6157 = vrot.slane %v6156, 4
        %v6159 = vshll.u32 %v6077, 16
        %v6161 = vrot.slane %v6159, 5
        %v6162 = vsel %vm798, %v6157, %v6161
        %v6164 = vshrl.u32 %v6033, 16
        %v6166 = vrot.slane %v6164, 4
        %v6167 = vshll.u32 %v6033, 16
        %v6169 = vrot.slane %v6167, 5
        %v6170 = vor.u32 %v6166, %v6169
        %v6171 = vrot.slane %v6170, 4
        %v6173 = vshll.u32 %v6034, 16
        %v6175 = vrot.slane %v6173, 5
        %v6176 = vsel %vm798, %v6171, %v6175
        %v6177 = vshrl.u32 %v6034, 16
        %v6179 = vrot.slane %v6177, 4
        %v6180 = vor.u32 %v6179, %v6175
        %v6181 = vrot.slane %v6180, 4
        %v6183 = vshll.u32 %v6078, 16
        %v6185 = vrot.slane %v6183, 5
        %v6186 = vsel %vm798, %v6181, %v6185
        %v6188 = vshrl.u32 %v6035, 16
        %v6190 = vrot.slane %v6188, 4
        %v6191 = vshll.u32 %v6035, 16
        %v6193 = vrot.slane %v6191, 5
        %v6194 = vor.u32 %v6190, %v6193
        %v6195 = vrot.slane %v6194, 4
        %v6197 = vshll.u32 %v6036, 16
        %v6199 = vrot.slane %v6197, 5
        %v6200 = vsel %vm798, %v6195, %v6199
        %v6201 = vshrl.u32 %v6036, 16
        %v6203 = vrot.slane %v6201, 4
        %v6204 = vor.u32 %v6203, %v6199
        %v6205 = vrot.slane %v6204, 4
        %v6207 = vshll.u32 %v6079, 16
        %v6209 = vrot.slane %v6207, 5
        %v6210 = vsel %vm798, %v6205, %v6209
        %v6212 = vshrl.u32 %v6037, 16
        %v6214 = vrot.slane %v6212, 4
        %v6215 = vshll.u32 %v6037, 16
        %v6217 = vrot.slane %v6215, 5
        %v6218 = vor.u32 %v6214, %v6217
        %v6219 = vrot.slane %v6218, 4
        %v6221 = vshll.u32 %v6038, 16
        %v6223 = vrot.slane %v6221, 5
        %v6224 = vsel %vm798, %v6219, %v6223
        %v6225 = vshrl.u32 %v6038, 16
        %v6227 = vrot.slane %v6225, 4
        %v6228 = vor.u32 %v6227, %v6223
        %v6229 = vrot.slane %v6228, 4
        %v6231 = vshll.u32 %v6080, 16
        %v6233 = vrot.slane %v6231, 5
        %v6234 = vsel %vm798, %v6229, %v6233
        %v6236 = vshrl.u32 %v6039, 16
        %v6238 = vrot.slane %v6236, 4
        %v6239 = vshll.u32 %v6039, 16
        %v6241 = vrot.slane %v6239, 5
        %v6242 = vor.u32 %v6238, %v6241
        %v6243 = vrot.slane %v6242, 4
        %v6245 = vshll.u32 %v6040, 16
        %v6247 = vrot.slane %v6245, 5
        %v6248 = vsel %vm798, %v6243, %v6247
        %v6249 = vshrl.u32 %v6040, 16
        %v6251 = vrot.slane %v6249, 4
        %v6252 = vor.u32 %v6251, %v6247
        %v6253 = vrot.slane %v6252, 4
        %v6255 = vshll.u32 %v6081, 16
        %v6257 = vrot.slane %v6255, 5
        %v6258 = vsel %vm798, %v6253, %v6257
        %v6260 = vshrl.u32 %v6041, 16
        %v6262 = vrot.slane %v6260, 4
        %v6263 = vshll.u32 %v6041, 16
        %v6265 = vrot.slane %v6263, 5
        %v6266 = vor.u32 %v6262, %v6265
        %v6267 = vrot.slane %v6266, 4
        %v6269 = vshll.u32 %v6042, 16
        %v6271 = vrot.slane %v6269, 5
        %v6272 = vsel %vm798, %v6267, %v6271
        %v6273 = vshrl.u32 %v6042, 16
        %v6275 = vrot.slane %v6273, 4
        %v6276 = vor.u32 %v6275, %v6271
        %v6277 = vrot.slane %v6276, 4
        %v6279 = vshll.u32 %v6082, 16
        %v6281 = vrot.slane %v6279, 5
        %v6282 = vsel %vm798, %v6277, %v6281
        %v6284 = vshrl.u32 %v6043, 16
        %v6286 = vrot.slane %v6284, 4
        %v6287 = vshll.u32 %v6043, 16
        %v6289 = vrot.slane %v6287, 5
        %v6290 = vor.u32 %v6286, %v6289
        %v6291 = vrot.slane %v6290, 4
        %v6293 = vshll.u32 %v6044, 16
        %v6295 = vrot.slane %v6293, 5
        %v6296 = vsel %vm798, %v6291, %v6295
        %v6297 = vshrl.u32 %v6044, 16
        %v6299 = vrot.slane %v6297, 4
        %v6300 = vor.u32 %v6299, %v6295
        %v6301 = vrot.slane %v6300, 4
        %v6303 = vshll.u32 %v6083, 16
        %v6305 = vrot.slane %v6303, 5
        %v6306 = vsel %vm798, %v6301, %v6305
        %v6308 = vshrl.u32 %v6045, 16
        %v6310 = vrot.slane %v6308, 4
        %v6311 = vshll.u32 %v6045, 16
        %v6313 = vrot.slane %v6311, 5
        %v6314 = vor.u32 %v6310, %v6313
        %v6315 = vrot.slane %v6314, 4
        %v6317 = vshll.u32 %v6046, 16
        %v6319 = vrot.slane %v6317, 5
        %v6320 = vsel %vm798, %v6315, %v6319
        %v6321 = vshrl.u32 %v6046, 16
        %v6323 = vrot.slane %v6321, 4
        %v6324 = vor.u32 %v6323, %v6319
        %v6325 = vrot.slane %v6324, 4
        %v6327 = vshll.u32 %v6084, 16
        %v6329 = vrot.slane %v6327, 5
        %v6330 = vsel %vm798, %v6325, %v6329
        %v6332 = vshrl.u32 %v6047, 16
        %v6334 = vrot.slane %v6332, 4
        %v6335 = vshll.u32 %v6047, 16
        %v6337 = vrot.slane %v6335, 5
        %v6338 = vor.u32 %v6334, %v6337
        %v6339 = vrot.slane %v6338, 4
        %v6341 = vshll.u32 %v6048, 16
        %v6343 = vrot.slane %v6341, 5
        %v6344 = vsel %vm798, %v6339, %v6343
        %v6345 = vshrl.u32 %v6048, 16
        %v6347 = vrot.slane %v6345, 4
        %v6348 = vor.u32 %v6347, %v6343
        %v6349 = vrot.slane %v6348, 4
        %v6351 = vshll.u32 %v6085, 16
        %v6353 = vrot.slane %v6351, 5
        %v6354 = vsel %vm798, %v6349, %v6353
        %v6356 = vshrl.u32 %v6049, 16
        %v6358 = vrot.slane %v6356, 4
        %v6359 = vshll.u32 %v6049, 16
        %v6361 = vrot.slane %v6359, 5
        %v6362 = vor.u32 %v6358, %v6361
        %v6363 = vrot.slane %v6362, 4
        %v6365 = vshll.u32 %v6050, 16
        %v6367 = vrot.slane %v6365, 5
        %v6368 = vsel %vm798, %v6363, %v6367
        %v6369 = vshrl.u32 %v6050, 16
        %v6371 = vrot.slane %v6369, 4
        %v6372 = vor.u32 %v6371, %v6367
        %v6373 = vrot.slane %v6372, 4
        %v6375 = vshll.u32 %v6086, 16
        %v6377 = vrot.slane %v6375, 5
        %v6378 = vsel %vm798, %v6373, %v6377
        %v6380 = vshrl.u32 %v6051, 16
        %v6382 = vrot.slane %v6380, 4
        %v6383 = vshll.u32 %v6051, 16
        %v6385 = vrot.slane %v6383, 5
        %v6386 = vor.u32 %v6382, %v6385
        %v6387 = vrot.slane %v6386, 4
        %v6389 = vshll.u32 %v6052, 16
        %v6391 = vrot.slane %v6389, 5
        %v6392 = vsel %vm798, %v6387, %v6391
        %v6393 = vshrl.u32 %v6052, 16
        %v6395 = vrot.slane %v6393, 4
        %v6396 = vor.u32 %v6395, %v6391
        %v6397 = vrot.slane %v6396, 4
        %v6399 = vshll.u32 %v6087, 16
        %v6401 = vrot.slane %v6399, 5
        %v6402 = vsel %vm798, %v6397, %v6401
        %v6404 = vshrl.u32 %v6053, 16
        %v6406 = vrot.slane %v6404, 4
        %v6407 = vshll.u32 %v6053, 16
        %v6409 = vrot.slane %v6407, 5
        %v6410 = vor.u32 %v6406, %v6409
        %v6411 = vrot.slane %v6410, 4
        %v6413 = vshll.u32 %v6054, 16
        %v6415 = vrot.slane %v6413, 5
        %v6416 = vsel %vm798, %v6411, %v6415
        %v6417 = vshrl.u32 %v6054, 16
        %v6419 = vrot.slane %v6417, 4
        %v6420 = vor.u32 %v6419, %v6415
        %v6421 = vrot.slane %v6420, 4
        %v6423 = vshll.u32 %v6088, 16
        %v6425 = vrot.slane %v6423, 5
        %v6426 = vsel %vm798, %v6421, %v6425
        %v6428 = vshrl.u32 %v6055, 16
        %v6430 = vrot.slane %v6428, 4
        %v6431 = vshll.u32 %v6055, 16
        %v6433 = vrot.slane %v6431, 5
        %v6434 = vor.u32 %v6430, %v6433
        %v6435 = vrot.slane %v6434, 4
        %v6437 = vshll.u32 %v6056, 16
        %v6439 = vrot.slane %v6437, 5
        %v6440 = vsel %vm798, %v6435, %v6439
        %v6441 = vshrl.u32 %v6056, 16
        %v6443 = vrot.slane %v6441, 4
        %v6444 = vor.u32 %v6443, %v6439
        %v6445 = vrot.slane %v6444, 4
        %v6447 = vshll.u32 %v6089, 16
        %v6449 = vrot.slane %v6447, 5
        %v6450 = vsel %vm798, %v6445, %v6449
        %v6452 = vshrl.u32 %v6057, 16
        %v6454 = vrot.slane %v6452, 4
        %v6455 = vshll.u32 %v6057, 16
        %v6457 = vrot.slane %v6455, 5
        %v6458 = vor.u32 %v6454, %v6457
        %v6459 = vrot.slane %v6458, 4
        %v6461 = vshll.u32 %v6058, 16
        %v6463 = vrot.slane %v6461, 5
        %v6464 = vsel %vm798, %v6459, %v6463
        %v6465 = vshrl.u32 %v6058, 16
        %v6467 = vrot.slane %v6465, 4
        %v6468 = vor.u32 %v6467, %v6463
        %v6469 = vrot.slane %v6468, 4
        %v6471 = vshll.u32 %v6090, 16
        %v6473 = vrot.slane %v6471, 5
        %v6474 = vsel %vm798, %v6469, %v6473
        %s6475 = scalar_lea.vmem [#allocation8], 64
        %v6476 = vld [vmem:[%s6475] sm:$0xf]
        %v6477 = vld [vmem:[%s6475 + $0x4] sm:$0xf]
        %v6478 = vld [vmem:[%s6475 + $0x8] sm:$0xf]
        %v6479 = vld [vmem:[%s6475 + $0xc] sm:$0xf]
        %v6480 = vld [vmem:[%s6475 + $0x10] sm:$0xf]
        %v6481 = vld [vmem:[%s6475 + $0x14] sm:$0xf]
        %v6482 = vld [vmem:[%s6475 + $0x18] sm:$0xf]
        %v6483 = vld [vmem:[%s6475 + $0x1c] sm:$0xf]
        %v6484 = vld [vmem:[%s6475 + $0x20] sm:$0xf]
        %v6485 = vld [vmem:[%s6475 + $0x24] sm:$0xf]
        %v6486 = vld [vmem:[%s6475 + $0x28] sm:$0xf]
        %v6487 = vld [vmem:[%s6475 + $0x2c] sm:$0xf]
        %v6488 = vld [vmem:[%s6475 + $0x30] sm:$0xf]
        %v6489 = vld [vmem:[%s6475 + $0x34] sm:$0xf]
        %v6490 = vld [vmem:[%s6475 + $0x38] sm:$0xf]
        %v6491 = vld [vmem:[%s6475 + $0x3c] sm:$0xf]
        %v6492 = vunpack.c.l.b16 %v6104
        %v6493 = vunpack.c.l.b16 %v6114
        %v6494 = vunpack.c.l.b16 %v6128
        %v6495 = vunpack.c.l.b16 %v6138
        %v6496 = vunpack.c.l.b16 %v6152
        %v6497 = vunpack.c.l.b16 %v6162
        %v6498 = vunpack.c.l.b16 %v6176
        %v6499 = vunpack.c.l.b16 %v6186
        %v6500 = vunpack.c.l.b16 %v6200
        %v6501 = vunpack.c.l.b16 %v6210
        %v6502 = vunpack.c.l.b16 %v6224
        %v6503 = vunpack.c.l.b16 %v6234
        %v6504 = vunpack.c.l.b16 %v6248
        %v6505 = vunpack.c.l.b16 %v6258
        %v6506 = vunpack.c.l.b16 %v6272
        %v6507 = vunpack.c.l.b16 %v6282
        %v6508 = vunpack.c.l.b16 %v6296
        %v6509 = vunpack.c.l.b16 %v6306
        %v6510 = vunpack.c.l.b16 %v6320
        %v6511 = vunpack.c.l.b16 %v6330
        %v6512 = vunpack.c.l.b16 %v6344
        %v6513 = vunpack.c.l.b16 %v6354
        %v6514 = vunpack.c.l.b16 %v6368
        %v6515 = vunpack.c.l.b16 %v6378
        %v6516 = vunpack.c.l.b16 %v6392
        %v6517 = vunpack.c.l.b16 %v6402
        %v6518 = vunpack.c.l.b16 %v6416
        %v6519 = vunpack.c.l.b16 %v6426
        %v6520 = vunpack.c.l.b16 %v6440
        %v6521 = vunpack.c.l.b16 %v6450
        %v6522 = vunpack.c.l.b16 %v6464
        %v6523 = vunpack.c.l.b16 %v6474
        %v6524 = vpack.c.b16 %v6493, %v6492
        %v6525 = vpack.c.b16 %v6495, %v6494
        %v6526 = vpack.c.b16 %v6497, %v6496
        %v6527 = vpack.c.b16 %v6499, %v6498
        %v6528 = vpack.c.b16 %v6501, %v6500
        %v6529 = vpack.c.b16 %v6503, %v6502
        %v6530 = vpack.c.b16 %v6505, %v6504
        %v6531 = vpack.c.b16 %v6507, %v6506
        %v6532 = vpack.c.b16 %v6509, %v6508
        %v6533 = vpack.c.b16 %v6511, %v6510
        %v6534 = vpack.c.b16 %v6513, %v6512
        %v6535 = vpack.c.b16 %v6515, %v6514
        %v6536 = vpack.c.b16 %v6517, %v6516
        %v6537 = vpack.c.b16 %v6519, %v6518
        %v6538 = vpack.c.b16 %v6521, %v6520
        %v6539 = vpack.c.b16 %v6523, %v6522
        %v6572 = vunpack.c.l.b16 %v6476
        %v6573 = vunpack.c.l.b16 %v6477
        %v6574 = vunpack.c.l.b16 %v6478
        %v6575 = vunpack.c.l.b16 %v6479
        %v6576 = vunpack.c.l.b16 %v6480
        %v6577 = vunpack.c.l.b16 %v6481
        %v6578 = vunpack.c.l.b16 %v6482
        %v6579 = vunpack.c.l.b16 %v6483
        %v6580 = vunpack.c.l.b16 %v6484
        %v6581 = vunpack.c.l.b16 %v6485
        %v6582 = vunpack.c.l.b16 %v6486
        %v6583 = vunpack.c.l.b16 %v6487
        %v6584 = vunpack.c.l.b16 %v6488
        %v6585 = vunpack.c.l.b16 %v6489
        %v6586 = vunpack.c.l.b16 %v6490
        %v6587 = vunpack.c.l.b16 %v6491
        %v6588 = vpack.c.b16 %v6573, %v6572
        %v6589 = vpack.c.b16 %v6575, %v6574
        %v6590 = vpack.c.b16 %v6577, %v6576
        %v6591 = vpack.c.b16 %v6579, %v6578
        %v6592 = vpack.c.b16 %v6581, %v6580
        %v6593 = vpack.c.b16 %v6583, %v6582
        %v6594 = vpack.c.b16 %v6585, %v6584
        %v6595 = vpack.c.b16 %v6587, %v6586
        %6604 = vmatprep.subr.bf16.mxu0 0
        %6605 = vmatpush1.bf16.msra.mxu0 %v6588
        %6606 = vmatprep.subr.bf16.mxu0 0
        %6607 = vmatpush1.bf16.msra.mxu0 %v6589
        %6608 = vmatprep.subr.bf16.mxu0 0
        %6609 = vmatpush1.bf16.msra.mxu0 %v6590
        %6610 = vmatprep.subr.bf16.mxu0 0
        %6611 = vmatpush1.bf16.msra.mxu0 %v6591
        %6612 = vmatprep.subr.bf16.mxu0 0
        %6613 = vmatpush1.bf16.msra.mxu0 %v6592
        %6614 = vmatprep.subr.bf16.mxu0 0
        %6615 = vmatpush1.bf16.msra.mxu0 %v6593
        %6616 = vmatprep.subr.bf16.mxu0 0
        %6617 = vmatpush1.bf16.msra.mxu0 %v6594
        %6618 = vmatprep.subr.bf16.mxu0 0
        %6619 = vmatpush1.bf16.msra.mxu0 %v6595
        %6620 = vmatprep.subr.bf16.mxu0 0
        %6621 = vmatpush1.bf16.msra.mxu0 0
        %6622 = vmatprep.subr.bf16.mxu0 0
        %6623 = vmatpush1.bf16.msra.mxu0 0
        %6624 = vmatprep.subr.bf16.mxu0 0
        %6625 = vmatpush1.bf16.msra.mxu0 0
        %6626 = vmatprep.subr.bf16.mxu0 0
        %6627 = vmatpush1.bf16.msra.mxu0 0
        %6628 = vmatprep.subr.bf16.mxu0 0
        %6629 = vmatpush1.bf16.msra.mxu0 0
        %6630 = vmatprep.subr.bf16.mxu0 0
        %6631 = vmatpush1.bf16.msra.mxu0 0
        %6632 = vmatprep.subr.bf16.mxu0 0
        %6633 = vmatpush1.bf16.msra.mxu0 0
        %6634 = vmatprep.subr.bf16.mxu0 0
        %6635 = vmatpush1.bf16.msra.mxu0 0
        %6636 = vmatprep.mubr.bf16.mxu0 0
        %6637 = vmatmul.mubr.bf16.gmra.mrb[0].mxu0 %v6524
        %v6638 = vpop.f32.mrb[0].mxu0
        %v6639 = vadd.f32 0.0, %v6638
        %v6640 = vpop.f32.mrb[0].mxu0
        %v6641 = vpop.f32.mrb[0].mxu0
        %v6642 = vadd.f32 0.0, %v6641
        %v6643 = vpop.f32.mrb[0].mxu0
        %6644 = vmatprep.mubr.bf16.mxu0 0
        %6645 = vmatmul.mubr.bf16.gmra.mrb[0].mxu0 %v6525
        %v6646 = vpop.f32.mrb[0].mxu0
        %v6647 = vadd.f32 0.0, %v6646
        %v6648 = vpop.f32.mrb[0].mxu0
        %v6649 = vpop.f32.mrb[0].mxu0
        %v6650 = vadd.f32 0.0, %v6649
        %v6651 = vpop.f32.mrb[0].mxu0
        %6652 = vmatprep.mubr.bf16.mxu0 0
        %6653 = vmatmul.mubr.bf16.gmra.mrb[0].mxu0 %v6526
        %v6654 = vpop.f32.mrb[0].mxu0
        %v6655 = vadd.f32 0.0, %v6654
        %v6656 = vpop.f32.mrb[0].mxu0
        %v6657 = vpop.f32.mrb[0].mxu0
        %v6658 = vadd.f32 0.0, %v6657
        %v6659 = vpop.f32.mrb[0].mxu0
        %6660 = vmatprep.mubr.bf16.mxu0 0
        %6661 = vmatmul.mubr.bf16.gmra.mrb[0].mxu0 %v6527
        %v6662 = vpop.f32.mrb[0].mxu0
        %v6663 = vadd.f32 0.0, %v6662
        %v6664 = vpop.f32.mrb[0].mxu0
        %v6665 = vpop.f32.mrb[0].mxu0
        %v6666 = vadd.f32 0.0, %v6665
        %v6667 = vpop.f32.mrb[0].mxu0
        %6668 = vmatprep.mubr.bf16.mxu0 0
        %6669 = vmatmul.mubr.bf16.gmra.mrb[0].mxu0 %v6528
        %v6670 = vpop.f32.mrb[0].mxu0
        %v6671 = vadd.f32 0.0, %v6670
        %v6672 = vpop.f32.mrb[0].mxu0
        %v6673 = vpop.f32.mrb[0].mxu0
        %v6674 = vadd.f32 0.0, %v6673
        %v6675 = vpop.f32.mrb[0].mxu0
        %6676 = vmatprep.mubr.bf16.mxu0 0
        %6677 = vmatmul.mubr.bf16.gmra.mrb[0].mxu0 %v6529
        %v6678 = vpop.f32.mrb[0].mxu0
        %v6679 = vadd.f32 0.0, %v6678
        %v6680 = vpop.f32.mrb[0].mxu0
        %v6681 = vpop.f32.mrb[0].mxu0
        %v6682 = vadd.f32 0.0, %v6681
        %v6683 = vpop.f32.mrb[0].mxu0
        %6684 = vmatprep.mubr.bf16.mxu0 0
        %6685 = vmatmul.mubr.bf16.gmra.mrb[0].mxu0 %v6530
        %v6686 = vpop.f32.mrb[0].mxu0
        %v6687 = vadd.f32 0.0, %v6686
        %v6688 = vpop.f32.mrb[0].mxu0
        %v6689 = vpop.f32.mrb[0].mxu0
        %v6690 = vadd.f32 0.0, %v6689
        %v6691 = vpop.f32.mrb[0].mxu0
        %6692 = vmatprep.mubr.bf16.mxu0 0
        %6693 = vmatmul.mubr.bf16.gmra.mrb[0].mxu0 %v6531
        %v6694 = vpop.f32.mrb[0].mxu0
        %v6695 = vadd.f32 0.0, %v6694
        %v6696 = vpop.f32.mrb[0].mxu0
        %v6697 = vpop.f32.mrb[0].mxu0
        %v6698 = vadd.f32 0.0, %v6697
        %v6699 = vpop.f32.mrb[0].mxu0
        %6700 = vmatprep.mubr.bf16.mxu0 0
        %6701 = vmatmul.mubr.bf16.gmra.mrb[0].mxu0 %v6532
        %v6702 = vpop.f32.mrb[0].mxu0
        %v6703 = vadd.f32 0.0, %v6702
        %v6704 = vpop.f32.mrb[0].mxu0
        %v6705 = vpop.f32.mrb[0].mxu0
        %v6706 = vadd.f32 0.0, %v6705
        %v6707 = vpop.f32.mrb[0].mxu0
        %6708 = vmatprep.mubr.bf16.mxu0 0
        %6709 = vmatmul.mubr.bf16.gmra.mrb[0].mxu0 %v6533
        %v6710 = vpop.f32.mrb[0].mxu0
        %v6711 = vadd.f32 0.0, %v6710
        %v6712 = vpop.f32.mrb[0].mxu0
        %v6713 = vpop.f32.mrb[0].mxu0
        %v6714 = vadd.f32 0.0, %v6713
        %v6715 = vpop.f32.mrb[0].mxu0
        %6716 = vmatprep.mubr.bf16.mxu0 0
        %6717 = vmatmul.mubr.bf16.gmra.mrb[0].mxu0 %v6534
        %v6718 = vpop.f32.mrb[0].mxu0
        %v6719 = vadd.f32 0.0, %v6718
        %v6720 = vpop.f32.mrb[0].mxu0
        %v6721 = vpop.f32.mrb[0].mxu0
        %v6722 = vadd.f32 0.0, %v6721
        %v6723 = vpop.f32.mrb[0].mxu0
        %6724 = vmatprep.mubr.bf16.mxu0 0
        %6725 = vmatmul.mubr.bf16.gmra.mrb[0].mxu0 %v6535
        %v6726 = vpop.f32.mrb[0].mxu0
        %v6727 = vadd.f32 0.0, %v6726
        %v6728 = vpop.f32.mrb[0].mxu0
        %v6729 = vpop.f32.mrb[0].mxu0
        %v6730 = vadd.f32 0.0, %v6729
        %v6731 = vpop.f32.mrb[0].mxu0
        %6732 = vmatprep.mubr.bf16.mxu0 0
        %6733 = vmatmul.mubr.bf16.gmra.mrb[0].mxu0 %v6536
        %v6734 = vpop.f32.mrb[0].mxu0
        %v6735 = vadd.f32 0.0, %v6734
        %v6736 = vpop.f32.mrb[0].mxu0
        %v6737 = vpop.f32.mrb[0].mxu0
        %v6738 = vadd.f32 0.0, %v6737
        %v6739 = vpop.f32.mrb[0].mxu0
        %6740 = vmatprep.mubr.bf16.mxu0 0
        %6741 = vmatmul.mubr.bf16.gmra.mrb[0].mxu0 %v6537
        %v6742 = vpop.f32.mrb[0].mxu0
        %v6743 = vadd.f32 0.0, %v6742
        %v6744 = vpop.f32.mrb[0].mxu0
        %v6745 = vpop.f32.mrb[0].mxu0
        %v6746 = vadd.f32 0.0, %v6745
        %v6747 = vpop.f32.mrb[0].mxu0
        %6748 = vmatprep.mubr.bf16.mxu0 0
        %6749 = vmatmul.mubr.bf16.gmra.mrb[0].mxu0 %v6538
        %v6750 = vpop.f32.mrb[0].mxu0
        %v6751 = vadd.f32 0.0, %v6750
        %v6752 = vpop.f32.mrb[0].mxu0
        %v6753 = vpop.f32.mrb[0].mxu0
        %v6754 = vadd.f32 0.0, %v6753
        %v6755 = vpop.f32.mrb[0].mxu0
        %6756 = vmatprep.mubr.bf16.mxu0 0
        %6757 = vmatmul.mubr.bf16.gmra.mrb[0].mxu0 %v6539
        %v6758 = vpop.f32.mrb[0].mxu0
        %v6759 = vadd.f32 0.0, %v6758
        %v6760 = vpop.f32.mrb[0].mxu0
        %v6761 = vpop.f32.mrb[0].mxu0
        %v6762 = vadd.f32 0.0, %v6761
        %v6763 = vpop.f32.mrb[0].mxu0
        %6764 = vdwg.mxu0
        %v6797 = vunpack.c.l.b16 %v6027
        %v6798 = vunpack.c.l.b16 %v6028
        %v6799 = vunpack.c.l.b16 %v6029
        %v6800 = vunpack.c.l.b16 %v6030
        %v6801 = vunpack.c.l.b16 %v6031
        %v6802 = vunpack.c.l.b16 %v6032
        %v6803 = vunpack.c.l.b16 %v6033
        %v6804 = vunpack.c.l.b16 %v6034
        %v6805 = vunpack.c.l.b16 %v6035
        %v6806 = vunpack.c.l.b16 %v6036
        %v6807 = vunpack.c.l.b16 %v6037
        %v6808 = vunpack.c.l.b16 %v6038
        %v6809 = vunpack.c.l.b16 %v6039
        %v6810 = vunpack.c.l.b16 %v6040
        %v6811 = vunpack.c.l.b16 %v6041
        %v6812 = vunpack.c.l.b16 %v6042
        %v6813 = vunpack.c.l.b16 %v6043
        %v6814 = vunpack.c.l.b16 %v6044
        %v6815 = vunpack.c.l.b16 %v6045
        %v6816 = vunpack.c.l.b16 %v6046
        %v6817 = vunpack.c.l.b16 %v6047
        %v6818 = vunpack.c.l.b16 %v6048
        %v6819 = vunpack.c.l.b16 %v6049
        %v6820 = vunpack.c.l.b16 %v6050
        %v6821 = vunpack.c.l.b16 %v6051
        %v6822 = vunpack.c.l.b16 %v6052
        %v6823 = vunpack.c.l.b16 %v6053
        %v6824 = vunpack.c.l.b16 %v6054
        %v6825 = vunpack.c.l.b16 %v6055
        %v6826 = vunpack.c.l.b16 %v6056
        %v6827 = vunpack.c.l.b16 %v6057
        %v6828 = vunpack.c.l.b16 %v6058
        %v6829 = vpack.c.b16 %v6798, %v6797
        %v6830 = vpack.c.b16 %v6800, %v6799
        %v6831 = vpack.c.b16 %v6802, %v6801
        %v6832 = vpack.c.b16 %v6804, %v6803
        %v6833 = vpack.c.b16 %v6806, %v6805
        %v6834 = vpack.c.b16 %v6808, %v6807
        %v6835 = vpack.c.b16 %v6810, %v6809
        %v6836 = vpack.c.b16 %v6812, %v6811
        %v6837 = vpack.c.b16 %v6814, %v6813
        %v6838 = vpack.c.b16 %v6816, %v6815
        %v6839 = vpack.c.b16 %v6818, %v6817
        %v6840 = vpack.c.b16 %v6820, %v6819
        %v6841 = vpack.c.b16 %v6822, %v6821
        %v6842 = vpack.c.b16 %v6824, %v6823
        %v6843 = vpack.c.b16 %v6826, %v6825
        %v6844 = vpack.c.b16 %v6828, %v6827
        %v6877 = vunpack.c.l.b16 %v6059
        %v6878 = vunpack.c.l.b16 %v6060
        %v6879 = vunpack.c.l.b16 %v6061
        %v6880 = vunpack.c.l.b16 %v6062
        %v6881 = vunpack.c.l.b16 %v6063
        %v6882 = vunpack.c.l.b16 %v6064
        %v6883 = vunpack.c.l.b16 %v6065
        %v6884 = vunpack.c.l.b16 %v6066
        %v6885 = vunpack.c.l.b16 %v6067
        %v6886 = vunpack.c.l.b16 %v6068
        %v6887 = vunpack.c.l.b16 %v6069
        %v6888 = vunpack.c.l.b16 %v6070
        %v6889 = vunpack.c.l.b16 %v6071
        %v6890 = vunpack.c.l.b16 %v6072
        %v6891 = vunpack.c.l.b16 %v6073
        %v6892 = vunpack.c.l.b16 %v6074
        %v6893 = vpack.c.b16 %v6878, %v6877
        %v6894 = vpack.c.b16 %v6880, %v6879
        %v6895 = vpack.c.b16 %v6882, %v6881
        %v6896 = vpack.c.b16 %v6884, %v6883
        %v6897 = vpack.c.b16 %v6886, %v6885
        %v6898 = vpack.c.b16 %v6888, %v6887
        %v6899 = vpack.c.b16 %v6890, %v6889
        %v6900 = vpack.c.b16 %v6892, %v6891
        %6909 = vmatprep.subr.bf16.mxu0 0
        %6910 = vmatpush1.bf16.msra.mxu0 %v6893
        %6911 = vmatprep.subr.bf16.mxu0 0
        %6912 = vmatpush1.bf16.msra.mxu0 %v6894
        %6913 = vmatprep.subr.bf16.mxu0 0
        %6914 = vmatpush1.bf16.msra.mxu0 %v6895
        %6915 = vmatprep.subr.bf16.mxu0 0
        %6916 = vmatpush1.bf16.msra.mxu0 %v6896
        %6917 = vmatprep.subr.bf16.mxu0 0
        %6918 = vmatpush1.bf16.msra.mxu0 %v6897
        %6919 = vmatprep.subr.bf16.mxu0 0
        %6920 = vmatpush1.bf16.msra.mxu0 %v6898
        %6921 = vmatprep.subr.bf16.mxu0 0
        %6922 = vmatpush1.bf16.msra.mxu0 %v6899
        %6923 = vmatprep.subr.bf16.mxu0 0
        %6924 = vmatpush1.bf16.msra.mxu0 %v6900
        %6925 = vmatprep.subr.bf16.mxu0 0
        %6926 = vmatpush1.bf16.msra.mxu0 0
        %6927 = vmatprep.subr.bf16.mxu0 0
        %6928 = vmatpush1.bf16.msra.mxu0 0
        %6929 = vmatprep.subr.bf16.mxu0 0
        %6930 = vmatpush1.bf16.msra.mxu0 0
        %6931 = vmatprep.subr.bf16.mxu0 0
        %6932 = vmatpush1.bf16.msra.mxu0 0
        %6933 = vmatprep.subr.bf16.mxu0 0
        %6934 = vmatpush1.bf16.msra.mxu0 0
        %6935 = vmatprep.subr.bf16.mxu0 0
        %6936 = vmatpush1.bf16.msra.mxu0 0
        %6937 = vmatprep.subr.bf16.mxu0 0
        %6938 = vmatpush1.bf16.msra.mxu0 0
        %6939 = vmatprep.subr.bf16.mxu0 0
        %6940 = vmatpush1.bf16.msra.mxu0 0
        %6941 = vmatprep.mubr.bf16.mxu0 0
        %6942 = vmatmul.mubr.bf16.gmra.mrb[0].mxu0 %v6829
        %v6943 = vpop.f32.mrb[0].mxu0
        %v6944 = vadd.f32 %v6639, %v6943
        %v6945 = vpop.f32.mrb[0].mxu0
        %v6946 = vpop.f32.mrb[0].mxu0
        %v6947 = vadd.f32 %v6642, %v6946
        %v6948 = vpop.f32.mrb[0].mxu0
        %6949 = vmatprep.mubr.bf16.mxu0 0
        %6950 = vmatmul.mubr.bf16.gmra.mrb[0].mxu0 %v6830
        %v6951 = vpop.f32.mrb[0].mxu0
        %v6952 = vadd.f32 %v6647, %v6951
        %v6953 = vpop.f32.mrb[0].mxu0
        %v6954 = vpop.f32.mrb[0].mxu0
        %v6955 = vadd.f32 %v6650, %v6954
        %v6956 = vpop.f32.mrb[0].mxu0
        %6957 = vmatprep.mubr.bf16.mxu0 0
        %6958 = vmatmul.mubr.bf16.gmra.mrb[0].mxu0 %v6831
        %v6959 = vpop.f32.mrb[0].mxu0
        %v6960 = vadd.f32 %v6655, %v6959
        %v6961 = vpop.f32.mrb[0].mxu0
        %v6962 = vpop.f32.mrb[0].mxu0
        %v6963 = vadd.f32 %v6658, %v6962
        %v6964 = vpop.f32.mrb[0].mxu0
        %6965 = vmatprep.mubr.bf16.mxu0 0
        %6966 = vmatmul.mubr.bf16.gmra.mrb[0].mxu0 %v6832
        %v6967 = vpop.f32.mrb[0].mxu0
        %v6968 = vadd.f32 %v6663, %v6967
        %v6969 = vpop.f32.mrb[0].mxu0
        %v6970 = vpop.f32.mrb[0].mxu0
        %v6971 = vadd.f32 %v6666, %v6970
        %v6972 = vpop.f32.mrb[0].mxu0
        %6973 = vmatprep.mubr.bf16.mxu0 0
        %6974 = vmatmul.mubr.bf16.gmra.mrb[0].mxu0 %v6833
        %v6975 = vpop.f32.mrb[0].mxu0
        %v6976 = vadd.f32 %v6671, %v6975
        %v6977 = vpop.f32.mrb[0].mxu0
        %v6978 = vpop.f32.mrb[0].mxu0
        %v6979 = vadd.f32 %v6674, %v6978
        %v6980 = vpop.f32.mrb[0].mxu0
        %6981 = vmatprep.mubr.bf16.mxu0 0
        %6982 = vmatmul.mubr.bf16.gmra.mrb[0].mxu0 %v6834
        %v6983 = vpop.f32.mrb[0].mxu0
        %v6984 = vadd.f32 %v6679, %v6983
        %v6985 = vpop.f32.mrb[0].mxu0
        %v6986 = vpop.f32.mrb[0].mxu0
        %v6987 = vadd.f32 %v6682, %v6986
        %v6988 = vpop.f32.mrb[0].mxu0
        %6989 = vmatprep.mubr.bf16.mxu0 0
        %6990 = vmatmul.mubr.bf16.gmra.mrb[0].mxu0 %v6835
        %v6991 = vpop.f32.mrb[0].mxu0
        %v6992 = vadd.f32 %v6687, %v6991
        %v6993 = vpop.f32.mrb[0].mxu0
        %v6994 = vpop.f32.mrb[0].mxu0
        %v6995 = vadd.f32 %v6690, %v6994
        %v6996 = vpop.f32.mrb[0].mxu0
        %6997 = vmatprep.mubr.bf16.mxu0 0
        %6998 = vmatmul.mubr.bf16.gmra.mrb[0].mxu0 %v6836
        %v6999 = vpop.f32.mrb[0].mxu0
        %v7000 = vadd.f32 %v6695, %v6999
        %v7001 = vpop.f32.mrb[0].mxu0
        %v7002 = vpop.f32.mrb[0].mxu0
        %v7003 = vadd.f32 %v6698, %v7002
        %v7004 = vpop.f32.mrb[0].mxu0
        %7005 = vmatprep.mubr.bf16.mxu0 0
        %7006 = vmatmul.mubr.bf16.gmra.mrb[0].mxu0 %v6837
        %v7007 = vpop.f32.mrb[0].mxu0
        %v7008 = vadd.f32 %v6703, %v7007
        %v7009 = vpop.f32.mrb[0].mxu0
        %v7010 = vpop.f32.mrb[0].mxu0
        %v7011 = vadd.f32 %v6706, %v7010
        %v7012 = vpop.f32.mrb[0].mxu0
        %7013 = vmatprep.mubr.bf16.mxu0 0
        %7014 = vmatmul.mubr.bf16.gmra.mrb[0].mxu0 %v6838
        %v7015 = vpop.f32.mrb[0].mxu0
        %v7016 = vadd.f32 %v6711, %v7015
        %v7017 = vpop.f32.mrb[0].mxu0
        %v7018 = vpop.f32.mrb[0].mxu0
        %v7019 = vadd.f32 %v6714, %v7018
        %v7020 = vpop.f32.mrb[0].mxu0
        %7021 = vmatprep.mubr.bf16.mxu0 0
        %7022 = vmatmul.mubr.bf16.gmra.mrb[0].mxu0 %v6839
        %v7023 = vpop.f32.mrb[0].mxu0
        %v7024 = vadd.f32 %v6719, %v7023
        %v7025 = vpop.f32.mrb[0].mxu0
        %v7026 = vpop.f32.mrb[0].mxu0
        %v7027 = vadd.f32 %v6722, %v7026
        %v7028 = vpop.f32.mrb[0].mxu0
        %7029 = vmatprep.mubr.bf16.mxu0 0
        %7030 = vmatmul.mubr.bf16.gmra.mrb[0].mxu0 %v6840
        %v7031 = vpop.f32.mrb[0].mxu0
        %v7032 = vadd.f32 %v6727, %v7031
        %v7033 = vpop.f32.mrb[0].mxu0
        %v7034 = vpop.f32.mrb[0].mxu0
        %v7035 = vadd.f32 %v6730, %v7034
        %v7036 = vpop.f32.mrb[0].mxu0
        %7037 = vmatprep.mubr.bf16.mxu0 0
        %7038 = vmatmul.mubr.bf16.gmra.mrb[0].mxu0 %v6841
        %v7039 = vpop.f32.mrb[0].mxu0
        %v7040 = vadd.f32 %v6735, %v7039
        %v7041 = vpop.f32.mrb[0].mxu0
        %v7042 = vpop.f32.mrb[0].mxu0
        %v7043 = vadd.f32 %v6738, %v7042
        %v7044 = vpop.f32.mrb[0].mxu0
        %7045 = vmatprep.mubr.bf16.mxu0 0
        %7046 = vmatmul.mubr.bf16.gmra.mrb[0].mxu0 %v6842
        %v7047 = vpop.f32.mrb[0].mxu0
        %v7048 = vadd.f32 %v6743, %v7047
        %v7049 = vpop.f32.mrb[0].mxu0
        %v7050 = vpop.f32.mrb[0].mxu0
        %v7051 = vadd.f32 %v6746, %v7050
        %v7052 = vpop.f32.mrb[0].mxu0
        %7053 = vmatprep.mubr.bf16.mxu0 0
        %7054 = vmatmul.mubr.bf16.gmra.mrb[0].mxu0 %v6843
        %v7055 = vpop.f32.mrb[0].mxu0
        %v7056 = vadd.f32 %v6751, %v7055
        %v7057 = vpop.f32.mrb[0].mxu0
        %v7058 = vpop.f32.mrb[0].mxu0
        %v7059 = vadd.f32 %v6754, %v7058
        %v7060 = vpop.f32.mrb[0].mxu0
        %7061 = vmatprep.mubr.bf16.mxu0 0
        %7062 = vmatmul.mubr.bf16.gmra.mrb[0].mxu0 %v6844
        %v7063 = vpop.f32.mrb[0].mxu0
        %v7064 = vadd.f32 %v6759, %v7063
        %v7065 = vpop.f32.mrb[0].mxu0
        %v7066 = vpop.f32.mrb[0].mxu0
        %v7067 = vadd.f32 %v6762, %v7066
        %v7068 = vpop.f32.mrb[0].mxu0
        %7069 = vdwg.mxu0
        %v7070 = vld [vmem:[#allocation2] sm:$0xe]
        %v7071 = vld [vmem:[#allocation2 + $0xc] sm:$0xe]
        %v7072 = vld [vmem:[#allocation2 + $0x18] sm:$0xe]
        %v7073 = vld [vmem:[#allocation2 + $0x24] sm:$0xe]
        %v7074 = vld [vmem:[#allocation2 + $0x30] sm:$0xe]
        %v7075 = vld [vmem:[#allocation2 + $0x3c] sm:$0xe]
        %v7076 = vld [vmem:[#allocation2 + $0x48] sm:$0xe]
        %v7077 = vld [vmem:[#allocation2 + $0x54] sm:$0xe]
        %v7078 = vld [vmem:[#allocation2 + $0x60] sm:$0xe]
        %v7079 = vld [vmem:[#allocation2 + $0x6c] sm:$0xe]
        %v7080 = vld [vmem:[#allocation2 + $0x78] sm:$0xe]
        %v7081 = vld [vmem:[#allocation2 + $0x84] sm:$0xe]
        %v7082 = vld [vmem:[#allocation2 + $0x90] sm:$0xe]
        %v7083 = vld [vmem:[#allocation2 + $0x9c] sm:$0xe]
        %v7084 = vld [vmem:[#allocation2 + $0xa8] sm:$0xe]
        %v7085 = vld [vmem:[#allocation2 + $0xb4] sm:$0xe]
        %v7118 = vrot.slane %v7070, 5
        %v7119 = vrot.slane %v7118, 4
        %v7120 = vrot.slane %v6028, 5
        %v7121 = vsel %vm1828, %v7119, %v7120
        %v7122 = vrot.slane %v7120, 4
        %v7123 = vrot.slane %v6075, 5
        %v7124 = vsel %vm1828, %v7122, %v7123
        %v7125 = vrot.slane %v7071, 5
        %v7126 = vrot.slane %v7125, 4
        %v7127 = vrot.slane %v6030, 5
        %v7128 = vsel %vm1828, %v7126, %v7127
        %v7129 = vrot.slane %v7127, 4
        %v7130 = vrot.slane %v6076, 5
        %v7131 = vsel %vm1828, %v7129, %v7130
        %v7132 = vrot.slane %v7072, 5
        %v7133 = vrot.slane %v7132, 4
        %v7134 = vrot.slane %v6032, 5
        %v7135 = vsel %vm1828, %v7133, %v7134
        %v7136 = vrot.slane %v7134, 4
        %v7137 = vrot.slane %v6077, 5
        %v7138 = vsel %vm1828, %v7136, %v7137
        %v7139 = vrot.slane %v7073, 5
        %v7140 = vrot.slane %v7139, 4
        %v7141 = vrot.slane %v6034, 5
        %v7142 = vsel %vm1828, %v7140, %v7141
        %v7143 = vrot.slane %v7141, 4
        %v7144 = vrot.slane %v6078, 5
        %v7145 = vsel %vm1828, %v7143, %v7144
        %v7146 = vrot.slane %v7074, 5
        %v7147 = vrot.slane %v7146, 4
        %v7148 = vrot.slane %v6036, 5
        %v7149 = vsel %vm1828, %v7147, %v7148
        %v7150 = vrot.slane %v7148, 4
        %v7151 = vrot.slane %v6079, 5
        %v7152 = vsel %vm1828, %v7150, %v7151
        %v7153 = vrot.slane %v7075, 5
        %v7154 = vrot.slane %v7153, 4
        %v7155 = vrot.slane %v6038, 5
        %v7156 = vsel %vm1828, %v7154, %v7155
        %v7157 = vrot.slane %v7155, 4
        %v7158 = vrot.slane %v6080, 5
        %v7159 = vsel %vm1828, %v7157, %v7158
        %v7160 = vrot.slane %v7076, 5
        %v7161 = vrot.slane %v7160, 4
        %v7162 = vrot.slane %v6040, 5
        %v7163 = vsel %vm1828, %v7161, %v7162
        %v7164 = vrot.slane %v7162, 4
        %v7165 = vrot.slane %v6081, 5
        %v7166 = vsel %vm1828, %v7164, %v7165
        %v7167 = vrot.slane %v7077, 5
        %v7168 = vrot.slane %v7167, 4
        %v7169 = vrot.slane %v6042, 5
        %v7170 = vsel %vm1828, %v7168, %v7169
        %v7171 = vrot.slane %v7169, 4
        %v7172 = vrot.slane %v6082, 5
        %v7173 = vsel %vm1828, %v7171, %v7172
        %v7174 = vrot.slane %v7078, 5
        %v7175 = vrot.slane %v7174, 4
        %v7176 = vrot.slane %v6044, 5
        %v7177 = vsel %vm1828, %v7175, %v7176
        %v7178 = vrot.slane %v7176, 4
        %v7179 = vrot.slane %v6083, 5
        %v7180 = vsel %vm1828, %v7178, %v7179
        %v7181 = vrot.slane %v7079, 5
        %v7182 = vrot.slane %v7181, 4
        %v7183 = vrot.slane %v6046, 5
        %v7184 = vsel %vm1828, %v7182, %v7183
        %v7185 = vrot.slane %v7183, 4
        %v7186 = vrot.slane %v6084, 5
        %v7187 = vsel %vm1828, %v7185, %v7186
        %v7188 = vrot.slane %v7080, 5
        %v7189 = vrot.slane %v7188, 4
        %v7190 = vrot.slane %v6048, 5
        %v7191 = vsel %vm1828, %v7189, %v7190
        %v7192 = vrot.slane %v7190, 4
        %v7193 = vrot.slane %v6085, 5
        %v7194 = vsel %vm1828, %v7192, %v7193
        %v7195 = vrot.slane %v7081, 5
        %v7196 = vrot.slane %v7195, 4
        %v7197 = vrot.slane %v6050, 5
        %v7198 = vsel %vm1828, %v7196, %v7197
        %v7199 = vrot.slane %v7197, 4
        %v7200 = vrot.slane %v6086, 5
        %v7201 = vsel %vm1828, %v7199, %v7200
        %v7202 = vrot.slane %v7082, 5
        %v7203 = vrot.slane %v7202, 4
        %v7204 = vrot.slane %v6052, 5
        %v7205 = vsel %vm1828, %v7203, %v7204
        %v7206 = vrot.slane %v7204, 4
        %v7207 = vrot.slane %v6087, 5
        %v7208 = vsel %vm1828, %v7206, %v7207
        %v7209 = vrot.slane %v7083, 5
        %v7210 = vrot.slane %v7209, 4
        %v7211 = vrot.slane %v6054, 5
        %v7212 = vsel %vm1828, %v7210, %v7211
        %v7213 = vrot.slane %v7211, 4
        %v7214 = vrot.slane %v6088, 5
        %v7215 = vsel %vm1828, %v7213, %v7214
        %v7216 = vrot.slane %v7084, 5
        %v7217 = vrot.slane %v7216, 4
        %v7218 = vrot.slane %v6056, 5
        %v7219 = vsel %vm1828, %v7217, %v7218
        %v7220 = vrot.slane %v7218, 4
        %v7221 = vrot.slane %v6089, 5
        %v7222 = vsel %vm1828, %v7220, %v7221
        %v7223 = vrot.slane %v7085, 5
        %v7224 = vrot.slane %v7223, 4
        %v7225 = vrot.slane %v6058, 5
        %v7226 = vsel %vm1828, %v7224, %v7225
        %v7227 = vrot.slane %v7225, 4
        %v7228 = vrot.slane %v6090, 5
        %v7229 = vsel %vm1828, %v7227, %v7228
        %s7230 = scalar_lea.vmem [#allocation8], 128
        %v7231 = vld [vmem:[%s7230] sm:$0xf]
        %v7232 = vld [vmem:[%s7230 + $0x4] sm:$0xf]
        %v7233 = vld [vmem:[%s7230 + $0x8] sm:$0xf]
        %v7234 = vld [vmem:[%s7230 + $0xc] sm:$0xf]
        %v7235 = vld [vmem:[%s7230 + $0x10] sm:$0xf]
        %v7236 = vld [vmem:[%s7230 + $0x14] sm:$0xf]
        %v7237 = vld [vmem:[%s7230 + $0x18] sm:$0xf]
        %v7238 = vld [vmem:[%s7230 + $0x1c] sm:$0xf]
        %v7239 = vld [vmem:[%s7230 + $0x20] sm:$0xf]
        %v7240 = vld [vmem:[%s7230 + $0x24] sm:$0xf]
        %v7241 = vld [vmem:[%s7230 + $0x28] sm:$0xf]
        %v7242 = vld [vmem:[%s7230 + $0x2c] sm:$0xf]
        %v7243 = vld [vmem:[%s7230 + $0x30] sm:$0xf]
        %v7244 = vld [vmem:[%s7230 + $0x34] sm:$0xf]
        %v7245 = vld [vmem:[%s7230 + $0x38] sm:$0xf]
        %v7246 = vld [vmem:[%s7230 + $0x3c] sm:$0xf]
        %v7247 = vunpack.c.l.b16 %v7121
        %v7248 = vunpack.c.l.b16 %v7124
        %v7249 = vunpack.c.l.b16 %v7128
        %v7250 = vunpack.c.l.b16 %v7131
        %v7251 = vunpack.c.l.b16 %v7135
        %v7252 = vunpack.c.l.b16 %v7138
        %v7253 = vunpack.c.l.b16 %v7142
        %v7254 = vunpack.c.l.b16 %v7145
        %v7255 = vunpack.c.l.b16 %v7149
        %v7256 = vunpack.c.l.b16 %v7152
        %v7257 = vunpack.c.l.b16 %v7156
        %v7258 = vunpack.c.l.b16 %v7159
        %v7259 = vunpack.c.l.b16 %v7163
        %v7260 = vunpack.c.l.b16 %v7166
        %v7261 = vunpack.c.l.b16 %v7170
        %v7262 = vunpack.c.l.b16 %v7173
        %v7263 = vunpack.c.l.b16 %v7177
        %v7264 = vunpack.c.l.b16 %v7180
        %v7265 = vunpack.c.l.b16 %v7184
        %v7266 = vunpack.c.l.b16 %v7187
        %v7267 = vunpack.c.l.b16 %v7191
        %v7268 = vunpack.c.l.b16 %v7194
        %v7269 = vunpack.c.l.b16 %v7198
        %v7270 = vunpack.c.l.b16 %v7201
        %v7271 = vunpack.c.l.b16 %v7205
        %v7272 = vunpack.c.l.b16 %v7208
        %v7273 = vunpack.c.l.b16 %v7212
        %v7274 = vunpack.c.l.b16 %v7215
        %v7275 = vunpack.c.l.b16 %v7219
        %v7276 = vunpack.c.l.b16 %v7222
        %v7277 = vunpack.c.l.b16 %v7226
        %v7278 = vunpack.c.l.b16 %v7229
        %v7279 = vpack.c.b16 %v7248, %v7247
        %v7280 = vpack.c.b16 %v7250, %v7249
        %v7281 = vpack.c.b16 %v7252, %v7251
        %v7282 = vpack.c.b16 %v7254, %v7253
        %v7283 = vpack.c.b16 %v7256, %v7255
        %v7284 = vpack.c.b16 %v7258, %v7257
        %v7285 = vpack.c.b16 %v7260, %v7259
        %v7286 = vpack.c.b16 %v7262, %v7261
        %v7287 = vpack.c.b16 %v7264, %v7263
        %v7288 = vpack.c.b16 %v7266, %v7265
        %v7289 = vpack.c.b16 %v7268, %v7267
        %v7290 = vpack.c.b16 %v7270, %v7269
        %v7291 = vpack.c.b16 %v7272, %v7271
        %v7292 = vpack.c.b16 %v7274, %v7273
        %v7293 = vpack.c.b16 %v7276, %v7275
        %v7294 = vpack.c.b16 %v7278, %v7277
        %v7327 = vunpack.c.l.b16 %v7231
        %v7328 = vunpack.c.l.b16 %v7232
        %v7329 = vunpack.c.l.b16 %v7233
        %v7330 = vunpack.c.l.b16 %v7234
        %v7331 = vunpack.c.l.b16 %v7235
        %v7332 = vunpack.c.l.b16 %v7236
        %v7333 = vunpack.c.l.b16 %v7237
        %v7334 = vunpack.c.l.b16 %v7238
        %v7335 = vunpack.c.l.b16 %v7239
        %v7336 = vunpack.c.l.b16 %v7240
        %v7337 = vunpack.c.l.b16 %v7241
        %v7338 = vunpack.c.l.b16 %v7242
        %v7339 = vunpack.c.l.b16 %v7243
        %v7340 = vunpack.c.l.b16 %v7244
        %v7341 = vunpack.c.l.b16 %v7245
        %v7342 = vunpack.c.l.b16 %v7246
        %v7343 = vpack.c.b16 %v7328, %v7327
        %v7344 = vpack.c.b16 %v7330, %v7329
        %v7345 = vpack.c.b16 %v7332, %v7331
        %v7346 = vpack.c.b16 %v7334, %v7333
        %v7347 = vpack.c.b16 %v7336, %v7335
        %v7348 = vpack.c.b16 %v7338, %v7337
        %v7349 = vpack.c.b16 %v7340, %v7339
        %v7350 = vpack.c.b16 %v7342, %v7341
        %7359 = vmatprep.subr.bf16.mxu0 0
        %7360 = vmatpush1.bf16.msra.mxu0 %v7343
        %7361 = vmatprep.subr.bf16.mxu0 0
        %7362 = vmatpush1.bf16.msra.mxu0 %v7344
        %7363 = vmatprep.subr.bf16.mxu0 0
        %7364 = vmatpush1.bf16.msra.mxu0 %v7345
        %7365 = vmatprep.subr.bf16.mxu0 0
        %7366 = vmatpush1.bf16.msra.mxu0 %v7346
        %7367 = vmatprep.subr.bf16.mxu0 0
        %7368 = vmatpush1.bf16.msra.mxu0 %v7347
        %7369 = vmatprep.subr.bf16.mxu0 0
        %7370 = vmatpush1.bf16.msra.mxu0 %v7348
        %7371 = vmatprep.subr.bf16.mxu0 0
        %7372 = vmatpush1.bf16.msra.mxu0 %v7349
        %7373 = vmatprep.subr.bf16.mxu0 0
        %7374 = vmatpush1.bf16.msra.mxu0 %v7350
        %7375 = vmatprep.subr.bf16.mxu0 0
        %7376 = vmatpush1.bf16.msra.mxu0 0
        %7377 = vmatprep.subr.bf16.mxu0 0
        %7378 = vmatpush1.bf16.msra.mxu0 0
        %7379 = vmatprep.subr.bf16.mxu0 0
        %7380 = vmatpush1.bf16.msra.mxu0 0
        %7381 = vmatprep.subr.bf16.mxu0 0
        %7382 = vmatpush1.bf16.msra.mxu0 0
        %7383 = vmatprep.subr.bf16.mxu0 0
        %7384 = vmatpush1.bf16.msra.mxu0 0
        %7385 = vmatprep.subr.bf16.mxu0 0
        %7386 = vmatpush1.bf16.msra.mxu0 0
        %7387 = vmatprep.subr.bf16.mxu0 0
        %7388 = vmatpush1.bf16.msra.mxu0 0
        %7389 = vmatprep.subr.bf16.mxu0 0
        %7390 = vmatpush1.bf16.msra.mxu0 0
        %7391 = vmatprep.mubr.bf16.mxu0 0
        %7392 = vmatmul.mubr.bf16.gmra.mrb[0].mxu0 %v7279
        %v7393 = vpop.f32.mrb[0].mxu0
        %v7394 = vadd.f32 0.0, %v7393
        %v7395 = vpop.f32.mrb[0].mxu0
        %v7396 = vpop.f32.mrb[0].mxu0
        %v7397 = vadd.f32 0.0, %v7396
        %v7398 = vpop.f32.mrb[0].mxu0
        %7399 = vmatprep.mubr.bf16.mxu0 0
        %7400 = vmatmul.mubr.bf16.gmra.mrb[0].mxu0 %v7280
        %v7401 = vpop.f32.mrb[0].mxu0
        %v7402 = vadd.f32 0.0, %v7401
        %v7403 = vpop.f32.mrb[0].mxu0
        %v7404 = vpop.f32.mrb[0].mxu0
        %v7405 = vadd.f32 0.0, %v7404
        %v7406 = vpop.f32.mrb[0].mxu0
        %7407 = vmatprep.mubr.bf16.mxu0 0
        %7408 = vmatmul.mubr.bf16.gmra.mrb[0].mxu0 %v7281
        %v7409 = vpop.f32.mrb[0].mxu0
        %v7410 = vadd.f32 0.0, %v7409
        %v7411 = vpop.f32.mrb[0].mxu0
        %v7412 = vpop.f32.mrb[0].mxu0
        %v7413 = vadd.f32 0.0, %v7412
        %v7414 = vpop.f32.mrb[0].mxu0
        %7415 = vmatprep.mubr.bf16.mxu0 0
        %7416 = vmatmul.mubr.bf16.gmra.mrb[0].mxu0 %v7282
        %v7417 = vpop.f32.mrb[0].mxu0
        %v7418 = vadd.f32 0.0, %v7417
        %v7419 = vpop.f32.mrb[0].mxu0
        %v7420 = vpop.f32.mrb[0].mxu0
        %v7421 = vadd.f32 0.0, %v7420
        %v7422 = vpop.f32.mrb[0].mxu0
        %7423 = vmatprep.mubr.bf16.mxu0 0
        %7424 = vmatmul.mubr.bf16.gmra.mrb[0].mxu0 %v7283
        %v7425 = vpop.f32.mrb[0].mxu0
        %v7426 = vadd.f32 0.0, %v7425
        %v7427 = vpop.f32.mrb[0].mxu0
        %v7428 = vpop.f32.mrb[0].mxu0
        %v7429 = vadd.f32 0.0, %v7428
        %v7430 = vpop.f32.mrb[0].mxu0
        %7431 = vmatprep.mubr.bf16.mxu0 0
        %7432 = vmatmul.mubr.bf16.gmra.mrb[0].mxu0 %v7284
        %v7433 = vpop.f32.mrb[0].mxu0
        %v7434 = vadd.f32 0.0, %v7433
        %v7435 = vpop.f32.mrb[0].mxu0
        %v7436 = vpop.f32.mrb[0].mxu0
        %v7437 = vadd.f32 0.0, %v7436
        %v7438 = vpop.f32.mrb[0].mxu0
        %7439 = vmatprep.mubr.bf16.mxu0 0
        %7440 = vmatmul.mubr.bf16.gmra.mrb[0].mxu0 %v7285
        %v7441 = vpop.f32.mrb[0].mxu0
        %v7442 = vadd.f32 0.0, %v7441
        %v7443 = vpop.f32.mrb[0].mxu0
        %v7444 = vpop.f32.mrb[0].mxu0
        %v7445 = vadd.f32 0.0, %v7444
        %v7446 = vpop.f32.mrb[0].mxu0
        %7447 = vmatprep.mubr.bf16.mxu0 0
        %7448 = vmatmul.mubr.bf16.gmra.mrb[0].mxu0 %v7286
        %v7449 = vpop.f32.mrb[0].mxu0
        %v7450 = vadd.f32 0.0, %v7449
        %v7451 = vpop.f32.mrb[0].mxu0
        %v7452 = vpop.f32.mrb[0].mxu0
        %v7453 = vadd.f32 0.0, %v7452
        %v7454 = vpop.f32.mrb[0].mxu0
        %7455 = vmatprep.mubr.bf16.mxu0 0
        %7456 = vmatmul.mubr.bf16.gmra.mrb[0].mxu0 %v7287
        %v7457 = vpop.f32.mrb[0].mxu0
        %v7458 = vadd.f32 0.0, %v7457
        %v7459 = vpop.f32.mrb[0].mxu0
        %v7460 = vpop.f32.mrb[0].mxu0
        %v7461 = vadd.f32 0.0, %v7460
        %v7462 = vpop.f32.mrb[0].mxu0
        %7463 = vmatprep.mubr.bf16.mxu0 0
        %7464 = vmatmul.mubr.bf16.gmra.mrb[0].mxu0 %v7288
        %v7465 = vpop.f32.mrb[0].mxu0
        %v7466 = vadd.f32 0.0, %v7465
        %v7467 = vpop.f32.mrb[0].mxu0
        %v7468 = vpop.f32.mrb[0].mxu0
        %v7469 = vadd.f32 0.0, %v7468
        %v7470 = vpop.f32.mrb[0].mxu0
        %7471 = vmatprep.mubr.bf16.mxu0 0
        %7472 = vmatmul.mubr.bf16.gmra.mrb[0].mxu0 %v7289
        %v7473 = vpop.f32.mrb[0].mxu0
        %v7474 = vadd.f32 0.0, %v7473
        %v7475 = vpop.f32.mrb[0].mxu0
        %v7476 = vpop.f32.mrb[0].mxu0
        %v7477 = vadd.f32 0.0, %v7476
        %v7478 = vpop.f32.mrb[0].mxu0
        %7479 = vmatprep.mubr.bf16.mxu0 0
        %7480 = vmatmul.mubr.bf16.gmra.mrb[0].mxu0 %v7290
        %v7481 = vpop.f32.mrb[0].mxu0
        %v7482 = vadd.f32 0.0, %v7481
        %v7483 = vpop.f32.mrb[0].mxu0
        %v7484 = vpop.f32.mrb[0].mxu0
        %v7485 = vadd.f32 0.0, %v7484
        %v7486 = vpop.f32.mrb[0].mxu0
        %7487 = vmatprep.mubr.bf16.mxu0 0
        %7488 = vmatmul.mubr.bf16.gmra.mrb[0].mxu0 %v7291
        %v7489 = vpop.f32.mrb[0].mxu0
        %v7490 = vadd.f32 0.0, %v7489
        %v7491 = vpop.f32.mrb[0].mxu0
        %v7492 = vpop.f32.mrb[0].mxu0
        %v7493 = vadd.f32 0.0, %v7492
        %v7494 = vpop.f32.mrb[0].mxu0
        %7495 = vmatprep.mubr.bf16.mxu0 0
        %7496 = vmatmul.mubr.bf16.gmra.mrb[0].mxu0 %v7292
        %v7497 = vpop.f32.mrb[0].mxu0
        %v7498 = vadd.f32 0.0, %v7497
        %v7499 = vpop.f32.mrb[0].mxu0
        %v7500 = vpop.f32.mrb[0].mxu0
        %v7501 = vadd.f32 0.0, %v7500
        %v7502 = vpop.f32.mrb[0].mxu0
        %7503 = vmatprep.mubr.bf16.mxu0 0
        %7504 = vmatmul.mubr.bf16.gmra.mrb[0].mxu0 %v7293
        %v7505 = vpop.f32.mrb[0].mxu0
        %v7506 = vadd.f32 0.0, %v7505
        %v7507 = vpop.f32.mrb[0].mxu0
        %v7508 = vpop.f32.mrb[0].mxu0
        %v7509 = vadd.f32 0.0, %v7508
        %v7510 = vpop.f32.mrb[0].mxu0
        %7511 = vmatprep.mubr.bf16.mxu0 0
        %7512 = vmatmul.mubr.bf16.gmra.mrb[0].mxu0 %v7294
        %v7513 = vpop.f32.mrb[0].mxu0
        %v7514 = vadd.f32 0.0, %v7513
        %v7515 = vpop.f32.mrb[0].mxu0
        %v7516 = vpop.f32.mrb[0].mxu0
        %v7517 = vadd.f32 0.0, %v7516
        %v7518 = vpop.f32.mrb[0].mxu0
        %7519 = vdwg.mxu0
        %v7520 = vadd.f32 %v6944, %v7394
        %v7521 = vadd.f32 %v6947, %v7397
        %v7522 = vadd.f32 %v6952, %v7402
        %v7523 = vadd.f32 %v6955, %v7405
        %v7524 = vadd.f32 %v6960, %v7410
        %v7525 = vadd.f32 %v6963, %v7413
        %v7526 = vadd.f32 %v6968, %v7418
        %v7527 = vadd.f32 %v6971, %v7421
        %v7528 = vadd.f32 %v6976, %v7426
        %v7529 = vadd.f32 %v6979, %v7429
        %v7530 = vadd.f32 %v6984, %v7434
        %v7531 = vadd.f32 %v6987, %v7437
        %v7532 = vadd.f32 %v6992, %v7442
        %v7533 = vadd.f32 %v6995, %v7445
        %v7534 = vadd.f32 %v7000, %v7450
        %v7535 = vadd.f32 %v7003, %v7453
        %v7536 = vadd.f32 %v7008, %v7458
        %v7537 = vadd.f32 %v7011, %v7461
        %v7538 = vadd.f32 %v7016, %v7466
        %v7539 = vadd.f32 %v7019, %v7469
        %v7540 = vadd.f32 %v7024, %v7474
        %v7541 = vadd.f32 %v7027, %v7477
        %v7542 = vadd.f32 %v7032, %v7482
        %v7543 = vadd.f32 %v7035, %v7485
        %v7544 = vadd.f32 %v7040, %v7490
        %v7545 = vadd.f32 %v7043, %v7493
        %v7546 = vadd.f32 %v7048, %v7498
        %v7547 = vadd.f32 %v7051, %v7501
        %v7548 = vadd.f32 %v7056, %v7506
        %v7549 = vadd.f32 %v7059, %v7509
        %v7550 = vadd.f32 %v7064, %v7514
        %v7551 = vadd.f32 %v7067, %v7517
        %v7552 = vld [vmem:[%s683] sm:$0xf]
        %v7553 = vld [vmem:[%s683 + $0x4] sm:$0xf]
        %v7554 = vld [vmem:[%s683 + $0xc] sm:$0xf]
        %v7555 = vld [vmem:[%s683 + $0x10] sm:$0xf]
        %v7556 = vld [vmem:[%s683 + $0x18] sm:$0xf]
        %v7557 = vld [vmem:[%s683 + $0x1c] sm:$0xf]
        %v7558 = vld [vmem:[%s683 + $0x24] sm:$0xf]
        %v7559 = vld [vmem:[%s683 + $0x28] sm:$0xf]
        %v7560 = vld [vmem:[%s683 + $0x30] sm:$0xf]
        %v7561 = vld [vmem:[%s683 + $0x34] sm:$0xf]
        %v7562 = vld [vmem:[%s683 + $0x3c] sm:$0xf]
        %v7563 = vld [vmem:[%s683 + $0x40] sm:$0xf]
        %v7564 = vld [vmem:[%s683 + $0x48] sm:$0xf]
        %v7565 = vld [vmem:[%s683 + $0x4c] sm:$0xf]
        %v7566 = vld [vmem:[%s683 + $0x54] sm:$0xf]
        %v7567 = vld [vmem:[%s683 + $0x58] sm:$0xf]
        %v7568 = vld [vmem:[%s683 + $0x60] sm:$0xf]
        %v7569 = vld [vmem:[%s683 + $0x64] sm:$0xf]
        %v7570 = vld [vmem:[%s683 + $0x6c] sm:$0xf]
        %v7571 = vld [vmem:[%s683 + $0x70] sm:$0xf]
        %v7572 = vld [vmem:[%s683 + $0x78] sm:$0xf]
        %v7573 = vld [vmem:[%s683 + $0x7c] sm:$0xf]
        %v7574 = vld [vmem:[%s683 + $0x84] sm:$0xf]
        %v7575 = vld [vmem:[%s683 + $0x88] sm:$0xf]
        %v7576 = vld [vmem:[%s683 + $0x90] sm:$0xf]
        %v7577 = vld [vmem:[%s683 + $0x94] sm:$0xf]
        %v7578 = vld [vmem:[%s683 + $0x9c] sm:$0xf]
        %v7579 = vld [vmem:[%s683 + $0xa0] sm:$0xf]
        %v7580 = vld [vmem:[%s683 + $0xa8] sm:$0xf]
        %v7581 = vld [vmem:[%s683 + $0xac] sm:$0xf]
        %v7582 = vld [vmem:[%s683 + $0xb4] sm:$0xf]
        %v7583 = vld [vmem:[%s683 + $0xb8] sm:$0xf]
        %s7584 = scalar_lea.vmem [#allocation8], 192
        %v7585 = vld [vmem:[%s7584] sm:$0xf]
        %v7586 = vld [vmem:[%s7584 + $0x4] sm:$0xf]
        %v7587 = vld [vmem:[%s7584 + $0x8] sm:$0xf]
        %v7588 = vld [vmem:[%s7584 + $0xc] sm:$0xf]
        %v7589 = vld [vmem:[%s7584 + $0x10] sm:$0xf]
        %v7590 = vld [vmem:[%s7584 + $0x14] sm:$0xf]
        %v7591 = vld [vmem:[%s7584 + $0x18] sm:$0xf]
        %v7592 = vld [vmem:[%s7584 + $0x1c] sm:$0xf]
        %v7593 = vld [vmem:[%s7584 + $0x20] sm:$0xf]
        %v7594 = vld [vmem:[%s7584 + $0x24] sm:$0xf]
        %v7595 = vld [vmem:[%s7584 + $0x28] sm:$0xf]
        %v7596 = vld [vmem:[%s7584 + $0x2c] sm:$0xf]
        %v7597 = vld [vmem:[%s7584 + $0x30] sm:$0xf]
        %v7598 = vld [vmem:[%s7584 + $0x34] sm:$0xf]
        %v7599 = vld [vmem:[%s7584 + $0x38] sm:$0xf]
        %v7600 = vld [vmem:[%s7584 + $0x3c] sm:$0xf]
        %v7633 = vunpack.c.l.b16 %v7552
        %v7634 = vunpack.c.l.b16 %v7553
        %v7635 = vunpack.c.l.b16 %v7554
        %v7636 = vunpack.c.l.b16 %v7555
        %v7637 = vunpack.c.l.b16 %v7556
        %v7638 = vunpack.c.l.b16 %v7557
        %v7639 = vunpack.c.l.b16 %v7558
        %v7640 = vunpack.c.l.b16 %v7559
        %v7641 = vunpack.c.l.b16 %v7560
        %v7642 = vunpack.c.l.b16 %v7561
        %v7643 = vunpack.c.l.b16 %v7562
        %v7644 = vunpack.c.l.b16 %v7563
        %v7645 = vunpack.c.l.b16 %v7564
        %v7646 = vunpack.c.l.b16 %v7565
        %v7647 = vunpack.c.l.b16 %v7566
        %v7648 = vunpack.c.l.b16 %v7567
        %v7649 = vunpack.c.l.b16 %v7568
        %v7650 = vunpack.c.l.b16 %v7569
        %v7651 = vunpack.c.l.b16 %v7570
        %v7652 = vunpack.c.l.b16 %v7571
        %v7653 = vunpack.c.l.b16 %v7572
        %v7654 = vunpack.c.l.b16 %v7573
        %v7655 = vunpack.c.l.b16 %v7574
        %v7656 = vunpack.c.l.b16 %v7575
        %v7657 = vunpack.c.l.b16 %v7576
        %v7658 = vunpack.c.l.b16 %v7577
        %v7659 = vunpack.c.l.b16 %v7578
        %v7660 = vunpack.c.l.b16 %v7579
        %v7661 = vunpack.c.l.b16 %v7580
        %v7662 = vunpack.c.l.b16 %v7581
        %v7663 = vunpack.c.l.b16 %v7582
        %v7664 = vunpack.c.l.b16 %v7583
        %v7665 = vpack.c.b16 %v7634, %v7633
        %v7666 = vpack.c.b16 %v7636, %v7635
        %v7667 = vpack.c.b16 %v7638, %v7637
        %v7668 = vpack.c.b16 %v7640, %v7639
        %v7669 = vpack.c.b16 %v7642, %v7641
        %v7670 = vpack.c.b16 %v7644, %v7643
        %v7671 = vpack.c.b16 %v7646, %v7645
        %v7672 = vpack.c.b16 %v7648, %v7647
        %v7673 = vpack.c.b16 %v7650, %v7649
        %v7674 = vpack.c.b16 %v7652, %v7651
        %v7675 = vpack.c.b16 %v7654, %v7653
        %v7676 = vpack.c.b16 %v7656, %v7655
        %v7677 = vpack.c.b16 %v7658, %v7657
        %v7678 = vpack.c.b16 %v7660, %v7659
        %v7679 = vpack.c.b16 %v7662, %v7661
        %v7680 = vpack.c.b16 %v7664, %v7663
        %v7713 = vunpack.c.l.b16 %v7585
        %v7714 = vunpack.c.l.b16 %v7586
        %v7715 = vunpack.c.l.b16 %v7587
        %v7716 = vunpack.c.l.b16 %v7588
        %v7717 = vunpack.c.l.b16 %v7589
        %v7718 = vunpack.c.l.b16 %v7590
        %v7719 = vunpack.c.l.b16 %v7591
        %v7720 = vunpack.c.l.b16 %v7592
        %v7721 = vunpack.c.l.b16 %v7593
        %v7722 = vunpack.c.l.b16 %v7594
        %v7723 = vunpack.c.l.b16 %v7595
        %v7724 = vunpack.c.l.b16 %v7596
        %v7725 = vunpack.c.l.b16 %v7597
        %v7726 = vunpack.c.l.b16 %v7598
        %v7727 = vunpack.c.l.b16 %v7599
        %v7728 = vunpack.c.l.b16 %v7600
        %v7729 = vpack.c.b16 %v7714, %v7713
        %v7730 = vpack.c.b16 %v7716, %v7715
        %v7731 = vpack.c.b16 %v7718, %v7717
        %v7732 = vpack.c.b16 %v7720, %v7719
        %v7733 = vpack.c.b16 %v7722, %v7721
        %v7734 = vpack.c.b16 %v7724, %v7723
        %v7735 = vpack.c.b16 %v7726, %v7725
        %v7736 = vpack.c.b16 %v7728, %v7727
        %7745 = vmatprep.subr.bf16.mxu0 0
        %7746 = vmatpush1.bf16.msra.mxu0 %v7729
        %7747 = vmatprep.subr.bf16.mxu0 0
        %7748 = vmatpush1.bf16.msra.mxu0 %v7730
        %7749 = vmatprep.subr.bf16.mxu0 0
        %7750 = vmatpush1.bf16.msra.mxu0 %v7731
        %7751 = vmatprep.subr.bf16.mxu0 0
        %7752 = vmatpush1.bf16.msra.mxu0 %v7732
        %7753 = vmatprep.subr.bf16.mxu0 0
        %7754 = vmatpush1.bf16.msra.mxu0 %v7733
        %7755 = vmatprep.subr.bf16.mxu0 0
        %7756 = vmatpush1.bf16.msra.mxu0 %v7734
        %7757 = vmatprep.subr.bf16.mxu0 0
        %7758 = vmatpush1.bf16.msra.mxu0 %v7735
        %7759 = vmatprep.subr.bf16.mxu0 0
        %7760 = vmatpush1.bf16.msra.mxu0 %v7736
        %7761 = vmatprep.subr.bf16.mxu0 0
        %7762 = vmatpush1.bf16.msra.mxu0 0
        %7763 = vmatprep.subr.bf16.mxu0 0
        %7764 = vmatpush1.bf16.msra.mxu0 0
        %7765 = vmatprep.subr.bf16.mxu0 0
        %7766 = vmatpush1.bf16.msra.mxu0 0
        %7767 = vmatprep.subr.bf16.mxu0 0
        %7768 = vmatpush1.bf16.msra.mxu0 0
        %7769 = vmatprep.subr.bf16.mxu0 0
        %7770 = vmatpush1.bf16.msra.mxu0 0
        %7771 = vmatprep.subr.bf16.mxu0 0
        %7772 = vmatpush1.bf16.msra.mxu0 0
        %7773 = vmatprep.subr.bf16.mxu0 0
        %7774 = vmatpush1.bf16.msra.mxu0 0
        %7775 = vmatprep.subr.bf16.mxu0 0
        %7776 = vmatpush1.bf16.msra.mxu0 0
        %7777 = vmatprep.mubr.bf16.mxu0 0
        %7778 = vmatmul.mubr.bf16.gmra.mrb[0].mxu0 %v7665
        %v7779 = vpop.f32.mrb[0].mxu0
        %v7780 = vadd.f32 0.0, %v7779
        %v7781 = vpop.f32.mrb[0].mxu0
        %v7782 = vpop.f32.mrb[0].mxu0
        %v7783 = vadd.f32 0.0, %v7782
        %v7784 = vpop.f32.mrb[0].mxu0
        %7785 = vmatprep.mubr.bf16.mxu0 0
        %7786 = vmatmul.mubr.bf16.gmra.mrb[0].mxu0 %v7666
        %v7787 = vpop.f32.mrb[0].mxu0
        %v7788 = vadd.f32 0.0, %v7787
        %v7789 = vpop.f32.mrb[0].mxu0
        %v7790 = vpop.f32.mrb[0].mxu0
        %v7791 = vadd.f32 0.0, %v7790
        %v7792 = vpop.f32.mrb[0].mxu0
        %7793 = vmatprep.mubr.bf16.mxu0 0
        %7794 = vmatmul.mubr.bf16.gmra.mrb[0].mxu0 %v7667
        %v7795 = vpop.f32.mrb[0].mxu0
        %v7796 = vadd.f32 0.0, %v7795
        %v7797 = vpop.f32.mrb[0].mxu0
        %v7798 = vpop.f32.mrb[0].mxu0
        %v7799 = vadd.f32 0.0, %v7798
        %v7800 = vpop.f32.mrb[0].mxu0
        %7801 = vmatprep.mubr.bf16.mxu0 0
        %7802 = vmatmul.mubr.bf16.gmra.mrb[0].mxu0 %v7668
        %v7803 = vpop.f32.mrb[0].mxu0
        %v7804 = vadd.f32 0.0, %v7803
        %v7805 = vpop.f32.mrb[0].mxu0
        %v7806 = vpop.f32.mrb[0].mxu0
        %v7807 = vadd.f32 0.0, %v7806
        %v7808 = vpop.f32.mrb[0].mxu0
        %7809 = vmatprep.mubr.bf16.mxu0 0
        %7810 = vmatmul.mubr.bf16.gmra.mrb[0].mxu0 %v7669
        %v7811 = vpop.f32.mrb[0].mxu0
        %v7812 = vadd.f32 0.0, %v7811
        %v7813 = vpop.f32.mrb[0].mxu0
        %v7814 = vpop.f32.mrb[0].mxu0
        %v7815 = vadd.f32 0.0, %v7814
        %v7816 = vpop.f32.mrb[0].mxu0
        %7817 = vmatprep.mubr.bf16.mxu0 0
        %7818 = vmatmul.mubr.bf16.gmra.mrb[0].mxu0 %v7670
        %v7819 = vpop.f32.mrb[0].mxu0
        %v7820 = vadd.f32 0.0, %v7819
        %v7821 = vpop.f32.mrb[0].mxu0
        %v7822 = vpop.f32.mrb[0].mxu0
        %v7823 = vadd.f32 0.0, %v7822
        %v7824 = vpop.f32.mrb[0].mxu0
        %7825 = vmatprep.mubr.bf16.mxu0 0
        %7826 = vmatmul.mubr.bf16.gmra.mrb[0].mxu0 %v7671
        %v7827 = vpop.f32.mrb[0].mxu0
        %v7828 = vadd.f32 0.0, %v7827
        %v7829 = vpop.f32.mrb[0].mxu0
        %v7830 = vpop.f32.mrb[0].mxu0
        %v7831 = vadd.f32 0.0, %v7830
        %v7832 = vpop.f32.mrb[0].mxu0
        %7833 = vmatprep.mubr.bf16.mxu0 0
        %7834 = vmatmul.mubr.bf16.gmra.mrb[0].mxu0 %v7672
        %v7835 = vpop.f32.mrb[0].mxu0
        %v7836 = vadd.f32 0.0, %v7835
        %v7837 = vpop.f32.mrb[0].mxu0
        %v7838 = vpop.f32.mrb[0].mxu0
        %v7839 = vadd.f32 0.0, %v7838
        %v7840 = vpop.f32.mrb[0].mxu0
        %7841 = vmatprep.mubr.bf16.mxu0 0
        %7842 = vmatmul.mubr.bf16.gmra.mrb[0].mxu0 %v7673
        %v7843 = vpop.f32.mrb[0].mxu0
        %v7844 = vadd.f32 0.0, %v7843
        %v7845 = vpop.f32.mrb[0].mxu0
        %v7846 = vpop.f32.mrb[0].mxu0
        %v7847 = vadd.f32 0.0, %v7846
        %v7848 = vpop.f32.mrb[0].mxu0
        %7849 = vmatprep.mubr.bf16.mxu0 0
        %7850 = vmatmul.mubr.bf16.gmra.mrb[0].mxu0 %v7674
        %v7851 = vpop.f32.mrb[0].mxu0
        %v7852 = vadd.f32 0.0, %v7851
        %v7853 = vpop.f32.mrb[0].mxu0
        %v7854 = vpop.f32.mrb[0].mxu0
        %v7855 = vadd.f32 0.0, %v7854
        %v7856 = vpop.f32.mrb[0].mxu0
        %7857 = vmatprep.mubr.bf16.mxu0 0
        %7858 = vmatmul.mubr.bf16.gmra.mrb[0].mxu0 %v7675
        %v7859 = vpop.f32.mrb[0].mxu0
        %v7860 = vadd.f32 0.0, %v7859
        %v7861 = vpop.f32.mrb[0].mxu0
        %v7862 = vpop.f32.mrb[0].mxu0
        %v7863 = vadd.f32 0.0, %v7862
        %v7864 = vpop.f32.mrb[0].mxu0
        %7865 = vmatprep.mubr.bf16.mxu0 0
        %7866 = vmatmul.mubr.bf16.gmra.mrb[0].mxu0 %v7676
        %v7867 = vpop.f32.mrb[0].mxu0
        %v7868 = vadd.f32 0.0, %v7867
        %v7869 = vpop.f32.mrb[0].mxu0
        %v7870 = vpop.f32.mrb[0].mxu0
        %v7871 = vadd.f32 0.0, %v7870
        %v7872 = vpop.f32.mrb[0].mxu0
        %7873 = vmatprep.mubr.bf16.mxu0 0
        %7874 = vmatmul.mubr.bf16.gmra.mrb[0].mxu0 %v7677
        %v7875 = vpop.f32.mrb[0].mxu0
        %v7876 = vadd.f32 0.0, %v7875
        %v7877 = vpop.f32.mrb[0].mxu0
        %v7878 = vpop.f32.mrb[0].mxu0
        %v7879 = vadd.f32 0.0, %v7878
        %v7880 = vpop.f32.mrb[0].mxu0
        %7881 = vmatprep.mubr.bf16.mxu0 0
        %7882 = vmatmul.mubr.bf16.gmra.mrb[0].mxu0 %v7678
        %v7883 = vpop.f32.mrb[0].mxu0
        %v7884 = vadd.f32 0.0, %v7883
        %v7885 = vpop.f32.mrb[0].mxu0
        %v7886 = vpop.f32.mrb[0].mxu0
        %v7887 = vadd.f32 0.0, %v7886
        %v7888 = vpop.f32.mrb[0].mxu0
        %7889 = vmatprep.mubr.bf16.mxu0 0
        %7890 = vmatmul.mubr.bf16.gmra.mrb[0].mxu0 %v7679
        %v7891 = vpop.f32.mrb[0].mxu0
        %v7892 = vadd.f32 0.0, %v7891
        %v7893 = vpop.f32.mrb[0].mxu0
        %v7894 = vpop.f32.mrb[0].mxu0
        %v7895 = vadd.f32 0.0, %v7894
        %v7896 = vpop.f32.mrb[0].mxu0
        %7897 = vmatprep.mubr.bf16.mxu0 0
        %7898 = vmatmul.mubr.bf16.gmra.mrb[0].mxu0 %v7680
        %v7899 = vpop.f32.mrb[0].mxu0
        %v7900 = vadd.f32 0.0, %v7899
        %v7901 = vpop.f32.mrb[0].mxu0
        %v7902 = vpop.f32.mrb[0].mxu0
        %v7903 = vadd.f32 0.0, %v7902
        %v7904 = vpop.f32.mrb[0].mxu0
        %7905 = vdwg.mxu0
        %v7906 = vadd.f32 %v7520, %v7780
        %v7907 = vadd.f32 %v7521, %v7783
        %v7908 = vadd.f32 %v7522, %v7788
        %v7909 = vadd.f32 %v7523, %v7791
        %v7910 = vadd.f32 %v7524, %v7796
        %v7911 = vadd.f32 %v7525, %v7799
        %v7912 = vadd.f32 %v7526, %v7804
        %v7913 = vadd.f32 %v7527, %v7807
        %v7914 = vadd.f32 %v7528, %v7812
        %v7915 = vadd.f32 %v7529, %v7815
        %v7916 = vadd.f32 %v7530, %v7820
        %v7917 = vadd.f32 %v7531, %v7823
        %v7918 = vadd.f32 %v7532, %v7828
        %v7919 = vadd.f32 %v7533, %v7831
        %v7920 = vadd.f32 %v7534, %v7836
        %v7921 = vadd.f32 %v7535, %v7839
        %v7922 = vadd.f32 %v7536, %v7844
        %v7923 = vadd.f32 %v7537, %v7847
        %v7924 = vadd.f32 %v7538, %v7852
        %v7925 = vadd.f32 %v7539, %v7855
        %v7926 = vadd.f32 %v7540, %v7860
        %v7927 = vadd.f32 %v7541, %v7863
        %v7928 = vadd.f32 %v7542, %v7868
        %v7929 = vadd.f32 %v7543, %v7871
        %v7930 = vadd.f32 %v7544, %v7876
        %v7931 = vadd.f32 %v7545, %v7879
        %v7932 = vadd.f32 %v7546, %v7884
        %v7933 = vadd.f32 %v7547, %v7887
        %v7934 = vadd.f32 %v7548, %v7892
        %v7935 = vadd.f32 %v7549, %v7895
        %v7936 = vadd.f32 %v7550, %v7900
        %v7937 = vadd.f32 %v7551, %v7903
        %v7938 = vld [vmem:[%s683] sm:$0xf]
        %v7939 = vld [vmem:[%s683 + $0x4] sm:$0xf]
        %v7940 = vld [vmem:[%s683 + $0x8] sm:$0x1]
        %v7941 = vld [vmem:[%s683 + $0xc] sm:$0xf]
        %v7942 = vld [vmem:[%s683 + $0x10] sm:$0xf]
        %v7943 = vld [vmem:[%s683 + $0x14] sm:$0x1]
        %v7944 = vld [vmem:[%s683 + $0x18] sm:$0xf]
        %v7945 = vld [vmem:[%s683 + $0x1c] sm:$0xf]
        %v7946 = vld [vmem:[%s683 + $0x20] sm:$0x1]
        %v7947 = vld [vmem:[%s683 + $0x24] sm:$0xf]
        %v7948 = vld [vmem:[%s683 + $0x28] sm:$0xf]
        %v7949 = vld [vmem:[%s683 + $0x2c] sm:$0x1]
        %v7950 = vld [vmem:[%s683 + $0x30] sm:$0xf]
        %v7951 = vld [vmem:[%s683 + $0x34] sm:$0xf]
        %v7952 = vld [vmem:[%s683 + $0x38] sm:$0x1]
        %v7953 = vld [vmem:[%s683 + $0x3c] sm:$0xf]
        %v7954 = vld [vmem:[%s683 + $0x40] sm:$0xf]
        %v7955 = vld [vmem:[%s683 + $0x44] sm:$0x1]
        %v7956 = vld [vmem:[%s683 + $0x48] sm:$0xf]
        %v7957 = vld [vmem:[%s683 + $0x4c] sm:$0xf]
        %v7958 = vld [vmem:[%s683 + $0x50] sm:$0x1]
        %v7959 = vld [vmem:[%s683 + $0x54] sm:$0xf]
        %v7960 = vld [vmem:[%s683 + $0x58] sm:$0xf]
        %v7961 = vld [vmem:[%s683 + $0x5c] sm:$0x1]
        %v7962 = vld [vmem:[%s683 + $0x60] sm:$0xf]
        %v7963 = vld [vmem:[%s683 + $0x64] sm:$0xf]
        %v7964 = vld [vmem:[%s683 + $0x68] sm:$0x1]
        %v7965 = vld [vmem:[%s683 + $0x6c] sm:$0xf]
        %v7966 = vld [vmem:[%s683 + $0x70] sm:$0xf]
        %v7967 = vld [vmem:[%s683 + $0x74] sm:$0x1]
        %v7968 = vld [vmem:[%s683 + $0x78] sm:$0xf]
        %v7969 = vld [vmem:[%s683 + $0x7c] sm:$0xf]
        %v7970 = vld [vmem:[%s683 + $0x80] sm:$0x1]
        %v7971 = vld [vmem:[%s683 + $0x84] sm:$0xf]
        %v7972 = vld [vmem:[%s683 + $0x88] sm:$0xf]
        %v7973 = vld [vmem:[%s683 + $0x8c] sm:$0x1]
        %v7974 = vld [vmem:[%s683 + $0x90] sm:$0xf]
        %v7975 = vld [vmem:[%s683 + $0x94] sm:$0xf]
        %v7976 = vld [vmem:[%s683 + $0x98] sm:$0x1]
        %v7977 = vld [vmem:[%s683 + $0x9c] sm:$0xf]
        %v7978 = vld [vmem:[%s683 + $0xa0] sm:$0xf]
        %v7979 = vld [vmem:[%s683 + $0xa4] sm:$0x1]
        %v7980 = vld [vmem:[%s683 + $0xa8] sm:$0xf]
        %v7981 = vld [vmem:[%s683 + $0xac] sm:$0xf]
        %v7982 = vld [vmem:[%s683 + $0xb0] sm:$0x1]
        %v7983 = vld [vmem:[%s683 + $0xb4] sm:$0xf]
        %v7984 = vld [vmem:[%s683 + $0xb8] sm:$0xf]
        %v7985 = vld [vmem:[%s683 + $0xbc] sm:$0x1]
        %v7987 = vshrl.u32 %v7938, 16
        %v7989 = vrot.slane %v7987, 4
        %v7990 = vshll.u32 %v7938, 16
        %v7992 = vrot.slane %v7990, 5
        %v7993 = vor.u32 %v7989, %v7992
        %v7994 = vrot.slane %v7993, 4
        %v7996 = vshll.u32 %v7939, 16
        %v7998 = vrot.slane %v7996, 5
        %v7999 = vsel %vm798, %v7994, %v7998
        %v8000 = vshrl.u32 %v7939, 16
        %v8002 = vrot.slane %v8000, 4
        %v8003 = vor.u32 %v8002, %v7998
        %v8004 = vrot.slane %v8003, 4
        %v8006 = vshll.u32 %v7940, 16
        %v8008 = vrot.slane %v8006, 5
        %v8009 = vsel %vm798, %v8004, %v8008
        %v8011 = vshrl.u32 %v7941, 16
        %v8013 = vrot.slane %v8011, 4
        %v8014 = vshll.u32 %v7941, 16
        %v8016 = vrot.slane %v8014, 5
        %v8017 = vor.u32 %v8013, %v8016
        %v8018 = vrot.slane %v8017, 4
        %v8020 = vshll.u32 %v7942, 16
        %v8022 = vrot.slane %v8020, 5
        %v8023 = vsel %vm798, %v8018, %v8022
        %v8024 = vshrl.u32 %v7942, 16
        %v8026 = vrot.slane %v8024, 4
        %v8027 = vor.u32 %v8026, %v8022
        %v8028 = vrot.slane %v8027, 4
        %v8030 = vshll.u32 %v7943, 16
        %v8032 = vrot.slane %v8030, 5
        %v8033 = vsel %vm798, %v8028, %v8032
        %v8035 = vshrl.u32 %v7944, 16
        %v8037 = vrot.slane %v8035, 4
        %v8038 = vshll.u32 %v7944, 16
        %v8040 = vrot.slane %v8038, 5
        %v8041 = vor.u32 %v8037, %v8040
        %v8042 = vrot.slane %v8041, 4
        %v8044 = vshll.u32 %v7945, 16
        %v8046 = vrot.slane %v8044, 5
        %v8047 = vsel %vm798, %v8042, %v8046
        %v8048 = vshrl.u32 %v7945, 16
        %v8050 = vrot.slane %v8048, 4
        %v8051 = vor.u32 %v8050, %v8046
        %v8052 = vrot.slane %v8051, 4
        %v8054 = vshll.u32 %v7946, 16
        %v8056 = vrot.slane %v8054, 5
        %v8057 = vsel %vm798, %v8052, %v8056
        %v8059 = vshrl.u32 %v7947, 16
        %v8061 = vrot.slane %v8059, 4
        %v8062 = vshll.u32 %v7947, 16
        %v8064 = vrot.slane %v8062, 5
        %v8065 = vor.u32 %v8061, %v8064
        %v8066 = vrot.slane %v8065, 4
        %v8068 = vshll.u32 %v7948, 16
        %v8070 = vrot.slane %v8068, 5
        %v8071 = vsel %vm798, %v8066, %v8070
        %v8072 = vshrl.u32 %v7948, 16
        %v8074 = vrot.slane %v8072, 4
        %v8075 = vor.u32 %v8074, %v8070
        %v8076 = vrot.slane %v8075, 4
        %v8078 = vshll.u32 %v7949, 16
        %v8080 = vrot.slane %v8078, 5
        %v8081 = vsel %vm798, %v8076, %v8080
        %v8083 = vshrl.u32 %v7950, 16
        %v8085 = vrot.slane %v8083, 4
        %v8086 = vshll.u32 %v7950, 16
        %v8088 = vrot.slane %v8086, 5
        %v8089 = vor.u32 %v8085, %v8088
        %v8090 = vrot.slane %v8089, 4
        %v8092 = vshll.u32 %v7951, 16
        %v8094 = vrot.slane %v8092, 5
        %v8095 = vsel %vm798, %v8090, %v8094
        %v8096 = vshrl.u32 %v7951, 16
        %v8098 = vrot.slane %v8096, 4
        %v8099 = vor.u32 %v8098, %v8094
        %v8100 = vrot.slane %v8099, 4
        %v8102 = vshll.u32 %v7952, 16
        %v8104 = vrot.slane %v8102, 5
        %v8105 = vsel %vm798, %v8100, %v8104
        %v8107 = vshrl.u32 %v7953, 16
        %v8109 = vrot.slane %v8107, 4
        %v8110 = vshll.u32 %v7953, 16
        %v8112 = vrot.slane %v8110, 5
        %v8113 = vor.u32 %v8109, %v8112
        %v8114 = vrot.slane %v8113, 4
        %v8116 = vshll.u32 %v7954, 16
        %v8118 = vrot.slane %v8116, 5
        %v8119 = vsel %vm798, %v8114, %v8118
        %v8120 = vshrl.u32 %v7954, 16
        %v8122 = vrot.slane %v8120, 4
        %v8123 = vor.u32 %v8122, %v8118
        %v8124 = vrot.slane %v8123, 4
        %v8126 = vshll.u32 %v7955, 16
        %v8128 = vrot.slane %v8126, 5
        %v8129 = vsel %vm798, %v8124, %v8128
        %v8131 = vshrl.u32 %v7956, 16
        %v8133 = vrot.slane %v8131, 4
        %v8134 = vshll.u32 %v7956, 16
        %v8136 = vrot.slane %v8134, 5
        %v8137 = vor.u32 %v8133, %v8136
        %v8138 = vrot.slane %v8137, 4
        %v8140 = vshll.u32 %v7957, 16
        %v8142 = vrot.slane %v8140, 5
        %v8143 = vsel %vm798, %v8138, %v8142
        %v8144 = vshrl.u32 %v7957, 16
        %v8146 = vrot.slane %v8144, 4
        %v8147 = vor.u32 %v8146, %v8142
        %v8148 = vrot.slane %v8147, 4
        %v8150 = vshll.u32 %v7958, 16
        %v8152 = vrot.slane %v8150, 5
        %v8153 = vsel %vm798, %v8148, %v8152
        %v8155 = vshrl.u32 %v7959, 16
        %v8157 = vrot.slane %v8155, 4
        %v8158 = vshll.u32 %v7959, 16
        %v8160 = vrot.slane %v8158, 5
        %v8161 = vor.u32 %v8157, %v8160
        %v8162 = vrot.slane %v8161, 4
        %v8164 = vshll.u32 %v7960, 16
        %v8166 = vrot.slane %v8164, 5
        %v8167 = vsel %vm798, %v8162, %v8166
        %v8168 = vshrl.u32 %v7960, 16
        %v8170 = vrot.slane %v8168, 4
        %v8171 = vor.u32 %v8170, %v8166
        %v8172 = vrot.slane %v8171, 4
        %v8174 = vshll.u32 %v7961, 16
        %v8176 = vrot.slane %v8174, 5
        %v8177 = vsel %vm798, %v8172, %v8176
        %v8179 = vshrl.u32 %v7962, 16
        %v8181 = vrot.slane %v8179, 4
        %v8182 = vshll.u32 %v7962, 16
        %v8184 = vrot.slane %v8182, 5
        %v8185 = vor.u32 %v8181, %v8184
        %v8186 = vrot.slane %v8185, 4
        %v8188 = vshll.u32 %v7963, 16
        %v8190 = vrot.slane %v8188, 5
        %v8191 = vsel %vm798, %v8186, %v8190
        %v8192 = vshrl.u32 %v7963, 16
        %v8194 = vrot.slane %v8192, 4
        %v8195 = vor.u32 %v8194, %v8190
        %v8196 = vrot.slane %v8195, 4
        %v8198 = vshll.u32 %v7964, 16
        %v8200 = vrot.slane %v8198, 5
        %v8201 = vsel %vm798, %v8196, %v8200
        %v8203 = vshrl.u32 %v7965, 16
        %v8205 = vrot.slane %v8203, 4
        %v8206 = vshll.u32 %v7965, 16
        %v8208 = vrot.slane %v8206, 5
        %v8209 = vor.u32 %v8205, %v8208
        %v8210 = vrot.slane %v8209, 4
        %v8212 = vshll.u32 %v7966, 16
        %v8214 = vrot.slane %v8212, 5
        %v8215 = vsel %vm798, %v8210, %v8214
        %v8216 = vshrl.u32 %v7966, 16
        %v8218 = vrot.slane %v8216, 4
        %v8219 = vor.u32 %v8218, %v8214
        %v8220 = vrot.slane %v8219, 4
        %v8222 = vshll.u32 %v7967, 16
        %v8224 = vrot.slane %v8222, 5
        %v8225 = vsel %vm798, %v8220, %v8224
        %v8227 = vshrl.u32 %v7968, 16
        %v8229 = vrot.slane %v8227, 4
        %v8230 = vshll.u32 %v7968, 16
        %v8232 = vrot.slane %v8230, 5
        %v8233 = vor.u32 %v8229, %v8232
        %v8234 = vrot.slane %v8233, 4
        %v8236 = vshll.u32 %v7969, 16
        %v8238 = vrot.slane %v8236, 5
        %v8239 = vsel %vm798, %v8234, %v8238
        %v8240 = vshrl.u32 %v7969, 16
        %v8242 = vrot.slane %v8240, 4
        %v8243 = vor.u32 %v8242, %v8238
        %v8244 = vrot.slane %v8243, 4
        %v8246 = vshll.u32 %v7970, 16
        %v8248 = vrot.slane %v8246, 5
        %v8249 = vsel %vm798, %v8244, %v8248
        %v8251 = vshrl.u32 %v7971, 16
        %v8253 = vrot.slane %v8251, 4
        %v8254 = vshll.u32 %v7971, 16
        %v8256 = vrot.slane %v8254, 5
        %v8257 = vor.u32 %v8253, %v8256
        %v8258 = vrot.slane %v8257, 4
        %v8260 = vshll.u32 %v7972, 16
        %v8262 = vrot.slane %v8260, 5
        %v8263 = vsel %vm798, %v8258, %v8262
        %v8264 = vshrl.u32 %v7972, 16
        %v8266 = vrot.slane %v8264, 4
        %v8267 = vor.u32 %v8266, %v8262
        %v8268 = vrot.slane %v8267, 4
        %v8270 = vshll.u32 %v7973, 16
        %v8272 = vrot.slane %v8270, 5
        %v8273 = vsel %vm798, %v8268, %v8272
        %v8275 = vshrl.u32 %v7974, 16
        %v8277 = vrot.slane %v8275, 4
        %v8278 = vshll.u32 %v7974, 16
        %v8280 = vrot.slane %v8278, 5
        %v8281 = vor.u32 %v8277, %v8280
        %v8282 = vrot.slane %v8281, 4
        %v8284 = vshll.u32 %v7975, 16
        %v8286 = vrot.slane %v8284, 5
        %v8287 = vsel %vm798, %v8282, %v8286
        %v8288 = vshrl.u32 %v7975, 16
        %v8290 = vrot.slane %v8288, 4
        %v8291 = vor.u32 %v8290, %v8286
        %v8292 = vrot.slane %v8291, 4
        %v8294 = vshll.u32 %v7976, 16
        %v8296 = vrot.slane %v8294, 5
        %v8297 = vsel %vm798, %v8292, %v8296
        %v8299 = vshrl.u32 %v7977, 16
        %v8301 = vrot.slane %v8299, 4
        %v8302 = vshll.u32 %v7977, 16
        %v8304 = vrot.slane %v8302, 5
        %v8305 = vor.u32 %v8301, %v8304
        %v8306 = vrot.slane %v8305, 4
        %v8308 = vshll.u32 %v7978, 16
        %v8310 = vrot.slane %v8308, 5
        %v8311 = vsel %vm798, %v8306, %v8310
        %v8312 = vshrl.u32 %v7978, 16
        %v8314 = vrot.slane %v8312, 4
        %v8315 = vor.u32 %v8314, %v8310
        %v8316 = vrot.slane %v8315, 4
        %v8318 = vshll.u32 %v7979, 16
        %v8320 = vrot.slane %v8318, 5
        %v8321 = vsel %vm798, %v8316, %v8320
        %v8323 = vshrl.u32 %v7980, 16
        %v8325 = vrot.slane %v8323, 4
        %v8326 = vshll.u32 %v7980, 16
        %v8328 = vrot.slane %v8326, 5
        %v8329 = vor.u32 %v8325, %v8328
        %v8330 = vrot.slane %v8329, 4
        %v8332 = vshll.u32 %v7981, 16
        %v8334 = vrot.slane %v8332, 5
        %v8335 = vsel %vm798, %v8330, %v8334
        %v8336 = vshrl.u32 %v7981, 16
        %v8338 = vrot.slane %v8336, 4
        %v8339 = vor.u32 %v8338, %v8334
        %v8340 = vrot.slane %v8339, 4
        %v8342 = vshll.u32 %v7982, 16
        %v8344 = vrot.slane %v8342, 5
        %v8345 = vsel %vm798, %v8340, %v8344
        %v8347 = vshrl.u32 %v7983, 16
        %v8349 = vrot.slane %v8347, 4
        %v8350 = vshll.u32 %v7983, 16
        %v8352 = vrot.slane %v8350, 5
        %v8353 = vor.u32 %v8349, %v8352
        %v8354 = vrot.slane %v8353, 4
        %v8356 = vshll.u32 %v7984, 16
        %v8358 = vrot.slane %v8356, 5
        %v8359 = vsel %vm798, %v8354, %v8358
        %v8360 = vshrl.u32 %v7984, 16
        %v8362 = vrot.slane %v8360, 4
        %v8363 = vor.u32 %v8362, %v8358
        %v8364 = vrot.slane %v8363, 4
        %v8366 = vshll.u32 %v7985, 16
        %v8368 = vrot.slane %v8366, 5
        %v8369 = vsel %vm798, %v8364, %v8368
        %s8370 = scalar_lea.vmem [#allocation8], 256
        %v8371 = vld [vmem:[%s8370] sm:$0xf]
        %v8372 = vld [vmem:[%s8370 + $0x4] sm:$0xf]
        %v8373 = vld [vmem:[%s8370 + $0x8] sm:$0xf]
        %v8374 = vld [vmem:[%s8370 + $0xc] sm:$0xf]
        %v8375 = vld [vmem:[%s8370 + $0x10] sm:$0xf]
        %v8376 = vld [vmem:[%s8370 + $0x14] sm:$0xf]
        %v8377 = vld [vmem:[%s8370 + $0x18] sm:$0xf]
        %v8378 = vld [vmem:[%s8370 + $0x1c] sm:$0xf]
        %v8379 = vld [vmem:[%s8370 + $0x20] sm:$0xf]
        %v8380 = vld [vmem:[%s8370 + $0x24] sm:$0xf]
        %v8381 = vld [vmem:[%s8370 + $0x28] sm:$0xf]
        %v8382 = vld [vmem:[%s8370 + $0x2c] sm:$0xf]
        %v8383 = vld [vmem:[%s8370 + $0x30] sm:$0xf]
        %v8384 = vld [vmem:[%s8370 + $0x34] sm:$0xf]
        %v8385 = vld [vmem:[%s8370 + $0x38] sm:$0xf]
        %v8386 = vld [vmem:[%s8370 + $0x3c] sm:$0xf]
        %v8387 = vunpack.c.l.b16 %v7999
        %v8388 = vunpack.c.l.b16 %v8009
        %v8389 = vunpack.c.l.b16 %v8023
        %v8390 = vunpack.c.l.b16 %v8033
        %v8391 = vunpack.c.l.b16 %v8047
        %v8392 = vunpack.c.l.b16 %v8057
        %v8393 = vunpack.c.l.b16 %v8071
        %v8394 = vunpack.c.l.b16 %v8081
        %v8395 = vunpack.c.l.b16 %v8095
        %v8396 = vunpack.c.l.b16 %v8105
        %v8397 = vunpack.c.l.b16 %v8119
        %v8398 = vunpack.c.l.b16 %v8129
        %v8399 = vunpack.c.l.b16 %v8143
        %v8400 = vunpack.c.l.b16 %v8153
        %v8401 = vunpack.c.l.b16 %v8167
        %v8402 = vunpack.c.l.b16 %v8177
        %v8403 = vunpack.c.l.b16 %v8191
        %v8404 = vunpack.c.l.b16 %v8201
        %v8405 = vunpack.c.l.b16 %v8215
        %v8406 = vunpack.c.l.b16 %v8225
        %v8407 = vunpack.c.l.b16 %v8239
        %v8408 = vunpack.c.l.b16 %v8249
        %v8409 = vunpack.c.l.b16 %v8263
        %v8410 = vunpack.c.l.b16 %v8273
        %v8411 = vunpack.c.l.b16 %v8287
        %v8412 = vunpack.c.l.b16 %v8297
        %v8413 = vunpack.c.l.b16 %v8311
        %v8414 = vunpack.c.l.b16 %v8321
        %v8415 = vunpack.c.l.b16 %v8335
        %v8416 = vunpack.c.l.b16 %v8345
        %v8417 = vunpack.c.l.b16 %v8359
        %v8418 = vunpack.c.l.b16 %v8369
        %v8419 = vpack.c.b16 %v8388, %v8387
        %v8420 = vpack.c.b16 %v8390, %v8389
        %v8421 = vpack.c.b16 %v8392, %v8391
        %v8422 = vpack.c.b16 %v8394, %v8393
        %v8423 = vpack.c.b16 %v8396, %v8395
        %v8424 = vpack.c.b16 %v8398, %v8397
        %v8425 = vpack.c.b16 %v8400, %v8399
        %v8426 = vpack.c.b16 %v8402, %v8401
        %v8427 = vpack.c.b16 %v8404, %v8403
        %v8428 = vpack.c.b16 %v8406, %v8405
        %v8429 = vpack.c.b16 %v8408, %v8407
        %v8430 = vpack.c.b16 %v8410, %v8409
        %v8431 = vpack.c.b16 %v8412, %v8411
        %v8432 = vpack.c.b16 %v8414, %v8413
        %v8433 = vpack.c.b16 %v8416, %v8415
        %v8434 = vpack.c.b16 %v8418, %v8417
        %v8467 = vunpack.c.l.b16 %v8371
        %v8468 = vunpack.c.l.b16 %v8372
        %v8469 = vunpack.c.l.b16 %v8373
        %v8470 = vunpack.c.l.b16 %v8374
        %v8471 = vunpack.c.l.b16 %v8375
        %v8472 = vunpack.c.l.b16 %v8376
        %v8473 = vunpack.c.l.b16 %v8377
        %v8474 = vunpack.c.l.b16 %v8378
        %v8475 = vunpack.c.l.b16 %v8379
        %v8476 = vunpack.c.l.b16 %v8380
        %v8477 = vunpack.c.l.b16 %v8381
        %v8478 = vunpack.c.l.b16 %v8382
        %v8479 = vunpack.c.l.b16 %v8383
        %v8480 = vunpack.c.l.b16 %v8384
        %v8481 = vunpack.c.l.b16 %v8385
        %v8482 = vunpack.c.l.b16 %v8386
        %v8483 = vpack.c.b16 %v8468, %v8467
        %v8484 = vpack.c.b16 %v8470, %v8469
        %v8485 = vpack.c.b16 %v8472, %v8471
        %v8486 = vpack.c.b16 %v8474, %v8473
        %v8487 = vpack.c.b16 %v8476, %v8475
        %v8488 = vpack.c.b16 %v8478, %v8477
        %v8489 = vpack.c.b16 %v8480, %v8479
        %v8490 = vpack.c.b16 %v8482, %v8481
        %8499 = vmatprep.subr.bf16.mxu0 0
        %8500 = vmatpush1.bf16.msra.mxu0 %v8483
        %8501 = vmatprep.subr.bf16.mxu0 0
        %8502 = vmatpush1.bf16.msra.mxu0 %v8484
        %8503 = vmatprep.subr.bf16.mxu0 0
        %8504 = vmatpush1.bf16.msra.mxu0 %v8485
        %8505 = vmatprep.subr.bf16.mxu0 0
        %8506 = vmatpush1.bf16.msra.mxu0 %v8486
        %8507 = vmatprep.subr.bf16.mxu0 0
        %8508 = vmatpush1.bf16.msra.mxu0 %v8487
        %8509 = vmatprep.subr.bf16.mxu0 0
        %8510 = vmatpush1.bf16.msra.mxu0 %v8488
        %8511 = vmatprep.subr.bf16.mxu0 0
        %8512 = vmatpush1.bf16.msra.mxu0 %v8489
        %8513 = vmatprep.subr.bf16.mxu0 0
        %8514 = vmatpush1.bf16.msra.mxu0 %v8490
        %8515 = vmatprep.subr.bf16.mxu0 0
        %8516 = vmatpush1.bf16.msra.mxu0 0
        %8517 = vmatprep.subr.bf16.mxu0 0
        %8518 = vmatpush1.bf16.msra.mxu0 0
        %8519 = vmatprep.subr.bf16.mxu0 0
        %8520 = vmatpush1.bf16.msra.mxu0 0
        %8521 = vmatprep.subr.bf16.mxu0 0
        %8522 = vmatpush1.bf16.msra.mxu0 0
        %8523 = vmatprep.subr.bf16.mxu0 0
        %8524 = vmatpush1.bf16.msra.mxu0 0
        %8525 = vmatprep.subr.bf16.mxu0 0
        %8526 = vmatpush1.bf16.msra.mxu0 0
        %8527 = vmatprep.subr.bf16.mxu0 0
        %8528 = vmatpush1.bf16.msra.mxu0 0
        %8529 = vmatprep.subr.bf16.mxu0 0
        %8530 = vmatpush1.bf16.msra.mxu0 0
        %8531 = vmatprep.mubr.bf16.mxu0 0
        %8532 = vmatmul.mubr.bf16.gmra.mrb[0].mxu0 %v8419
        %v8533 = vpop.f32.mrb[0].mxu0
        %v8534 = vadd.f32 0.0, %v8533
        %v8535 = vpop.f32.mrb[0].mxu0
        %v8536 = vpop.f32.mrb[0].mxu0
        %v8537 = vadd.f32 0.0, %v8536
        %v8538 = vpop.f32.mrb[0].mxu0
        %8539 = vmatprep.mubr.bf16.mxu0 0
        %8540 = vmatmul.mubr.bf16.gmra.mrb[0].mxu0 %v8420
        %v8541 = vpop.f32.mrb[0].mxu0
        %v8542 = vadd.f32 0.0, %v8541
        %v8543 = vpop.f32.mrb[0].mxu0
        %v8544 = vpop.f32.mrb[0].mxu0
        %v8545 = vadd.f32 0.0, %v8544
        %v8546 = vpop.f32.mrb[0].mxu0
        %8547 = vmatprep.mubr.bf16.mxu0 0
        %8548 = vmatmul.mubr.bf16.gmra.mrb[0].mxu0 %v8421
        %v8549 = vpop.f32.mrb[0].mxu0
        %v8550 = vadd.f32 0.0, %v8549
        %v8551 = vpop.f32.mrb[0].mxu0
        %v8552 = vpop.f32.mrb[0].mxu0
        %v8553 = vadd.f32 0.0, %v8552
        %v8554 = vpop.f32.mrb[0].mxu0
        %8555 = vmatprep.mubr.bf16.mxu0 0
        %8556 = vmatmul.mubr.bf16.gmra.mrb[0].mxu0 %v8422
        %v8557 = vpop.f32.mrb[0].mxu0
        %v8558 = vadd.f32 0.0, %v8557
        %v8559 = vpop.f32.mrb[0].mxu0
        %v8560 = vpop.f32.mrb[0].mxu0
        %v8561 = vadd.f32 0.0, %v8560
        %v8562 = vpop.f32.mrb[0].mxu0
        %8563 = vmatprep.mubr.bf16.mxu0 0
        %8564 = vmatmul.mubr.bf16.gmra.mrb[0].mxu0 %v8423
        %v8565 = vpop.f32.mrb[0].mxu0
        %v8566 = vadd.f32 0.0, %v8565
        %v8567 = vpop.f32.mrb[0].mxu0
        %v8568 = vpop.f32.mrb[0].mxu0
        %v8569 = vadd.f32 0.0, %v8568
        %v8570 = vpop.f32.mrb[0].mxu0
        %8571 = vmatprep.mubr.bf16.mxu0 0
        %8572 = vmatmul.mubr.bf16.gmra.mrb[0].mxu0 %v8424
        %v8573 = vpop.f32.mrb[0].mxu0
        %v8574 = vadd.f32 0.0, %v8573
        %v8575 = vpop.f32.mrb[0].mxu0
        %v8576 = vpop.f32.mrb[0].mxu0
        %v8577 = vadd.f32 0.0, %v8576
        %v8578 = vpop.f32.mrb[0].mxu0
        %8579 = vmatprep.mubr.bf16.mxu0 0
        %8580 = vmatmul.mubr.bf16.gmra.mrb[0].mxu0 %v8425
        %v8581 = vpop.f32.mrb[0].mxu0
        %v8582 = vadd.f32 0.0, %v8581
        %v8583 = vpop.f32.mrb[0].mxu0
        %v8584 = vpop.f32.mrb[0].mxu0
        %v8585 = vadd.f32 0.0, %v8584
        %v8586 = vpop.f32.mrb[0].mxu0
        %8587 = vmatprep.mubr.bf16.mxu0 0
        %8588 = vmatmul.mubr.bf16.gmra.mrb[0].mxu0 %v8426
        %v8589 = vpop.f32.mrb[0].mxu0
        %v8590 = vadd.f32 0.0, %v8589
        %v8591 = vpop.f32.mrb[0].mxu0
        %v8592 = vpop.f32.mrb[0].mxu0
        %v8593 = vadd.f32 0.0, %v8592
        %v8594 = vpop.f32.mrb[0].mxu0
        %8595 = vmatprep.mubr.bf16.mxu0 0
        %8596 = vmatmul.mubr.bf16.gmra.mrb[0].mxu0 %v8427
        %v8597 = vpop.f32.mrb[0].mxu0
        %v8598 = vadd.f32 0.0, %v8597
        %v8599 = vpop.f32.mrb[0].mxu0
        %v8600 = vpop.f32.mrb[0].mxu0
        %v8601 = vadd.f32 0.0, %v8600
        %v8602 = vpop.f32.mrb[0].mxu0
        %8603 = vmatprep.mubr.bf16.mxu0 0
        %8604 = vmatmul.mubr.bf16.gmra.mrb[0].mxu0 %v8428
        %v8605 = vpop.f32.mrb[0].mxu0
        %v8606 = vadd.f32 0.0, %v8605
        %v8607 = vpop.f32.mrb[0].mxu0
        %v8608 = vpop.f32.mrb[0].mxu0
        %v8609 = vadd.f32 0.0, %v8608
        %v8610 = vpop.f32.mrb[0].mxu0
        %8611 = vmatprep.mubr.bf16.mxu0 0
        %8612 = vmatmul.mubr.bf16.gmra.mrb[0].mxu0 %v8429
        %v8613 = vpop.f32.mrb[0].mxu0
        %v8614 = vadd.f32 0.0, %v8613
        %v8615 = vpop.f32.mrb[0].mxu0
        %v8616 = vpop.f32.mrb[0].mxu0
        %v8617 = vadd.f32 0.0, %v8616
        %v8618 = vpop.f32.mrb[0].mxu0
        %8619 = vmatprep.mubr.bf16.mxu0 0
        %8620 = vmatmul.mubr.bf16.gmra.mrb[0].mxu0 %v8430
        %v8621 = vpop.f32.mrb[0].mxu0
        %v8622 = vadd.f32 0.0, %v8621
        %v8623 = vpop.f32.mrb[0].mxu0
        %v8624 = vpop.f32.mrb[0].mxu0
        %v8625 = vadd.f32 0.0, %v8624
        %v8626 = vpop.f32.mrb[0].mxu0
        %8627 = vmatprep.mubr.bf16.mxu0 0
        %8628 = vmatmul.mubr.bf16.gmra.mrb[0].mxu0 %v8431
        %v8629 = vpop.f32.mrb[0].mxu0
        %v8630 = vadd.f32 0.0, %v8629
        %v8631 = vpop.f32.mrb[0].mxu0
        %v8632 = vpop.f32.mrb[0].mxu0
        %v8633 = vadd.f32 0.0, %v8632
        %v8634 = vpop.f32.mrb[0].mxu0
        %8635 = vmatprep.mubr.bf16.mxu0 0
        %8636 = vmatmul.mubr.bf16.gmra.mrb[0].mxu0 %v8432
        %v8637 = vpop.f32.mrb[0].mxu0
        %v8638 = vadd.f32 0.0, %v8637
        %v8639 = vpop.f32.mrb[0].mxu0
        %v8640 = vpop.f32.mrb[0].mxu0
        %v8641 = vadd.f32 0.0, %v8640
        %v8642 = vpop.f32.mrb[0].mxu0
        %8643 = vmatprep.mubr.bf16.mxu0 0
        %8644 = vmatmul.mubr.bf16.gmra.mrb[0].mxu0 %v8433
        %v8645 = vpop.f32.mrb[0].mxu0
        %v8646 = vadd.f32 0.0, %v8645
        %v8647 = vpop.f32.mrb[0].mxu0
        %v8648 = vpop.f32.mrb[0].mxu0
        %v8649 = vadd.f32 0.0, %v8648
        %v8650 = vpop.f32.mrb[0].mxu0
        %8651 = vmatprep.mubr.bf16.mxu0 0
        %8652 = vmatmul.mubr.bf16.gmra.mrb[0].mxu0 %v8434
        %v8653 = vpop.f32.mrb[0].mxu0
        %v8654 = vadd.f32 0.0, %v8653
        %v8655 = vpop.f32.mrb[0].mxu0
        %v8656 = vpop.f32.mrb[0].mxu0
        %v8657 = vadd.f32 0.0, %v8656
        %v8658 = vpop.f32.mrb[0].mxu0
        %8659 = vdwg.mxu0
        %v8660 = vadd.f32 %v7906, %v8534
        %v8661 = vadd.f32 %v7907, %v8537
        %v8662 = vadd.f32 %v7908, %v8542
        %v8663 = vadd.f32 %v7909, %v8545
        %v8664 = vadd.f32 %v7910, %v8550
        %v8665 = vadd.f32 %v7911, %v8553
        %v8666 = vadd.f32 %v7912, %v8558
        %v8667 = vadd.f32 %v7913, %v8561
        %v8668 = vadd.f32 %v7914, %v8566
        %v8669 = vadd.f32 %v7915, %v8569
        %v8670 = vadd.f32 %v7916, %v8574
        %v8671 = vadd.f32 %v7917, %v8577
        %v8672 = vadd.f32 %v7918, %v8582
        %v8673 = vadd.f32 %v7919, %v8585
        %v8674 = vadd.f32 %v7920, %v8590
        %v8675 = vadd.f32 %v7921, %v8593
        %v8676 = vadd.f32 %v7922, %v8598
        %v8677 = vadd.f32 %v7923, %v8601
        %v8678 = vadd.f32 %v7924, %v8606
        %v8679 = vadd.f32 %v7925, %v8609
        %v8680 = vadd.f32 %v7926, %v8614
        %v8681 = vadd.f32 %v7927, %v8617
        %v8682 = vadd.f32 %v7928, %v8622
        %v8683 = vadd.f32 %v7929, %v8625
        %v8684 = vadd.f32 %v7930, %v8630
        %v8685 = vadd.f32 %v7931, %v8633
        %v8686 = vadd.f32 %v7932, %v8638
        %v8687 = vadd.f32 %v7933, %v8641
        %v8688 = vadd.f32 %v7934, %v8646
        %v8689 = vadd.f32 %v7935, %v8649
        %v8690 = vadd.f32 %v7936, %v8654
        %v8691 = vadd.f32 %v7937, %v8657
        %v8692 = vld [vmem:[%s683] sm:$0xe]
        %v8693 = vld [vmem:[%s683 + $0xc] sm:$0xe]
        %v8694 = vld [vmem:[%s683 + $0x18] sm:$0xe]
        %v8695 = vld [vmem:[%s683 + $0x24] sm:$0xe]
        %v8696 = vld [vmem:[%s683 + $0x30] sm:$0xe]
        %v8697 = vld [vmem:[%s683 + $0x3c] sm:$0xe]
        %v8698 = vld [vmem:[%s683 + $0x48] sm:$0xe]
        %v8699 = vld [vmem:[%s683 + $0x54] sm:$0xe]
        %v8700 = vld [vmem:[%s683 + $0x60] sm:$0xe]
        %v8701 = vld [vmem:[%s683 + $0x6c] sm:$0xe]
        %v8702 = vld [vmem:[%s683 + $0x78] sm:$0xe]
        %v8703 = vld [vmem:[%s683 + $0x84] sm:$0xe]
        %v8704 = vld [vmem:[%s683 + $0x90] sm:$0xe]
        %v8705 = vld [vmem:[%s683 + $0x9c] sm:$0xe]
        %v8706 = vld [vmem:[%s683 + $0xa8] sm:$0xe]
        %v8707 = vld [vmem:[%s683 + $0xb4] sm:$0xe]
        %v8756 = vrot.slane %v8692, 5
        %v8757 = vrot.slane %v8756, 4
        %v8758 = vrot.slane %v7939, 5
        %v8759 = vsel %vm1828, %v8757, %v8758
        %v8760 = vrot.slane %v8758, 4
        %v8761 = vrot.slane %v7940, 5
        %v8762 = vsel %vm1828, %v8760, %v8761
        %v8763 = vrot.slane %v8693, 5
        %v8764 = vrot.slane %v8763, 4
        %v8765 = vrot.slane %v7942, 5
        %v8766 = vsel %vm1828, %v8764, %v8765
        %v8767 = vrot.slane %v8765, 4
        %v8768 = vrot.slane %v7943, 5
        %v8769 = vsel %vm1828, %v8767, %v8768
        %v8770 = vrot.slane %v8694, 5
        %v8771 = vrot.slane %v8770, 4
        %v8772 = vrot.slane %v7945, 5
        %v8773 = vsel %vm1828, %v8771, %v8772
        %v8774 = vrot.slane %v8772, 4
        %v8775 = vrot.slane %v7946, 5
        %v8776 = vsel %vm1828, %v8774, %v8775
        %v8777 = vrot.slane %v8695, 5
        %v8778 = vrot.slane %v8777, 4
        %v8779 = vrot.slane %v7948, 5
        %v8780 = vsel %vm1828, %v8778, %v8779
        %v8781 = vrot.slane %v8779, 4
        %v8782 = vrot.slane %v7949, 5
        %v8783 = vsel %vm1828, %v8781, %v8782
        %v8784 = vrot.slane %v8696, 5
        %v8785 = vrot.slane %v8784, 4
        %v8786 = vrot.slane %v7951, 5
        %v8787 = vsel %vm1828, %v8785, %v8786
        %v8788 = vrot.slane %v8786, 4
        %v8789 = vrot.slane %v7952, 5
        %v8790 = vsel %vm1828, %v8788, %v8789
        %v8791 = vrot.slane %v8697, 5
        %v8792 = vrot.slane %v8791, 4
        %v8793 = vrot.slane %v7954, 5
        %v8794 = vsel %vm1828, %v8792, %v8793
        %v8795 = vrot.slane %v8793, 4
        %v8796 = vrot.slane %v7955, 5
        %v8797 = vsel %vm1828, %v8795, %v8796
        %v8798 = vrot.slane %v8698, 5
        %v8799 = vrot.slane %v8798, 4
        %v8800 = vrot.slane %v7957, 5
        %v8801 = vsel %vm1828, %v8799, %v8800
        %v8802 = vrot.slane %v8800, 4
        %v8803 = vrot.slane %v7958, 5
        %v8804 = vsel %vm1828, %v8802, %v8803
        %v8805 = vrot.slane %v8699, 5
        %v8806 = vrot.slane %v8805, 4
        %v8807 = vrot.slane %v7960, 5
        %v8808 = vsel %vm1828, %v8806, %v8807
        %v8809 = vrot.slane %v8807, 4
        %v8810 = vrot.slane %v7961, 5
        %v8811 = vsel %vm1828, %v8809, %v8810
        %v8812 = vrot.slane %v8700, 5
        %v8813 = vrot.slane %v8812, 4
        %v8814 = vrot.slane %v7963, 5
        %v8815 = vsel %vm1828, %v8813, %v8814
        %v8816 = vrot.slane %v8814, 4
        %v8817 = vrot.slane %v7964, 5
        %v8818 = vsel %vm1828, %v8816, %v8817
        %v8819 = vrot.slane %v8701, 5
        %v8820 = vrot.slane %v8819, 4
        %v8821 = vrot.slane %v7966, 5
        %v8822 = vsel %vm1828, %v8820, %v8821
        %v8823 = vrot.slane %v8821, 4
        %v8824 = vrot.slane %v7967, 5
        %v8825 = vsel %vm1828, %v8823, %v8824
        %v8826 = vrot.slane %v8702, 5
        %v8827 = vrot.slane %v8826, 4
        %v8828 = vrot.slane %v7969, 5
        %v8829 = vsel %vm1828, %v8827, %v8828
        %v8830 = vrot.slane %v8828, 4
        %v8831 = vrot.slane %v7970, 5
        %v8832 = vsel %vm1828, %v8830, %v8831
        %v8833 = vrot.slane %v8703, 5
        %v8834 = vrot.slane %v8833, 4
        %v8835 = vrot.slane %v7972, 5
        %v8836 = vsel %vm1828, %v8834, %v8835
        %v8837 = vrot.slane %v8835, 4
        %v8838 = vrot.slane %v7973, 5
        %v8839 = vsel %vm1828, %v8837, %v8838
        %v8840 = vrot.slane %v8704, 5
        %v8841 = vrot.slane %v8840, 4
        %v8842 = vrot.slane %v7975, 5
        %v8843 = vsel %vm1828, %v8841, %v8842
        %v8844 = vrot.slane %v8842, 4
        %v8845 = vrot.slane %v7976, 5
        %v8846 = vsel %vm1828, %v8844, %v8845
        %v8847 = vrot.slane %v8705, 5
        %v8848 = vrot.slane %v8847, 4
        %v8849 = vrot.slane %v7978, 5
        %v8850 = vsel %vm1828, %v8848, %v8849
        %v8851 = vrot.slane %v8849, 4
        %v8852 = vrot.slane %v7979, 5
        %v8853 = vsel %vm1828, %v8851, %v8852
        %v8854 = vrot.slane %v8706, 5
        %v8855 = vrot.slane %v8854, 4
        %v8856 = vrot.slane %v7981, 5
        %v8857 = vsel %vm1828, %v8855, %v8856
        %v8858 = vrot.slane %v8856, 4
        %v8859 = vrot.slane %v7982, 5
        %v8860 = vsel %vm1828, %v8858, %v8859
        %v8861 = vrot.slane %v8707, 5
        %v8862 = vrot.slane %v8861, 4
        %v8863 = vrot.slane %v7984, 5
        %v8864 = vsel %vm1828, %v8862, %v8863
        %v8865 = vrot.slane %v8863, 4
        %v8866 = vrot.slane %v7985, 5
        %v8867 = vsel %vm1828, %v8865, %v8866
        %s8868 = scalar_lea.vmem [#allocation8], 320
        %v8869 = vld [vmem:[%s8868] sm:$0xf]
        %v8870 = vld [vmem:[%s8868 + $0x4] sm:$0xf]
        %v8871 = vld [vmem:[%s8868 + $0x8] sm:$0xf]
        %v8872 = vld [vmem:[%s8868 + $0xc] sm:$0xf]
        %v8873 = vld [vmem:[%s8868 + $0x10] sm:$0xf]
        %v8874 = vld [vmem:[%s8868 + $0x14] sm:$0xf]
        %v8875 = vld [vmem:[%s8868 + $0x18] sm:$0xf]
        %v8876 = vld [vmem:[%s8868 + $0x1c] sm:$0xf]
        %v8877 = vld [vmem:[%s8868 + $0x20] sm:$0xf]
        %v8878 = vld [vmem:[%s8868 + $0x24] sm:$0xf]
        %v8879 = vld [vmem:[%s8868 + $0x28] sm:$0xf]
        %v8880 = vld [vmem:[%s8868 + $0x2c] sm:$0xf]
        %v8881 = vld [vmem:[%s8868 + $0x30] sm:$0xf]
        %v8882 = vld [vmem:[%s8868 + $0x34] sm:$0xf]
        %v8883 = vld [vmem:[%s8868 + $0x38] sm:$0xf]
        %v8884 = vld [vmem:[%s8868 + $0x3c] sm:$0xf]
        %v8885 = vunpack.c.l.b16 %v8759
        %v8886 = vunpack.c.l.b16 %v8762
        %v8887 = vunpack.c.l.b16 %v8766
        %v8888 = vunpack.c.l.b16 %v8769
        %v8889 = vunpack.c.l.b16 %v8773
        %v8890 = vunpack.c.l.b16 %v8776
        %v8891 = vunpack.c.l.b16 %v8780
        %v8892 = vunpack.c.l.b16 %v8783
        %v8893 = vunpack.c.l.b16 %v8787
        %v8894 = vunpack.c.l.b16 %v8790
        %v8895 = vunpack.c.l.b16 %v8794
        %v8896 = vunpack.c.l.b16 %v8797
        %v8897 = vunpack.c.l.b16 %v8801
        %v8898 = vunpack.c.l.b16 %v8804
        %v8899 = vunpack.c.l.b16 %v8808
        %v8900 = vunpack.c.l.b16 %v8811
        %v8901 = vunpack.c.l.b16 %v8815
        %v8902 = vunpack.c.l.b16 %v8818
        %v8903 = vunpack.c.l.b16 %v8822
        %v8904 = vunpack.c.l.b16 %v8825
        %v8905 = vunpack.c.l.b16 %v8829
        %v8906 = vunpack.c.l.b16 %v8832
        %v8907 = vunpack.c.l.b16 %v8836
        %v8908 = vunpack.c.l.b16 %v8839
        %v8909 = vunpack.c.l.b16 %v8843
        %v8910 = vunpack.c.l.b16 %v8846
        %v8911 = vunpack.c.l.b16 %v8850
        %v8912 = vunpack.c.l.b16 %v8853
        %v8913 = vunpack.c.l.b16 %v8857
        %v8914 = vunpack.c.l.b16 %v8860
        %v8915 = vunpack.c.l.b16 %v8864
        %v8916 = vunpack.c.l.b16 %v8867
        %v8917 = vpack.c.b16 %v8886, %v8885
        %v8918 = vpack.c.b16 %v8888, %v8887
        %v8919 = vpack.c.b16 %v8890, %v8889
        %v8920 = vpack.c.b16 %v8892, %v8891
        %v8921 = vpack.c.b16 %v8894, %v8893
        %v8922 = vpack.c.b16 %v8896, %v8895
        %v8923 = vpack.c.b16 %v8898, %v8897
        %v8924 = vpack.c.b16 %v8900, %v8899
        %v8925 = vpack.c.b16 %v8902, %v8901
        %v8926 = vpack.c.b16 %v8904, %v8903
        %v8927 = vpack.c.b16 %v8906, %v8905
        %v8928 = vpack.c.b16 %v8908, %v8907
        %v8929 = vpack.c.b16 %v8910, %v8909
        %v8930 = vpack.c.b16 %v8912, %v8911
        %v8931 = vpack.c.b16 %v8914, %v8913
        %v8932 = vpack.c.b16 %v8916, %v8915
        %v8965 = vunpack.c.l.b16 %v8869
        %v8966 = vunpack.c.l.b16 %v8870
        %v8967 = vunpack.c.l.b16 %v8871
        %v8968 = vunpack.c.l.b16 %v8872
        %v8969 = vunpack.c.l.b16 %v8873
        %v8970 = vunpack.c.l.b16 %v8874
        %v8971 = vunpack.c.l.b16 %v8875
        %v8972 = vunpack.c.l.b16 %v8876
        %v8973 = vunpack.c.l.b16 %v8877
        %v8974 = vunpack.c.l.b16 %v8878
        %v8975 = vunpack.c.l.b16 %v8879
        %v8976 = vunpack.c.l.b16 %v8880
        %v8977 = vunpack.c.l.b16 %v8881
        %v8978 = vunpack.c.l.b16 %v8882
        %v8979 = vunpack.c.l.b16 %v8883
        %v8980 = vunpack.c.l.b16 %v8884
        %v8981 = vpack.c.b16 %v8966, %v8965
        %v8982 = vpack.c.b16 %v8968, %v8967
        %v8983 = vpack.c.b16 %v8970, %v8969
        %v8984 = vpack.c.b16 %v8972, %v8971
        %v8985 = vpack.c.b16 %v8974, %v8973
        %v8986 = vpack.c.b16 %v8976, %v8975
        %v8987 = vpack.c.b16 %v8978, %v8977
        %v8988 = vpack.c.b16 %v8980, %v8979
        %8997 = vmatprep.subr.bf16.mxu0 0
        %8998 = vmatpush1.bf16.msra.mxu0 %v8981
        %8999 = vmatprep.subr.bf16.mxu0 0
        %9000 = vmatpush1.bf16.msra.mxu0 %v8982
        %9001 = vmatprep.subr.bf16.mxu0 0
        %9002 = vmatpush1.bf16.msra.mxu0 %v8983
        %9003 = vmatprep.subr.bf16.mxu0 0
        %9004 = vmatpush1.bf16.msra.mxu0 %v8984
        %9005 = vmatprep.subr.bf16.mxu0 0
        %9006 = vmatpush1.bf16.msra.mxu0 %v8985
        %9007 = vmatprep.subr.bf16.mxu0 0
        %9008 = vmatpush1.bf16.msra.mxu0 %v8986
        %9009 = vmatprep.subr.bf16.mxu0 0
        %9010 = vmatpush1.bf16.msra.mxu0 %v8987
        %9011 = vmatprep.subr.bf16.mxu0 0
        %9012 = vmatpush1.bf16.msra.mxu0 %v8988
        %9013 = vmatprep.subr.bf16.mxu0 0
        %9014 = vmatpush1.bf16.msra.mxu0 0
        %9015 = vmatprep.subr.bf16.mxu0 0
        %9016 = vmatpush1.bf16.msra.mxu0 0
        %9017 = vmatprep.subr.bf16.mxu0 0
        %9018 = vmatpush1.bf16.msra.mxu0 0
        %9019 = vmatprep.subr.bf16.mxu0 0
        %9020 = vmatpush1.bf16.msra.mxu0 0
        %9021 = vmatprep.subr.bf16.mxu0 0
        %9022 = vmatpush1.bf16.msra.mxu0 0
        %9023 = vmatprep.subr.bf16.mxu0 0
        %9024 = vmatpush1.bf16.msra.mxu0 0
        %9025 = vmatprep.subr.bf16.mxu0 0
        %9026 = vmatpush1.bf16.msra.mxu0 0
        %9027 = vmatprep.subr.bf16.mxu0 0
        %9028 = vmatpush1.bf16.msra.mxu0 0
        %9029 = vmatprep.mubr.bf16.mxu0 0
        %9030 = vmatmul.mubr.bf16.gmra.mrb[0].mxu0 %v8917
        %v9031 = vpop.f32.mrb[0].mxu0
        %v9032 = vadd.f32 0.0, %v9031
        %v9033 = vpop.f32.mrb[0].mxu0
        %v9034 = vpop.f32.mrb[0].mxu0
        %v9035 = vadd.f32 0.0, %v9034
        %v9036 = vpop.f32.mrb[0].mxu0
        %9037 = vmatprep.mubr.bf16.mxu0 0
        %9038 = vmatmul.mubr.bf16.gmra.mrb[0].mxu0 %v8918
        %v9039 = vpop.f32.mrb[0].mxu0
        %v9040 = vadd.f32 0.0, %v9039
        %v9041 = vpop.f32.mrb[0].mxu0
        %v9042 = vpop.f32.mrb[0].mxu0
        %v9043 = vadd.f32 0.0, %v9042
        %v9044 = vpop.f32.mrb[0].mxu0
        %9045 = vmatprep.mubr.bf16.mxu0 0
        %9046 = vmatmul.mubr.bf16.gmra.mrb[0].mxu0 %v8919
        %v9047 = vpop.f32.mrb[0].mxu0
        %v9048 = vadd.f32 0.0, %v9047
        %v9049 = vpop.f32.mrb[0].mxu0
        %v9050 = vpop.f32.mrb[0].mxu0
        %v9051 = vadd.f32 0.0, %v9050
        %v9052 = vpop.f32.mrb[0].mxu0
        %9053 = vmatprep.mubr.bf16.mxu0 0
        %9054 = vmatmul.mubr.bf16.gmra.mrb[0].mxu0 %v8920
        %v9055 = vpop.f32.mrb[0].mxu0
        %v9056 = vadd.f32 0.0, %v9055
        %v9057 = vpop.f32.mrb[0].mxu0
        %v9058 = vpop.f32.mrb[0].mxu0
        %v9059 = vadd.f32 0.0, %v9058
        %v9060 = vpop.f32.mrb[0].mxu0
        %9061 = vmatprep.mubr.bf16.mxu0 0
        %9062 = vmatmul.mubr.bf16.gmra.mrb[0].mxu0 %v8921
        %v9063 = vpop.f32.mrb[0].mxu0
        %v9064 = vadd.f32 0.0, %v9063
        %v9065 = vpop.f32.mrb[0].mxu0
        %v9066 = vpop.f32.mrb[0].mxu0
        %v9067 = vadd.f32 0.0, %v9066
        %v9068 = vpop.f32.mrb[0].mxu0
        %9069 = vmatprep.mubr.bf16.mxu0 0
        %9070 = vmatmul.mubr.bf16.gmra.mrb[0].mxu0 %v8922
        %v9071 = vpop.f32.mrb[0].mxu0
        %v9072 = vadd.f32 0.0, %v9071
        %v9073 = vpop.f32.mrb[0].mxu0
        %v9074 = vpop.f32.mrb[0].mxu0
        %v9075 = vadd.f32 0.0, %v9074
        %v9076 = vpop.f32.mrb[0].mxu0
        %9077 = vmatprep.mubr.bf16.mxu0 0
        %9078 = vmatmul.mubr.bf16.gmra.mrb[0].mxu0 %v8923
        %v9079 = vpop.f32.mrb[0].mxu0
        %v9080 = vadd.f32 0.0, %v9079
        %v9081 = vpop.f32.mrb[0].mxu0
        %v9082 = vpop.f32.mrb[0].mxu0
        %v9083 = vadd.f32 0.0, %v9082
        %v9084 = vpop.f32.mrb[0].mxu0
        %9085 = vmatprep.mubr.bf16.mxu0 0
        %9086 = vmatmul.mubr.bf16.gmra.mrb[0].mxu0 %v8924
        %v9087 = vpop.f32.mrb[0].mxu0
        %v9088 = vadd.f32 0.0, %v9087
        %v9089 = vpop.f32.mrb[0].mxu0
        %v9090 = vpop.f32.mrb[0].mxu0
        %v9091 = vadd.f32 0.0, %v9090
        %v9092 = vpop.f32.mrb[0].mxu0
        %9093 = vmatprep.mubr.bf16.mxu0 0
        %9094 = vmatmul.mubr.bf16.gmra.mrb[0].mxu0 %v8925
        %v9095 = vpop.f32.mrb[0].mxu0
        %v9096 = vadd.f32 0.0, %v9095
        %v9097 = vpop.f32.mrb[0].mxu0
        %v9098 = vpop.f32.mrb[0].mxu0
        %v9099 = vadd.f32 0.0, %v9098
        %v9100 = vpop.f32.mrb[0].mxu0
        %9101 = vmatprep.mubr.bf16.mxu0 0
        %9102 = vmatmul.mubr.bf16.gmra.mrb[0].mxu0 %v8926
        %v9103 = vpop.f32.mrb[0].mxu0
        %v9104 = vadd.f32 0.0, %v9103
        %v9105 = vpop.f32.mrb[0].mxu0
        %v9106 = vpop.f32.mrb[0].mxu0
        %v9107 = vadd.f32 0.0, %v9106
        %v9108 = vpop.f32.mrb[0].mxu0
        %9109 = vmatprep.mubr.bf16.mxu0 0
        %9110 = vmatmul.mubr.bf16.gmra.mrb[0].mxu0 %v8927
        %v9111 = vpop.f32.mrb[0].mxu0
        %v9112 = vadd.f32 0.0, %v9111
        %v9113 = vpop.f32.mrb[0].mxu0
        %v9114 = vpop.f32.mrb[0].mxu0
        %v9115 = vadd.f32 0.0, %v9114
        %v9116 = vpop.f32.mrb[0].mxu0
        %9117 = vmatprep.mubr.bf16.mxu0 0
        %9118 = vmatmul.mubr.bf16.gmra.mrb[0].mxu0 %v8928
        %v9119 = vpop.f32.mrb[0].mxu0
        %v9120 = vadd.f32 0.0, %v9119
        %v9121 = vpop.f32.mrb[0].mxu0
        %v9122 = vpop.f32.mrb[0].mxu0
        %v9123 = vadd.f32 0.0, %v9122
        %v9124 = vpop.f32.mrb[0].mxu0
        %9125 = vmatprep.mubr.bf16.mxu0 0
        %9126 = vmatmul.mubr.bf16.gmra.mrb[0].mxu0 %v8929
        %v9127 = vpop.f32.mrb[0].mxu0
        %v9128 = vadd.f32 0.0, %v9127
        %v9129 = vpop.f32.mrb[0].mxu0
        %v9130 = vpop.f32.mrb[0].mxu0
        %v9131 = vadd.f32 0.0, %v9130
        %v9132 = vpop.f32.mrb[0].mxu0
        %9133 = vmatprep.mubr.bf16.mxu0 0
        %9134 = vmatmul.mubr.bf16.gmra.mrb[0].mxu0 %v8930
        %v9135 = vpop.f32.mrb[0].mxu0
        %v9136 = vadd.f32 0.0, %v9135
        %v9137 = vpop.f32.mrb[0].mxu0
        %v9138 = vpop.f32.mrb[0].mxu0
        %v9139 = vadd.f32 0.0, %v9138
        %v9140 = vpop.f32.mrb[0].mxu0
        %9141 = vmatprep.mubr.bf16.mxu0 0
        %9142 = vmatmul.mubr.bf16.gmra.mrb[0].mxu0 %v8931
        %v9143 = vpop.f32.mrb[0].mxu0
        %v9144 = vadd.f32 0.0, %v9143
        %v9145 = vpop.f32.mrb[0].mxu0
        %v9146 = vpop.f32.mrb[0].mxu0
        %v9147 = vadd.f32 0.0, %v9146
        %v9148 = vpop.f32.mrb[0].mxu0
        %9149 = vmatprep.mubr.bf16.mxu0 0
        %9150 = vmatmul.mubr.bf16.gmra.mrb[0].mxu0 %v8932
        %v9151 = vpop.f32.mrb[0].mxu0
        %v9152 = vadd.f32 0.0, %v9151
        %v9153 = vpop.f32.mrb[0].mxu0
        %v9154 = vpop.f32.mrb[0].mxu0
        %v9155 = vadd.f32 0.0, %v9154
        %v9156 = vpop.f32.mrb[0].mxu0
        %9157 = vdwg.mxu0
        %v9158 = vadd.f32 %v8660, %v9032
        %v9159 = vadd.f32 %v8661, %v9035
        %v9160 = vadd.f32 %v8662, %v9040
        %v9161 = vadd.f32 %v8663, %v9043
        %v9162 = vadd.f32 %v8664, %v9048
        %v9163 = vadd.f32 %v8665, %v9051
        %v9164 = vadd.f32 %v8666, %v9056
        %v9165 = vadd.f32 %v8667, %v9059
        %v9166 = vadd.f32 %v8668, %v9064
        %v9167 = vadd.f32 %v8669, %v9067
        %v9168 = vadd.f32 %v8670, %v9072
        %v9169 = vadd.f32 %v8671, %v9075
        %v9170 = vadd.f32 %v8672, %v9080
        %v9171 = vadd.f32 %v8673, %v9083
        %v9172 = vadd.f32 %v8674, %v9088
        %v9173 = vadd.f32 %v8675, %v9091
        %v9174 = vadd.f32 %v8676, %v9096
        %v9175 = vadd.f32 %v8677, %v9099
        %v9176 = vadd.f32 %v8678, %v9104
        %v9177 = vadd.f32 %v8679, %v9107
        %v9178 = vadd.f32 %v8680, %v9112
        %v9179 = vadd.f32 %v8681, %v9115
        %v9180 = vadd.f32 %v8682, %v9120
        %v9181 = vadd.f32 %v8683, %v9123
        %v9182 = vadd.f32 %v8684, %v9128
        %v9183 = vadd.f32 %v8685, %v9131
        %v9184 = vadd.f32 %v8686, %v9136
        %v9185 = vadd.f32 %v8687, %v9139
        %v9186 = vadd.f32 %v8688, %v9144
        %v9187 = vadd.f32 %v8689, %v9147
        %v9188 = vadd.f32 %v8690, %v9152
        %v9189 = vadd.f32 %v8691, %v9155
        %v9190 = vld [vmem:[%s3901] sm:$0xf]
        %v9191 = vld [vmem:[%s3901 + $0x4] sm:$0xf]
        %v9192 = vld [vmem:[%s3901 + $0xc] sm:$0xf]
        %v9193 = vld [vmem:[%s3901 + $0x10] sm:$0xf]
        %v9194 = vld [vmem:[%s3901 + $0x18] sm:$0xf]
        %v9195 = vld [vmem:[%s3901 + $0x1c] sm:$0xf]
        %v9196 = vld [vmem:[%s3901 + $0x24] sm:$0xf]
        %v9197 = vld [vmem:[%s3901 + $0x28] sm:$0xf]
        %v9198 = vld [vmem:[%s3901 + $0x30] sm:$0xf]
        %v9199 = vld [vmem:[%s3901 + $0x34] sm:$0xf]
        %v9200 = vld [vmem:[%s3901 + $0x3c] sm:$0xf]
        %v9201 = vld [vmem:[%s3901 + $0x40] sm:$0xf]
        %v9202 = vld [vmem:[%s3901 + $0x48] sm:$0xf]
        %v9203 = vld [vmem:[%s3901 + $0x4c] sm:$0xf]
        %v9204 = vld [vmem:[%s3901 + $0x54] sm:$0xf]
        %v9205 = vld [vmem:[%s3901 + $0x58] sm:$0xf]
        %v9206 = vld [vmem:[%s3901 + $0x60] sm:$0xf]
        %v9207 = vld [vmem:[%s3901 + $0x64] sm:$0xf]
        %v9208 = vld [vmem:[%s3901 + $0x6c] sm:$0xf]
        %v9209 = vld [vmem:[%s3901 + $0x70] sm:$0xf]
        %v9210 = vld [vmem:[%s3901 + $0x78] sm:$0xf]
        %v9211 = vld [vmem:[%s3901 + $0x7c] sm:$0xf]
        %v9212 = vld [vmem:[%s3901 + $0x84] sm:$0xf]
        %v9213 = vld [vmem:[%s3901 + $0x88] sm:$0xf]
        %v9214 = vld [vmem:[%s3901 + $0x90] sm:$0xf]
        %v9215 = vld [vmem:[%s3901 + $0x94] sm:$0xf]
        %v9216 = vld [vmem:[%s3901 + $0x9c] sm:$0xf]
        %v9217 = vld [vmem:[%s3901 + $0xa0] sm:$0xf]
        %v9218 = vld [vmem:[%s3901 + $0xa8] sm:$0xf]
        %v9219 = vld [vmem:[%s3901 + $0xac] sm:$0xf]
        %v9220 = vld [vmem:[%s3901 + $0xb4] sm:$0xf]
        %v9221 = vld [vmem:[%s3901 + $0xb8] sm:$0xf]
        %s9222 = scalar_lea.vmem [#allocation8], 384
        %v9223 = vld [vmem:[%s9222] sm:$0xf]
        %v9224 = vld [vmem:[%s9222 + $0x4] sm:$0xf]
        %v9225 = vld [vmem:[%s9222 + $0x8] sm:$0xf]
        %v9226 = vld [vmem:[%s9222 + $0xc] sm:$0xf]
        %v9227 = vld [vmem:[%s9222 + $0x10] sm:$0xf]
        %v9228 = vld [vmem:[%s9222 + $0x14] sm:$0xf]
        %v9229 = vld [vmem:[%s9222 + $0x18] sm:$0xf]
        %v9230 = vld [vmem:[%s9222 + $0x1c] sm:$0xf]
        %v9231 = vld [vmem:[%s9222 + $0x20] sm:$0xf]
        %v9232 = vld [vmem:[%s9222 + $0x24] sm:$0xf]
        %v9233 = vld [vmem:[%s9222 + $0x28] sm:$0xf]
        %v9234 = vld [vmem:[%s9222 + $0x2c] sm:$0xf]
        %v9235 = vld [vmem:[%s9222 + $0x30] sm:$0xf]
        %v9236 = vld [vmem:[%s9222 + $0x34] sm:$0xf]
        %v9237 = vld [vmem:[%s9222 + $0x38] sm:$0xf]
        %v9238 = vld [vmem:[%s9222 + $0x3c] sm:$0xf]
        %v9271 = vunpack.c.l.b16 %v9190
        %v9272 = vunpack.c.l.b16 %v9191
        %v9273 = vunpack.c.l.b16 %v9192
        %v9274 = vunpack.c.l.b16 %v9193
        %v9275 = vunpack.c.l.b16 %v9194
        %v9276 = vunpack.c.l.b16 %v9195
        %v9277 = vunpack.c.l.b16 %v9196
        %v9278 = vunpack.c.l.b16 %v9197
        %v9279 = vunpack.c.l.b16 %v9198
        %v9280 = vunpack.c.l.b16 %v9199
        %v9281 = vunpack.c.l.b16 %v9200
        %v9282 = vunpack.c.l.b16 %v9201
        %v9283 = vunpack.c.l.b16 %v9202
        %v9284 = vunpack.c.l.b16 %v9203
        %v9285 = vunpack.c.l.b16 %v9204
        %v9286 = vunpack.c.l.b16 %v9205
        %v9287 = vunpack.c.l.b16 %v9206
        %v9288 = vunpack.c.l.b16 %v9207
        %v9289 = vunpack.c.l.b16 %v9208
        %v9290 = vunpack.c.l.b16 %v9209
        %v9291 = vunpack.c.l.b16 %v9210
        %v9292 = vunpack.c.l.b16 %v9211
        %v9293 = vunpack.c.l.b16 %v9212
        %v9294 = vunpack.c.l.b16 %v9213
        %v9295 = vunpack.c.l.b16 %v9214
        %v9296 = vunpack.c.l.b16 %v9215
        %v9297 = vunpack.c.l.b16 %v9216
        %v9298 = vunpack.c.l.b16 %v9217
        %v9299 = vunpack.c.l.b16 %v9218
        %v9300 = vunpack.c.l.b16 %v9219
        %v9301 = vunpack.c.l.b16 %v9220
        %v9302 = vunpack.c.l.b16 %v9221
        %v9303 = vpack.c.b16 %v9272, %v9271
        %v9304 = vpack.c.b16 %v9274, %v9273
        %v9305 = vpack.c.b16 %v9276, %v9275
        %v9306 = vpack.c.b16 %v9278, %v9277
        %v9307 = vpack.c.b16 %v9280, %v9279
        %v9308 = vpack.c.b16 %v9282, %v9281
        %v9309 = vpack.c.b16 %v9284, %v9283
        %v9310 = vpack.c.b16 %v9286, %v9285
        %v9311 = vpack.c.b16 %v9288, %v9287
        %v9312 = vpack.c.b16 %v9290, %v9289
        %v9313 = vpack.c.b16 %v9292, %v9291
        %v9314 = vpack.c.b16 %v9294, %v9293
        %v9315 = vpack.c.b16 %v9296, %v9295
        %v9316 = vpack.c.b16 %v9298, %v9297
        %v9317 = vpack.c.b16 %v9300, %v9299
        %v9318 = vpack.c.b16 %v9302, %v9301
        %v9351 = vunpack.c.l.b16 %v9223
        %v9352 = vunpack.c.l.b16 %v9224
        %v9353 = vunpack.c.l.b16 %v9225
        %v9354 = vunpack.c.l.b16 %v9226
        %v9355 = vunpack.c.l.b16 %v9227
        %v9356 = vunpack.c.l.b16 %v9228
        %v9357 = vunpack.c.l.b16 %v9229
        %v9358 = vunpack.c.l.b16 %v9230
        %v9359 = vunpack.c.l.b16 %v9231
        %v9360 = vunpack.c.l.b16 %v9232
        %v9361 = vunpack.c.l.b16 %v9233
        %v9362 = vunpack.c.l.b16 %v9234
        %v9363 = vunpack.c.l.b16 %v9235
        %v9364 = vunpack.c.l.b16 %v9236
        %v9365 = vunpack.c.l.b16 %v9237
        %v9366 = vunpack.c.l.b16 %v9238
        %v9367 = vpack.c.b16 %v9352, %v9351
        %v9368 = vpack.c.b16 %v9354, %v9353
        %v9369 = vpack.c.b16 %v9356, %v9355
        %v9370 = vpack.c.b16 %v9358, %v9357
        %v9371 = vpack.c.b16 %v9360, %v9359
        %v9372 = vpack.c.b16 %v9362, %v9361
        %v9373 = vpack.c.b16 %v9364, %v9363
        %v9374 = vpack.c.b16 %v9366, %v9365
        %9383 = vmatprep.subr.bf16.mxu0 0
        %9384 = vmatpush1.bf16.msra.mxu0 %v9367
        %9385 = vmatprep.subr.bf16.mxu0 0
        %9386 = vmatpush1.bf16.msra.mxu0 %v9368
        %9387 = vmatprep.subr.bf16.mxu0 0
        %9388 = vmatpush1.bf16.msra.mxu0 %v9369
        %9389 = vmatprep.subr.bf16.mxu0 0
        %9390 = vmatpush1.bf16.msra.mxu0 %v9370
        %9391 = vmatprep.subr.bf16.mxu0 0
        %9392 = vmatpush1.bf16.msra.mxu0 %v9371
        %9393 = vmatprep.subr.bf16.mxu0 0
        %9394 = vmatpush1.bf16.msra.mxu0 %v9372
        %9395 = vmatprep.subr.bf16.mxu0 0
        %9396 = vmatpush1.bf16.msra.mxu0 %v9373
        %9397 = vmatprep.subr.bf16.mxu0 0
        %9398 = vmatpush1.bf16.msra.mxu0 %v9374
        %9399 = vmatprep.subr.bf16.mxu0 0
        %9400 = vmatpush1.bf16.msra.mxu0 0
        %9401 = vmatprep.subr.bf16.mxu0 0
        %9402 = vmatpush1.bf16.msra.mxu0 0
        %9403 = vmatprep.subr.bf16.mxu0 0
        %9404 = vmatpush1.bf16.msra.mxu0 0
        %9405 = vmatprep.subr.bf16.mxu0 0
        %9406 = vmatpush1.bf16.msra.mxu0 0
        %9407 = vmatprep.subr.bf16.mxu0 0
        %9408 = vmatpush1.bf16.msra.mxu0 0
        %9409 = vmatprep.subr.bf16.mxu0 0
        %9410 = vmatpush1.bf16.msra.mxu0 0
        %9411 = vmatprep.subr.bf16.mxu0 0
        %9412 = vmatpush1.bf16.msra.mxu0 0
        %9413 = vmatprep.subr.bf16.mxu0 0
        %9414 = vmatpush1.bf16.msra.mxu0 0
        %9415 = vmatprep.mubr.bf16.mxu0 0
        %9416 = vmatmul.mubr.bf16.gmra.mrb[0].mxu0 %v9303
        %v9417 = vpop.f32.mrb[0].mxu0
        %v9418 = vadd.f32 0.0, %v9417
        %v9419 = vpop.f32.mrb[0].mxu0
        %v9420 = vpop.f32.mrb[0].mxu0
        %v9421 = vadd.f32 0.0, %v9420
        %v9422 = vpop.f32.mrb[0].mxu0
        %9423 = vmatprep.mubr.bf16.mxu0 0
        %9424 = vmatmul.mubr.bf16.gmra.mrb[0].mxu0 %v9304
        %v9425 = vpop.f32.mrb[0].mxu0
        %v9426 = vadd.f32 0.0, %v9425
        %v9427 = vpop.f32.mrb[0].mxu0
        %v9428 = vpop.f32.mrb[0].mxu0
        %v9429 = vadd.f32 0.0, %v9428
        %v9430 = vpop.f32.mrb[0].mxu0
        %9431 = vmatprep.mubr.bf16.mxu0 0
        %9432 = vmatmul.mubr.bf16.gmra.mrb[0].mxu0 %v9305
        %v9433 = vpop.f32.mrb[0].mxu0
        %v9434 = vadd.f32 0.0, %v9433
        %v9435 = vpop.f32.mrb[0].mxu0
        %v9436 = vpop.f32.mrb[0].mxu0
        %v9437 = vadd.f32 0.0, %v9436
        %v9438 = vpop.f32.mrb[0].mxu0
        %9439 = vmatprep.mubr.bf16.mxu0 0
        %9440 = vmatmul.mubr.bf16.gmra.mrb[0].mxu0 %v9306
        %v9441 = vpop.f32.mrb[0].mxu0
        %v9442 = vadd.f32 0.0, %v9441
        %v9443 = vpop.f32.mrb[0].mxu0
        %v9444 = vpop.f32.mrb[0].mxu0
        %v9445 = vadd.f32 0.0, %v9444
        %v9446 = vpop.f32.mrb[0].mxu0
        %9447 = vmatprep.mubr.bf16.mxu0 0
        %9448 = vmatmul.mubr.bf16.gmra.mrb[0].mxu0 %v9307
        %v9449 = vpop.f32.mrb[0].mxu0
        %v9450 = vadd.f32 0.0, %v9449
        %v9451 = vpop.f32.mrb[0].mxu0
        %v9452 = vpop.f32.mrb[0].mxu0
        %v9453 = vadd.f32 0.0, %v9452
        %v9454 = vpop.f32.mrb[0].mxu0
        %9455 = vmatprep.mubr.bf16.mxu0 0
        %9456 = vmatmul.mubr.bf16.gmra.mrb[0].mxu0 %v9308
        %v9457 = vpop.f32.mrb[0].mxu0
        %v9458 = vadd.f32 0.0, %v9457
        %v9459 = vpop.f32.mrb[0].mxu0
        %v9460 = vpop.f32.mrb[0].mxu0
        %v9461 = vadd.f32 0.0, %v9460
        %v9462 = vpop.f32.mrb[0].mxu0
        %9463 = vmatprep.mubr.bf16.mxu0 0
        %9464 = vmatmul.mubr.bf16.gmra.mrb[0].mxu0 %v9309
        %v9465 = vpop.f32.mrb[0].mxu0
        %v9466 = vadd.f32 0.0, %v9465
        %v9467 = vpop.f32.mrb[0].mxu0
        %v9468 = vpop.f32.mrb[0].mxu0
        %v9469 = vadd.f32 0.0, %v9468
        %v9470 = vpop.f32.mrb[0].mxu0
        %9471 = vmatprep.mubr.bf16.mxu0 0
        %9472 = vmatmul.mubr.bf16.gmra.mrb[0].mxu0 %v9310
        %v9473 = vpop.f32.mrb[0].mxu0
        %v9474 = vadd.f32 0.0, %v9473
        %v9475 = vpop.f32.mrb[0].mxu0
        %v9476 = vpop.f32.mrb[0].mxu0
        %v9477 = vadd.f32 0.0, %v9476
        %v9478 = vpop.f32.mrb[0].mxu0
        %9479 = vmatprep.mubr.bf16.mxu0 0
        %9480 = vmatmul.mubr.bf16.gmra.mrb[0].mxu0 %v9311
        %v9481 = vpop.f32.mrb[0].mxu0
        %v9482 = vadd.f32 0.0, %v9481
        %v9483 = vpop.f32.mrb[0].mxu0
        %v9484 = vpop.f32.mrb[0].mxu0
        %v9485 = vadd.f32 0.0, %v9484
        %v9486 = vpop.f32.mrb[0].mxu0
        %9487 = vmatprep.mubr.bf16.mxu0 0
        %9488 = vmatmul.mubr.bf16.gmra.mrb[0].mxu0 %v9312
        %v9489 = vpop.f32.mrb[0].mxu0
        %v9490 = vadd.f32 0.0, %v9489
        %v9491 = vpop.f32.mrb[0].mxu0
        %v9492 = vpop.f32.mrb[0].mxu0
        %v9493 = vadd.f32 0.0, %v9492
        %v9494 = vpop.f32.mrb[0].mxu0
        %9495 = vmatprep.mubr.bf16.mxu0 0
        %9496 = vmatmul.mubr.bf16.gmra.mrb[0].mxu0 %v9313
        %v9497 = vpop.f32.mrb[0].mxu0
        %v9498 = vadd.f32 0.0, %v9497
        %v9499 = vpop.f32.mrb[0].mxu0
        %v9500 = vpop.f32.mrb[0].mxu0
        %v9501 = vadd.f32 0.0, %v9500
        %v9502 = vpop.f32.mrb[0].mxu0
        %9503 = vmatprep.mubr.bf16.mxu0 0
        %9504 = vmatmul.mubr.bf16.gmra.mrb[0].mxu0 %v9314
        %v9505 = vpop.f32.mrb[0].mxu0
        %v9506 = vadd.f32 0.0, %v9505
        %v9507 = vpop.f32.mrb[0].mxu0
        %v9508 = vpop.f32.mrb[0].mxu0
        %v9509 = vadd.f32 0.0, %v9508
        %v9510 = vpop.f32.mrb[0].mxu0
        %9511 = vmatprep.mubr.bf16.mxu0 0
        %9512 = vmatmul.mubr.bf16.gmra.mrb[0].mxu0 %v9315
        %v9513 = vpop.f32.mrb[0].mxu0
        %v9514 = vadd.f32 0.0, %v9513
        %v9515 = vpop.f32.mrb[0].mxu0
        %v9516 = vpop.f32.mrb[0].mxu0
        %v9517 = vadd.f32 0.0, %v9516
        %v9518 = vpop.f32.mrb[0].mxu0
        %9519 = vmatprep.mubr.bf16.mxu0 0
        %9520 = vmatmul.mubr.bf16.gmra.mrb[0].mxu0 %v9316
        %v9521 = vpop.f32.mrb[0].mxu0
        %v9522 = vadd.f32 0.0, %v9521
        %v9523 = vpop.f32.mrb[0].mxu0
        %v9524 = vpop.f32.mrb[0].mxu0
        %v9525 = vadd.f32 0.0, %v9524
        %v9526 = vpop.f32.mrb[0].mxu0
        %9527 = vmatprep.mubr.bf16.mxu0 0
        %9528 = vmatmul.mubr.bf16.gmra.mrb[0].mxu0 %v9317
        %v9529 = vpop.f32.mrb[0].mxu0
        %v9530 = vadd.f32 0.0, %v9529
        %v9531 = vpop.f32.mrb[0].mxu0
        %v9532 = vpop.f32.mrb[0].mxu0
        %v9533 = vadd.f32 0.0, %v9532
        %v9534 = vpop.f32.mrb[0].mxu0
        %9535 = vmatprep.mubr.bf16.mxu0 0
        %9536 = vmatmul.mubr.bf16.gmra.mrb[0].mxu0 %v9318
        %v9537 = vpop.f32.mrb[0].mxu0
        %v9538 = vadd.f32 0.0, %v9537
        %v9539 = vpop.f32.mrb[0].mxu0
        %v9540 = vpop.f32.mrb[0].mxu0
        %v9541 = vadd.f32 0.0, %v9540
        %v9542 = vpop.f32.mrb[0].mxu0
        %9543 = vdwg.mxu0
        %v9544 = vadd.f32 %v9158, %v9418
        %v9545 = vadd.f32 %v9159, %v9421
        %v9546 = vadd.f32 %v9160, %v9426
        %v9547 = vadd.f32 %v9161, %v9429
        %v9548 = vadd.f32 %v9162, %v9434
        %v9549 = vadd.f32 %v9163, %v9437
        %v9550 = vadd.f32 %v9164, %v9442
        %v9551 = vadd.f32 %v9165, %v9445
        %v9552 = vadd.f32 %v9166, %v9450
        %v9553 = vadd.f32 %v9167, %v9453
        %v9554 = vadd.f32 %v9168, %v9458
        %v9555 = vadd.f32 %v9169, %v9461
        %v9556 = vadd.f32 %v9170, %v9466
        %v9557 = vadd.f32 %v9171, %v9469
        %v9558 = vadd.f32 %v9172, %v9474
        %v9559 = vadd.f32 %v9173, %v9477
        %v9560 = vadd.f32 %v9174, %v9482
        %v9561 = vadd.f32 %v9175, %v9485
        %v9562 = vadd.f32 %v9176, %v9490
        %v9563 = vadd.f32 %v9177, %v9493
        %v9564 = vadd.f32 %v9178, %v9498
        %v9565 = vadd.f32 %v9179, %v9501
        %v9566 = vadd.f32 %v9180, %v9506
        %v9567 = vadd.f32 %v9181, %v9509
        %v9568 = vadd.f32 %v9182, %v9514
        %v9569 = vadd.f32 %v9183, %v9517
        %v9570 = vadd.f32 %v9184, %v9522
        %v9571 = vadd.f32 %v9185, %v9525
        %v9572 = vadd.f32 %v9186, %v9530
        %v9573 = vadd.f32 %v9187, %v9533
        %v9574 = vadd.f32 %v9188, %v9538
        %v9575 = vadd.f32 %v9189, %v9541
        %v9576 = vld [vmem:[%s3901] sm:$0xf]
        %v9577 = vld [vmem:[%s3901 + $0x4] sm:$0xf]
        %v9578 = vld [vmem:[%s3901 + $0x8] sm:$0x1]
        %v9579 = vld [vmem:[%s3901 + $0xc] sm:$0xf]
        %v9580 = vld [vmem:[%s3901 + $0x10] sm:$0xf]
        %v9581 = vld [vmem:[%s3901 + $0x14] sm:$0x1]
        %v9582 = vld [vmem:[%s3901 + $0x18] sm:$0xf]
        %v9583 = vld [vmem:[%s3901 + $0x1c] sm:$0xf]
        %v9584 = vld [vmem:[%s3901 + $0x20] sm:$0x1]
        %v9585 = vld [vmem:[%s3901 + $0x24] sm:$0xf]
        %v9586 = vld [vmem:[%s3901 + $0x28] sm:$0xf]
        %v9587 = vld [vmem:[%s3901 + $0x2c] sm:$0x1]
        %v9588 = vld [vmem:[%s3901 + $0x30] sm:$0xf]
        %v9589 = vld [vmem:[%s3901 + $0x34] sm:$0xf]
        %v9590 = vld [vmem:[%s3901 + $0x38] sm:$0x1]
        %v9591 = vld [vmem:[%s3901 + $0x3c] sm:$0xf]
        %v9592 = vld [vmem:[%s3901 + $0x40] sm:$0xf]
        %v9593 = vld [vmem:[%s3901 + $0x44] sm:$0x1]
        %v9594 = vld [vmem:[%s3901 + $0x48] sm:$0xf]
        %v9595 = vld [vmem:[%s3901 + $0x4c] sm:$0xf]
        %v9596 = vld [vmem:[%s3901 + $0x50] sm:$0x1]
        %v9597 = vld [vmem:[%s3901 + $0x54] sm:$0xf]
        %v9598 = vld [vmem:[%s3901 + $0x58] sm:$0xf]
        %v9599 = vld [vmem:[%s3901 + $0x5c] sm:$0x1]
        %v9600 = vld [vmem:[%s3901 + $0x60] sm:$0xf]
        %v9601 = vld [vmem:[%s3901 + $0x64] sm:$0xf]
        %v9602 = vld [vmem:[%s3901 + $0x68] sm:$0x1]
        %v9603 = vld [vmem:[%s3901 + $0x6c] sm:$0xf]
        %v9604 = vld [vmem:[%s3901 + $0x70] sm:$0xf]
        %v9605 = vld [vmem:[%s3901 + $0x74] sm:$0x1]
        %v9606 = vld [vmem:[%s3901 + $0x78] sm:$0xf]
        %v9607 = vld [vmem:[%s3901 + $0x7c] sm:$0xf]
        %v9608 = vld [vmem:[%s3901 + $0x80] sm:$0x1]
        %v9609 = vld [vmem:[%s3901 + $0x84] sm:$0xf]
        %v9610 = vld [vmem:[%s3901 + $0x88] sm:$0xf]
        %v9611 = vld [vmem:[%s3901 + $0x8c] sm:$0x1]
        %v9612 = vld [vmem:[%s3901 + $0x90] sm:$0xf]
        %v9613 = vld [vmem:[%s3901 + $0x94] sm:$0xf]
        %v9614 = vld [vmem:[%s3901 + $0x98] sm:$0x1]
        %v9615 = vld [vmem:[%s3901 + $0x9c] sm:$0xf]
        %v9616 = vld [vmem:[%s3901 + $0xa0] sm:$0xf]
        %v9617 = vld [vmem:[%s3901 + $0xa4] sm:$0x1]
        %v9618 = vld [vmem:[%s3901 + $0xa8] sm:$0xf]
        %v9619 = vld [vmem:[%s3901 + $0xac] sm:$0xf]
        %v9620 = vld [vmem:[%s3901 + $0xb0] sm:$0x1]
        %v9621 = vld [vmem:[%s3901 + $0xb4] sm:$0xf]
        %v9622 = vld [vmem:[%s3901 + $0xb8] sm:$0xf]
        %v9623 = vld [vmem:[%s3901 + $0xbc] sm:$0x1]
        %v9625 = vshrl.u32 %v9576, 16
        %v9627 = vrot.slane %v9625, 4
        %v9628 = vshll.u32 %v9576, 16
        %v9630 = vrot.slane %v9628, 5
        %v9631 = vor.u32 %v9627, %v9630
        %v9632 = vrot.slane %v9631, 4
        %v9634 = vshll.u32 %v9577, 16
        %v9636 = vrot.slane %v9634, 5
        %v9637 = vsel %vm798, %v9632, %v9636
        %v9638 = vshrl.u32 %v9577, 16
        %v9640 = vrot.slane %v9638, 4
        %v9641 = vor.u32 %v9640, %v9636
        %v9642 = vrot.slane %v9641, 4
        %v9644 = vshll.u32 %v9578, 16
        %v9646 = vrot.slane %v9644, 5
        %v9647 = vsel %vm798, %v9642, %v9646
        %v9649 = vshrl.u32 %v9579, 16
        %v9651 = vrot.slane %v9649, 4
        %v9652 = vshll.u32 %v9579, 16
        %v9654 = vrot.slane %v9652, 5
        %v9655 = vor.u32 %v9651, %v9654
        %v9656 = vrot.slane %v9655, 4
        %v9658 = vshll.u32 %v9580, 16
        %v9660 = vrot.slane %v9658, 5
        %v9661 = vsel %vm798, %v9656, %v9660
        %v9662 = vshrl.u32 %v9580, 16
        %v9664 = vrot.slane %v9662, 4
        %v9665 = vor.u32 %v9664, %v9660
        %v9666 = vrot.slane %v9665, 4
        %v9668 = vshll.u32 %v9581, 16
        %v9670 = vrot.slane %v9668, 5
        %v9671 = vsel %vm798, %v9666, %v9670
        %v9673 = vshrl.u32 %v9582, 16
        %v9675 = vrot.slane %v9673, 4
        %v9676 = vshll.u32 %v9582, 16
        %v9678 = vrot.slane %v9676, 5
        %v9679 = vor.u32 %v9675, %v9678
        %v9680 = vrot.slane %v9679, 4
        %v9682 = vshll.u32 %v9583, 16
        %v9684 = vrot.slane %v9682, 5
        %v9685 = vsel %vm798, %v9680, %v9684
        %v9686 = vshrl.u32 %v9583, 16
        %v9688 = vrot.slane %v9686, 4
        %v9689 = vor.u32 %v9688, %v9684
        %v9690 = vrot.slane %v9689, 4
        %v9692 = vshll.u32 %v9584, 16
        %v9694 = vrot.slane %v9692, 5
        %v9695 = vsel %vm798, %v9690, %v9694
        %v9697 = vshrl.u32 %v9585, 16
        %v9699 = vrot.slane %v9697, 4
        %v9700 = vshll.u32 %v9585, 16
        %v9702 = vrot.slane %v9700, 5
        %v9703 = vor.u32 %v9699, %v9702
        %v9704 = vrot.slane %v9703, 4
        %v9706 = vshll.u32 %v9586, 16
        %v9708 = vrot.slane %v9706, 5
        %v9709 = vsel %vm798, %v9704, %v9708
        %v9710 = vshrl.u32 %v9586, 16
        %v9712 = vrot.slane %v9710, 4
        %v9713 = vor.u32 %v9712, %v9708
        %v9714 = vrot.slane %v9713, 4
        %v9716 = vshll.u32 %v9587, 16
        %v9718 = vrot.slane %v9716, 5
        %v9719 = vsel %vm798, %v9714, %v9718
        %v9721 = vshrl.u32 %v9588, 16
        %v9723 = vrot.slane %v9721, 4
        %v9724 = vshll.u32 %v9588, 16
        %v9726 = vrot.slane %v9724, 5
        %v9727 = vor.u32 %v9723, %v9726
        %v9728 = vrot.slane %v9727, 4
        %v9730 = vshll.u32 %v9589, 16
        %v9732 = vrot.slane %v9730, 5
        %v9733 = vsel %vm798, %v9728, %v9732
        %v9734 = vshrl.u32 %v9589, 16
        %v9736 = vrot.slane %v9734, 4
        %v9737 = vor.u32 %v9736, %v9732
        %v9738 = vrot.slane %v9737, 4
        %v9740 = vshll.u32 %v9590, 16
        %v9742 = vrot.slane %v9740, 5
        %v9743 = vsel %vm798, %v9738, %v9742
        %v9745 = vshrl.u32 %v9591, 16
        %v9747 = vrot.slane %v9745, 4
        %v9748 = vshll.u32 %v9591, 16
        %v9750 = vrot.slane %v9748, 5
        %v9751 = vor.u32 %v9747, %v9750
        %v9752 = vrot.slane %v9751, 4
        %v9754 = vshll.u32 %v9592, 16
        %v9756 = vrot.slane %v9754, 5
        %v9757 = vsel %vm798, %v9752, %v9756
        %v9758 = vshrl.u32 %v9592, 16
        %v9760 = vrot.slane %v9758, 4
        %v9761 = vor.u32 %v9760, %v9756
        %v9762 = vrot.slane %v9761, 4
        %v9764 = vshll.u32 %v9593, 16
        %v9766 = vrot.slane %v9764, 5
        %v9767 = vsel %vm798, %v9762, %v9766
        %v9769 = vshrl.u32 %v9594, 16
        %v9771 = vrot.slane %v9769, 4
        %v9772 = vshll.u32 %v9594, 16
        %v9774 = vrot.slane %v9772, 5
        %v9775 = vor.u32 %v9771, %v9774
        %v9776 = vrot.slane %v9775, 4
        %v9778 = vshll.u32 %v9595, 16
        %v9780 = vrot.slane %v9778, 5
        %v9781 = vsel %vm798, %v9776, %v9780
        %v9782 = vshrl.u32 %v9595, 16
        %v9784 = vrot.slane %v9782, 4
        %v9785 = vor.u32 %v9784, %v9780
        %v9786 = vrot.slane %v9785, 4
        %v9788 = vshll.u32 %v9596, 16
        %v9790 = vrot.slane %v9788, 5
        %v9791 = vsel %vm798, %v9786, %v9790
        %v9793 = vshrl.u32 %v9597, 16
        %v9795 = vrot.slane %v9793, 4
        %v9796 = vshll.u32 %v9597, 16
        %v9798 = vrot.slane %v9796, 5
        %v9799 = vor.u32 %v9795, %v9798
        %v9800 = vrot.slane %v9799, 4
        %v9802 = vshll.u32 %v9598, 16
        %v9804 = vrot.slane %v9802, 5
        %v9805 = vsel %vm798, %v9800, %v9804
        %v9806 = vshrl.u32 %v9598, 16
        %v9808 = vrot.slane %v9806, 4
        %v9809 = vor.u32 %v9808, %v9804
        %v9810 = vrot.slane %v9809, 4
        %v9812 = vshll.u32 %v9599, 16
        %v9814 = vrot.slane %v9812, 5
        %v9815 = vsel %vm798, %v9810, %v9814
        %v9817 = vshrl.u32 %v9600, 16
        %v9819 = vrot.slane %v9817, 4
        %v9820 = vshll.u32 %v9600, 16
        %v9822 = vrot.slane %v9820, 5
        %v9823 = vor.u32 %v9819, %v9822
        %v9824 = vrot.slane %v9823, 4
        %v9826 = vshll.u32 %v9601, 16
        %v9828 = vrot.slane %v9826, 5
        %v9829 = vsel %vm798, %v9824, %v9828
        %v9830 = vshrl.u32 %v9601, 16
        %v9832 = vrot.slane %v9830, 4
        %v9833 = vor.u32 %v9832, %v9828
        %v9834 = vrot.slane %v9833, 4
        %v9836 = vshll.u32 %v9602, 16
        %v9838 = vrot.slane %v9836, 5
        %v9839 = vsel %vm798, %v9834, %v9838
        %v9841 = vshrl.u32 %v9603, 16
        %v9843 = vrot.slane %v9841, 4
        %v9844 = vshll.u32 %v9603, 16
        %v9846 = vrot.slane %v9844, 5
        %v9847 = vor.u32 %v9843, %v9846
        %v9848 = vrot.slane %v9847, 4
        %v9850 = vshll.u32 %v9604, 16
        %v9852 = vrot.slane %v9850, 5
        %v9853 = vsel %vm798, %v9848, %v9852
        %v9854 = vshrl.u32 %v9604, 16
        %v9856 = vrot.slane %v9854, 4
        %v9857 = vor.u32 %v9856, %v9852
        %v9858 = vrot.slane %v9857, 4
        %v9860 = vshll.u32 %v9605, 16
        %v9862 = vrot.slane %v9860, 5
        %v9863 = vsel %vm798, %v9858, %v9862
        %v9865 = vshrl.u32 %v9606, 16
        %v9867 = vrot.slane %v9865, 4
        %v9868 = vshll.u32 %v9606, 16
        %v9870 = vrot.slane %v9868, 5
        %v9871 = vor.u32 %v9867, %v9870
        %v9872 = vrot.slane %v9871, 4
        %v9874 = vshll.u32 %v9607, 16
        %v9876 = vrot.slane %v9874, 5
        %v9877 = vsel %vm798, %v9872, %v9876
        %v9878 = vshrl.u32 %v9607, 16
        %v9880 = vrot.slane %v9878, 4
        %v9881 = vor.u32 %v9880, %v9876
        %v9882 = vrot.slane %v9881, 4
        %v9884 = vshll.u32 %v9608, 16
        %v9886 = vrot.slane %v9884, 5
        %v9887 = vsel %vm798, %v9882, %v9886
        %v9889 = vshrl.u32 %v9609, 16
        %v9891 = vrot.slane %v9889, 4
        %v9892 = vshll.u32 %v9609, 16
        %v9894 = vrot.slane %v9892, 5
        %v9895 = vor.u32 %v9891, %v9894
        %v9896 = vrot.slane %v9895, 4
        %v9898 = vshll.u32 %v9610, 16
        %v9900 = vrot.slane %v9898, 5
        %v9901 = vsel %vm798, %v9896, %v9900
        %v9902 = vshrl.u32 %v9610, 16
        %v9904 = vrot.slane %v9902, 4
        %v9905 = vor.u32 %v9904, %v9900
        %v9906 = vrot.slane %v9905, 4
        %v9908 = vshll.u32 %v9611, 16
        %v9910 = vrot.slane %v9908, 5
        %v9911 = vsel %vm798, %v9906, %v9910
        %v9913 = vshrl.u32 %v9612, 16
        %v9915 = vrot.slane %v9913, 4
        %v9916 = vshll.u32 %v9612, 16
        %v9918 = vrot.slane %v9916, 5
        %v9919 = vor.u32 %v9915, %v9918
        %v9920 = vrot.slane %v9919, 4
        %v9922 = vshll.u32 %v9613, 16
        %v9924 = vrot.slane %v9922, 5
        %v9925 = vsel %vm798, %v9920, %v9924
        %v9926 = vshrl.u32 %v9613, 16
        %v9928 = vrot.slane %v9926, 4
        %v9929 = vor.u32 %v9928, %v9924
        %v9930 = vrot.slane %v9929, 4
        %v9932 = vshll.u32 %v9614, 16
        %v9934 = vrot.slane %v9932, 5
        %v9935 = vsel %vm798, %v9930, %v9934
        %v9937 = vshrl.u32 %v9615, 16
        %v9939 = vrot.slane %v9937, 4
        %v9940 = vshll.u32 %v9615, 16
        %v9942 = vrot.slane %v9940, 5
        %v9943 = vor.u32 %v9939, %v9942
        %v9944 = vrot.slane %v9943, 4
        %v9946 = vshll.u32 %v9616, 16
        %v9948 = vrot.slane %v9946, 5
        %v9949 = vsel %vm798, %v9944, %v9948
        %v9950 = vshrl.u32 %v9616, 16
        %v9952 = vrot.slane %v9950, 4
        %v9953 = vor.u32 %v9952, %v9948
        %v9954 = vrot.slane %v9953, 4
        %v9956 = vshll.u32 %v9617, 16
        %v9958 = vrot.slane %v9956, 5
        %v9959 = vsel %vm798, %v9954, %v9958
        %v9961 = vshrl.u32 %v9618, 16
        %v9963 = vrot.slane %v9961, 4
        %v9964 = vshll.u32 %v9618, 16
        %v9966 = vrot.slane %v9964, 5
        %v9967 = vor.u32 %v9963, %v9966
        %v9968 = vrot.slane %v9967, 4
        %v9970 = vshll.u32 %v9619, 16
        %v9972 = vrot.slane %v9970, 5
        %v9973 = vsel %vm798, %v9968, %v9972
        %v9974 = vshrl.u32 %v9619, 16
        %v9976 = vrot.slane %v9974, 4
        %v9977 = vor.u32 %v9976, %v9972
        %v9978 = vrot.slane %v9977, 4
        %v9980 = vshll.u32 %v9620, 16
        %v9982 = vrot.slane %v9980, 5
        %v9983 = vsel %vm798, %v9978, %v9982
        %v9985 = vshrl.u32 %v9621, 16
        %v9987 = vrot.slane %v9985, 4
        %v9988 = vshll.u32 %v9621, 16
        %v9990 = vrot.slane %v9988, 5
        %v9991 = vor.u32 %v9987, %v9990
        %v9992 = vrot.slane %v9991, 4
        %v9994 = vshll.u32 %v9622, 16
        %v9996 = vrot.slane %v9994, 5
        %v9997 = vsel %vm798, %v9992, %v9996
        %v9998 = vshrl.u32 %v9622, 16
        %v10000 = vrot.slane %v9998, 4
        %v10001 = vor.u32 %v10000, %v9996
        %v10002 = vrot.slane %v10001, 4
        %v10004 = vshll.u32 %v9623, 16
        %v10006 = vrot.slane %v10004, 5
        %v10007 = vsel %vm798, %v10002, %v10006
        %s10008 = scalar_lea.vmem [#allocation8], 448
        %v10009 = vld [vmem:[%s10008] sm:$0xf]
        %v10010 = vld [vmem:[%s10008 + $0x4] sm:$0xf]
        %v10011 = vld [vmem:[%s10008 + $0x8] sm:$0xf]
        %v10012 = vld [vmem:[%s10008 + $0xc] sm:$0xf]
        %v10013 = vld [vmem:[%s10008 + $0x10] sm:$0xf]
        %v10014 = vld [vmem:[%s10008 + $0x14] sm:$0xf]
        %v10015 = vld [vmem:[%s10008 + $0x18] sm:$0xf]
        %v10016 = vld [vmem:[%s10008 + $0x1c] sm:$0xf]
        %v10017 = vld [vmem:[%s10008 + $0x20] sm:$0xf]
        %v10018 = vld [vmem:[%s10008 + $0x24] sm:$0xf]
        %v10019 = vld [vmem:[%s10008 + $0x28] sm:$0xf]
        %v10020 = vld [vmem:[%s10008 + $0x2c] sm:$0xf]
        %v10021 = vld [vmem:[%s10008 + $0x30] sm:$0xf]
        %v10022 = vld [vmem:[%s10008 + $0x34] sm:$0xf]
        %v10023 = vld [vmem:[%s10008 + $0x38] sm:$0xf]
        %v10024 = vld [vmem:[%s10008 + $0x3c] sm:$0xf]
        %v10025 = vunpack.c.l.b16 %v9637
        %v10026 = vunpack.c.l.b16 %v9647
        %v10027 = vunpack.c.l.b16 %v9661
        %v10028 = vunpack.c.l.b16 %v9671
        %v10029 = vunpack.c.l.b16 %v9685
        %v10030 = vunpack.c.l.b16 %v9695
        %v10031 = vunpack.c.l.b16 %v9709
        %v10032 = vunpack.c.l.b16 %v9719
        %v10033 = vunpack.c.l.b16 %v9733
        %v10034 = vunpack.c.l.b16 %v9743
        %v10035 = vunpack.c.l.b16 %v9757
        %v10036 = vunpack.c.l.b16 %v9767
        %v10037 = vunpack.c.l.b16 %v9781
        %v10038 = vunpack.c.l.b16 %v9791
        %v10039 = vunpack.c.l.b16 %v9805
        %v10040 = vunpack.c.l.b16 %v9815
        %v10041 = vunpack.c.l.b16 %v9829
        %v10042 = vunpack.c.l.b16 %v9839
        %v10043 = vunpack.c.l.b16 %v9853
        %v10044 = vunpack.c.l.b16 %v9863
        %v10045 = vunpack.c.l.b16 %v9877
        %v10046 = vunpack.c.l.b16 %v9887
        %v10047 = vunpack.c.l.b16 %v9901
        %v10048 = vunpack.c.l.b16 %v9911
        %v10049 = vunpack.c.l.b16 %v9925
        %v10050 = vunpack.c.l.b16 %v9935
        %v10051 = vunpack.c.l.b16 %v9949
        %v10052 = vunpack.c.l.b16 %v9959
        %v10053 = vunpack.c.l.b16 %v9973
        %v10054 = vunpack.c.l.b16 %v9983
        %v10055 = vunpack.c.l.b16 %v9997
        %v10056 = vunpack.c.l.b16 %v10007
        %v10057 = vpack.c.b16 %v10026, %v10025
        %v10058 = vpack.c.b16 %v10028, %v10027
        %v10059 = vpack.c.b16 %v10030, %v10029
        %v10060 = vpack.c.b16 %v10032, %v10031
        %v10061 = vpack.c.b16 %v10034, %v10033
        %v10062 = vpack.c.b16 %v10036, %v10035
        %v10063 = vpack.c.b16 %v10038, %v10037
        %v10064 = vpack.c.b16 %v10040, %v10039
        %v10065 = vpack.c.b16 %v10042, %v10041
        %v10066 = vpack.c.b16 %v10044, %v10043
        %v10067 = vpack.c.b16 %v10046, %v10045
        %v10068 = vpack.c.b16 %v10048, %v10047
        %v10069 = vpack.c.b16 %v10050, %v10049
        %v10070 = vpack.c.b16 %v10052, %v10051
        %v10071 = vpack.c.b16 %v10054, %v10053
        %v10072 = vpack.c.b16 %v10056, %v10055
        %v10105 = vunpack.c.l.b16 %v10009
        %v10106 = vunpack.c.l.b16 %v10010
        %v10107 = vunpack.c.l.b16 %v10011
        %v10108 = vunpack.c.l.b16 %v10012
        %v10109 = vunpack.c.l.b16 %v10013
        %v10110 = vunpack.c.l.b16 %v10014
        %v10111 = vunpack.c.l.b16 %v10015
        %v10112 = vunpack.c.l.b16 %v10016
        %v10113 = vunpack.c.l.b16 %v10017
        %v10114 = vunpack.c.l.b16 %v10018
        %v10115 = vunpack.c.l.b16 %v10019
        %v10116 = vunpack.c.l.b16 %v10020
        %v10117 = vunpack.c.l.b16 %v10021
        %v10118 = vunpack.c.l.b16 %v10022
        %v10119 = vunpack.c.l.b16 %v10023
        %v10120 = vunpack.c.l.b16 %v10024
        %v10121 = vpack.c.b16 %v10106, %v10105
        %v10122 = vpack.c.b16 %v10108, %v10107
        %v10123 = vpack.c.b16 %v10110, %v10109
        %v10124 = vpack.c.b16 %v10112, %v10111
        %v10125 = vpack.c.b16 %v10114, %v10113
        %v10126 = vpack.c.b16 %v10116, %v10115
        %v10127 = vpack.c.b16 %v10118, %v10117
        %v10128 = vpack.c.b16 %v10120, %v10119
        %10137 = vmatprep.subr.bf16.mxu0 0
        %10138 = vmatpush1.bf16.msra.mxu0 %v10121
        %10139 = vmatprep.subr.bf16.mxu0 0
        %10140 = vmatpush1.bf16.msra.mxu0 %v10122
        %10141 = vmatprep.subr.bf16.mxu0 0
        %10142 = vmatpush1.bf16.msra.mxu0 %v10123
        %10143 = vmatprep.subr.bf16.mxu0 0
        %10144 = vmatpush1.bf16.msra.mxu0 %v10124
        %10145 = vmatprep.subr.bf16.mxu0 0
        %10146 = vmatpush1.bf16.msra.mxu0 %v10125
        %10147 = vmatprep.subr.bf16.mxu0 0
        %10148 = vmatpush1.bf16.msra.mxu0 %v10126
        %10149 = vmatprep.subr.bf16.mxu0 0
        %10150 = vmatpush1.bf16.msra.mxu0 %v10127
        %10151 = vmatprep.subr.bf16.mxu0 0
        %10152 = vmatpush1.bf16.msra.mxu0 %v10128
        %10153 = vmatprep.subr.bf16.mxu0 0
        %10154 = vmatpush1.bf16.msra.mxu0 0
        %10155 = vmatprep.subr.bf16.mxu0 0
        %10156 = vmatpush1.bf16.msra.mxu0 0
        %10157 = vmatprep.subr.bf16.mxu0 0
        %10158 = vmatpush1.bf16.msra.mxu0 0
        %10159 = vmatprep.subr.bf16.mxu0 0
        %10160 = vmatpush1.bf16.msra.mxu0 0
        %10161 = vmatprep.subr.bf16.mxu0 0
        %10162 = vmatpush1.bf16.msra.mxu0 0
        %10163 = vmatprep.subr.bf16.mxu0 0
        %10164 = vmatpush1.bf16.msra.mxu0 0
        %10165 = vmatprep.subr.bf16.mxu0 0
        %10166 = vmatpush1.bf16.msra.mxu0 0
        %10167 = vmatprep.subr.bf16.mxu0 0
        %10168 = vmatpush1.bf16.msra.mxu0 0
        %10169 = vmatprep.mubr.bf16.mxu0 0
        %10170 = vmatmul.mubr.bf16.gmra.mrb[0].mxu0 %v10057
        %v10171 = vpop.f32.mrb[0].mxu0
        %v10172 = vadd.f32 0.0, %v10171
        %v10173 = vpop.f32.mrb[0].mxu0
        %v10174 = vpop.f32.mrb[0].mxu0
        %v10175 = vadd.f32 0.0, %v10174
        %v10176 = vpop.f32.mrb[0].mxu0
        %10177 = vmatprep.mubr.bf16.mxu0 0
        %10178 = vmatmul.mubr.bf16.gmra.mrb[0].mxu0 %v10058
        %v10179 = vpop.f32.mrb[0].mxu0
        %v10180 = vadd.f32 0.0, %v10179
        %v10181 = vpop.f32.mrb[0].mxu0
        %v10182 = vpop.f32.mrb[0].mxu0
        %v10183 = vadd.f32 0.0, %v10182
        %v10184 = vpop.f32.mrb[0].mxu0
        %10185 = vmatprep.mubr.bf16.mxu0 0
        %10186 = vmatmul.mubr.bf16.gmra.mrb[0].mxu0 %v10059
        %v10187 = vpop.f32.mrb[0].mxu0
        %v10188 = vadd.f32 0.0, %v10187
        %v10189 = vpop.f32.mrb[0].mxu0
        %v10190 = vpop.f32.mrb[0].mxu0
        %v10191 = vadd.f32 0.0, %v10190
        %v10192 = vpop.f32.mrb[0].mxu0
        %10193 = vmatprep.mubr.bf16.mxu0 0
        %10194 = vmatmul.mubr.bf16.gmra.mrb[0].mxu0 %v10060
        %v10195 = vpop.f32.mrb[0].mxu0
        %v10196 = vadd.f32 0.0, %v10195
        %v10197 = vpop.f32.mrb[0].mxu0
        %v10198 = vpop.f32.mrb[0].mxu0
        %v10199 = vadd.f32 0.0, %v10198
        %v10200 = vpop.f32.mrb[0].mxu0
        %10201 = vmatprep.mubr.bf16.mxu0 0
        %10202 = vmatmul.mubr.bf16.gmra.mrb[0].mxu0 %v10061
        %v10203 = vpop.f32.mrb[0].mxu0
        %v10204 = vadd.f32 0.0, %v10203
        %v10205 = vpop.f32.mrb[0].mxu0
        %v10206 = vpop.f32.mrb[0].mxu0
        %v10207 = vadd.f32 0.0, %v10206
        %v10208 = vpop.f32.mrb[0].mxu0
        %10209 = vmatprep.mubr.bf16.mxu0 0
        %10210 = vmatmul.mubr.bf16.gmra.mrb[0].mxu0 %v10062
        %v10211 = vpop.f32.mrb[0].mxu0
        %v10212 = vadd.f32 0.0, %v10211
        %v10213 = vpop.f32.mrb[0].mxu0
        %v10214 = vpop.f32.mrb[0].mxu0
        %v10215 = vadd.f32 0.0, %v10214
        %v10216 = vpop.f32.mrb[0].mxu0
        %10217 = vmatprep.mubr.bf16.mxu0 0
        %10218 = vmatmul.mubr.bf16.gmra.mrb[0].mxu0 %v10063
        %v10219 = vpop.f32.mrb[0].mxu0
        %v10220 = vadd.f32 0.0, %v10219
        %v10221 = vpop.f32.mrb[0].mxu0
        %v10222 = vpop.f32.mrb[0].mxu0
        %v10223 = vadd.f32 0.0, %v10222
        %v10224 = vpop.f32.mrb[0].mxu0
        %10225 = vmatprep.mubr.bf16.mxu0 0
        %10226 = vmatmul.mubr.bf16.gmra.mrb[0].mxu0 %v10064
        %v10227 = vpop.f32.mrb[0].mxu0
        %v10228 = vadd.f32 0.0, %v10227
        %v10229 = vpop.f32.mrb[0].mxu0
        %v10230 = vpop.f32.mrb[0].mxu0
        %v10231 = vadd.f32 0.0, %v10230
        %v10232 = vpop.f32.mrb[0].mxu0
        %10233 = vmatprep.mubr.bf16.mxu0 0
        %10234 = vmatmul.mubr.bf16.gmra.mrb[0].mxu0 %v10065
        %v10235 = vpop.f32.mrb[0].mxu0
        %v10236 = vadd.f32 0.0, %v10235
        %v10237 = vpop.f32.mrb[0].mxu0
        %v10238 = vpop.f32.mrb[0].mxu0
        %v10239 = vadd.f32 0.0, %v10238
        %v10240 = vpop.f32.mrb[0].mxu0
        %10241 = vmatprep.mubr.bf16.mxu0 0
        %10242 = vmatmul.mubr.bf16.gmra.mrb[0].mxu0 %v10066
        %v10243 = vpop.f32.mrb[0].mxu0
        %v10244 = vadd.f32 0.0, %v10243
        %v10245 = vpop.f32.mrb[0].mxu0
        %v10246 = vpop.f32.mrb[0].mxu0
        %v10247 = vadd.f32 0.0, %v10246
        %v10248 = vpop.f32.mrb[0].mxu0
        %10249 = vmatprep.mubr.bf16.mxu0 0
        %10250 = vmatmul.mubr.bf16.gmra.mrb[0].mxu0 %v10067
        %v10251 = vpop.f32.mrb[0].mxu0
        %v10252 = vadd.f32 0.0, %v10251
        %v10253 = vpop.f32.mrb[0].mxu0
        %v10254 = vpop.f32.mrb[0].mxu0
        %v10255 = vadd.f32 0.0, %v10254
        %v10256 = vpop.f32.mrb[0].mxu0
        %10257 = vmatprep.mubr.bf16.mxu0 0
        %10258 = vmatmul.mubr.bf16.gmra.mrb[0].mxu0 %v10068
        %v10259 = vpop.f32.mrb[0].mxu0
        %v10260 = vadd.f32 0.0, %v10259
        %v10261 = vpop.f32.mrb[0].mxu0
        %v10262 = vpop.f32.mrb[0].mxu0
        %v10263 = vadd.f32 0.0, %v10262
        %v10264 = vpop.f32.mrb[0].mxu0
        %10265 = vmatprep.mubr.bf16.mxu0 0
        %10266 = vmatmul.mubr.bf16.gmra.mrb[0].mxu0 %v10069
        %v10267 = vpop.f32.mrb[0].mxu0
        %v10268 = vadd.f32 0.0, %v10267
        %v10269 = vpop.f32.mrb[0].mxu0
        %v10270 = vpop.f32.mrb[0].mxu0
        %v10271 = vadd.f32 0.0, %v10270
        %v10272 = vpop.f32.mrb[0].mxu0
        %10273 = vmatprep.mubr.bf16.mxu0 0
        %10274 = vmatmul.mubr.bf16.gmra.mrb[0].mxu0 %v10070
        %v10275 = vpop.f32.mrb[0].mxu0
        %v10276 = vadd.f32 0.0, %v10275
        %v10277 = vpop.f32.mrb[0].mxu0
        %v10278 = vpop.f32.mrb[0].mxu0
        %v10279 = vadd.f32 0.0, %v10278
        %v10280 = vpop.f32.mrb[0].mxu0
        %10281 = vmatprep.mubr.bf16.mxu0 0
        %10282 = vmatmul.mubr.bf16.gmra.mrb[0].mxu0 %v10071
        %v10283 = vpop.f32.mrb[0].mxu0
        %v10284 = vadd.f32 0.0, %v10283
        %v10285 = vpop.f32.mrb[0].mxu0
        %v10286 = vpop.f32.mrb[0].mxu0
        %v10287 = vadd.f32 0.0, %v10286
        %v10288 = vpop.f32.mrb[0].mxu0
        %10289 = vmatprep.mubr.bf16.mxu0 0
        %10290 = vmatmul.mubr.bf16.gmra.mrb[0].mxu0 %v10072
        %v10291 = vpop.f32.mrb[0].mxu0
        %v10292 = vadd.f32 0.0, %v10291
        %v10293 = vpop.f32.mrb[0].mxu0
        %v10294 = vpop.f32.mrb[0].mxu0
        %v10295 = vadd.f32 0.0, %v10294
        %v10296 = vpop.f32.mrb[0].mxu0
        %10297 = vdwg.mxu0
        %v10298 = vadd.f32 %v9544, %v10172
        %v10299 = vadd.f32 %v9545, %v10175
        %v10300 = vadd.f32 %v9546, %v10180
        %v10301 = vadd.f32 %v9547, %v10183
        %v10302 = vadd.f32 %v9548, %v10188
        %v10303 = vadd.f32 %v9549, %v10191
        %v10304 = vadd.f32 %v9550, %v10196
        %v10305 = vadd.f32 %v9551, %v10199
        %v10306 = vadd.f32 %v9552, %v10204
        %v10307 = vadd.f32 %v9553, %v10207
        %v10308 = vadd.f32 %v9554, %v10212
        %v10309 = vadd.f32 %v9555, %v10215
        %v10310 = vadd.f32 %v9556, %v10220
        %v10311 = vadd.f32 %v9557, %v10223
        %v10312 = vadd.f32 %v9558, %v10228
        %v10313 = vadd.f32 %v9559, %v10231
        %v10314 = vadd.f32 %v9560, %v10236
        %v10315 = vadd.f32 %v9561, %v10239
        %v10316 = vadd.f32 %v9562, %v10244
        %v10317 = vadd.f32 %v9563, %v10247
        %v10318 = vadd.f32 %v9564, %v10252
        %v10319 = vadd.f32 %v9565, %v10255
        %v10320 = vadd.f32 %v9566, %v10260
        %v10321 = vadd.f32 %v9567, %v10263
        %v10322 = vadd.f32 %v9568, %v10268
        %v10323 = vadd.f32 %v9569, %v10271
        %v10324 = vadd.f32 %v9570, %v10276
        %v10325 = vadd.f32 %v9571, %v10279
        %v10326 = vadd.f32 %v9572, %v10284
        %v10327 = vadd.f32 %v9573, %v10287
        %v10328 = vadd.f32 %v9574, %v10292
        %v10329 = vadd.f32 %v9575, %v10295
        %v10330 = vld [vmem:[%s3901] sm:$0xe]
        %v10331 = vld [vmem:[%s3901 + $0xc] sm:$0xe]
        %v10332 = vld [vmem:[%s3901 + $0x18] sm:$0xe]
        %v10333 = vld [vmem:[%s3901 + $0x24] sm:$0xe]
        %v10334 = vld [vmem:[%s3901 + $0x30] sm:$0xe]
        %v10335 = vld [vmem:[%s3901 + $0x3c] sm:$0xe]
        %v10336 = vld [vmem:[%s3901 + $0x48] sm:$0xe]
        %v10337 = vld [vmem:[%s3901 + $0x54] sm:$0xe]
        %v10338 = vld [vmem:[%s3901 + $0x60] sm:$0xe]
        %v10339 = vld [vmem:[%s3901 + $0x6c] sm:$0xe]
        %v10340 = vld [vmem:[%s3901 + $0x78] sm:$0xe]
        %v10341 = vld [vmem:[%s3901 + $0x84] sm:$0xe]
        %v10342 = vld [vmem:[%s3901 + $0x90] sm:$0xe]
        %v10343 = vld [vmem:[%s3901 + $0x9c] sm:$0xe]
        %v10344 = vld [vmem:[%s3901 + $0xa8] sm:$0xe]
        %v10345 = vld [vmem:[%s3901 + $0xb4] sm:$0xe]
        %v10394 = vrot.slane %v10330, 5
        %v10395 = vrot.slane %v10394, 4
        %v10396 = vrot.slane %v9577, 5
        %v10397 = vsel %vm1828, %v10395, %v10396
        %v10398 = vrot.slane %v10396, 4
        %v10399 = vrot.slane %v9578, 5
        %v10400 = vsel %vm1828, %v10398, %v10399
        %v10401 = vrot.slane %v10331, 5
        %v10402 = vrot.slane %v10401, 4
        %v10403 = vrot.slane %v9580, 5
        %v10404 = vsel %vm1828, %v10402, %v10403
        %v10405 = vrot.slane %v10403, 4
        %v10406 = vrot.slane %v9581, 5
        %v10407 = vsel %vm1828, %v10405, %v10406
        %v10408 = vrot.slane %v10332, 5
        %v10409 = vrot.slane %v10408, 4
        %v10410 = vrot.slane %v9583, 5
        %v10411 = vsel %vm1828, %v10409, %v10410
        %v10412 = vrot.slane %v10410, 4
        %v10413 = vrot.slane %v9584, 5
        %v10414 = vsel %vm1828, %v10412, %v10413
        %v10415 = vrot.slane %v10333, 5
        %v10416 = vrot.slane %v10415, 4
        %v10417 = vrot.slane %v9586, 5
        %v10418 = vsel %vm1828, %v10416, %v10417
        %v10419 = vrot.slane %v10417, 4
        %v10420 = vrot.slane %v9587, 5
        %v10421 = vsel %vm1828, %v10419, %v10420
        %v10422 = vrot.slane %v10334, 5
        %v10423 = vrot.slane %v10422, 4
        %v10424 = vrot.slane %v9589, 5
        %v10425 = vsel %vm1828, %v10423, %v10424
        %v10426 = vrot.slane %v10424, 4
        %v10427 = vrot.slane %v9590, 5
        %v10428 = vsel %vm1828, %v10426, %v10427
        %v10429 = vrot.slane %v10335, 5
        %v10430 = vrot.slane %v10429, 4
        %v10431 = vrot.slane %v9592, 5
        %v10432 = vsel %vm1828, %v10430, %v10431
        %v10433 = vrot.slane %v10431, 4
        %v10434 = vrot.slane %v9593, 5
        %v10435 = vsel %vm1828, %v10433, %v10434
        %v10436 = vrot.slane %v10336, 5
        %v10437 = vrot.slane %v10436, 4
        %v10438 = vrot.slane %v9595, 5
        %v10439 = vsel %vm1828, %v10437, %v10438
        %v10440 = vrot.slane %v10438, 4
        %v10441 = vrot.slane %v9596, 5
        %v10442 = vsel %vm1828, %v10440, %v10441
        %v10443 = vrot.slane %v10337, 5
        %v10444 = vrot.slane %v10443, 4
        %v10445 = vrot.slane %v9598, 5
        %v10446 = vsel %vm1828, %v10444, %v10445
        %v10447 = vrot.slane %v10445, 4
        %v10448 = vrot.slane %v9599, 5
        %v10449 = vsel %vm1828, %v10447, %v10448
        %v10450 = vrot.slane %v10338, 5
        %v10451 = vrot.slane %v10450, 4
        %v10452 = vrot.slane %v9601, 5
        %v10453 = vsel %vm1828, %v10451, %v10452
        %v10454 = vrot.slane %v10452, 4
        %v10455 = vrot.slane %v9602, 5
        %v10456 = vsel %vm1828, %v10454, %v10455
        %v10457 = vrot.slane %v10339, 5
        %v10458 = vrot.slane %v10457, 4
        %v10459 = vrot.slane %v9604, 5
        %v10460 = vsel %vm1828, %v10458, %v10459
        %v10461 = vrot.slane %v10459, 4
        %v10462 = vrot.slane %v9605, 5
        %v10463 = vsel %vm1828, %v10461, %v10462
        %v10464 = vrot.slane %v10340, 5
        %v10465 = vrot.slane %v10464, 4
        %v10466 = vrot.slane %v9607, 5
        %v10467 = vsel %vm1828, %v10465, %v10466
        %v10468 = vrot.slane %v10466, 4
        %v10469 = vrot.slane %v9608, 5
        %v10470 = vsel %vm1828, %v10468, %v10469
        %v10471 = vrot.slane %v10341, 5
        %v10472 = vrot.slane %v10471, 4
        %v10473 = vrot.slane %v9610, 5
        %v10474 = vsel %vm1828, %v10472, %v10473
        %v10475 = vrot.slane %v10473, 4
        %v10476 = vrot.slane %v9611, 5
        %v10477 = vsel %vm1828, %v10475, %v10476
        %v10478 = vrot.slane %v10342, 5
        %v10479 = vrot.slane %v10478, 4
        %v10480 = vrot.slane %v9613, 5
        %v10481 = vsel %vm1828, %v10479, %v10480
        %v10482 = vrot.slane %v10480, 4
        %v10483 = vrot.slane %v9614, 5
        %v10484 = vsel %vm1828, %v10482, %v10483
        %v10485 = vrot.slane %v10343, 5
        %v10486 = vrot.slane %v10485, 4
        %v10487 = vrot.slane %v9616, 5
        %v10488 = vsel %vm1828, %v10486, %v10487
        %v10489 = vrot.slane %v10487, 4
        %v10490 = vrot.slane %v9617, 5
        %v10491 = vsel %vm1828, %v10489, %v10490
        %v10492 = vrot.slane %v10344, 5
        %v10493 = vrot.slane %v10492, 4
        %v10494 = vrot.slane %v9619, 5
        %v10495 = vsel %vm1828, %v10493, %v10494
        %v10496 = vrot.slane %v10494, 4
        %v10497 = vrot.slane %v9620, 5
        %v10498 = vsel %vm1828, %v10496, %v10497
        %v10499 = vrot.slane %v10345, 5
        %v10500 = vrot.slane %v10499, 4
        %v10501 = vrot.slane %v9622, 5
        %v10502 = vsel %vm1828, %v10500, %v10501
        %v10503 = vrot.slane %v10501, 4
        %v10504 = vrot.slane %v9623, 5
        %v10505 = vsel %vm1828, %v10503, %v10504
        %s10506 = scalar_lea.vmem [#allocation8], 512
        %v10507 = vld [vmem:[%s10506] sm:$0xf]
        %v10508 = vld [vmem:[%s10506 + $0x4] sm:$0xf]
        %v10509 = vld [vmem:[%s10506 + $0x8] sm:$0xf]
        %v10510 = vld [vmem:[%s10506 + $0xc] sm:$0xf]
        %v10511 = vld [vmem:[%s10506 + $0x10] sm:$0xf]
        %v10512 = vld [vmem:[%s10506 + $0x14] sm:$0xf]
        %v10513 = vld [vmem:[%s10506 + $0x18] sm:$0xf]
        %v10514 = vld [vmem:[%s10506 + $0x1c] sm:$0xf]
        %v10515 = vld [vmem:[%s10506 + $0x20] sm:$0xf]
        %v10516 = vld [vmem:[%s10506 + $0x24] sm:$0xf]
        %v10517 = vld [vmem:[%s10506 + $0x28] sm:$0xf]
        %v10518 = vld [vmem:[%s10506 + $0x2c] sm:$0xf]
        %v10519 = vld [vmem:[%s10506 + $0x30] sm:$0xf]
        %v10520 = vld [vmem:[%s10506 + $0x34] sm:$0xf]
        %v10521 = vld [vmem:[%s10506 + $0x38] sm:$0xf]
        %v10522 = vld [vmem:[%s10506 + $0x3c] sm:$0xf]
        %v10523 = vunpack.c.l.b16 %v10397
        %v10524 = vunpack.c.l.b16 %v10400
        %v10525 = vunpack.c.l.b16 %v10404
        %v10526 = vunpack.c.l.b16 %v10407
        %v10527 = vunpack.c.l.b16 %v10411
        %v10528 = vunpack.c.l.b16 %v10414
        %v10529 = vunpack.c.l.b16 %v10418
        %v10530 = vunpack.c.l.b16 %v10421
        %v10531 = vunpack.c.l.b16 %v10425
        %v10532 = vunpack.c.l.b16 %v10428
        %v10533 = vunpack.c.l.b16 %v10432
        %v10534 = vunpack.c.l.b16 %v10435
        %v10535 = vunpack.c.l.b16 %v10439
        %v10536 = vunpack.c.l.b16 %v10442
        %v10537 = vunpack.c.l.b16 %v10446
        %v10538 = vunpack.c.l.b16 %v10449
        %v10539 = vunpack.c.l.b16 %v10453
        %v10540 = vunpack.c.l.b16 %v10456
        %v10541 = vunpack.c.l.b16 %v10460
        %v10542 = vunpack.c.l.b16 %v10463
        %v10543 = vunpack.c.l.b16 %v10467
        %v10544 = vunpack.c.l.b16 %v10470
        %v10545 = vunpack.c.l.b16 %v10474
        %v10546 = vunpack.c.l.b16 %v10477
        %v10547 = vunpack.c.l.b16 %v10481
        %v10548 = vunpack.c.l.b16 %v10484
        %v10549 = vunpack.c.l.b16 %v10488
        %v10550 = vunpack.c.l.b16 %v10491
        %v10551 = vunpack.c.l.b16 %v10495
        %v10552 = vunpack.c.l.b16 %v10498
        %v10553 = vunpack.c.l.b16 %v10502
        %v10554 = vunpack.c.l.b16 %v10505
        %v10555 = vpack.c.b16 %v10524, %v10523
        %v10556 = vpack.c.b16 %v10526, %v10525
        %v10557 = vpack.c.b16 %v10528, %v10527
        %v10558 = vpack.c.b16 %v10530, %v10529
        %v10559 = vpack.c.b16 %v10532, %v10531
        %v10560 = vpack.c.b16 %v10534, %v10533
        %v10561 = vpack.c.b16 %v10536, %v10535
        %v10562 = vpack.c.b16 %v10538, %v10537
        %v10563 = vpack.c.b16 %v10540, %v10539
        %v10564 = vpack.c.b16 %v10542, %v10541
        %v10565 = vpack.c.b16 %v10544, %v10543
        %v10566 = vpack.c.b16 %v10546, %v10545
        %v10567 = vpack.c.b16 %v10548, %v10547
        %v10568 = vpack.c.b16 %v10550, %v10549
        %v10569 = vpack.c.b16 %v10552, %v10551
        %v10570 = vpack.c.b16 %v10554, %v10553
        %v10603 = vunpack.c.l.b16 %v10507
        %v10604 = vunpack.c.l.b16 %v10508
        %v10605 = vunpack.c.l.b16 %v10509
        %v10606 = vunpack.c.l.b16 %v10510
        %v10607 = vunpack.c.l.b16 %v10511
        %v10608 = vunpack.c.l.b16 %v10512
        %v10609 = vunpack.c.l.b16 %v10513
        %v10610 = vunpack.c.l.b16 %v10514
        %v10611 = vunpack.c.l.b16 %v10515
        %v10612 = vunpack.c.l.b16 %v10516
        %v10613 = vunpack.c.l.b16 %v10517
        %v10614 = vunpack.c.l.b16 %v10518
        %v10615 = vunpack.c.l.b16 %v10519
        %v10616 = vunpack.c.l.b16 %v10520
        %v10617 = vunpack.c.l.b16 %v10521
        %v10618 = vunpack.c.l.b16 %v10522
        %v10619 = vpack.c.b16 %v10604, %v10603
        %v10620 = vpack.c.b16 %v10606, %v10605
        %v10621 = vpack.c.b16 %v10608, %v10607
        %v10622 = vpack.c.b16 %v10610, %v10609
        %v10623 = vpack.c.b16 %v10612, %v10611
        %v10624 = vpack.c.b16 %v10614, %v10613
        %v10625 = vpack.c.b16 %v10616, %v10615
        %v10626 = vpack.c.b16 %v10618, %v10617
        %10635 = vmatprep.subr.bf16.mxu0 0
        %10636 = vmatpush1.bf16.msra.mxu0 %v10619
        %10637 = vmatprep.subr.bf16.mxu0 0
        %10638 = vmatpush1.bf16.msra.mxu0 %v10620
        %10639 = vmatprep.subr.bf16.mxu0 0
        %10640 = vmatpush1.bf16.msra.mxu0 %v10621
        %10641 = vmatprep.subr.bf16.mxu0 0
        %10642 = vmatpush1.bf16.msra.mxu0 %v10622
        %10643 = vmatprep.subr.bf16.mxu0 0
        %10644 = vmatpush1.bf16.msra.mxu0 %v10623
        %10645 = vmatprep.subr.bf16.mxu0 0
        %10646 = vmatpush1.bf16.msra.mxu0 %v10624
        %10647 = vmatprep.subr.bf16.mxu0 0
        %10648 = vmatpush1.bf16.msra.mxu0 %v10625
        %10649 = vmatprep.subr.bf16.mxu0 0
        %10650 = vmatpush1.bf16.msra.mxu0 %v10626
        %10651 = vmatprep.subr.bf16.mxu0 0
        %10652 = vmatpush1.bf16.msra.mxu0 0
        %10653 = vmatprep.subr.bf16.mxu0 0
        %10654 = vmatpush1.bf16.msra.mxu0 0
        %10655 = vmatprep.subr.bf16.mxu0 0
        %10656 = vmatpush1.bf16.msra.mxu0 0
        %10657 = vmatprep.subr.bf16.mxu0 0
        %10658 = vmatpush1.bf16.msra.mxu0 0
        %10659 = vmatprep.subr.bf16.mxu0 0
        %10660 = vmatpush1.bf16.msra.mxu0 0
        %10661 = vmatprep.subr.bf16.mxu0 0
        %10662 = vmatpush1.bf16.msra.mxu0 0
        %10663 = vmatprep.subr.bf16.mxu0 0
        %10664 = vmatpush1.bf16.msra.mxu0 0
        %10665 = vmatprep.subr.bf16.mxu0 0
        %10666 = vmatpush1.bf16.msra.mxu0 0
        %10667 = vmatprep.mubr.bf16.mxu0 0
        %10668 = vmatmul.mubr.bf16.gmra.mrb[0].mxu0 %v10555
        %v10669 = vpop.f32.mrb[0].mxu0
        %v10670 = vadd.f32 0.0, %v10669
        %v10671 = vpop.f32.mrb[0].mxu0
        %v10672 = vpop.f32.mrb[0].mxu0
        %v10673 = vadd.f32 0.0, %v10672
        %v10674 = vpop.f32.mrb[0].mxu0
        %10675 = vmatprep.mubr.bf16.mxu0 0
        %10676 = vmatmul.mubr.bf16.gmra.mrb[0].mxu0 %v10556
        %v10677 = vpop.f32.mrb[0].mxu0
        %v10678 = vadd.f32 0.0, %v10677
        %v10679 = vpop.f32.mrb[0].mxu0
        %v10680 = vpop.f32.mrb[0].mxu0
        %v10681 = vadd.f32 0.0, %v10680
        %v10682 = vpop.f32.mrb[0].mxu0
        %10683 = vmatprep.mubr.bf16.mxu0 0
        %10684 = vmatmul.mubr.bf16.gmra.mrb[0].mxu0 %v10557
        %v10685 = vpop.f32.mrb[0].mxu0
        %v10686 = vadd.f32 0.0, %v10685
        %v10687 = vpop.f32.mrb[0].mxu0
        %v10688 = vpop.f32.mrb[0].mxu0
        %v10689 = vadd.f32 0.0, %v10688
        %v10690 = vpop.f32.mrb[0].mxu0
        %10691 = vmatprep.mubr.bf16.mxu0 0
        %10692 = vmatmul.mubr.bf16.gmra.mrb[0].mxu0 %v10558
        %v10693 = vpop.f32.mrb[0].mxu0
        %v10694 = vadd.f32 0.0, %v10693
        %v10695 = vpop.f32.mrb[0].mxu0
        %v10696 = vpop.f32.mrb[0].mxu0
        %v10697 = vadd.f32 0.0, %v10696
        %v10698 = vpop.f32.mrb[0].mxu0
        %10699 = vmatprep.mubr.bf16.mxu0 0
        %10700 = vmatmul.mubr.bf16.gmra.mrb[0].mxu0 %v10559
        %v10701 = vpop.f32.mrb[0].mxu0
        %v10702 = vadd.f32 0.0, %v10701
        %v10703 = vpop.f32.mrb[0].mxu0
        %v10704 = vpop.f32.mrb[0].mxu0
        %v10705 = vadd.f32 0.0, %v10704
        %v10706 = vpop.f32.mrb[0].mxu0
        %10707 = vmatprep.mubr.bf16.mxu0 0
        %10708 = vmatmul.mubr.bf16.gmra.mrb[0].mxu0 %v10560
        %v10709 = vpop.f32.mrb[0].mxu0
        %v10710 = vadd.f32 0.0, %v10709
        %v10711 = vpop.f32.mrb[0].mxu0
        %v10712 = vpop.f32.mrb[0].mxu0
        %v10713 = vadd.f32 0.0, %v10712
        %v10714 = vpop.f32.mrb[0].mxu0
        %10715 = vmatprep.mubr.bf16.mxu0 0
        %10716 = vmatmul.mubr.bf16.gmra.mrb[0].mxu0 %v10561
        %v10717 = vpop.f32.mrb[0].mxu0
        %v10718 = vadd.f32 0.0, %v10717
        %v10719 = vpop.f32.mrb[0].mxu0
        %v10720 = vpop.f32.mrb[0].mxu0
        %v10721 = vadd.f32 0.0, %v10720
        %v10722 = vpop.f32.mrb[0].mxu0
        %10723 = vmatprep.mubr.bf16.mxu0 0
        %10724 = vmatmul.mubr.bf16.gmra.mrb[0].mxu0 %v10562
        %v10725 = vpop.f32.mrb[0].mxu0
        %v10726 = vadd.f32 0.0, %v10725
        %v10727 = vpop.f32.mrb[0].mxu0
        %v10728 = vpop.f32.mrb[0].mxu0
        %v10729 = vadd.f32 0.0, %v10728
        %v10730 = vpop.f32.mrb[0].mxu0
        %10731 = vmatprep.mubr.bf16.mxu0 0
        %10732 = vmatmul.mubr.bf16.gmra.mrb[0].mxu0 %v10563
        %v10733 = vpop.f32.mrb[0].mxu0
        %v10734 = vadd.f32 0.0, %v10733
        %v10735 = vpop.f32.mrb[0].mxu0
        %v10736 = vpop.f32.mrb[0].mxu0
        %v10737 = vadd.f32 0.0, %v10736
        %v10738 = vpop.f32.mrb[0].mxu0
        %10739 = vmatprep.mubr.bf16.mxu0 0
        %10740 = vmatmul.mubr.bf16.gmra.mrb[0].mxu0 %v10564
        %v10741 = vpop.f32.mrb[0].mxu0
        %v10742 = vadd.f32 0.0, %v10741
        %v10743 = vpop.f32.mrb[0].mxu0
        %v10744 = vpop.f32.mrb[0].mxu0
        %v10745 = vadd.f32 0.0, %v10744
        %v10746 = vpop.f32.mrb[0].mxu0
        %10747 = vmatprep.mubr.bf16.mxu0 0
        %10748 = vmatmul.mubr.bf16.gmra.mrb[0].mxu0 %v10565
        %v10749 = vpop.f32.mrb[0].mxu0
        %v10750 = vadd.f32 0.0, %v10749
        %v10751 = vpop.f32.mrb[0].mxu0
        %v10752 = vpop.f32.mrb[0].mxu0
        %v10753 = vadd.f32 0.0, %v10752
        %v10754 = vpop.f32.mrb[0].mxu0
        %10755 = vmatprep.mubr.bf16.mxu0 0
        %10756 = vmatmul.mubr.bf16.gmra.mrb[0].mxu0 %v10566
        %v10757 = vpop.f32.mrb[0].mxu0
        %v10758 = vadd.f32 0.0, %v10757
        %v10759 = vpop.f32.mrb[0].mxu0
        %v10760 = vpop.f32.mrb[0].mxu0
        %v10761 = vadd.f32 0.0, %v10760
        %v10762 = vpop.f32.mrb[0].mxu0
        %10763 = vmatprep.mubr.bf16.mxu0 0
        %10764 = vmatmul.mubr.bf16.gmra.mrb[0].mxu0 %v10567
        %v10765 = vpop.f32.mrb[0].mxu0
        %v10766 = vadd.f32 0.0, %v10765
        %v10767 = vpop.f32.mrb[0].mxu0
        %v10768 = vpop.f32.mrb[0].mxu0
        %v10769 = vadd.f32 0.0, %v10768
        %v10770 = vpop.f32.mrb[0].mxu0
        %10771 = vmatprep.mubr.bf16.mxu0 0
        %10772 = vmatmul.mubr.bf16.gmra.mrb[0].mxu0 %v10568
        %v10773 = vpop.f32.mrb[0].mxu0
        %v10774 = vadd.f32 0.0, %v10773
        %v10775 = vpop.f32.mrb[0].mxu0
        %v10776 = vpop.f32.mrb[0].mxu0
        %v10777 = vadd.f32 0.0, %v10776
        %v10778 = vpop.f32.mrb[0].mxu0
        %10779 = vmatprep.mubr.bf16.mxu0 0
        %10780 = vmatmul.mubr.bf16.gmra.mrb[0].mxu0 %v10569
        %v10781 = vpop.f32.mrb[0].mxu0
        %v10782 = vadd.f32 0.0, %v10781
        %v10783 = vpop.f32.mrb[0].mxu0
        %v10784 = vpop.f32.mrb[0].mxu0
        %v10785 = vadd.f32 0.0, %v10784
        %v10786 = vpop.f32.mrb[0].mxu0
        %10787 = vmatprep.mubr.bf16.mxu0 0
        %10788 = vmatmul.mubr.bf16.gmra.mrb[0].mxu0 %v10570
        %v10789 = vpop.f32.mrb[0].mxu0
        %v10790 = vadd.f32 0.0, %v10789
        %v10791 = vpop.f32.mrb[0].mxu0
        %v10792 = vpop.f32.mrb[0].mxu0
        %v10793 = vadd.f32 0.0, %v10792
        %v10794 = vpop.f32.mrb[0].mxu0
        %10795 = vdwg.mxu0
        %v10796 = vadd.f32 %v10298, %v10670
        %v10797 = vadd.f32 %v10299, %v10673
        %v10798 = vadd.f32 %v10300, %v10678
        %v10799 = vadd.f32 %v10301, %v10681
        %v10800 = vadd.f32 %v10302, %v10686
        %v10801 = vadd.f32 %v10303, %v10689
        %v10802 = vadd.f32 %v10304, %v10694
        %v10803 = vadd.f32 %v10305, %v10697
        %v10804 = vadd.f32 %v10306, %v10702
        %v10805 = vadd.f32 %v10307, %v10705
        %v10806 = vadd.f32 %v10308, %v10710
        %v10807 = vadd.f32 %v10309, %v10713
        %v10808 = vadd.f32 %v10310, %v10718
        %v10809 = vadd.f32 %v10311, %v10721
        %v10810 = vadd.f32 %v10312, %v10726
        %v10811 = vadd.f32 %v10313, %v10729
        %v10812 = vadd.f32 %v10314, %v10734
        %v10813 = vadd.f32 %v10315, %v10737
        %v10814 = vadd.f32 %v10316, %v10742
        %v10815 = vadd.f32 %v10317, %v10745
        %v10816 = vadd.f32 %v10318, %v10750
        %v10817 = vadd.f32 %v10319, %v10753
        %v10818 = vadd.f32 %v10320, %v10758
        %v10819 = vadd.f32 %v10321, %v10761
        %v10820 = vadd.f32 %v10322, %v10766
        %v10821 = vadd.f32 %v10323, %v10769
        %v10822 = vadd.f32 %v10324, %v10774
        %v10823 = vadd.f32 %v10325, %v10777
        %v10824 = vadd.f32 %v10326, %v10782
        %v10825 = vadd.f32 %v10327, %v10785
        %v10826 = vadd.f32 %v10328, %v10790
        %v10827 = vadd.f32 %v10329, %v10793
        %v10828 = vld [vmem:[%s4] sm:$0x1]
        %v10830 = vlaneseq
        %v10831 = vshrl.u32 %v10830, 7
        %v10832 = vsub.s32 0, %v10831
        %v10833 = vrot.slane %v10828, %v10832
        %v10835 = vadd.f32 %v10796, %v10833
        %v10836 = vadd.f32 %v10797, %v10833
        %v10837 = vadd.f32 %v10798, %v10833
        %v10838 = vadd.f32 %v10799, %v10833
        %v10839 = vadd.f32 %v10800, %v10833
        %v10840 = vadd.f32 %v10801, %v10833
        %v10841 = vadd.f32 %v10802, %v10833
        %v10842 = vadd.f32 %v10803, %v10833
        %v10843 = vadd.f32 %v10804, %v10833
        %v10844 = vadd.f32 %v10805, %v10833
        %v10845 = vadd.f32 %v10806, %v10833
        %v10846 = vadd.f32 %v10807, %v10833
        %v10847 = vadd.f32 %v10808, %v10833
        %v10848 = vadd.f32 %v10809, %v10833
        %v10849 = vadd.f32 %v10810, %v10833
        %v10850 = vadd.f32 %v10811, %v10833
        %v10851 = vadd.f32 %v10812, %v10833
        %v10852 = vadd.f32 %v10813, %v10833
        %v10853 = vadd.f32 %v10814, %v10833
        %v10854 = vadd.f32 %v10815, %v10833
        %v10855 = vadd.f32 %v10816, %v10833
        %v10856 = vadd.f32 %v10817, %v10833
        %v10857 = vadd.f32 %v10818, %v10833
        %v10858 = vadd.f32 %v10819, %v10833
        %v10859 = vadd.f32 %v10820, %v10833
        %v10860 = vadd.f32 %v10821, %v10833
        %v10861 = vadd.f32 %v10822, %v10833
        %v10862 = vadd.f32 %v10823, %v10833
        %v10863 = vadd.f32 %v10824, %v10833
        %v10864 = vadd.f32 %v10825, %v10833
        %v10865 = vadd.f32 %v10826, %v10833
        %v10866 = vadd.f32 %v10827, %v10833
        %v10867 = vmax.f32 %v10835, 0.0
        %v10868 = vmax.f32 %v10836, 0.0
        %v10869 = vmax.f32 %v10837, 0.0
        %v10870 = vmax.f32 %v10838, 0.0
        %v10871 = vmax.f32 %v10839, 0.0
        %v10872 = vmax.f32 %v10840, 0.0
        %v10873 = vmax.f32 %v10841, 0.0
        %v10874 = vmax.f32 %v10842, 0.0
        %v10875 = vmax.f32 %v10843, 0.0
        %v10876 = vmax.f32 %v10844, 0.0
        %v10877 = vmax.f32 %v10845, 0.0
        %v10878 = vmax.f32 %v10846, 0.0
        %v10879 = vmax.f32 %v10847, 0.0
        %v10880 = vmax.f32 %v10848, 0.0
        %v10881 = vmax.f32 %v10849, 0.0
        %v10882 = vmax.f32 %v10850, 0.0
        %v10883 = vmax.f32 %v10851, 0.0
        %v10884 = vmax.f32 %v10852, 0.0
        %v10885 = vmax.f32 %v10853, 0.0
        %v10886 = vmax.f32 %v10854, 0.0
        %v10887 = vmax.f32 %v10855, 0.0
        %v10888 = vmax.f32 %v10856, 0.0
        %v10889 = vmax.f32 %v10857, 0.0
        %v10890 = vmax.f32 %v10858, 0.0
        %v10891 = vmax.f32 %v10859, 0.0
        %v10892 = vmax.f32 %v10860, 0.0
        %v10893 = vmax.f32 %v10861, 0.0
        %v10894 = vmax.f32 %v10862, 0.0
        %v10895 = vmax.f32 %v10863, 0.0
        %v10896 = vmax.f32 %v10864, 0.0
        %v10897 = vmax.f32 %v10865, 0.0
        %v10898 = vmax.f32 %v10866, 0.0
        %v10899 = vld [vmem:[%s237] sm:$0xff]
        %v10900 = vld [vmem:[%s237 + $0x8] sm:$0xff]
        %v10901 = vld [vmem:[%s237 + $0x10] sm:$0xff]
        %v10902 = vld [vmem:[%s237 + $0x18] sm:$0xff]
        %v10903 = vld [vmem:[%s237 + $0x20] sm:$0xff]
        %v10904 = vld [vmem:[%s237 + $0x28] sm:$0xff]
        %v10905 = vld [vmem:[%s237 + $0x30] sm:$0xff]
        %v10906 = vld [vmem:[%s237 + $0x38] sm:$0xff]
        %v10907 = vld [vmem:[%s237 + $0x40] sm:$0xff]
        %v10908 = vld [vmem:[%s237 + $0x48] sm:$0xff]
        %v10909 = vld [vmem:[%s237 + $0x50] sm:$0xff]
        %v10910 = vld [vmem:[%s237 + $0x58] sm:$0xff]
        %v10911 = vld [vmem:[%s237 + $0x60] sm:$0xff]
        %v10912 = vld [vmem:[%s237 + $0x68] sm:$0xff]
        %v10913 = vld [vmem:[%s237 + $0x70] sm:$0xff]
        %v10914 = vld [vmem:[%s237 + $0x78] sm:$0xff]
        %v10915 = vld [vmem:[%s237 + $0x80] sm:$0xff]
        %v10916 = vld [vmem:[%s237 + $0x88] sm:$0xff]
        %v10917 = vld [vmem:[%s237 + $0x90] sm:$0xff]
        %v10918 = vld [vmem:[%s237 + $0x98] sm:$0xff]
        %v10919 = vld [vmem:[%s237 + $0xa0] sm:$0xff]
        %v10920 = vld [vmem:[%s237 + $0xa8] sm:$0xff]
        %v10921 = vld [vmem:[%s237 + $0xb0] sm:$0xff]
        %v10922 = vld [vmem:[%s237 + $0xb8] sm:$0xff]
        %v10923 = vld [vmem:[%s237 + $0xc0] sm:$0xff]
        %v10924 = vld [vmem:[%s237 + $0xc8] sm:$0xff]
        %v10925 = vld [vmem:[%s237 + $0xd0] sm:$0xff]
        %v10926 = vld [vmem:[%s237 + $0xd8] sm:$0xff]
        %v10927 = vld [vmem:[%s237 + $0xe0] sm:$0xff]
        %v10928 = vld [vmem:[%s237 + $0xe8] sm:$0xff]
        %v10929 = vld [vmem:[%s237 + $0xf0] sm:$0xff]
        %v10930 = vld [vmem:[%s237 + $0xf8] sm:$0xff]
        %v10931 = vadd.f32 %v10867, %v10899
        %v10932 = vadd.f32 %v10868, %v10900
        %v10933 = vadd.f32 %v10869, %v10901
        %v10934 = vadd.f32 %v10870, %v10902
        %v10935 = vadd.f32 %v10871, %v10903
        %v10936 = vadd.f32 %v10872, %v10904
        %v10937 = vadd.f32 %v10873, %v10905
        %v10938 = vadd.f32 %v10874, %v10906
        %v10939 = vadd.f32 %v10875, %v10907
        %v10940 = vadd.f32 %v10876, %v10908
        %v10941 = vadd.f32 %v10877, %v10909
        %v10942 = vadd.f32 %v10878, %v10910
        %v10943 = vadd.f32 %v10879, %v10911
        %v10944 = vadd.f32 %v10880, %v10912
        %v10945 = vadd.f32 %v10881, %v10913
        %v10946 = vadd.f32 %v10882, %v10914
        %v10947 = vadd.f32 %v10883, %v10915
        %v10948 = vadd.f32 %v10884, %v10916
        %v10949 = vadd.f32 %v10885, %v10917
        %v10950 = vadd.f32 %v10886, %v10918
        %v10951 = vadd.f32 %v10887, %v10919
        %v10952 = vadd.f32 %v10888, %v10920
        %v10953 = vadd.f32 %v10889, %v10921
        %v10954 = vadd.f32 %v10890, %v10922
        %v10955 = vadd.f32 %v10891, %v10923
        %v10956 = vadd.f32 %v10892, %v10924
        %v10957 = vadd.f32 %v10893, %v10925
        %v10958 = vadd.f32 %v10894, %v10926
        %v10959 = vadd.f32 %v10895, %v10927
        %v10960 = vadd.f32 %v10896, %v10928
        %v10961 = vadd.f32 %v10897, %v10929
        %v10962 = vadd.f32 %v10898, %v10930
        %10963 = vst [vmem:[%s271] sm:$0xff] %v10931
        %10964 = vst [vmem:[%s271 + $0x8] sm:$0xff] %v10932
        %10965 = vst [vmem:[%s271 + $0x10] sm:$0xff] %v10933
        %10966 = vst [vmem:[%s271 + $0x18] sm:$0xff] %v10934
        %10967 = vst [vmem:[%s271 + $0x20] sm:$0xff] %v10935
        %10968 = vst [vmem:[%s271 + $0x28] sm:$0xff] %v10936
        %10969 = vst [vmem:[%s271 + $0x30] sm:$0xff] %v10937
        %10970 = vst [vmem:[%s271 + $0x38] sm:$0xff] %v10938
        %10971 = vst [vmem:[%s271 + $0x40] sm:$0xff] %v10939
        %10972 = vst [vmem:[%s271 + $0x48] sm:$0xff] %v10940
        %10973 = vst [vmem:[%s271 + $0x50] sm:$0xff] %v10941
        %10974 = vst [vmem:[%s271 + $0x58] sm:$0xff] %v10942
        %10975 = vst [vmem:[%s271 + $0x60] sm:$0xff] %v10943
        %10976 = vst [vmem:[%s271 + $0x68] sm:$0xff] %v10944
        %10977 = vst [vmem:[%s271 + $0x70] sm:$0xff] %v10945
        %10978 = vst [vmem:[%s271 + $0x78] sm:$0xff] %v10946
        %10979 = vst [vmem:[%s271 + $0x80] sm:$0xff] %v10947
        %10980 = vst [vmem:[%s271 + $0x88] sm:$0xff] %v10948
        %10981 = vst [vmem:[%s271 + $0x90] sm:$0xff] %v10949
        %10982 = vst [vmem:[%s271 + $0x98] sm:$0xff] %v10950
        %10983 = vst [vmem:[%s271 + $0xa0] sm:$0xff] %v10951
        %10984 = vst [vmem:[%s271 + $0xa8] sm:$0xff] %v10952
        %10985 = vst [vmem:[%s271 + $0xb0] sm:$0xff] %v10953
        %10986 = vst [vmem:[%s271 + $0xb8] sm:$0xff] %v10954
        %10987 = vst [vmem:[%s271 + $0xc0] sm:$0xff] %v10955
        %10988 = vst [vmem:[%s271 + $0xc8] sm:$0xff] %v10956
        %10989 = vst [vmem:[%s271 + $0xd0] sm:$0xff] %v10957
        %10990 = vst [vmem:[%s271 + $0xd8] sm:$0xff] %v10958
        %10991 = vst [vmem:[%s271 + $0xe0] sm:$0xff] %v10959
        %10992 = vst [vmem:[%s271 + $0xe8] sm:$0xff] %v10960
        %10993 = vst [vmem:[%s271 + $0xf0] sm:$0xff] %v10961
        %10994 = vst [vmem:[%s271 + $0xf8] sm:$0xff] %v10962
        %s10995 = sand.u32 %s141, 1
        %s10996 = scalar_lea.sflag [#allocation5], %s10995
        %s10997 = sand.u32 %s141, 1
        %s10998 = smul.addr %s10997, 256
        %s10999 = scalar_lea.vmem [#allocation9], %s10998
        // Predicated region
        $region53: #{tpu_custom_call.1} parent=39 // pred_check
          %p11000 = pneg %p151
        $region54: #{tpu_custom_call.1} parent=39 // pred_check_branch
          %11002 = sbr.rel (%p11000) target = $region56
        $region55: #{tpu_custom_call.1} parent=39 // pred_region
          %s11004 = ssub.s32 4096, 4096
          %11005 = vsyncadd %s10996, %s11004
          %s11006 = smul.addr %s23, 32
          %s11007 = smul.addr %s11006, 128
          %s11008 = scalar_lea.hbm %s5, %s11007
          %s11009 = sshll.u32 %s10999, 4
          %s11010 = int_to_ptr.vmem [resolvable:$true] %s11009
          %11015 = dma.vmem_to_hbm [thread:$0]  %s11010, 4096, %s11008, %s10996, 128, 128, 8
        $region56: #{tpu_custom_call.1} parent=39 // pred_fallthru
          _
      $region40: #{tpu_custom_call.1} parent=5 // pred_fallthru
        _
      %p11016 = scmp.le.s32.totalorder 2, %s18
      // Predicated region
      $region57: #{tpu_custom_call.1} parent=5 // pred_check
        %p11017 = pneg %p11016
      $region58: #{tpu_custom_call.1} parent=5 // pred_check_branch
        %11019 = sbr.rel (%p11017) target = $region60
      $region59: #{tpu_custom_call.1} parent=5 // pred_region
        %s11020 = ssub.s32 %s18, 2
        // Predicated region
        $region61: #{tpu_custom_call.1} parent=59 // pred_check
          %p11021 = pneg %p157
        $region62: #{tpu_custom_call.1} parent=59 // pred_check_branch
          %11023 = sbr.rel (%p11021) target = $region64
        $region63: #{tpu_custom_call.1} parent=59 // pred_region
          %s11024 = sand.u32 %s142, 1
          %s11025 = scalar_lea.sflag [#allocation5], %s11024
          %s11026 = sand.u32 %s142, 1
          %s11027 = smul.addr %s11026, 256
          %s11028 = scalar_lea.vmem [#allocation9], %s11027
          %11029 = dma.done %s11025, 4096
        $region64: #{tpu_custom_call.1} parent=59 // pred_fallthru
          _
      $region60: #{tpu_custom_call.1} parent=5 // pred_fallthru
        _
    $region6: #{tpu_custom_call.1} parent=1 // loop_footer
      %s22 = sadd.s32 1, %s18
    $region7: #{tpu_custom_call.1} parent=1 // loop_footer_branch
      %17 = sbr.rel target = $region3
    $region8: #{tpu_custom_call.1} parent=1 // loop_exit
      _
    %11030 = vsyncpa [#allocation4], 1
    %s11031 = scalar_lea.sflag [#allocation4], 1
    %11032 = vsyncpa %s11031, 1
    %11033 = vsyncpa [#allocation7], 1
    %11034 = vsyncpa [#allocation5], 1
    %s11035 = scalar_lea.sflag [#allocation5], 1
    %11036 = vsyncpa %s11035, 1

</llo_original>
